<compile_context>
chip_gen: v6e
topology: v6e:2x2x1
jax: 0.10.0
libtpu: 0.0.40
codegen_flags: <defaults>
</compile_context>

<pallas_src>
import jax
import jax.numpy as jnp
from jax import lax
from jax.experimental import pallas as pl
from jax.experimental.pallas import tpu as pltpu

N_MAP = 32          # config['n_map']
NUM_SCALES = 2      # config['num_scales']
NUM_FUSE = 4        # the 4 fuse iterations in MapNet
EPS = 1e-5          # nn.GroupNorm default eps


def _group_norm(x, gamma, beta):
    # nn.GroupNorm(num_groups=1, C) on a (N, C) tensor: per-row normalization over
    # all C channels + per-channel affine.  Two-pass variance for robustness.
    mean = jnp.mean(x, axis=-1, keepdims=True)
    d = x - mean
    var = jnp.mean(d * d, axis=-1, keepdims=True)
    return d * lax.rsqrt(var + EPS) * gamma + beta


def mapnet_kernel(
    x_ref,                        # (N, 4)          bf16   [ctrs | feats]
    w_s1_ref, b_s1_ref,           # (4, 2C) bf16, (1, 2C) f32   block-diag stem 1
    w_s2_ref, g_s_ref, bt_s_ref,  # (2C, 2C) bf16, (1, 2C) f32, (1, 2C) f32
    adj_ref,                      # ((K+1)*N, N)    bf16   [I ; A_0 ; ... ; A_{K-1}]
    w_all_ref,                    # (4, K+1, C, C)  bf16   [W_ctr, W_0, ..., W_{K-1}]
    g_nrm_ref, bt_nrm_ref,        # (4, C) f32
    w_c2_ref,                     # (4, C, C)       bf16
    g_c2_ref, bt_c2_ref,          # (4, C) f32
    out_ref,                      # (N, C)          f32
):
    f32, bf16 = jnp.float32, jnp.bfloat16
    N, C = out_ref.shape
    n_all = adj_ref.shape[0] // N          # K+1 relation blocks ('ctr' identity first)
    n_iter = w_all_ref.shape[0]

    # ---- fused input stem: feat = relu(GN(input(ctrs)) + GN(seg(feats))) ----
    h = jnp.dot(x_ref[...], w_s1_ref[...], preferred_element_type=f32) + b_s1_ref[...]
    h = jnp.maximum(h, 0.0)
    z = jnp.dot(h.astype(bf16), w_s2_ref[...], preferred_element_type=f32)   # (N, 2C)
    g_s, bt_s = g_s_ref[...], bt_s_ref[...]
    # z[:, C:] is a lane-offset-32 slice; runs once (stem), accepted per review.
    feat = jnp.maximum(
        _group_norm(z[:, :C], g_s[:, :C], bt_s[:, :C])
        + _group_norm(z[:, C:], g_s[:, C:], bt_s[:, C:]),
        0.0)
    res = feat

    g_nrm, bt_nrm = g_nrm_ref[...], bt_nrm_ref[...]
    g_c2, bt_c2 = g_c2_ref[...], bt_c2_ref[...]

    for i in range(n_iter):     # 4 fuse iterations (sequential residual dependency)
        # gather-first reassociation: one stacked adjacency matmul realizes the 'ctr'
        # term (identity block) and all K index_add_ gathers; bf16 cast happens once.
        gathered = jnp.dot(adj_ref[...], feat.astype(bf16),
                           preferred_element_type=f32).astype(bf16)   # ((K+1)N, C)
        w_i = w_all_ref[i]                                            # (K+1, C, C)
        # K+1 small weight matmuls on sublane-aligned row slices, accumulated in f32.
        temp = jnp.dot(gathered[:N], w_i[0], preferred_element_type=f32)
        for k in range(1, n_all):
            temp = temp + jnp.dot(gathered[k * N:(k + 1) * N], w_i[k],
                                  preferred_element_type=f32)
        # feat = relu(fuse['norm'][i](temp))
        feat = jnp.maximum(_group_norm(temp, g_nrm[i:i + 1], bt_nrm[i:i + 1]), 0.0)
        # feat = fuse['ctr2'][i](feat)   (Linear no bias + GroupNorm, no act)
        feat = _group_norm(
            jnp.dot(feat.astype(bf16), w_c2_ref[i], preferred_element_type=f32),
            g_c2[i:i + 1], bt_c2[i:i + 1])
        # feat += res ; feat = relu(feat) ; res = feat
        feat = jnp.maximum(feat + res, 0.0)
        res = feat

    out_ref[...] = feat


def pack_mapnet_params(params, adj):
    """One-time host-side packing (model-load time): PyTorch layout -> kernel layout."""
    f32, bf16 = jnp.float32, jnp.bfloat16
    C = params["w_in2"].shape[0]
    n_keys, N, _ = adj.shape
    t = lambda w: jnp.swapaxes(w, -1, -2).astype(f32)     # (out,in) -> (in,out)
    row = lambda x: x.reshape(1, -1).astype(f32)
    z2 = jnp.zeros((2, C), f32)
    zc = jnp.zeros((C, C), f32)

    # fused input stem (block-diagonal): (4, 2C) and (2C, 2C)
    w_s1 = jnp.block([[t(params["w_in1"]), z2], [z2, t(params["w_sg1"])]])
    b_s1 = jnp.concatenate([row(params["b_in1"]), row(params["b_sg1"])], axis=1)
    w_s2 = jnp.block([[t(params["w_in2"]), zc], [zc, t(params["w_sg2"])]])
    g_s = jnp.concatenate([row(params["g_in"]), row(params["g_sg"])], axis=1)
    bt_s = jnp.concatenate([row(params["bt_in"]), row(params["bt_sg"])], axis=1)

    # adjacency, vertically stacked with a leading identity block for the 'ctr' term
    # (gather-first reassociation).  bf16 is exact for integer counts <= 256.
    assert float(adj.max()) <= 256.0, "edge multiplicity too large for bf16 adjacency"
    adj_all = jnp.concatenate([jnp.eye(N, dtype=f32)[None], adj.astype(f32)], axis=0)
    adj_all = adj_all.reshape((n_keys + 1) * N, N)

    # fuse weights, stacked along a leading relation axis: [W_ctr, W_0, ..., W_{K-1}]
    w_all = jnp.concatenate([t(params["w_ctr"])[:, None], t(params["w_edge"])],
                            axis=1)                        # (4, K+1, C, C)

    return dict(
        w_s1=w_s1.astype(bf16), b_s1=b_s1,
        w_s2=w_s2.astype(bf16), g_s=g_s, bt_s=bt_s,
        adj=adj_all.astype(bf16),
        w_all=w_all.astype(bf16),
        g_nrm=params["g_nrm"].astype(f32), bt_nrm=params["bt_nrm"].astype(f32),
        w_c2=t(params["w_ctr2"]).astype(bf16),
        g_c2=params["g_c2"].astype(f32), bt_c2=params["bt_c2"].astype(f32),
    )


def mapnet_forward(ctrs, feats, packed):
    """Forward pass; `packed` comes from pack_mapnet_params (done once at load)."""
    # TODO(synk): amortize per-call weight/adjacency DMA + launch overhead at this
    #             size by batching graphs per call or keeping weights resident
    #             across calls (cross-call prefetch pattern).
    N = ctrs.shape[0]
    C = packed["w_c2"].shape[-1]
    n_all = packed["adj"].shape[0] // N          # K+1
    x = jnp.concatenate([ctrs.astype(jnp.float32), feats.astype(jnp.float32)],
                        axis=1).astype(jnp.bfloat16)

    inputs = [x, packed["w_s1"], packed["b_s1"], packed["w_s2"], packed["g_s"],
              packed["bt_s"], packed["adj"], packed["w_all"], packed["g_nrm"],
              packed["bt_nrm"], packed["w_c2"], packed["g_c2"], packed["bt_c2"]]

    flops = (2 * (N * 4 * 2 * C + N * 2 * C * 2 * C)
             + NUM_FUSE * 2 * (n_all * N * N * C        # stacked gather matmul
                               + n_all * N * C * C      # per-relation weight matmuls
                               + N * C * C))            # ctr2
    bytes_accessed = sum(int(a.nbytes) for a in inputs) + N * C * 4
    cost = pl.CostEstimate(flops=flops, transcendentals=(2 + 2 * NUM_FUSE) * N,
                           bytes_accessed=bytes_accessed)

    out = pl.pallas_call(
        mapnet_kernel,
        out_shape=jax.ShapeDtypeStruct((N, C), jnp.float32),
        in_specs=[pl.BlockSpec(memory_space=pltpu.MemorySpace.VMEM)] * len(inputs),
        out_specs=pl.BlockSpec(memory_space=pltpu.MemorySpace.VMEM),
        cost_estimate=cost,
    )(*inputs)

    # mirror the module's return: (feat, graph['idcs'], graph['ctrs']) pass-throughs
    idcs = [jnp.arange(N, dtype=jnp.int32)]
    return out, idcs, [ctrs]


# ---------------- pure-JAX references (PyTorch semantics, real index_add_) --------
def _gn_ref(x, g, b):
    m = x.mean(-1, keepdims=True)
    d = x - m
    v = (d * d).mean(-1, keepdims=True)
    return d * lax.rsqrt(v + EPS) * g + b


def mapnet_reference_f32(ctrs, feats, params, edges):
    """Full float32 reference with PyTorch MapNet semantics."""
    h = jax.nn.relu(ctrs @ params["w_in1"].T + params["b_in1"])
    h = _gn_ref(h @ params["w_in2"].T, params["g_in"], params["bt_in"])
    s = jax.nn.relu(feats @ params["w_sg1"].T + params["b_sg1"])
    s = _gn_ref(s @ params["w_sg2"].T, params["g_sg"], params["bt_sg"])
    feat = jax.nn.relu(h + s)
    res = feat
    for i in range(NUM_FUSE):
        temp = feat @ params["w_ctr"][i].T
        for k, (u, v) in enumerate(edges):
            temp = temp.at[u].add((feat @ params["w_edge"][i, k].T)[v])
        feat = jax.nn.relu(_gn_ref(temp, params["g_nrm"][i], params["bt_nrm"][i]))
        feat = _gn_ref(feat @ params["w_ctr2"][i].T, params["g_c2"][i], params["bt_c2"][i])
        feat = jax.nn.relu(feat + res)
        res = feat
    return feat


def mapnet_reference_bf16(ctrs, feats, params, edges):
    """Same computation under the kernel's mixed-precision policy and gather-first
    order: bf16 matmul operands, f32 accumulation / GroupNorm / residual chain,
    gather-then-project (sum_k (A_k feat) W_k) with real index_add_ semantics."""
    bf16, f32 = jnp.bfloat16, jnp.float32
    bdot = lambda a, b: jnp.dot(a.astype(bf16), b.astype(bf16),
                                preferred_element_type=f32)

    h = jax.nn.relu(bdot(ctrs, params["w_in1"].T) + params["b_in1"])
    h = _gn_ref(bdot(h, params["w_in2"].T), params["g_in"], params["bt_in"])
    s = jax.nn.relu(bdot(feats, params["w_sg1"].T) + params["b_sg1"])
    s = _gn_ref(bdot(s, params["w_sg2"].T), params["g_sg"], params["bt_sg"])
    feat = jax.nn.relu(h + s)
    res = feat
    for i in range(NUM_FUSE):
        temp = bdot(feat, params["w_ctr"][i].T)
        for k, (u, v) in enumerate(edges):
            g = jnp.zeros_like(feat).at[u].add(feat.astype(bf16).astype(f32)[v])
            temp = temp + bdot(g, params["w_edge"][i, k].T)
        feat = jax.nn.relu(_gn_ref(temp, params["g_nrm"][i], params["bt_nrm"][i]))
        feat = _gn_ref(bdot(feat, params["w_ctr2"][i].T),
                       params["g_c2"][i], params["bt_c2"][i])
        feat = jax.nn.relu(feat + res)
        res = feat
    return feat


if __name__ == "__main__":
    key = jax.random.PRNGKey(0)
    N = 64                       # total map nodes (cat of graph['ctrs'])
    E = 48                       # edges per relation key
    n_keys = 2 * NUM_SCALES + 2  # pre0,suc0,pre1,suc1,left,right
    C = N_MAP

    ks = iter(jax.random.split(key, 40))
    nrm = lambda shape, s=0.2: s * jax.random.normal(next(ks), shape, jnp.float32)

    # graph inputs
    ctrs = nrm((N, 2), 1.0)      # lane centerline points
    feats = nrm((N, 2), 1.0)     # lane segment vectors

    # deterministic synthetic parameters (PyTorch layout: Linear weight = (out, in))
    params = dict(
        w_in1=nrm((C, 2)), b_in1=nrm((C,)), w_in2=nrm((C, C)),
        g_in=jnp.ones((C,), jnp.float32), bt_in=jnp.zeros((C,), jnp.float32),
        w_sg1=nrm((C, 2)), b_sg1=nrm((C,)), w_sg2=nrm((C, C)),
        g_sg=jnp.ones((C,), jnp.float32), bt_sg=jnp.zeros((C,), jnp.float32),
        w_ctr=nrm((NUM_FUSE, C, C)),
        w_edge=nrm((NUM_FUSE, n_keys, C, C)),
        g_nrm=jnp.ones((NUM_FUSE, C), jnp.float32),
        bt_nrm=jnp.zeros((NUM_FUSE, C), jnp.float32),
        w_ctr2=nrm((NUM_FUSE, C, C)),
        g_c2=jnp.ones((NUM_FUSE, C), jnp.float32),
        bt_c2=jnp.zeros((NUM_FUSE, C), jnp.float32),
    )

    # random edge lists (u = destination of index_add, v = gathered source)
    edges = []
    for _ in range(n_keys):
        u = jax.random.randint(next(ks), (E,), 0, N)
        v = jax.random.randint(next(ks), (E,), 0, N)
        edges.append((u, v))

    # dense adjacency (counts duplicates, matching index_add_ accumulation)
    adj = jnp.zeros((n_keys, N, N), jnp.float32)
    for k, (u, v) in enumerate(edges):
        adj = adj.at[k, u, v].add(1.0)

    # one-time host-side packing (done once at model-load time in real use)
    packed = pack_mapnet_params(params, adj)

    feat_out, idcs, ctrs_out = mapnet_forward(ctrs, feats, packed)
    feat_out = jax.block_until_ready(feat_out)

    # strict check vs a reference using the exact same mixed-precision policy
    ref_policy = mapnet_reference_bf16(ctrs, feats, params, edges)
    err_policy = float(jnp.max(jnp.abs(feat_out - ref_policy)))
    assert err_policy < 1e-2, f"kernel mismatch vs matched-precision ref: {err_policy}"

    # loose check vs the pure-f32 PyTorch-semantics reference (bounds bf16 drift)
    ref_f32 = mapnet_reference_f32(ctrs, feats, params, edges)
    err_f32 = float(jnp.max(jnp.abs(feat_out - ref_f32)))
    assert err_f32 < 0.35, f"bf16-matmul drift vs f32 reference too large: {err_f32}"

    print("KERNEL_OK")
</pallas_src>

<mosaic_0001>
module attributes {stable_mosaic.version = 11 : i64} {
  func.func @mapnet_kernel(%arg0: memref<64x4xbf16, #tpu.memory_space<vmem>>, %arg1: memref<4x64xbf16, #tpu.memory_space<vmem>>, %arg2: memref<1x64xf32, #tpu.memory_space<vmem>>, %arg3: memref<64x64xbf16, #tpu.memory_space<vmem>>, %arg4: memref<1x64xf32, #tpu.memory_space<vmem>>, %arg5: memref<1x64xf32, #tpu.memory_space<vmem>>, %arg6: memref<448x64xbf16, #tpu.memory_space<vmem>>, %arg7: memref<4x7x32x32xbf16, #tpu.memory_space<vmem>>, %arg8: memref<4x32xf32, #tpu.memory_space<vmem>>, %arg9: memref<4x32xf32, #tpu.memory_space<vmem>>, %arg10: memref<4x32x32xbf16, #tpu.memory_space<vmem>>, %arg11: memref<4x32xf32, #tpu.memory_space<vmem>>, %arg12: memref<4x32xf32, #tpu.memory_space<vmem>>, %arg13: memref<64x32xf32, #tpu.memory_space<vmem>>) attributes {dimension_semantics = [], scalar_prefetch = 0 : i64, scratch_operands = 0 : i64, tpu.core_type = #tpu.core_type<tc>} {
    %c0 = arith.constant 0 : index
    %c0_0 = arith.constant 0 : index
    %0 = vector.load %arg0[%c0, %c0_0] : memref<64x4xbf16, #tpu.memory_space<vmem>>, vector<64x4xbf16>
    %c0_1 = arith.constant 0 : index
    %c0_2 = arith.constant 0 : index
    %1 = vector.load %arg1[%c0_1, %c0_2] : memref<4x64xbf16, #tpu.memory_space<vmem>>, vector<4x64xbf16>
    %cst = arith.constant dense<0.000000e+00> : vector<64x64xf32>
    %2 = tpu.matmul %0, %1, %cst {dimension_numbers = #tpu.dot_dimension_numbers<[1], [0], [0], [1], [0, 0, 1, 1], [], []>} : vector<64x4xbf16>, vector<4x64xbf16>, vector<64x64xf32> -> vector<64x64xf32>
    %c0_3 = arith.constant 0 : index
    %c0_4 = arith.constant 0 : index
    %3 = vector.load %arg2[%c0_3, %c0_4] : memref<1x64xf32, #tpu.memory_space<vmem>>, vector<1x64xf32>
    %4 = vector.broadcast %3 : vector<1x64xf32> to vector<64x64xf32>
    %5 = arith.addf %2, %4 : vector<64x64xf32>
    %cst_5 = arith.constant 0.000000e+00 : f32
    %6 = vector.broadcast %cst_5 : f32 to vector<64x64xf32>
    %7 = arith.maximumf %5, %6 : vector<64x64xf32>
    %8 = arith.truncf %7 : vector<64x64xf32> to vector<64x64xbf16>
    %c0_6 = arith.constant 0 : index
    %c0_7 = arith.constant 0 : index
    %9 = vector.load %arg3[%c0_6, %c0_7] : memref<64x64xbf16, #tpu.memory_space<vmem>>, vector<64x64xbf16>
    %cst_8 = arith.constant dense<0.000000e+00> : vector<64x64xf32>
    %10 = tpu.matmul %8, %9, %cst_8 {dimension_numbers = #tpu.dot_dimension_numbers<[1], [0], [0], [1], [0, 0, 1, 1], [], []>} : vector<64x64xbf16>, vector<64x64xbf16>, vector<64x64xf32> -> vector<64x64xf32>
    %c0_9 = arith.constant 0 : index
    %c0_10 = arith.constant 0 : index
    %11 = vector.load %arg4[%c0_9, %c0_10] : memref<1x64xf32, #tpu.memory_space<vmem>>, vector<1x64xf32>
    %c0_11 = arith.constant 0 : index
    %c0_12 = arith.constant 0 : index
    %12 = vector.load %arg5[%c0_11, %c0_12] : memref<1x64xf32, #tpu.memory_space<vmem>>, vector<1x64xf32>
    %13 = vector.extract_strided_slice %10 {offsets = [0, 0], sizes = [64, 32], strides = [1, 1]} : vector<64x64xf32> to vector<64x32xf32>
    %14 = vector.extract_strided_slice %11 {offsets = [0, 0], sizes = [1, 32], strides = [1, 1]} : vector<1x64xf32> to vector<1x32xf32>
    %15 = vector.extract_strided_slice %12 {offsets = [0, 0], sizes = [1, 32], strides = [1, 1]} : vector<1x64xf32> to vector<1x32xf32>
    %cst_13 = arith.constant dense<0.000000e+00> : vector<64xf32>
    %16 = vector.multi_reduction <add>, %13, %cst_13 [1] : vector<64x32xf32> to vector<64xf32>
    %17 = vector.shape_cast %16 : vector<64xf32> to vector<64x1xf32>
    %cst_14 = arith.constant 3.200000e+01 : f32
    %18 = vector.broadcast %cst_14 : f32 to vector<64x1xf32>
    %19 = arith.divf %17, %18 : vector<64x1xf32>
    %20 = vector.broadcast %19 : vector<64x1xf32> to vector<64x32xf32>
    %21 = arith.subf %13, %20 : vector<64x32xf32>
    %22 = arith.mulf %21, %21 : vector<64x32xf32>
    %cst_15 = arith.constant dense<0.000000e+00> : vector<64xf32>
    %23 = vector.multi_reduction <add>, %22, %cst_15 [1] : vector<64x32xf32> to vector<64xf32>
    %24 = vector.shape_cast %23 : vector<64xf32> to vector<64x1xf32>
    %cst_16 = arith.constant 3.200000e+01 : f32
    %25 = vector.broadcast %cst_16 : f32 to vector<64x1xf32>
    %26 = arith.divf %24, %25 : vector<64x1xf32>
    %cst_17 = arith.constant 9.99999974E-6 : f32
    %27 = vector.broadcast %cst_17 : f32 to vector<64x1xf32>
    %28 = arith.addf %26, %27 : vector<64x1xf32>
    %29 = math.rsqrt %28 : vector<64x1xf32>
    %30 = vector.broadcast %29 : vector<64x1xf32> to vector<64x32xf32>
    %31 = arith.mulf %21, %30 : vector<64x32xf32>
    %32 = vector.broadcast %14 : vector<1x32xf32> to vector<64x32xf32>
    %33 = arith.mulf %31, %32 : vector<64x32xf32>
    %34 = vector.broadcast %15 : vector<1x32xf32> to vector<64x32xf32>
    %35 = arith.addf %33, %34 : vector<64x32xf32>
    %36 = vector.extract_strided_slice %10 {offsets = [0, 32], sizes = [64, 32], strides = [1, 1]} : vector<64x64xf32> to vector<64x32xf32>
    %37 = vector.extract_strided_slice %11 {offsets = [0, 32], sizes = [1, 32], strides = [1, 1]} : vector<1x64xf32> to vector<1x32xf32>
    %38 = vector.extract_strided_slice %12 {offsets = [0, 32], sizes = [1, 32], strides = [1, 1]} : vector<1x64xf32> to vector<1x32xf32>
    %cst_18 = arith.constant dense<0.000000e+00> : vector<64xf32>
    %39 = vector.multi_reduction <add>, %36, %cst_18 [1] : vector<64x32xf32> to vector<64xf32>
    %40 = vector.shape_cast %39 : vector<64xf32> to vector<64x1xf32>
    %cst_19 = arith.constant 3.200000e+01 : f32
    %41 = vector.broadcast %cst_19 : f32 to vector<64x1xf32>
    %42 = arith.divf %40, %41 : vector<64x1xf32>
    %43 = vector.broadcast %42 : vector<64x1xf32> to vector<64x32xf32>
    %44 = arith.subf %36, %43 : vector<64x32xf32>
    %45 = arith.mulf %44, %44 : vector<64x32xf32>
    %cst_20 = arith.constant dense<0.000000e+00> : vector<64xf32>
    %46 = vector.multi_reduction <add>, %45, %cst_20 [1] : vector<64x32xf32> to vector<64xf32>
    %47 = vector.shape_cast %46 : vector<64xf32> to vector<64x1xf32>
    %cst_21 = arith.constant 3.200000e+01 : f32
    %48 = vector.broadcast %cst_21 : f32 to vector<64x1xf32>
    %49 = arith.divf %47, %48 : vector<64x1xf32>
    %cst_22 = arith.constant 9.99999974E-6 : f32
    %50 = vector.broadcast %cst_22 : f32 to vector<64x1xf32>
    %51 = arith.addf %49, %50 : vector<64x1xf32>
    %52 = math.rsqrt %51 : vector<64x1xf32>
    %53 = vector.broadcast %52 : vector<64x1xf32> to vector<64x32xf32>
    %54 = arith.mulf %44, %53 : vector<64x32xf32>
    %55 = vector.broadcast %37 : vector<1x32xf32> to vector<64x32xf32>
    %56 = arith.mulf %54, %55 : vector<64x32xf32>
    %57 = vector.broadcast %38 : vector<1x32xf32> to vector<64x32xf32>
    %58 = arith.addf %56, %57 : vector<64x32xf32>
    %59 = arith.addf %35, %58 : vector<64x32xf32>
    %cst_23 = arith.constant 0.000000e+00 : f32
    %60 = vector.broadcast %cst_23 : f32 to vector<64x32xf32>
    %61 = arith.maximumf %59, %60 : vector<64x32xf32>
    %c0_24 = arith.constant 0 : index
    %c0_25 = arith.constant 0 : index
    %62 = vector.load %arg8[%c0_24, %c0_25] : memref<4x32xf32, #tpu.memory_space<vmem>>, vector<4x32xf32>
    %c0_26 = arith.constant 0 : index
    %c0_27 = arith.constant 0 : index
    %63 = vector.load %arg9[%c0_26, %c0_27] : memref<4x32xf32, #tpu.memory_space<vmem>>, vector<4x32xf32>
    %c0_28 = arith.constant 0 : index
    %c0_29 = arith.constant 0 : index
    %64 = vector.load %arg11[%c0_28, %c0_29] : memref<4x32xf32, #tpu.memory_space<vmem>>, vector<4x32xf32>
    %c0_30 = arith.constant 0 : index
    %c0_31 = arith.constant 0 : index
    %65 = vector.load %arg12[%c0_30, %c0_31] : memref<4x32xf32, #tpu.memory_space<vmem>>, vector<4x32xf32>
    %c0_32 = arith.constant 0 : index
    %c0_33 = arith.constant 0 : index
    %66 = vector.load %arg6[%c0_32, %c0_33] : memref<448x64xbf16, #tpu.memory_space<vmem>>, vector<448x64xbf16>
    %67 = arith.truncf %61 : vector<64x32xf32> to vector<64x32xbf16>
    %cst_34 = arith.constant dense<0.000000e+00> : vector<448x32xf32>
    %68 = tpu.matmul %66, %67, %cst_34 {dimension_numbers = #tpu.dot_dimension_numbers<[1], [0], [0], [1], [0, 0, 1, 1], [], []>} : vector<448x64xbf16>, vector<64x32xbf16>, vector<448x32xf32> -> vector<448x32xf32>
    %69 = arith.truncf %68 : vector<448x32xf32> to vector<448x32xbf16>
    %c0_35 = arith.constant 0 : index
    %c0_36 = arith.constant 0 : index
    %c0_37 = arith.constant 0 : index
    %c0_38 = arith.constant 0 : index
    %70 = vector.load %arg7[%c0_35, %c0_36, %c0_37, %c0_38] : memref<4x7x32x32xbf16, #tpu.memory_space<vmem>>, vector<1x7x32x32xbf16>
    %71 = vector.shape_cast %70 : vector<1x7x32x32xbf16> to vector<7x32x32xbf16>
    %72 = vector.extract_strided_slice %69 {offsets = [0, 0], sizes = [64, 32], strides = [1, 1]} : vector<448x32xbf16> to vector<64x32xbf16>
    %73 = vector.extract_strided_slice %71 {offsets = [0, 0, 0], sizes = [1, 32, 32], strides = [1, 1, 1]} : vector<7x32x32xbf16> to vector<1x32x32xbf16>
    %74 = vector.shape_cast %73 : vector<1x32x32xbf16> to vector<32x32xbf16>
    %cst_39 = arith.constant dense<0.000000e+00> : vector<64x32xf32>
    %75 = tpu.matmul %72, %74, %cst_39 {dimension_numbers = #tpu.dot_dimension_numbers<[1], [0], [0], [1], [0, 0, 1, 1], [], []>} : vector<64x32xbf16>, vector<32x32xbf16>, vector<64x32xf32> -> vector<64x32xf32>
    %76 = vector.extract_strided_slice %69 {offsets = [64, 0], sizes = [64, 32], strides = [1, 1]} : vector<448x32xbf16> to vector<64x32xbf16>
    %77 = vector.extract_strided_slice %71 {offsets = [1, 0, 0], sizes = [1, 32, 32], strides = [1, 1, 1]} : vector<7x32x32xbf16> to vector<1x32x32xbf16>
    %78 = vector.shape_cast %77 : vector<1x32x32xbf16> to vector<32x32xbf16>
    %cst_40 = arith.constant dense<0.000000e+00> : vector<64x32xf32>
    %79 = tpu.matmul %76, %78, %cst_40 {dimension_numbers = #tpu.dot_dimension_numbers<[1], [0], [0], [1], [0, 0, 1, 1], [], []>} : vector<64x32xbf16>, vector<32x32xbf16>, vector<64x32xf32> -> vector<64x32xf32>
    %80 = arith.addf %75, %79 : vector<64x32xf32>
    %81 = vector.extract_strided_slice %69 {offsets = [128, 0], sizes = [64, 32], strides = [1, 1]} : vector<448x32xbf16> to vector<64x32xbf16>
    %82 = vector.extract_strided_slice %71 {offsets = [2, 0, 0], sizes = [1, 32, 32], strides = [1, 1, 1]} : vector<7x32x32xbf16> to vector<1x32x32xbf16>
    %83 = vector.shape_cast %82 : vector<1x32x32xbf16> to vector<32x32xbf16>
    %cst_41 = arith.constant dense<0.000000e+00> : vector<64x32xf32>
    %84 = tpu.matmul %81, %83, %cst_41 {dimension_numbers = #tpu.dot_dimension_numbers<[1], [0], [0], [1], [0, 0, 1, 1], [], []>} : vector<64x32xbf16>, vector<32x32xbf16>, vector<64x32xf32> -> vector<64x32xf32>
    %85 = arith.addf %80, %84 : vector<64x32xf32>
    %86 = vector.extract_strided_slice %69 {offsets = [192, 0], sizes = [64, 32], strides = [1, 1]} : vector<448x32xbf16> to vector<64x32xbf16>
    %87 = vector.extract_strided_slice %71 {offsets = [3, 0, 0], sizes = [1, 32, 32], strides = [1, 1, 1]} : vector<7x32x32xbf16> to vector<1x32x32xbf16>
    %88 = vector.shape_cast %87 : vector<1x32x32xbf16> to vector<32x32xbf16>
    %cst_42 = arith.constant dense<0.000000e+00> : vector<64x32xf32>
    %89 = tpu.matmul %86, %88, %cst_42 {dimension_numbers = #tpu.dot_dimension_numbers<[1], [0], [0], [1], [0, 0, 1, 1], [], []>} : vector<64x32xbf16>, vector<32x32xbf16>, vector<64x32xf32> -> vector<64x32xf32>
    %90 = arith.addf %85, %89 : vector<64x32xf32>
    %91 = vector.extract_strided_slice %69 {offsets = [256, 0], sizes = [64, 32], strides = [1, 1]} : vector<448x32xbf16> to vector<64x32xbf16>
    %92 = vector.extract_strided_slice %71 {offsets = [4, 0, 0], sizes = [1, 32, 32], strides = [1, 1, 1]} : vector<7x32x32xbf16> to vector<1x32x32xbf16>
    %93 = vector.shape_cast %92 : vector<1x32x32xbf16> to vector<32x32xbf16>
    %cst_43 = arith.constant dense<0.000000e+00> : vector<64x32xf32>
    %94 = tpu.matmul %91, %93, %cst_43 {dimension_numbers = #tpu.dot_dimension_numbers<[1], [0], [0], [1], [0, 0, 1, 1], [], []>} : vector<64x32xbf16>, vector<32x32xbf16>, vector<64x32xf32> -> vector<64x32xf32>
    %95 = arith.addf %90, %94 : vector<64x32xf32>
    %96 = vector.extract_strided_slice %69 {offsets = [320, 0], sizes = [64, 32], strides = [1, 1]} : vector<448x32xbf16> to vector<64x32xbf16>
    %97 = vector.extract_strided_slice %71 {offsets = [5, 0, 0], sizes = [1, 32, 32], strides = [1, 1, 1]} : vector<7x32x32xbf16> to vector<1x32x32xbf16>
    %98 = vector.shape_cast %97 : vector<1x32x32xbf16> to vector<32x32xbf16>
    %cst_44 = arith.constant dense<0.000000e+00> : vector<64x32xf32>
    %99 = tpu.matmul %96, %98, %cst_44 {dimension_numbers = #tpu.dot_dimension_numbers<[1], [0], [0], [1], [0, 0, 1, 1], [], []>} : vector<64x32xbf16>, vector<32x32xbf16>, vector<64x32xf32> -> vector<64x32xf32>
    %100 = arith.addf %95, %99 : vector<64x32xf32>
    %101 = vector.extract_strided_slice %69 {offsets = [384, 0], sizes = [64, 32], strides = [1, 1]} : vector<448x32xbf16> to vector<64x32xbf16>
    %102 = vector.extract_strided_slice %71 {offsets = [6, 0, 0], sizes = [1, 32, 32], strides = [1, 1, 1]} : vector<7x32x32xbf16> to vector<1x32x32xbf16>
    %103 = vector.shape_cast %102 : vector<1x32x32xbf16> to vector<32x32xbf16>
    %cst_45 = arith.constant dense<0.000000e+00> : vector<64x32xf32>
    %104 = tpu.matmul %101, %103, %cst_45 {dimension_numbers = #tpu.dot_dimension_numbers<[1], [0], [0], [1], [0, 0, 1, 1], [], []>} : vector<64x32xbf16>, vector<32x32xbf16>, vector<64x32xf32> -> vector<64x32xf32>
    %105 = arith.addf %100, %104 : vector<64x32xf32>
    %106 = vector.extract_strided_slice %62 {offsets = [0, 0], sizes = [1, 32], strides = [1, 1]} : vector<4x32xf32> to vector<1x32xf32>
    %107 = vector.extract_strided_slice %63 {offsets = [0, 0], sizes = [1, 32], strides = [1, 1]} : vector<4x32xf32> to vector<1x32xf32>
    %cst_46 = arith.constant dense<0.000000e+00> : vector<64xf32>
    %108 = vector.multi_reduction <add>, %105, %cst_46 [1] : vector<64x32xf32> to vector<64xf32>
    %109 = vector.shape_cast %108 : vector<64xf32> to vector<64x1xf32>
    %cst_47 = arith.constant 3.200000e+01 : f32
    %110 = vector.broadcast %cst_47 : f32 to vector<64x1xf32>
    %111 = arith.divf %109, %110 : vector<64x1xf32>
    %112 = vector.broadcast %111 : vector<64x1xf32> to vector<64x32xf32>
    %113 = arith.subf %105, %112 : vector<64x32xf32>
    %114 = arith.mulf %113, %113 : vector<64x32xf32>
    %cst_48 = arith.constant dense<0.000000e+00> : vector<64xf32>
    %115 = vector.multi_reduction <add>, %114, %cst_48 [1] : vector<64x32xf32> to vector<64xf32>
    %116 = vector.shape_cast %115 : vector<64xf32> to vector<64x1xf32>
    %cst_49 = arith.constant 3.200000e+01 : f32
    %117 = vector.broadcast %cst_49 : f32 to vector<64x1xf32>
    %118 = arith.divf %116, %117 : vector<64x1xf32>
    %cst_50 = arith.constant 9.99999974E-6 : f32
    %119 = vector.broadcast %cst_50 : f32 to vector<64x1xf32>
    %120 = arith.addf %118, %119 : vector<64x1xf32>
    %121 = math.rsqrt %120 : vector<64x1xf32>
    %122 = vector.broadcast %121 : vector<64x1xf32> to vector<64x32xf32>
    %123 = arith.mulf %113, %122 : vector<64x32xf32>
    %124 = vector.broadcast %106 : vector<1x32xf32> to vector<64x32xf32>
    %125 = arith.mulf %123, %124 : vector<64x32xf32>
    %126 = vector.broadcast %107 : vector<1x32xf32> to vector<64x32xf32>
    %127 = arith.addf %125, %126 : vector<64x32xf32>
    %cst_51 = arith.constant 0.000000e+00 : f32
    %128 = vector.broadcast %cst_51 : f32 to vector<64x32xf32>
    %129 = arith.maximumf %127, %128 : vector<64x32xf32>
    %130 = arith.truncf %129 : vector<64x32xf32> to vector<64x32xbf16>
    %c0_52 = arith.constant 0 : index
    %c0_53 = arith.constant 0 : index
    %c0_54 = arith.constant 0 : index
    %131 = vector.load %arg10[%c0_52, %c0_53, %c0_54] : memref<4x32x32xbf16, #tpu.memory_space<vmem>>, vector<1x32x32xbf16>
    %132 = vector.shape_cast %131 : vector<1x32x32xbf16> to vector<32x32xbf16>
    %cst_55 = arith.constant dense<0.000000e+00> : vector<64x32xf32>
    %133 = tpu.matmul %130, %132, %cst_55 {dimension_numbers = #tpu.dot_dimension_numbers<[1], [0], [0], [1], [0, 0, 1, 1], [], []>} : vector<64x32xbf16>, vector<32x32xbf16>, vector<64x32xf32> -> vector<64x32xf32>
    %134 = vector.extract_strided_slice %64 {offsets = [0, 0], sizes = [1, 32], strides = [1, 1]} : vector<4x32xf32> to vector<1x32xf32>
    %135 = vector.extract_strided_slice %65 {offsets = [0, 0], sizes = [1, 32], strides = [1, 1]} : vector<4x32xf32> to vector<1x32xf32>
    %cst_56 = arith.constant dense<0.000000e+00> : vector<64xf32>
    %136 = vector.multi_reduction <add>, %133, %cst_56 [1] : vector<64x32xf32> to vector<64xf32>
    %137 = vector.shape_cast %136 : vector<64xf32> to vector<64x1xf32>
    %cst_57 = arith.constant 3.200000e+01 : f32
    %138 = vector.broadcast %cst_57 : f32 to vector<64x1xf32>
    %139 = arith.divf %137, %138 : vector<64x1xf32>
    %140 = vector.broadcast %139 : vector<64x1xf32> to vector<64x32xf32>
    %141 = arith.subf %133, %140 : vector<64x32xf32>
    %142 = arith.mulf %141, %141 : vector<64x32xf32>
    %cst_58 = arith.constant dense<0.000000e+00> : vector<64xf32>
    %143 = vector.multi_reduction <add>, %142, %cst_58 [1] : vector<64x32xf32> to vector<64xf32>
    %144 = vector.shape_cast %143 : vector<64xf32> to vector<64x1xf32>
    %cst_59 = arith.constant 3.200000e+01 : f32
    %145 = vector.broadcast %cst_59 : f32 to vector<64x1xf32>
    %146 = arith.divf %144, %145 : vector<64x1xf32>
    %cst_60 = arith.constant 9.99999974E-6 : f32
    %147 = vector.broadcast %cst_60 : f32 to vector<64x1xf32>
    %148 = arith.addf %146, %147 : vector<64x1xf32>
    %149 = math.rsqrt %148 : vector<64x1xf32>
    %150 = vector.broadcast %149 : vector<64x1xf32> to vector<64x32xf32>
    %151 = arith.mulf %141, %150 : vector<64x32xf32>
    %152 = vector.broadcast %134 : vector<1x32xf32> to vector<64x32xf32>
    %153 = arith.mulf %151, %152 : vector<64x32xf32>
    %154 = vector.broadcast %135 : vector<1x32xf32> to vector<64x32xf32>
    %155 = arith.addf %153, %154 : vector<64x32xf32>
    %156 = arith.addf %155, %61 : vector<64x32xf32>
    %cst_61 = arith.constant 0.000000e+00 : f32
    %157 = vector.broadcast %cst_61 : f32 to vector<64x32xf32>
    %158 = arith.maximumf %156, %157 : vector<64x32xf32>
    %c0_62 = arith.constant 0 : index
    %c0_63 = arith.constant 0 : index
    %159 = vector.load %arg6[%c0_62, %c0_63] : memref<448x64xbf16, #tpu.memory_space<vmem>>, vector<448x64xbf16>
    %160 = arith.truncf %158 : vector<64x32xf32> to vector<64x32xbf16>
    %cst_64 = arith.constant dense<0.000000e+00> : vector<448x32xf32>
    %161 = tpu.matmul %159, %160, %cst_64 {dimension_numbers = #tpu.dot_dimension_numbers<[1], [0], [0], [1], [0, 0, 1, 1], [], []>} : vector<448x64xbf16>, vector<64x32xbf16>, vector<448x32xf32> -> vector<448x32xf32>
    %162 = arith.truncf %161 : vector<448x32xf32> to vector<448x32xbf16>
    %c1 = arith.constant 1 : index
    %c0_65 = arith.constant 0 : index
    %c0_66 = arith.constant 0 : index
    %c0_67 = arith.constant 0 : index
    %163 = vector.load %arg7[%c1, %c0_65, %c0_66, %c0_67] : memref<4x7x32x32xbf16, #tpu.memory_space<vmem>>, vector<1x7x32x32xbf16>
    %164 = vector.shape_cast %163 : vector<1x7x32x32xbf16> to vector<7x32x32xbf16>
    %165 = vector.extract_strided_slice %162 {offsets = [0, 0], sizes = [64, 32], strides = [1, 1]} : vector<448x32xbf16> to vector<64x32xbf16>
    %166 = vector.extract_strided_slice %164 {offsets = [0, 0, 0], sizes = [1, 32, 32], strides = [1, 1, 1]} : vector<7x32x32xbf16> to vector<1x32x32xbf16>
    %167 = vector.shape_cast %166 : vector<1x32x32xbf16> to vector<32x32xbf16>
    %cst_68 = arith.constant dense<0.000000e+00> : vector<64x32xf32>
    %168 = tpu.matmul %165, %167, %cst_68 {dimension_numbers = #tpu.dot_dimension_numbers<[1], [0], [0], [1], [0, 0, 1, 1], [], []>} : vector<64x32xbf16>, vector<32x32xbf16>, vector<64x32xf32> -> vector<64x32xf32>
    %169 = vector.extract_strided_slice %162 {offsets = [64, 0], sizes = [64, 32], strides = [1, 1]} : vector<448x32xbf16> to vector<64x32xbf16>
    %170 = vector.extract_strided_slice %164 {offsets = [1, 0, 0], sizes = [1, 32, 32], strides = [1, 1, 1]} : vector<7x32x32xbf16> to vector<1x32x32xbf16>
    %171 = vector.shape_cast %170 : vector<1x32x32xbf16> to vector<32x32xbf16>
    %cst_69 = arith.constant dense<0.000000e+00> : vector<64x32xf32>
    %172 = tpu.matmul %169, %171, %cst_69 {dimension_numbers = #tpu.dot_dimension_numbers<[1], [0], [0], [1], [0, 0, 1, 1], [], []>} : vector<64x32xbf16>, vector<32x32xbf16>, vector<64x32xf32> -> vector<64x32xf32>
    %173 = arith.addf %168, %172 : vector<64x32xf32>
    %174 = vector.extract_strided_slice %162 {offsets = [128, 0], sizes = [64, 32], strides = [1, 1]} : vector<448x32xbf16> to vector<64x32xbf16>
    %175 = vector.extract_strided_slice %164 {offsets = [2, 0, 0], sizes = [1, 32, 32], strides = [1, 1, 1]} : vector<7x32x32xbf16> to vector<1x32x32xbf16>
    %176 = vector.shape_cast %175 : vector<1x32x32xbf16> to vector<32x32xbf16>
    %cst_70 = arith.constant dense<0.000000e+00> : vector<64x32xf32>
    %177 = tpu.matmul %174, %176, %cst_70 {dimension_numbers = #tpu.dot_dimension_numbers<[1], [0], [0], [1], [0, 0, 1, 1], [], []>} : vector<64x32xbf16>, vector<32x32xbf16>, vector<64x32xf32> -> vector<64x32xf32>
    %178 = arith.addf %173, %177 : vector<64x32xf32>
    %179 = vector.extract_strided_slice %162 {offsets = [192, 0], sizes = [64, 32], strides = [1, 1]} : vector<448x32xbf16> to vector<64x32xbf16>
    %180 = vector.extract_strided_slice %164 {offsets = [3, 0, 0], sizes = [1, 32, 32], strides = [1, 1, 1]} : vector<7x32x32xbf16> to vector<1x32x32xbf16>
    %181 = vector.shape_cast %180 : vector<1x32x32xbf16> to vector<32x32xbf16>
    %cst_71 = arith.constant dense<0.000000e+00> : vector<64x32xf32>
    %182 = tpu.matmul %179, %181, %cst_71 {dimension_numbers = #tpu.dot_dimension_numbers<[1], [0], [0], [1], [0, 0, 1, 1], [], []>} : vector<64x32xbf16>, vector<32x32xbf16>, vector<64x32xf32> -> vector<64x32xf32>
    %183 = arith.addf %178, %182 : vector<64x32xf32>
    %184 = vector.extract_strided_slice %162 {offsets = [256, 0], sizes = [64, 32], strides = [1, 1]} : vector<448x32xbf16> to vector<64x32xbf16>
    %185 = vector.extract_strided_slice %164 {offsets = [4, 0, 0], sizes = [1, 32, 32], strides = [1, 1, 1]} : vector<7x32x32xbf16> to vector<1x32x32xbf16>
    %186 = vector.shape_cast %185 : vector<1x32x32xbf16> to vector<32x32xbf16>
    %cst_72 = arith.constant dense<0.000000e+00> : vector<64x32xf32>
    %187 = tpu.matmul %184, %186, %cst_72 {dimension_numbers = #tpu.dot_dimension_numbers<[1], [0], [0], [1], [0, 0, 1, 1], [], []>} : vector<64x32xbf16>, vector<32x32xbf16>, vector<64x32xf32> -> vector<64x32xf32>
    %188 = arith.addf %183, %187 : vector<64x32xf32>
    %189 = vector.extract_strided_slice %162 {offsets = [320, 0], sizes = [64, 32], strides = [1, 1]} : vector<448x32xbf16> to vector<64x32xbf16>
    %190 = vector.extract_strided_slice %164 {offsets = [5, 0, 0], sizes = [1, 32, 32], strides = [1, 1, 1]} : vector<7x32x32xbf16> to vector<1x32x32xbf16>
    %191 = vector.shape_cast %190 : vector<1x32x32xbf16> to vector<32x32xbf16>
    %cst_73 = arith.constant dense<0.000000e+00> : vector<64x32xf32>
    %192 = tpu.matmul %189, %191, %cst_73 {dimension_numbers = #tpu.dot_dimension_numbers<[1], [0], [0], [1], [0, 0, 1, 1], [], []>} : vector<64x32xbf16>, vector<32x32xbf16>, vector<64x32xf32> -> vector<64x32xf32>
    %193 = arith.addf %188, %192 : vector<64x32xf32>
    %194 = vector.extract_strided_slice %162 {offsets = [384, 0], sizes = [64, 32], strides = [1, 1]} : vector<448x32xbf16> to vector<64x32xbf16>
    %195 = vector.extract_strided_slice %164 {offsets = [6, 0, 0], sizes = [1, 32, 32], strides = [1, 1, 1]} : vector<7x32x32xbf16> to vector<1x32x32xbf16>
    %196 = vector.shape_cast %195 : vector<1x32x32xbf16> to vector<32x32xbf16>
    %cst_74 = arith.constant dense<0.000000e+00> : vector<64x32xf32>
    %197 = tpu.matmul %194, %196, %cst_74 {dimension_numbers = #tpu.dot_dimension_numbers<[1], [0], [0], [1], [0, 0, 1, 1], [], []>} : vector<64x32xbf16>, vector<32x32xbf16>, vector<64x32xf32> -> vector<64x32xf32>
    %198 = arith.addf %193, %197 : vector<64x32xf32>
    %199 = vector.extract_strided_slice %62 {offsets = [1, 0], sizes = [1, 32], strides = [1, 1]} : vector<4x32xf32> to vector<1x32xf32>
    %200 = vector.extract_strided_slice %63 {offsets = [1, 0], sizes = [1, 32], strides = [1, 1]} : vector<4x32xf32> to vector<1x32xf32>
    %cst_75 = arith.constant dense<0.000000e+00> : vector<64xf32>
    %201 = vector.multi_reduction <add>, %198, %cst_75 [1] : vector<64x32xf32> to vector<64xf32>
    %202 = vector.shape_cast %201 : vector<64xf32> to vector<64x1xf32>
    %cst_76 = arith.constant 3.200000e+01 : f32
    %203 = vector.broadcast %cst_76 : f32 to vector<64x1xf32>
    %204 = arith.divf %202, %203 : vector<64x1xf32>
    %205 = vector.broadcast %204 : vector<64x1xf32> to vector<64x32xf32>
    %206 = arith.subf %198, %205 : vector<64x32xf32>
    %207 = arith.mulf %206, %206 : vector<64x32xf32>
    %cst_77 = arith.constant dense<0.000000e+00> : vector<64xf32>
    %208 = vector.multi_reduction <add>, %207, %cst_77 [1] : vector<64x32xf32> to vector<64xf32>
    %209 = vector.shape_cast %208 : vector<64xf32> to vector<64x1xf32>
    %cst_78 = arith.constant 3.200000e+01 : f32
    %210 = vector.broadcast %cst_78 : f32 to vector<64x1xf32>
    %211 = arith.divf %209, %210 : vector<64x1xf32>
    %cst_79 = arith.constant 9.99999974E-6 : f32
    %212 = vector.broadcast %cst_79 : f32 to vector<64x1xf32>
    %213 = arith.addf %211, %212 : vector<64x1xf32>
    %214 = math.rsqrt %213 : vector<64x1xf32>
    %215 = vector.broadcast %214 : vector<64x1xf32> to vector<64x32xf32>
    %216 = arith.mulf %206, %215 : vector<64x32xf32>
    %217 = vector.broadcast %199 : vector<1x32xf32> to vector<64x32xf32>
    %218 = arith.mulf %216, %217 : vector<64x32xf32>
    %219 = vector.broadcast %200 : vector<1x32xf32> to vector<64x32xf32>
    %220 = arith.addf %218, %219 : vector<64x32xf32>
    %cst_80 = arith.constant 0.000000e+00 : f32
    %221 = vector.broadcast %cst_80 : f32 to vector<64x32xf32>
    %222 = arith.maximumf %220, %221 : vector<64x32xf32>
    %223 = arith.truncf %222 : vector<64x32xf32> to vector<64x32xbf16>
    %c1_81 = arith.constant 1 : index
    %c0_82 = arith.constant 0 : index
    %c0_83 = arith.constant 0 : index
    %224 = vector.load %arg10[%c1_81, %c0_82, %c0_83] : memref<4x32x32xbf16, #tpu.memory_space<vmem>>, vector<1x32x32xbf16>
    %225 = vector.shape_cast %224 : vector<1x32x32xbf16> to vector<32x32xbf16>
    %cst_84 = arith.constant dense<0.000000e+00> : vector<64x32xf32>
    %226 = tpu.matmul %223, %225, %cst_84 {dimension_numbers = #tpu.dot_dimension_numbers<[1], [0], [0], [1], [0, 0, 1, 1], [], []>} : vector<64x32xbf16>, vector<32x32xbf16>, vector<64x32xf32> -> vector<64x32xf32>
    %227 = vector.extract_strided_slice %64 {offsets = [1, 0], sizes = [1, 32], strides = [1, 1]} : vector<4x32xf32> to vector<1x32xf32>
    %228 = vector.extract_strided_slice %65 {offsets = [1, 0], sizes = [1, 32], strides = [1, 1]} : vector<4x32xf32> to vector<1x32xf32>
    %cst_85 = arith.constant dense<0.000000e+00> : vector<64xf32>
    %229 = vector.multi_reduction <add>, %226, %cst_85 [1] : vector<64x32xf32> to vector<64xf32>
    %230 = vector.shape_cast %229 : vector<64xf32> to vector<64x1xf32>
    %cst_86 = arith.constant 3.200000e+01 : f32
    %231 = vector.broadcast %cst_86 : f32 to vector<64x1xf32>
    %232 = arith.divf %230, %231 : vector<64x1xf32>
    %233 = vector.broadcast %232 : vector<64x1xf32> to vector<64x32xf32>
    %234 = arith.subf %226, %233 : vector<64x32xf32>
    %235 = arith.mulf %234, %234 : vector<64x32xf32>
    %cst_87 = arith.constant dense<0.000000e+00> : vector<64xf32>
    %236 = vector.multi_reduction <add>, %235, %cst_87 [1] : vector<64x32xf32> to vector<64xf32>
    %237 = vector.shape_cast %236 : vector<64xf32> to vector<64x1xf32>
    %cst_88 = arith.constant 3.200000e+01 : f32
    %238 = vector.broadcast %cst_88 : f32 to vector<64x1xf32>
    %239 = arith.divf %237, %238 : vector<64x1xf32>
    %cst_89 = arith.constant 9.99999974E-6 : f32
    %240 = vector.broadcast %cst_89 : f32 to vector<64x1xf32>
    %241 = arith.addf %239, %240 : vector<64x1xf32>
    %242 = math.rsqrt %241 : vector<64x1xf32>
    %243 = vector.broadcast %242 : vector<64x1xf32> to vector<64x32xf32>
    %244 = arith.mulf %234, %243 : vector<64x32xf32>
    %245 = vector.broadcast %227 : vector<1x32xf32> to vector<64x32xf32>
    %246 = arith.mulf %244, %245 : vector<64x32xf32>
    %247 = vector.broadcast %228 : vector<1x32xf32> to vector<64x32xf32>
    %248 = arith.addf %246, %247 : vector<64x32xf32>
    %249 = arith.addf %248, %158 : vector<64x32xf32>
    %cst_90 = arith.constant 0.000000e+00 : f32
    %250 = vector.broadcast %cst_90 : f32 to vector<64x32xf32>
    %251 = arith.maximumf %249, %250 : vector<64x32xf32>
    %c0_91 = arith.constant 0 : index
    %c0_92 = arith.constant 0 : index
    %252 = vector.load %arg6[%c0_91, %c0_92] : memref<448x64xbf16, #tpu.memory_space<vmem>>, vector<448x64xbf16>
    %253 = arith.truncf %251 : vector<64x32xf32> to vector<64x32xbf16>
    %cst_93 = arith.constant dense<0.000000e+00> : vector<448x32xf32>
    %254 = tpu.matmul %252, %253, %cst_93 {dimension_numbers = #tpu.dot_dimension_numbers<[1], [0], [0], [1], [0, 0, 1, 1], [], []>} : vector<448x64xbf16>, vector<64x32xbf16>, vector<448x32xf32> -> vector<448x32xf32>
    %255 = arith.truncf %254 : vector<448x32xf32> to vector<448x32xbf16>
    %c2 = arith.constant 2 : index
    %c0_94 = arith.constant 0 : index
    %c0_95 = arith.constant 0 : index
    %c0_96 = arith.constant 0 : index
    %256 = vector.load %arg7[%c2, %c0_94, %c0_95, %c0_96] : memref<4x7x32x32xbf16, #tpu.memory_space<vmem>>, vector<1x7x32x32xbf16>
    %257 = vector.shape_cast %256 : vector<1x7x32x32xbf16> to vector<7x32x32xbf16>
    %258 = vector.extract_strided_slice %255 {offsets = [0, 0], sizes = [64, 32], strides = [1, 1]} : vector<448x32xbf16> to vector<64x32xbf16>
    %259 = vector.extract_strided_slice %257 {offsets = [0, 0, 0], sizes = [1, 32, 32], strides = [1, 1, 1]} : vector<7x32x32xbf16> to vector<1x32x32xbf16>
    %260 = vector.shape_cast %259 : vector<1x32x32xbf16> to vector<32x32xbf16>
    %cst_97 = arith.constant dense<0.000000e+00> : vector<64x32xf32>
    %261 = tpu.matmul %258, %260, %cst_97 {dimension_numbers = #tpu.dot_dimension_numbers<[1], [0], [0], [1], [0, 0, 1, 1], [], []>} : vector<64x32xbf16>, vector<32x32xbf16>, vector<64x32xf32> -> vector<64x32xf32>
    %262 = vector.extract_strided_slice %255 {offsets = [64, 0], sizes = [64, 32], strides = [1, 1]} : vector<448x32xbf16> to vector<64x32xbf16>
    %263 = vector.extract_strided_slice %257 {offsets = [1, 0, 0], sizes = [1, 32, 32], strides = [1, 1, 1]} : vector<7x32x32xbf16> to vector<1x32x32xbf16>
    %264 = vector.shape_cast %263 : vector<1x32x32xbf16> to vector<32x32xbf16>
    %cst_98 = arith.constant dense<0.000000e+00> : vector<64x32xf32>
    %265 = tpu.matmul %262, %264, %cst_98 {dimension_numbers = #tpu.dot_dimension_numbers<[1], [0], [0], [1], [0, 0, 1, 1], [], []>} : vector<64x32xbf16>, vector<32x32xbf16>, vector<64x32xf32> -> vector<64x32xf32>
    %266 = arith.addf %261, %265 : vector<64x32xf32>
    %267 = vector.extract_strided_slice %255 {offsets = [128, 0], sizes = [64, 32], strides = [1, 1]} : vector<448x32xbf16> to vector<64x32xbf16>
    %268 = vector.extract_strided_slice %257 {offsets = [2, 0, 0], sizes = [1, 32, 32], strides = [1, 1, 1]} : vector<7x32x32xbf16> to vector<1x32x32xbf16>
    %269 = vector.shape_cast %268 : vector<1x32x32xbf16> to vector<32x32xbf16>
    %cst_99 = arith.constant dense<0.000000e+00> : vector<64x32xf32>
    %270 = tpu.matmul %267, %269, %cst_99 {dimension_numbers = #tpu.dot_dimension_numbers<[1], [0], [0], [1], [0, 0, 1, 1], [], []>} : vector<64x32xbf16>, vector<32x32xbf16>, vector<64x32xf32> -> vector<64x32xf32>
    %271 = arith.addf %266, %270 : vector<64x32xf32>
    %272 = vector.extract_strided_slice %255 {offsets = [192, 0], sizes = [64, 32], strides = [1, 1]} : vector<448x32xbf16> to vector<64x32xbf16>
    %273 = vector.extract_strided_slice %257 {offsets = [3, 0, 0], sizes = [1, 32, 32], strides = [1, 1, 1]} : vector<7x32x32xbf16> to vector<1x32x32xbf16>
    %274 = vector.shape_cast %273 : vector<1x32x32xbf16> to vector<32x32xbf16>
    %cst_100 = arith.constant dense<0.000000e+00> : vector<64x32xf32>
    %275 = tpu.matmul %272, %274, %cst_100 {dimension_numbers = #tpu.dot_dimension_numbers<[1], [0], [0], [1], [0, 0, 1, 1], [], []>} : vector<64x32xbf16>, vector<32x32xbf16>, vector<64x32xf32> -> vector<64x32xf32>
    %276 = arith.addf %271, %275 : vector<64x32xf32>
    %277 = vector.extract_strided_slice %255 {offsets = [256, 0], sizes = [64, 32], strides = [1, 1]} : vector<448x32xbf16> to vector<64x32xbf16>
    %278 = vector.extract_strided_slice %257 {offsets = [4, 0, 0], sizes = [1, 32, 32], strides = [1, 1, 1]} : vector<7x32x32xbf16> to vector<1x32x32xbf16>
    %279 = vector.shape_cast %278 : vector<1x32x32xbf16> to vector<32x32xbf16>
    %cst_101 = arith.constant dense<0.000000e+00> : vector<64x32xf32>
    %280 = tpu.matmul %277, %279, %cst_101 {dimension_numbers = #tpu.dot_dimension_numbers<[1], [0], [0], [1], [0, 0, 1, 1], [], []>} : vector<64x32xbf16>, vector<32x32xbf16>, vector<64x32xf32> -> vector<64x32xf32>
    %281 = arith.addf %276, %280 : vector<64x32xf32>
    %282 = vector.extract_strided_slice %255 {offsets = [320, 0], sizes = [64, 32], strides = [1, 1]} : vector<448x32xbf16> to vector<64x32xbf16>
    %283 = vector.extract_strided_slice %257 {offsets = [5, 0, 0], sizes = [1, 32, 32], strides = [1, 1, 1]} : vector<7x32x32xbf16> to vector<1x32x32xbf16>
    %284 = vector.shape_cast %283 : vector<1x32x32xbf16> to vector<32x32xbf16>
    %cst_102 = arith.constant dense<0.000000e+00> : vector<64x32xf32>
    %285 = tpu.matmul %282, %284, %cst_102 {dimension_numbers = #tpu.dot_dimension_numbers<[1], [0], [0], [1], [0, 0, 1, 1], [], []>} : vector<64x32xbf16>, vector<32x32xbf16>, vector<64x32xf32> -> vector<64x32xf32>
    %286 = arith.addf %281, %285 : vector<64x32xf32>
    %287 = vector.extract_strided_slice %255 {offsets = [384, 0], sizes = [64, 32], strides = [1, 1]} : vector<448x32xbf16> to vector<64x32xbf16>
    %288 = vector.extract_strided_slice %257 {offsets = [6, 0, 0], sizes = [1, 32, 32], strides = [1, 1, 1]} : vector<7x32x32xbf16> to vector<1x32x32xbf16>
    %289 = vector.shape_cast %288 : vector<1x32x32xbf16> to vector<32x32xbf16>
    %cst_103 = arith.constant dense<0.000000e+00> : vector<64x32xf32>
    %290 = tpu.matmul %287, %289, %cst_103 {dimension_numbers = #tpu.dot_dimension_numbers<[1], [0], [0], [1], [0, 0, 1, 1], [], []>} : vector<64x32xbf16>, vector<32x32xbf16>, vector<64x32xf32> -> vector<64x32xf32>
    %291 = arith.addf %286, %290 : vector<64x32xf32>
    %292 = vector.extract_strided_slice %62 {offsets = [2, 0], sizes = [1, 32], strides = [1, 1]} : vector<4x32xf32> to vector<1x32xf32>
    %293 = vector.extract_strided_slice %63 {offsets = [2, 0], sizes = [1, 32], strides = [1, 1]} : vector<4x32xf32> to vector<1x32xf32>
    %cst_104 = arith.constant dense<0.000000e+00> : vector<64xf32>
    %294 = vector.multi_reduction <add>, %291, %cst_104 [1] : vector<64x32xf32> to vector<64xf32>
    %295 = vector.shape_cast %294 : vector<64xf32> to vector<64x1xf32>
    %cst_105 = arith.constant 3.200000e+01 : f32
    %296 = vector.broadcast %cst_105 : f32 to vector<64x1xf32>
    %297 = arith.divf %295, %296 : vector<64x1xf32>
    %298 = vector.broadcast %297 : vector<64x1xf32> to vector<64x32xf32>
    %299 = arith.subf %291, %298 : vector<64x32xf32>
    %300 = arith.mulf %299, %299 : vector<64x32xf32>
    %cst_106 = arith.constant dense<0.000000e+00> : vector<64xf32>
    %301 = vector.multi_reduction <add>, %300, %cst_106 [1] : vector<64x32xf32> to vector<64xf32>
    %302 = vector.shape_cast %301 : vector<64xf32> to vector<64x1xf32>
    %cst_107 = arith.constant 3.200000e+01 : f32
    %303 = vector.broadcast %cst_107 : f32 to vector<64x1xf32>
    %304 = arith.divf %302, %303 : vector<64x1xf32>
    %cst_108 = arith.constant 9.99999974E-6 : f32
    %305 = vector.broadcast %cst_108 : f32 to vector<64x1xf32>
    %306 = arith.addf %304, %305 : vector<64x1xf32>
    %307 = math.rsqrt %306 : vector<64x1xf32>
    %308 = vector.broadcast %307 : vector<64x1xf32> to vector<64x32xf32>
    %309 = arith.mulf %299, %308 : vector<64x32xf32>
    %310 = vector.broadcast %292 : vector<1x32xf32> to vector<64x32xf32>
    %311 = arith.mulf %309, %310 : vector<64x32xf32>
    %312 = vector.broadcast %293 : vector<1x32xf32> to vector<64x32xf32>
    %313 = arith.addf %311, %312 : vector<64x32xf32>
    %cst_109 = arith.constant 0.000000e+00 : f32
    %314 = vector.broadcast %cst_109 : f32 to vector<64x32xf32>
    %315 = arith.maximumf %313, %314 : vector<64x32xf32>
    %316 = arith.truncf %315 : vector<64x32xf32> to vector<64x32xbf16>
    %c2_110 = arith.constant 2 : index
    %c0_111 = arith.constant 0 : index
    %c0_112 = arith.constant 0 : index
    %317 = vector.load %arg10[%c2_110, %c0_111, %c0_112] : memref<4x32x32xbf16, #tpu.memory_space<vmem>>, vector<1x32x32xbf16>
    %318 = vector.shape_cast %317 : vector<1x32x32xbf16> to vector<32x32xbf16>
    %cst_113 = arith.constant dense<0.000000e+00> : vector<64x32xf32>
    %319 = tpu.matmul %316, %318, %cst_113 {dimension_numbers = #tpu.dot_dimension_numbers<[1], [0], [0], [1], [0, 0, 1, 1], [], []>} : vector<64x32xbf16>, vector<32x32xbf16>, vector<64x32xf32> -> vector<64x32xf32>
    %320 = vector.extract_strided_slice %64 {offsets = [2, 0], sizes = [1, 32], strides = [1, 1]} : vector<4x32xf32> to vector<1x32xf32>
    %321 = vector.extract_strided_slice %65 {offsets = [2, 0], sizes = [1, 32], strides = [1, 1]} : vector<4x32xf32> to vector<1x32xf32>
    %cst_114 = arith.constant dense<0.000000e+00> : vector<64xf32>
    %322 = vector.multi_reduction <add>, %319, %cst_114 [1] : vector<64x32xf32> to vector<64xf32>
    %323 = vector.shape_cast %322 : vector<64xf32> to vector<64x1xf32>
    %cst_115 = arith.constant 3.200000e+01 : f32
    %324 = vector.broadcast %cst_115 : f32 to vector<64x1xf32>
    %325 = arith.divf %323, %324 : vector<64x1xf32>
    %326 = vector.broadcast %325 : vector<64x1xf32> to vector<64x32xf32>
    %327 = arith.subf %319, %326 : vector<64x32xf32>
    %328 = arith.mulf %327, %327 : vector<64x32xf32>
    %cst_116 = arith.constant dense<0.000000e+00> : vector<64xf32>
    %329 = vector.multi_reduction <add>, %328, %cst_116 [1] : vector<64x32xf32> to vector<64xf32>
    %330 = vector.shape_cast %329 : vector<64xf32> to vector<64x1xf32>
    %cst_117 = arith.constant 3.200000e+01 : f32
    %331 = vector.broadcast %cst_117 : f32 to vector<64x1xf32>
    %332 = arith.divf %330, %331 : vector<64x1xf32>
    %cst_118 = arith.constant 9.99999974E-6 : f32
    %333 = vector.broadcast %cst_118 : f32 to vector<64x1xf32>
    %334 = arith.addf %332, %333 : vector<64x1xf32>
    %335 = math.rsqrt %334 : vector<64x1xf32>
    %336 = vector.broadcast %335 : vector<64x1xf32> to vector<64x32xf32>
    %337 = arith.mulf %327, %336 : vector<64x32xf32>
    %338 = vector.broadcast %320 : vector<1x32xf32> to vector<64x32xf32>
    %339 = arith.mulf %337, %338 : vector<64x32xf32>
    %340 = vector.broadcast %321 : vector<1x32xf32> to vector<64x32xf32>
    %341 = arith.addf %339, %340 : vector<64x32xf32>
    %342 = arith.addf %341, %251 : vector<64x32xf32>
    %cst_119 = arith.constant 0.000000e+00 : f32
    %343 = vector.broadcast %cst_119 : f32 to vector<64x32xf32>
    %344 = arith.maximumf %342, %343 : vector<64x32xf32>
    %c0_120 = arith.constant 0 : index
    %c0_121 = arith.constant 0 : index
    %345 = vector.load %arg6[%c0_120, %c0_121] : memref<448x64xbf16, #tpu.memory_space<vmem>>, vector<448x64xbf16>
    %346 = arith.truncf %344 : vector<64x32xf32> to vector<64x32xbf16>
    %cst_122 = arith.constant dense<0.000000e+00> : vector<448x32xf32>
    %347 = tpu.matmul %345, %346, %cst_122 {dimension_numbers = #tpu.dot_dimension_numbers<[1], [0], [0], [1], [0, 0, 1, 1], [], []>} : vector<448x64xbf16>, vector<64x32xbf16>, vector<448x32xf32> -> vector<448x32xf32>
    %348 = arith.truncf %347 : vector<448x32xf32> to vector<448x32xbf16>
    %c3 = arith.constant 3 : index
    %c0_123 = arith.constant 0 : index
    %c0_124 = arith.constant 0 : index
    %c0_125 = arith.constant 0 : index
    %349 = vector.load %arg7[%c3, %c0_123, %c0_124, %c0_125] : memref<4x7x32x32xbf16, #tpu.memory_space<vmem>>, vector<1x7x32x32xbf16>
    %350 = vector.shape_cast %349 : vector<1x7x32x32xbf16> to vector<7x32x32xbf16>
    %351 = vector.extract_strided_slice %348 {offsets = [0, 0], sizes = [64, 32], strides = [1, 1]} : vector<448x32xbf16> to vector<64x32xbf16>
    %352 = vector.extract_strided_slice %350 {offsets = [0, 0, 0], sizes = [1, 32, 32], strides = [1, 1, 1]} : vector<7x32x32xbf16> to vector<1x32x32xbf16>
    %353 = vector.shape_cast %352 : vector<1x32x32xbf16> to vector<32x32xbf16>
    %cst_126 = arith.constant dense<0.000000e+00> : vector<64x32xf32>
    %354 = tpu.matmul %351, %353, %cst_126 {dimension_numbers = #tpu.dot_dimension_numbers<[1], [0], [0], [1], [0, 0, 1, 1], [], []>} : vector<64x32xbf16>, vector<32x32xbf16>, vector<64x32xf32> -> vector<64x32xf32>
    %355 = vector.extract_strided_slice %348 {offsets = [64, 0], sizes = [64, 32], strides = [1, 1]} : vector<448x32xbf16> to vector<64x32xbf16>
    %356 = vector.extract_strided_slice %350 {offsets = [1, 0, 0], sizes = [1, 32, 32], strides = [1, 1, 1]} : vector<7x32x32xbf16> to vector<1x32x32xbf16>
    %357 = vector.shape_cast %356 : vector<1x32x32xbf16> to vector<32x32xbf16>
    %cst_127 = arith.constant dense<0.000000e+00> : vector<64x32xf32>
    %358 = tpu.matmul %355, %357, %cst_127 {dimension_numbers = #tpu.dot_dimension_numbers<[1], [0], [0], [1], [0, 0, 1, 1], [], []>} : vector<64x32xbf16>, vector<32x32xbf16>, vector<64x32xf32> -> vector<64x32xf32>
    %359 = arith.addf %354, %358 : vector<64x32xf32>
    %360 = vector.extract_strided_slice %348 {offsets = [128, 0], sizes = [64, 32], strides = [1, 1]} : vector<448x32xbf16> to vector<64x32xbf16>
    %361 = vector.extract_strided_slice %350 {offsets = [2, 0, 0], sizes = [1, 32, 32], strides = [1, 1, 1]} : vector<7x32x32xbf16> to vector<1x32x32xbf16>
    %362 = vector.shape_cast %361 : vector<1x32x32xbf16> to vector<32x32xbf16>
    %cst_128 = arith.constant dense<0.000000e+00> : vector<64x32xf32>
    %363 = tpu.matmul %360, %362, %cst_128 {dimension_numbers = #tpu.dot_dimension_numbers<[1], [0], [0], [1], [0, 0, 1, 1], [], []>} : vector<64x32xbf16>, vector<32x32xbf16>, vector<64x32xf32> -> vector<64x32xf32>
    %364 = arith.addf %359, %363 : vector<64x32xf32>
    %365 = vector.extract_strided_slice %348 {offsets = [192, 0], sizes = [64, 32], strides = [1, 1]} : vector<448x32xbf16> to vector<64x32xbf16>
    %366 = vector.extract_strided_slice %350 {offsets = [3, 0, 0], sizes = [1, 32, 32], strides = [1, 1, 1]} : vector<7x32x32xbf16> to vector<1x32x32xbf16>
    %367 = vector.shape_cast %366 : vector<1x32x32xbf16> to vector<32x32xbf16>
    %cst_129 = arith.constant dense<0.000000e+00> : vector<64x32xf32>
    %368 = tpu.matmul %365, %367, %cst_129 {dimension_numbers = #tpu.dot_dimension_numbers<[1], [0], [0], [1], [0, 0, 1, 1], [], []>} : vector<64x32xbf16>, vector<32x32xbf16>, vector<64x32xf32> -> vector<64x32xf32>
    %369 = arith.addf %364, %368 : vector<64x32xf32>
    %370 = vector.extract_strided_slice %348 {offsets = [256, 0], sizes = [64, 32], strides = [1, 1]} : vector<448x32xbf16> to vector<64x32xbf16>
    %371 = vector.extract_strided_slice %350 {offsets = [4, 0, 0], sizes = [1, 32, 32], strides = [1, 1, 1]} : vector<7x32x32xbf16> to vector<1x32x32xbf16>
    %372 = vector.shape_cast %371 : vector<1x32x32xbf16> to vector<32x32xbf16>
    %cst_130 = arith.constant dense<0.000000e+00> : vector<64x32xf32>
    %373 = tpu.matmul %370, %372, %cst_130 {dimension_numbers = #tpu.dot_dimension_numbers<[1], [0], [0], [1], [0, 0, 1, 1], [], []>} : vector<64x32xbf16>, vector<32x32xbf16>, vector<64x32xf32> -> vector<64x32xf32>
    %374 = arith.addf %369, %373 : vector<64x32xf32>
    %375 = vector.extract_strided_slice %348 {offsets = [320, 0], sizes = [64, 32], strides = [1, 1]} : vector<448x32xbf16> to vector<64x32xbf16>
    %376 = vector.extract_strided_slice %350 {offsets = [5, 0, 0], sizes = [1, 32, 32], strides = [1, 1, 1]} : vector<7x32x32xbf16> to vector<1x32x32xbf16>
    %377 = vector.shape_cast %376 : vector<1x32x32xbf16> to vector<32x32xbf16>
    %cst_131 = arith.constant dense<0.000000e+00> : vector<64x32xf32>
    %378 = tpu.matmul %375, %377, %cst_131 {dimension_numbers = #tpu.dot_dimension_numbers<[1], [0], [0], [1], [0, 0, 1, 1], [], []>} : vector<64x32xbf16>, vector<32x32xbf16>, vector<64x32xf32> -> vector<64x32xf32>
    %379 = arith.addf %374, %378 : vector<64x32xf32>
    %380 = vector.extract_strided_slice %348 {offsets = [384, 0], sizes = [64, 32], strides = [1, 1]} : vector<448x32xbf16> to vector<64x32xbf16>
    %381 = vector.extract_strided_slice %350 {offsets = [6, 0, 0], sizes = [1, 32, 32], strides = [1, 1, 1]} : vector<7x32x32xbf16> to vector<1x32x32xbf16>
    %382 = vector.shape_cast %381 : vector<1x32x32xbf16> to vector<32x32xbf16>
    %cst_132 = arith.constant dense<0.000000e+00> : vector<64x32xf32>
    %383 = tpu.matmul %380, %382, %cst_132 {dimension_numbers = #tpu.dot_dimension_numbers<[1], [0], [0], [1], [0, 0, 1, 1], [], []>} : vector<64x32xbf16>, vector<32x32xbf16>, vector<64x32xf32> -> vector<64x32xf32>
    %384 = arith.addf %379, %383 : vector<64x32xf32>
    %385 = vector.extract_strided_slice %62 {offsets = [3, 0], sizes = [1, 32], strides = [1, 1]} : vector<4x32xf32> to vector<1x32xf32>
    %386 = vector.extract_strided_slice %63 {offsets = [3, 0], sizes = [1, 32], strides = [1, 1]} : vector<4x32xf32> to vector<1x32xf32>
    %cst_133 = arith.constant dense<0.000000e+00> : vector<64xf32>
    %387 = vector.multi_reduction <add>, %384, %cst_133 [1] : vector<64x32xf32> to vector<64xf32>
    %388 = vector.shape_cast %387 : vector<64xf32> to vector<64x1xf32>
    %cst_134 = arith.constant 3.200000e+01 : f32
    %389 = vector.broadcast %cst_134 : f32 to vector<64x1xf32>
    %390 = arith.divf %388, %389 : vector<64x1xf32>
    %391 = vector.broadcast %390 : vector<64x1xf32> to vector<64x32xf32>
    %392 = arith.subf %384, %391 : vector<64x32xf32>
    %393 = arith.mulf %392, %392 : vector<64x32xf32>
    %cst_135 = arith.constant dense<0.000000e+00> : vector<64xf32>
    %394 = vector.multi_reduction <add>, %393, %cst_135 [1] : vector<64x32xf32> to vector<64xf32>
    %395 = vector.shape_cast %394 : vector<64xf32> to vector<64x1xf32>
    %cst_136 = arith.constant 3.200000e+01 : f32
    %396 = vector.broadcast %cst_136 : f32 to vector<64x1xf32>
    %397 = arith.divf %395, %396 : vector<64x1xf32>
    %cst_137 = arith.constant 9.99999974E-6 : f32
    %398 = vector.broadcast %cst_137 : f32 to vector<64x1xf32>
    %399 = arith.addf %397, %398 : vector<64x1xf32>
    %400 = math.rsqrt %399 : vector<64x1xf32>
    %401 = vector.broadcast %400 : vector<64x1xf32> to vector<64x32xf32>
    %402 = arith.mulf %392, %401 : vector<64x32xf32>
    %403 = vector.broadcast %385 : vector<1x32xf32> to vector<64x32xf32>
    %404 = arith.mulf %402, %403 : vector<64x32xf32>
    %405 = vector.broadcast %386 : vector<1x32xf32> to vector<64x32xf32>
    %406 = arith.addf %404, %405 : vector<64x32xf32>
    %cst_138 = arith.constant 0.000000e+00 : f32
    %407 = vector.broadcast %cst_138 : f32 to vector<64x32xf32>
    %408 = arith.maximumf %406, %407 : vector<64x32xf32>
    %409 = arith.truncf %408 : vector<64x32xf32> to vector<64x32xbf16>
    %c3_139 = arith.constant 3 : index
    %c0_140 = arith.constant 0 : index
    %c0_141 = arith.constant 0 : index
    %410 = vector.load %arg10[%c3_139, %c0_140, %c0_141] : memref<4x32x32xbf16, #tpu.memory_space<vmem>>, vector<1x32x32xbf16>
    %411 = vector.shape_cast %410 : vector<1x32x32xbf16> to vector<32x32xbf16>
    %cst_142 = arith.constant dense<0.000000e+00> : vector<64x32xf32>
    %412 = tpu.matmul %409, %411, %cst_142 {dimension_numbers = #tpu.dot_dimension_numbers<[1], [0], [0], [1], [0, 0, 1, 1], [], []>} : vector<64x32xbf16>, vector<32x32xbf16>, vector<64x32xf32> -> vector<64x32xf32>
    %413 = vector.extract_strided_slice %64 {offsets = [3, 0], sizes = [1, 32], strides = [1, 1]} : vector<4x32xf32> to vector<1x32xf32>
    %414 = vector.extract_strided_slice %65 {offsets = [3, 0], sizes = [1, 32], strides = [1, 1]} : vector<4x32xf32> to vector<1x32xf32>
    %cst_143 = arith.constant dense<0.000000e+00> : vector<64xf32>
    %415 = vector.multi_reduction <add>, %412, %cst_143 [1] : vector<64x32xf32> to vector<64xf32>
    %416 = vector.shape_cast %415 : vector<64xf32> to vector<64x1xf32>
    %cst_144 = arith.constant 3.200000e+01 : f32
    %417 = vector.broadcast %cst_144 : f32 to vector<64x1xf32>
    %418 = arith.divf %416, %417 : vector<64x1xf32>
    %419 = vector.broadcast %418 : vector<64x1xf32> to vector<64x32xf32>
    %420 = arith.subf %412, %419 : vector<64x32xf32>
    %421 = arith.mulf %420, %420 : vector<64x32xf32>
    %cst_145 = arith.constant dense<0.000000e+00> : vector<64xf32>
    %422 = vector.multi_reduction <add>, %421, %cst_145 [1] : vector<64x32xf32> to vector<64xf32>
    %423 = vector.shape_cast %422 : vector<64xf32> to vector<64x1xf32>
    %cst_146 = arith.constant 3.200000e+01 : f32
    %424 = vector.broadcast %cst_146 : f32 to vector<64x1xf32>
    %425 = arith.divf %423, %424 : vector<64x1xf32>
    %cst_147 = arith.constant 9.99999974E-6 : f32
    %426 = vector.broadcast %cst_147 : f32 to vector<64x1xf32>
    %427 = arith.addf %425, %426 : vector<64x1xf32>
    %428 = math.rsqrt %427 : vector<64x1xf32>
    %429 = vector.broadcast %428 : vector<64x1xf32> to vector<64x32xf32>
    %430 = arith.mulf %420, %429 : vector<64x32xf32>
    %431 = vector.broadcast %413 : vector<1x32xf32> to vector<64x32xf32>
    %432 = arith.mulf %430, %431 : vector<64x32xf32>
    %433 = vector.broadcast %414 : vector<1x32xf32> to vector<64x32xf32>
    %434 = arith.addf %432, %433 : vector<64x32xf32>
    %435 = arith.addf %434, %344 : vector<64x32xf32>
    %cst_148 = arith.constant 0.000000e+00 : f32
    %436 = vector.broadcast %cst_148 : f32 to vector<64x32xf32>
    %437 = arith.maximumf %435, %436 : vector<64x32xf32>
    %c0_149 = arith.constant 0 : index
    %c0_150 = arith.constant 0 : index
    %438 = vector.load %arg13[%c0_149, %c0_150] : memref<64x32xf32, #tpu.memory_space<vmem>>, vector<64x32xf32>
    tpu.vector_store %arg13[%c0_149, %c0_150], %437 {strides = array<i32>} : memref<64x32xf32, #tpu.memory_space<vmem>>, vector<64x32xf32>,
    return
  }
}

</mosaic_0001>

<llo_original>
// kernel: tpu_custom_call.1
$region0: #{tpu_custom_call.1}
  #allocation0 [shape = 'u32[]', space=smem, size = 0x4, offset = 0x4, fixed_abs, tag = 'smem constant byte address 0x4 - core index']
  #allocation1 [shape = 'u32[144,128]{1,0:T(1,128)}', space=vmem, size = 0x12000, scoped, tag = 'internal scratch']
  %s0 = inlined_call_operand.vmem [shape: bf16[64,4], index: 0, kind: input, shape index: {}]
  %s1 = inlined_call_operand.vmem [shape: bf16[4,64], index: 1, kind: input, shape index: {}]
  %s2 = inlined_call_operand.vmem [shape: f32[1,64], index: 2, kind: input, shape index: {}]
  %s3 = inlined_call_operand.vmem [shape: bf16[64,64], index: 3, kind: input, shape index: {}]
  %s4 = inlined_call_operand.vmem [shape: f32[1,64], index: 4, kind: input, shape index: {}]
  %s5 = inlined_call_operand.vmem [shape: f32[1,64], index: 5, kind: input, shape index: {}]
  %s6 = inlined_call_operand.vmem [shape: bf16[448,64], index: 6, kind: input, shape index: {}]
  %s7 = inlined_call_operand.hbm [shape: bf16[4,7,32,32], index: 7, kind: input, shape index: {}]
  %s8 = inlined_call_operand.vmem [shape: f32[4,32], index: 8, kind: input, shape index: {}]
  %s9 = inlined_call_operand.vmem [shape: f32[4,32], index: 9, kind: input, shape index: {}]
  %s10 = inlined_call_operand.vmem [shape: bf16[4,32,32], index: 10, kind: input, shape index: {}]
  %s11 = inlined_call_operand.vmem [shape: f32[4,32], index: 11, kind: input, shape index: {}]
  %s12 = inlined_call_operand.vmem [shape: f32[4,32], index: 12, kind: input, shape index: {}]
  %s13 = inlined_call_operand.vmem [shape: f32[64,32], index: 13, kind: output, shape index: {}]
  %s14 = sld [smem:[#allocation0]]
  $region66: #{tpu_custom_call.1} parent=0
    _
  %s16 = ssub.s32 1, %s14
  %s17 = scalar_select 0, %s16, %s14
  $region1: #{tpu_custom_call.1} parent=0
    #allocation2 [shape = 'u8[229376]{0}', space=vmem, size = 0x38000, scoped, tag = 'input window, operand 7, single buffered']
    #allocation3 [shape = 's32[1]{0}', space=sflag, size = 0x4, scoped, tag = 'scoped memory for tpu_custom_call.1']
    %18 = vsyncpa [#allocation3], 0
    // Predicated region
    $region2: #{tpu_custom_call.1} parent=1 // pred_check
      _
    $region3: #{tpu_custom_call.1} parent=1 // pred_check_branch
      %20 = sbr.rel (0) target = $region5
    $region4: #{tpu_custom_call.1} parent=1 // pred_region
      _
    $region5: #{tpu_custom_call.1} parent=1 // pred_fallthru
      _
    // Predicated region
    $region6: #{tpu_custom_call.1} parent=1 // pred_check
      _
    $region7: #{tpu_custom_call.1} parent=1 // pred_check_branch
      %22 = sbr.rel (0) target = $region9
    $region8: #{tpu_custom_call.1} parent=1 // pred_region
      _
    $region9: #{tpu_custom_call.1} parent=1 // pred_fallthru
      _
    // Predicated region
    $region10: #{tpu_custom_call.1} parent=1 // pred_check
      _
    $region11: #{tpu_custom_call.1} parent=1 // pred_check_branch
      %24 = sbr.rel (0) target = $region13
    $region12: #{tpu_custom_call.1} parent=1 // pred_region
      _
    $region13: #{tpu_custom_call.1} parent=1 // pred_fallthru
      _
    // Predicated region
    $region14: #{tpu_custom_call.1} parent=1 // pred_check
      _
    $region15: #{tpu_custom_call.1} parent=1 // pred_check_branch
      %26 = sbr.rel (0) target = $region17
    $region16: #{tpu_custom_call.1} parent=1 // pred_region
      _
    $region17: #{tpu_custom_call.1} parent=1 // pred_fallthru
      _
    // Predicated region
    $region18: #{tpu_custom_call.1} parent=1 // pred_check
      _
    $region19: #{tpu_custom_call.1} parent=1 // pred_check_branch
      %28 = sbr.rel (0) target = $region21
    $region20: #{tpu_custom_call.1} parent=1 // pred_region
      _
    $region21: #{tpu_custom_call.1} parent=1 // pred_fallthru
      _
    // Predicated region
    $region22: #{tpu_custom_call.1} parent=1 // pred_check
      _
    $region23: #{tpu_custom_call.1} parent=1 // pred_check_branch
      %30 = sbr.rel (0) target = $region25
    $region24: #{tpu_custom_call.1} parent=1 // pred_region
      _
    $region25: #{tpu_custom_call.1} parent=1 // pred_fallthru
      _
    // Predicated region
    $region26: #{tpu_custom_call.1} parent=1 // pred_check
      _
    $region27: #{tpu_custom_call.1} parent=1 // pred_check_branch
      %32 = sbr.rel (0) target = $region29
    $region28: #{tpu_custom_call.1} parent=1 // pred_region
      _
    $region29: #{tpu_custom_call.1} parent=1 // pred_fallthru
      _
    // Predicated region
    $region30: #{tpu_custom_call.1} parent=1 // pred_check
      _
    $region31: #{tpu_custom_call.1} parent=1 // pred_check_branch
      %34 = sbr.rel (0) target = $region33
    $region32: #{tpu_custom_call.1} parent=1 // pred_region
      %s36 = ssub.s32 7168, 7168
      %37 = vsyncadd [#allocation3], %s36
      %s38 = sshll.u32 [#allocation2], 4
      %s39 = int_to_ptr.vmem [resolvable:$true] %s38
      %44 = dma.hbm_to_vmem [thread:$0]  %s7, 7168, %s39, [#allocation3], 64, 64, 4
    $region33: #{tpu_custom_call.1} parent=1 // pred_fallthru
      _
    // Predicated region
    $region34: #{tpu_custom_call.1} parent=1 // pred_check
      _
    $region35: #{tpu_custom_call.1} parent=1 // pred_check_branch
      %46 = sbr.rel (0) target = $region37
    $region36: #{tpu_custom_call.1} parent=1 // pred_region
      _
    $region37: #{tpu_custom_call.1} parent=1 // pred_fallthru
      _
    // Predicated region
    $region38: #{tpu_custom_call.1} parent=1 // pred_check
      _
    $region39: #{tpu_custom_call.1} parent=1 // pred_check_branch
      %48 = sbr.rel (0) target = $region41
    $region40: #{tpu_custom_call.1} parent=1 // pred_region
      _
    $region41: #{tpu_custom_call.1} parent=1 // pred_fallthru
      _
    // Predicated region
    $region42: #{tpu_custom_call.1} parent=1 // pred_check
      _
    $region43: #{tpu_custom_call.1} parent=1 // pred_check_branch
      %50 = sbr.rel (0) target = $region45
    $region44: #{tpu_custom_call.1} parent=1 // pred_region
      _
    $region45: #{tpu_custom_call.1} parent=1 // pred_fallthru
      _
    // Predicated region
    $region46: #{tpu_custom_call.1} parent=1 // pred_check
      _
    $region47: #{tpu_custom_call.1} parent=1 // pred_check_branch
      %52 = sbr.rel (0) target = $region49
    $region48: #{tpu_custom_call.1} parent=1 // pred_region
      _
    $region49: #{tpu_custom_call.1} parent=1 // pred_fallthru
      _
    // Predicated region
    $region50: #{tpu_custom_call.1} parent=1 // pred_check
      _
    $region51: #{tpu_custom_call.1} parent=1 // pred_check_branch
      %54 = sbr.rel (0) target = $region53
    $region52: #{tpu_custom_call.1} parent=1 // pred_region
      _
    $region53: #{tpu_custom_call.1} parent=1 // pred_fallthru
      _
    // Predicated region
    $region54: #{tpu_custom_call.1} parent=1 // pred_check
      _
    $region55: #{tpu_custom_call.1} parent=1 // pred_check_branch
      %56 = sbr.rel (0) target = $region57
    $region56: #{tpu_custom_call.1} parent=1 // pred_region
      %57 = dma.done [#allocation3], 7168
    $region57: #{tpu_custom_call.1} parent=1 // pred_fallthru
      _
    %v59 = vld [vmem:[%s0] sm:$0xf]
    %v60 = vld [vmem:[%s0 + $0x4] sm:$0xf]
    %v61 = vld [vmem:[%s0 + $0x8] sm:$0xf]
    %v62 = vld [vmem:[%s0 + $0xc] sm:$0xf]
    %v63 = vld [vmem:[%s0 + $0x10] sm:$0xf]
    %v64 = vld [vmem:[%s0 + $0x14] sm:$0xf]
    %v65 = vld [vmem:[%s0 + $0x18] sm:$0xf]
    %v66 = vld [vmem:[%s0 + $0x1c] sm:$0xf]
    %v67 = vld [vmem:[%s1] sm:$0x3]
    %v68 = vld [vmem:[%s2] sm:$0x1]
    %v70 = vlaneseq
    %v71 = vshrl.u32 %v70, 7
    %v72 = vsub.s32 0, %v71
    %v73 = vrot.slane %v68, %v72
    %v83 = vunpack.c.l.b16 %v59
    %v84 = vunpack.c.l.b16 %v60
    %v85 = vunpack.c.l.b16 %v61
    %v86 = vunpack.c.l.b16 %v62
    %v87 = vunpack.c.l.b16 %v63
    %v88 = vunpack.c.l.b16 %v64
    %v89 = vunpack.c.l.b16 %v65
    %v90 = vunpack.c.l.b16 %v66
    %v91 = vpack.c.b16 %v84, %v83
    %v92 = vpack.c.b16 %v86, %v85
    %v93 = vpack.c.b16 %v88, %v87
    %v94 = vpack.c.b16 %v90, %v89
    %vm95 = vcmask 31744
    %v97 = vsel %vm95, %v91, 0
    %v100 = vsel %vm95, %v92, 0
    %v103 = vsel %vm95, %v93, 0
    %v106 = vsel %vm95, %v94, 0
    %vm108 = vcmask 1041408
    %v110 = vsel %vm108, %v67, 0
    %112 = vmatprep.subr.bf16.mxu0 0
    %113 = vmatpush1.bf16.msra.mxu0 0
    %114 = vmatprep.subr.bf16.mxu0 0
    %115 = vmatpush1.bf16.msra.mxu0 0
    %116 = vmatprep.subr.bf16.mxu0 0
    %117 = vmatpush1.bf16.msra.mxu0 0
    %118 = vmatprep.subr.bf16.mxu0 0
    %119 = vmatpush1.bf16.msra.mxu0 0
    %120 = vmatprep.subr.bf16.mxu0 0
    %121 = vmatpush1.bf16.msra.mxu0 0
    %122 = vmatprep.subr.bf16.mxu0 0
    %123 = vmatpush1.bf16.msra.mxu0 0
    %124 = vmatprep.subr.bf16.mxu0 0
    %125 = vmatpush1.bf16.msra.mxu0 0
    %126 = vmatprep.subr.bf16.mxu0 0
    %127 = vmatpush1.bf16.msra.mxu0 %v110
    %128 = vmatprep.subr.bf16.mxu0 0
    %129 = vmatpush2.bf16.msra.mxu0 0
    %130 = vmatprep.subr.bf16.mxu0 0
    %131 = vmatpush2.bf16.msra.mxu0 0
    %132 = vmatprep.subr.bf16.mxu0 0
    %133 = vmatpush2.bf16.msra.mxu0 0
    %134 = vmatprep.subr.bf16.mxu0 0
    %135 = vmatpush2.bf16.msra.mxu0 0
    %136 = vmatprep.subr.bf16.mxu0 0
    %137 = vmatpush2.bf16.msra.mxu0 0
    %138 = vmatprep.subr.bf16.mxu0 0
    %139 = vmatpush2.bf16.msra.mxu0 0
    %140 = vmatprep.subr.bf16.mxu0 0
    %141 = vmatpush2.bf16.msra.mxu0 0
    %142 = vmatprep.subr.bf16.mxu0 0
    %143 = vmatpush2.bf16.msra.mxu0 0
    %144 = vmatprep.mubr.bf16.mxu0 0
    %145 = vmatmul.mubr.bf16.gmra.mxu0 %v97
    %v146 = vpop.f32.mrf.mxu0
    %v147 = vadd.f32 %v73, %v146
    %v148 = vpop.f32.mrf.mxu0
    %v149 = vpop.f32.mrf.mxu0
    %v150 = vadd.f32 %v73, %v149
    %v151 = vpop.f32.mrf.mxu0
    %152 = vmatprep.mubr.bf16.mxu0 0
    %153 = vmatmul.mubr.bf16.gmra.mxu0 %v100
    %v154 = vpop.f32.mrf.mxu0
    %v155 = vadd.f32 %v73, %v154
    %v156 = vpop.f32.mrf.mxu0
    %v157 = vpop.f32.mrf.mxu0
    %v158 = vadd.f32 %v73, %v157
    %v159 = vpop.f32.mrf.mxu0
    %160 = vmatprep.mubr.bf16.mxu0 0
    %161 = vmatmul.mubr.bf16.gmra.mxu0 %v103
    %v162 = vpop.f32.mrf.mxu0
    %v163 = vadd.f32 %v73, %v162
    %v164 = vpop.f32.mrf.mxu0
    %v165 = vpop.f32.mrf.mxu0
    %v166 = vadd.f32 %v73, %v165
    %v167 = vpop.f32.mrf.mxu0
    %168 = vmatprep.mubr.bf16.mxu0 0
    %169 = vmatmul.mubr.bf16.gmra.mxu0 %v106
    %v170 = vpop.f32.mrf.mxu0
    %v171 = vadd.f32 %v73, %v170
    %v172 = vpop.f32.mrf.mxu0
    %v173 = vpop.f32.mrf.mxu0
    %v174 = vadd.f32 %v73, %v173
    %v175 = vpop.f32.mrf.mxu0
    %176 = vdwg.mxu0
    %v177 = vmax.f32 %v147, 0.0
    %v178 = vmax.f32 %v150, 0.0
    %v179 = vmax.f32 %v155, 0.0
    %v180 = vmax.f32 %v158, 0.0
    %v181 = vmax.f32 %v163, 0.0
    %v182 = vmax.f32 %v166, 0.0
    %v183 = vmax.f32 %v171, 0.0
    %v184 = vmax.f32 %v174, 0.0
    %v185 = vpack.c.bf16 %v178, %v177
    %v186 = vpack.c.bf16 %v180, %v179
    %v187 = vpack.c.bf16 %v182, %v181
    %v188 = vpack.c.bf16 %v184, %v183
    %v189 = vld [vmem:[%s3] sm:$0xf]
    %v190 = vld [vmem:[%s3 + $0x4] sm:$0xf]
    %v191 = vld [vmem:[%s3 + $0x8] sm:$0xf]
    %v192 = vld [vmem:[%s3 + $0xc] sm:$0xf]
    %v193 = vld [vmem:[%s3 + $0x10] sm:$0xf]
    %v194 = vld [vmem:[%s3 + $0x14] sm:$0xf]
    %v195 = vld [vmem:[%s3 + $0x18] sm:$0xf]
    %v196 = vld [vmem:[%s3 + $0x1c] sm:$0xf]
    %v205 = vunpack.c.l.b16 %v189
    %v206 = vunpack.c.l.b16 %v190
    %v207 = vunpack.c.l.b16 %v191
    %v208 = vunpack.c.l.b16 %v192
    %v209 = vunpack.c.l.b16 %v193
    %v210 = vunpack.c.l.b16 %v194
    %v211 = vunpack.c.l.b16 %v195
    %v212 = vunpack.c.l.b16 %v196
    %v213 = vpack.c.b16 %v206, %v205
    %v214 = vpack.c.b16 %v208, %v207
    %v215 = vpack.c.b16 %v210, %v209
    %v216 = vpack.c.b16 %v212, %v211
    %vm221 = vcmask 523264
    %v223 = vsel %vm221, %v185, 0
    %v226 = vsel %vm221, %v186, 0
    %v229 = vsel %vm221, %v187, 0
    %v232 = vsel %vm221, %v188, 0
    %234 = vmatprep.subr.bf16.mxu0 0
    %235 = vmatpush1.bf16.msra.mxu0 0
    %236 = vmatprep.subr.bf16.mxu0 0
    %237 = vmatpush1.bf16.msra.mxu0 0
    %238 = vmatprep.subr.bf16.mxu0 0
    %239 = vmatpush1.bf16.msra.mxu0 0
    %240 = vmatprep.subr.bf16.mxu0 0
    %241 = vmatpush1.bf16.msra.mxu0 0
    %242 = vmatprep.subr.bf16.mxu0 0
    %243 = vmatpush1.bf16.msra.mxu0 %v216
    %244 = vmatprep.subr.bf16.mxu0 0
    %245 = vmatpush1.bf16.msra.mxu0 %v215
    %246 = vmatprep.subr.bf16.mxu0 0
    %247 = vmatpush1.bf16.msra.mxu0 %v214
    %248 = vmatprep.subr.bf16.mxu0 0
    %249 = vmatpush1.bf16.msra.mxu0 %v213
    %250 = vmatprep.subr.bf16.mxu0 0
    %251 = vmatpush2.bf16.msra.mxu0 0
    %252 = vmatprep.subr.bf16.mxu0 0
    %253 = vmatpush2.bf16.msra.mxu0 0
    %254 = vmatprep.subr.bf16.mxu0 0
    %255 = vmatpush2.bf16.msra.mxu0 0
    %256 = vmatprep.subr.bf16.mxu0 0
    %257 = vmatpush2.bf16.msra.mxu0 0
    %258 = vmatprep.subr.bf16.mxu0 0
    %259 = vmatpush2.bf16.msra.mxu0 0
    %260 = vmatprep.subr.bf16.mxu0 0
    %261 = vmatpush2.bf16.msra.mxu0 0
    %262 = vmatprep.subr.bf16.mxu0 0
    %263 = vmatpush2.bf16.msra.mxu0 0
    %264 = vmatprep.subr.bf16.mxu0 0
    %265 = vmatpush2.bf16.msra.mxu0 0
    %266 = vmatprep.mubr.bf16.mxu0 0
    %267 = vmatmul.mubr.bf16.gmra.mxu0 %v223
    %v268 = vpop.f32.mrf.mxu0
    %v269 = vadd.f32 0.0, %v268
    %v270 = vpop.f32.mrf.mxu0
    %v271 = vpop.f32.mrf.mxu0
    %v272 = vadd.f32 0.0, %v271
    %v273 = vpop.f32.mrf.mxu0
    %274 = vmatprep.mubr.bf16.mxu0 0
    %275 = vmatmul.mubr.bf16.gmra.mxu0 %v226
    %v276 = vpop.f32.mrf.mxu0
    %v277 = vadd.f32 0.0, %v276
    %v278 = vpop.f32.mrf.mxu0
    %v279 = vpop.f32.mrf.mxu0
    %v280 = vadd.f32 0.0, %v279
    %v281 = vpop.f32.mrf.mxu0
    %282 = vmatprep.mubr.bf16.mxu0 0
    %283 = vmatmul.mubr.bf16.gmra.mxu0 %v229
    %v284 = vpop.f32.mrf.mxu0
    %v285 = vadd.f32 0.0, %v284
    %v286 = vpop.f32.mrf.mxu0
    %v287 = vpop.f32.mrf.mxu0
    %v288 = vadd.f32 0.0, %v287
    %v289 = vpop.f32.mrf.mxu0
    %290 = vmatprep.mubr.bf16.mxu0 0
    %291 = vmatmul.mubr.bf16.gmra.mxu0 %v232
    %v292 = vpop.f32.mrf.mxu0
    %v293 = vadd.f32 0.0, %v292
    %v294 = vpop.f32.mrf.mxu0
    %v295 = vpop.f32.mrf.mxu0
    %v296 = vadd.f32 0.0, %v295
    %v297 = vpop.f32.mrf.mxu0
    %298 = vdwg.mxu0
    %v299 = vld [vmem:[%s4] sm:$0x1]
    %v300 = vld [vmem:[%s5] sm:$0x1]
    %vm301 = vcmask 261120
    %v302 = vsel %vm301, %v269, 0.0
    %303 = vadd.xlane.f32.xlu0 %v302
    %v304 = vpop.xlane.xlu0 %303
    %v305 = vsel %vm301, %v272, 0.0
    %306 = vadd.xlane.f32.xlu0 %v305
    %v307 = vpop.xlane.xlu0 %306
    %v308 = vsel %vm301, %v277, 0.0
    %309 = vadd.xlane.f32.xlu0 %v308
    %v310 = vpop.xlane.xlu0 %309
    %v311 = vsel %vm301, %v280, 0.0
    %312 = vadd.xlane.f32.xlu0 %v311
    %v313 = vpop.xlane.xlu0 %312
    %v314 = vsel %vm301, %v285, 0.0
    %315 = vadd.xlane.f32.xlu0 %v314
    %v316 = vpop.xlane.xlu0 %315
    %v317 = vsel %vm301, %v288, 0.0
    %318 = vadd.xlane.f32.xlu0 %v317
    %v319 = vpop.xlane.xlu0 %318
    %v320 = vsel %vm301, %v293, 0.0
    %321 = vadd.xlane.f32.xlu0 %v320
    %v322 = vpop.xlane.xlu0 %321
    %v323 = vsel %vm301, %v296, 0.0
    %324 = vadd.xlane.f32.xlu0 %v323
    %v325 = vpop.xlane.xlu0 %324
    %v326 = vrcp.pop 32.0
    %v327 = vmul.f32 %v304, %v326
    %v328 = vmul.f32 %v307, %v326
    %v329 = vmul.f32 %v310, %v326
    %v330 = vmul.f32 %v313, %v326
    %v331 = vmul.f32 %v316, %v326
    %v332 = vmul.f32 %v319, %v326
    %v333 = vmul.f32 %v322, %v326
    %v334 = vmul.f32 %v325, %v326
    %v335 = vsub.f32 %v269, %v327
    %v336 = vsub.f32 %v272, %v328
    %v337 = vsub.f32 %v277, %v329
    %v338 = vsub.f32 %v280, %v330
    %v339 = vsub.f32 %v285, %v331
    %v340 = vsub.f32 %v288, %v332
    %v341 = vsub.f32 %v293, %v333
    %v342 = vsub.f32 %v296, %v334
    %v343 = vmul.f32 %v335, %v335
    %v344 = vmul.f32 %v336, %v336
    %v345 = vmul.f32 %v337, %v337
    %v346 = vmul.f32 %v338, %v338
    %v347 = vmul.f32 %v339, %v339
    %v348 = vmul.f32 %v340, %v340
    %v349 = vmul.f32 %v341, %v341
    %v350 = vmul.f32 %v342, %v342
    %v351 = vsel %vm301, %v343, 0.0
    %352 = vadd.xlane.f32.xlu0 %v351
    %v353 = vpop.xlane.xlu0 %352
    %v354 = vsel %vm301, %v344, 0.0
    %355 = vadd.xlane.f32.xlu0 %v354
    %v356 = vpop.xlane.xlu0 %355
    %v357 = vsel %vm301, %v345, 0.0
    %358 = vadd.xlane.f32.xlu0 %v357
    %v359 = vpop.xlane.xlu0 %358
    %v360 = vsel %vm301, %v346, 0.0
    %361 = vadd.xlane.f32.xlu0 %v360
    %v362 = vpop.xlane.xlu0 %361
    %v363 = vsel %vm301, %v347, 0.0
    %364 = vadd.xlane.f32.xlu0 %v363
    %v365 = vpop.xlane.xlu0 %364
    %v366 = vsel %vm301, %v348, 0.0
    %367 = vadd.xlane.f32.xlu0 %v366
    %v368 = vpop.xlane.xlu0 %367
    %v369 = vsel %vm301, %v349, 0.0
    %370 = vadd.xlane.f32.xlu0 %v369
    %v371 = vpop.xlane.xlu0 %370
    %v372 = vsel %vm301, %v350, 0.0
    %373 = vadd.xlane.f32.xlu0 %v372
    %v374 = vpop.xlane.xlu0 %373
    %v375 = vmul.f32 %v353, %v326
    %v376 = vmul.f32 %v356, %v326
    %v377 = vmul.f32 %v359, %v326
    %v378 = vmul.f32 %v362, %v326
    %v379 = vmul.f32 %v365, %v326
    %v380 = vmul.f32 %v368, %v326
    %v381 = vmul.f32 %v371, %v326
    %v382 = vmul.f32 %v374, %v326
    %v383 = vadd.f32 %v375, 1e-05
    %v384 = vadd.f32 %v376, 1e-05
    %v385 = vadd.f32 %v377, 1e-05
    %v386 = vadd.f32 %v378, 1e-05
    %v387 = vadd.f32 %v379, 1e-05
    %v388 = vadd.f32 %v380, 1e-05
    %v389 = vadd.f32 %v381, 1e-05
    %v390 = vadd.f32 %v382, 1e-05
    %v391 = vrsqrt.pop %v383
    %v392 = vrsqrt.pop %v384
    %v393 = vrsqrt.pop %v385
    %v394 = vrsqrt.pop %v386
    %v395 = vrsqrt.pop %v387
    %v396 = vrsqrt.pop %v388
    %v397 = vrsqrt.pop %v389
    %v398 = vrsqrt.pop %v390
    %v399 = vmul.f32 %v335, %v391
    %v400 = vmul.f32 %v336, %v392
    %v401 = vmul.f32 %v337, %v393
    %v402 = vmul.f32 %v338, %v394
    %v403 = vmul.f32 %v339, %v395
    %v404 = vmul.f32 %v340, %v396
    %v405 = vmul.f32 %v341, %v397
    %v406 = vmul.f32 %v342, %v398
    %v408 = vlaneseq
    %v409 = vshrl.u32 %v408, 7
    %v410 = vsub.s32 0, %v409
    %v411 = vrot.slane %v299, %v410
    %v413 = vmul.f32 %v399, %v411
    %v414 = vmul.f32 %v400, %v411
    %v415 = vmul.f32 %v401, %v411
    %v416 = vmul.f32 %v402, %v411
    %v417 = vmul.f32 %v403, %v411
    %v418 = vmul.f32 %v404, %v411
    %v419 = vmul.f32 %v405, %v411
    %v420 = vmul.f32 %v406, %v411
    %v422 = vlaneseq
    %v423 = vshrl.u32 %v422, 7
    %v424 = vsub.s32 0, %v423
    %v425 = vrot.slane %v300, %v424
    %v427 = vadd.f32 %v413, %v425
    %v428 = vadd.f32 %v414, %v425
    %v429 = vadd.f32 %v415, %v425
    %v430 = vadd.f32 %v416, %v425
    %v431 = vadd.f32 %v417, %v425
    %v432 = vadd.f32 %v418, %v425
    %v433 = vadd.f32 %v419, %v425
    %v434 = vadd.f32 %v420, %v425
    %443 = vrot.lane.b32.xlu0 %v269, 96
    %v444 = vpop.permute.xlu0 %443
    %445 = vrot.lane.b32.xlu0 %v272, 96
    %v446 = vpop.permute.xlu0 %445
    %447 = vrot.lane.b32.xlu0 %v277, 96
    %v448 = vpop.permute.xlu0 %447
    %449 = vrot.lane.b32.xlu0 %v280, 96
    %v450 = vpop.permute.xlu0 %449
    %451 = vrot.lane.b32.xlu0 %v285, 96
    %v452 = vpop.permute.xlu0 %451
    %453 = vrot.lane.b32.xlu0 %v288, 96
    %v454 = vpop.permute.xlu0 %453
    %455 = vrot.lane.b32.xlu0 %v293, 96
    %v456 = vpop.permute.xlu0 %455
    %457 = vrot.lane.b32.xlu0 %v296, 96
    %v458 = vpop.permute.xlu0 %457
    %v467 = vsel %vm301, %v444, 0.0
    %468 = vadd.xlane.f32.xlu0 %v467
    %v469 = vpop.xlane.xlu0 %468
    %v470 = vsel %vm301, %v446, 0.0
    %471 = vadd.xlane.f32.xlu0 %v470
    %v472 = vpop.xlane.xlu0 %471
    %v473 = vsel %vm301, %v448, 0.0
    %474 = vadd.xlane.f32.xlu0 %v473
    %v475 = vpop.xlane.xlu0 %474
    %v476 = vsel %vm301, %v450, 0.0
    %477 = vadd.xlane.f32.xlu0 %v476
    %v478 = vpop.xlane.xlu0 %477
    %v479 = vsel %vm301, %v452, 0.0
    %480 = vadd.xlane.f32.xlu0 %v479
    %v481 = vpop.xlane.xlu0 %480
    %v482 = vsel %vm301, %v454, 0.0
    %483 = vadd.xlane.f32.xlu0 %v482
    %v484 = vpop.xlane.xlu0 %483
    %v485 = vsel %vm301, %v456, 0.0
    %486 = vadd.xlane.f32.xlu0 %v485
    %v487 = vpop.xlane.xlu0 %486
    %v488 = vsel %vm301, %v458, 0.0
    %489 = vadd.xlane.f32.xlu0 %v488
    %v490 = vpop.xlane.xlu0 %489
    %v491 = vmul.f32 %v469, %v326
    %v492 = vmul.f32 %v472, %v326
    %v493 = vmul.f32 %v475, %v326
    %v494 = vmul.f32 %v478, %v326
    %v495 = vmul.f32 %v481, %v326
    %v496 = vmul.f32 %v484, %v326
    %v497 = vmul.f32 %v487, %v326
    %v498 = vmul.f32 %v490, %v326
    %v499 = vsub.f32 %v269, %v491
    %v500 = vsub.f32 %v272, %v492
    %v501 = vsub.f32 %v277, %v493
    %v502 = vsub.f32 %v280, %v494
    %v503 = vsub.f32 %v285, %v495
    %v504 = vsub.f32 %v288, %v496
    %v505 = vsub.f32 %v293, %v497
    %v506 = vsub.f32 %v296, %v498
    %v507 = vmul.f32 %v499, %v499
    %v508 = vmul.f32 %v500, %v500
    %v509 = vmul.f32 %v501, %v501
    %v510 = vmul.f32 %v502, %v502
    %v511 = vmul.f32 %v503, %v503
    %v512 = vmul.f32 %v504, %v504
    %v513 = vmul.f32 %v505, %v505
    %v514 = vmul.f32 %v506, %v506
    %523 = vrot.lane.b32.xlu0 %v507, 96
    %v524 = vpop.permute.xlu0 %523
    %525 = vrot.lane.b32.xlu0 %v508, 96
    %v526 = vpop.permute.xlu0 %525
    %527 = vrot.lane.b32.xlu0 %v509, 96
    %v528 = vpop.permute.xlu0 %527
    %529 = vrot.lane.b32.xlu0 %v510, 96
    %v530 = vpop.permute.xlu0 %529
    %531 = vrot.lane.b32.xlu0 %v511, 96
    %v532 = vpop.permute.xlu0 %531
    %533 = vrot.lane.b32.xlu0 %v512, 96
    %v534 = vpop.permute.xlu0 %533
    %535 = vrot.lane.b32.xlu0 %v513, 96
    %v536 = vpop.permute.xlu0 %535
    %537 = vrot.lane.b32.xlu0 %v514, 96
    %v538 = vpop.permute.xlu0 %537
    %v547 = vsel %vm301, %v524, 0.0
    %548 = vadd.xlane.f32.xlu0 %v547
    %v549 = vpop.xlane.xlu0 %548
    %v550 = vsel %vm301, %v526, 0.0
    %551 = vadd.xlane.f32.xlu0 %v550
    %v552 = vpop.xlane.xlu0 %551
    %v553 = vsel %vm301, %v528, 0.0
    %554 = vadd.xlane.f32.xlu0 %v553
    %v555 = vpop.xlane.xlu0 %554
    %v556 = vsel %vm301, %v530, 0.0
    %557 = vadd.xlane.f32.xlu0 %v556
    %v558 = vpop.xlane.xlu0 %557
    %v559 = vsel %vm301, %v532, 0.0
    %560 = vadd.xlane.f32.xlu0 %v559
    %v561 = vpop.xlane.xlu0 %560
    %v562 = vsel %vm301, %v534, 0.0
    %563 = vadd.xlane.f32.xlu0 %v562
    %v564 = vpop.xlane.xlu0 %563
    %v565 = vsel %vm301, %v536, 0.0
    %566 = vadd.xlane.f32.xlu0 %v565
    %v567 = vpop.xlane.xlu0 %566
    %v568 = vsel %vm301, %v538, 0.0
    %569 = vadd.xlane.f32.xlu0 %v568
    %v570 = vpop.xlane.xlu0 %569
    %v571 = vmul.f32 %v549, %v326
    %v572 = vmul.f32 %v552, %v326
    %v573 = vmul.f32 %v555, %v326
    %v574 = vmul.f32 %v558, %v326
    %v575 = vmul.f32 %v561, %v326
    %v576 = vmul.f32 %v564, %v326
    %v577 = vmul.f32 %v567, %v326
    %v578 = vmul.f32 %v570, %v326
    %v579 = vadd.f32 %v571, 1e-05
    %v580 = vadd.f32 %v572, 1e-05
    %v581 = vadd.f32 %v573, 1e-05
    %v582 = vadd.f32 %v574, 1e-05
    %v583 = vadd.f32 %v575, 1e-05
    %v584 = vadd.f32 %v576, 1e-05
    %v585 = vadd.f32 %v577, 1e-05
    %v586 = vadd.f32 %v578, 1e-05
    %v587 = vrsqrt.pop %v579
    %v588 = vrsqrt.pop %v580
    %v589 = vrsqrt.pop %v581
    %v590 = vrsqrt.pop %v582
    %v591 = vrsqrt.pop %v583
    %v592 = vrsqrt.pop %v584
    %v593 = vrsqrt.pop %v585
    %v594 = vrsqrt.pop %v586
    %v595 = vmul.f32 %v499, %v587
    %v596 = vmul.f32 %v500, %v588
    %v597 = vmul.f32 %v501, %v589
    %v598 = vmul.f32 %v502, %v590
    %v599 = vmul.f32 %v503, %v591
    %v600 = vmul.f32 %v504, %v592
    %v601 = vmul.f32 %v505, %v593
    %v602 = vmul.f32 %v506, %v594
    %v603 = vmul.f32 %v595, %v411
    %v604 = vmul.f32 %v596, %v411
    %v605 = vmul.f32 %v597, %v411
    %v606 = vmul.f32 %v598, %v411
    %v607 = vmul.f32 %v599, %v411
    %v608 = vmul.f32 %v600, %v411
    %v609 = vmul.f32 %v601, %v411
    %v610 = vmul.f32 %v602, %v411
    %v611 = vadd.f32 %v603, %v425
    %v612 = vadd.f32 %v604, %v425
    %v613 = vadd.f32 %v605, %v425
    %v614 = vadd.f32 %v606, %v425
    %v615 = vadd.f32 %v607, %v425
    %v616 = vadd.f32 %v608, %v425
    %v617 = vadd.f32 %v609, %v425
    %v618 = vadd.f32 %v610, %v425
    %627 = vrot.lane.b32.xlu0 %v611, 96
    %v628 = vpop.permute.xlu0 %627
    %629 = vrot.lane.b32.xlu0 %v612, 96
    %v630 = vpop.permute.xlu0 %629
    %631 = vrot.lane.b32.xlu0 %v613, 96
    %v632 = vpop.permute.xlu0 %631
    %633 = vrot.lane.b32.xlu0 %v614, 96
    %v634 = vpop.permute.xlu0 %633
    %635 = vrot.lane.b32.xlu0 %v615, 96
    %v636 = vpop.permute.xlu0 %635
    %637 = vrot.lane.b32.xlu0 %v616, 96
    %v638 = vpop.permute.xlu0 %637
    %639 = vrot.lane.b32.xlu0 %v617, 96
    %v640 = vpop.permute.xlu0 %639
    %641 = vrot.lane.b32.xlu0 %v618, 96
    %v642 = vpop.permute.xlu0 %641
    %v651 = vadd.f32 %v427, %v628
    %v652 = vadd.f32 %v428, %v630
    %v653 = vadd.f32 %v429, %v632
    %v654 = vadd.f32 %v430, %v634
    %v655 = vadd.f32 %v431, %v636
    %v656 = vadd.f32 %v432, %v638
    %v657 = vadd.f32 %v433, %v640
    %v658 = vadd.f32 %v434, %v642
    %v659 = vmax.f32 %v651, 0.0
    %v660 = vmax.f32 %v652, 0.0
    %v661 = vmax.f32 %v653, 0.0
    %v662 = vmax.f32 %v654, 0.0
    %v663 = vmax.f32 %v655, 0.0
    %v664 = vmax.f32 %v656, 0.0
    %v665 = vmax.f32 %v657, 0.0
    %v666 = vmax.f32 %v658, 0.0
    %v667 = vld [vmem:[%s8] sm:$0xf]
    %v668 = vld [vmem:[%s9] sm:$0xf]
    %v669 = vld [vmem:[%s11] sm:$0xf]
    %v670 = vld [vmem:[%s12] sm:$0xf]
    %v671 = vld [vmem:[%s6] sm:$0xf]
    %v672 = vld [vmem:[%s6 + $0x4] sm:$0xf]
    %v673 = vld [vmem:[%s6 + $0x8] sm:$0xf]
    %v674 = vld [vmem:[%s6 + $0xc] sm:$0xf]
    %v675 = vld [vmem:[%s6 + $0x10] sm:$0xf]
    %v676 = vld [vmem:[%s6 + $0x14] sm:$0xf]
    %v677 = vld [vmem:[%s6 + $0x18] sm:$0xf]
    %v678 = vld [vmem:[%s6 + $0x1c] sm:$0xf]
    %v679 = vld [vmem:[%s6 + $0x20] sm:$0xf]
    %v680 = vld [vmem:[%s6 + $0x24] sm:$0xf]
    %v681 = vld [vmem:[%s6 + $0x28] sm:$0xf]
    %v682 = vld [vmem:[%s6 + $0x2c] sm:$0xf]
    %v683 = vld [vmem:[%s6 + $0x30] sm:$0xf]
    %v684 = vld [vmem:[%s6 + $0x34] sm:$0xf]
    %v685 = vld [vmem:[%s6 + $0x38] sm:$0xf]
    %v686 = vld [vmem:[%s6 + $0x3c] sm:$0xf]
    %v687 = vld [vmem:[%s6 + $0x40] sm:$0xf]
    %v688 = vld [vmem:[%s6 + $0x44] sm:$0xf]
    %v689 = vld [vmem:[%s6 + $0x48] sm:$0xf]
    %v690 = vld [vmem:[%s6 + $0x4c] sm:$0xf]
    %v691 = vld [vmem:[%s6 + $0x50] sm:$0xf]
    %v692 = vld [vmem:[%s6 + $0x54] sm:$0xf]
    %v693 = vld [vmem:[%s6 + $0x58] sm:$0xf]
    %v694 = vld [vmem:[%s6 + $0x5c] sm:$0xf]
    %v695 = vld [vmem:[%s6 + $0x60] sm:$0xf]
    %v696 = vld [vmem:[%s6 + $0x64] sm:$0xf]
    %v697 = vld [vmem:[%s6 + $0x68] sm:$0xf]
    %v698 = vld [vmem:[%s6 + $0x6c] sm:$0xf]
    %v699 = vld [vmem:[%s6 + $0x70] sm:$0xf]
    %v700 = vld [vmem:[%s6 + $0x74] sm:$0xf]
    %v701 = vld [vmem:[%s6 + $0x78] sm:$0xf]
    %v702 = vld [vmem:[%s6 + $0x7c] sm:$0xf]
    %v703 = vld [vmem:[%s6 + $0x80] sm:$0xf]
    %v704 = vld [vmem:[%s6 + $0x84] sm:$0xf]
    %v705 = vld [vmem:[%s6 + $0x88] sm:$0xf]
    %v706 = vld [vmem:[%s6 + $0x8c] sm:$0xf]
    %v707 = vld [vmem:[%s6 + $0x90] sm:$0xf]
    %v708 = vld [vmem:[%s6 + $0x94] sm:$0xf]
    %v709 = vld [vmem:[%s6 + $0x98] sm:$0xf]
    %v710 = vld [vmem:[%s6 + $0x9c] sm:$0xf]
    %v711 = vld [vmem:[%s6 + $0xa0] sm:$0xf]
    %v712 = vld [vmem:[%s6 + $0xa4] sm:$0xf]
    %v713 = vld [vmem:[%s6 + $0xa8] sm:$0xf]
    %v714 = vld [vmem:[%s6 + $0xac] sm:$0xf]
    %v715 = vld [vmem:[%s6 + $0xb0] sm:$0xf]
    %v716 = vld [vmem:[%s6 + $0xb4] sm:$0xf]
    %v717 = vld [vmem:[%s6 + $0xb8] sm:$0xf]
    %v718 = vld [vmem:[%s6 + $0xbc] sm:$0xf]
    %v719 = vld [vmem:[%s6 + $0xc0] sm:$0xf]
    %v720 = vld [vmem:[%s6 + $0xc4] sm:$0xf]
    %v721 = vld [vmem:[%s6 + $0xc8] sm:$0xf]
    %v722 = vld [vmem:[%s6 + $0xcc] sm:$0xf]
    %v723 = vld [vmem:[%s6 + $0xd0] sm:$0xf]
    %v724 = vld [vmem:[%s6 + $0xd4] sm:$0xf]
    %v725 = vld [vmem:[%s6 + $0xd8] sm:$0xf]
    %v726 = vld [vmem:[%s6 + $0xdc] sm:$0xf]
    %v727 = vpack.c.bf16 %v660, %v659
    %v728 = vpack.c.bf16 %v662, %v661
    %v729 = vpack.c.bf16 %v664, %v663
    %v730 = vpack.c.bf16 %v666, %v665
    %v787 = vunpack.c.l.b16 %v671
    %v788 = vunpack.c.l.b16 %v672
    %v789 = vunpack.c.l.b16 %v673
    %v790 = vunpack.c.l.b16 %v674
    %v791 = vunpack.c.l.b16 %v675
    %v792 = vunpack.c.l.b16 %v676
    %v793 = vunpack.c.l.b16 %v677
    %v794 = vunpack.c.l.b16 %v678
    %v795 = vunpack.c.l.b16 %v679
    %v796 = vunpack.c.l.b16 %v680
    %v797 = vunpack.c.l.b16 %v681
    %v798 = vunpack.c.l.b16 %v682
    %v799 = vunpack.c.l.b16 %v683
    %v800 = vunpack.c.l.b16 %v684
    %v801 = vunpack.c.l.b16 %v685
    %v802 = vunpack.c.l.b16 %v686
    %v803 = vunpack.c.l.b16 %v687
    %v804 = vunpack.c.l.b16 %v688
    %v805 = vunpack.c.l.b16 %v689
    %v806 = vunpack.c.l.b16 %v690
    %v807 = vunpack.c.l.b16 %v691
    %v808 = vunpack.c.l.b16 %v692
    %v809 = vunpack.c.l.b16 %v693
    %v810 = vunpack.c.l.b16 %v694
    %v811 = vunpack.c.l.b16 %v695
    %v812 = vunpack.c.l.b16 %v696
    %v813 = vunpack.c.l.b16 %v697
    %v814 = vunpack.c.l.b16 %v698
    %v815 = vunpack.c.l.b16 %v699
    %v816 = vunpack.c.l.b16 %v700
    %v817 = vunpack.c.l.b16 %v701
    %v818 = vunpack.c.l.b16 %v702
    %v819 = vunpack.c.l.b16 %v703
    %v820 = vunpack.c.l.b16 %v704
    %v821 = vunpack.c.l.b16 %v705
    %v822 = vunpack.c.l.b16 %v706
    %v823 = vunpack.c.l.b16 %v707
    %v824 = vunpack.c.l.b16 %v708
    %v825 = vunpack.c.l.b16 %v709
    %v826 = vunpack.c.l.b16 %v710
    %v827 = vunpack.c.l.b16 %v711
    %v828 = vunpack.c.l.b16 %v712
    %v829 = vunpack.c.l.b16 %v713
    %v830 = vunpack.c.l.b16 %v714
    %v831 = vunpack.c.l.b16 %v715
    %v832 = vunpack.c.l.b16 %v716
    %v833 = vunpack.c.l.b16 %v717
    %v834 = vunpack.c.l.b16 %v718
    %v835 = vunpack.c.l.b16 %v719
    %v836 = vunpack.c.l.b16 %v720
    %v837 = vunpack.c.l.b16 %v721
    %v838 = vunpack.c.l.b16 %v722
    %v839 = vunpack.c.l.b16 %v723
    %v840 = vunpack.c.l.b16 %v724
    %v841 = vunpack.c.l.b16 %v725
    %v842 = vunpack.c.l.b16 %v726
    %v843 = vpack.c.b16 %v788, %v787
    %v844 = vpack.c.b16 %v790, %v789
    %v845 = vpack.c.b16 %v792, %v791
    %v846 = vpack.c.b16 %v794, %v793
    %v847 = vpack.c.b16 %v796, %v795
    %v848 = vpack.c.b16 %v798, %v797
    %v849 = vpack.c.b16 %v800, %v799
    %v850 = vpack.c.b16 %v802, %v801
    %v851 = vpack.c.b16 %v804, %v803
    %v852 = vpack.c.b16 %v806, %v805
    %v853 = vpack.c.b16 %v808, %v807
    %v854 = vpack.c.b16 %v810, %v809
    %v855 = vpack.c.b16 %v812, %v811
    %v856 = vpack.c.b16 %v814, %v813
    %v857 = vpack.c.b16 %v816, %v815
    %v858 = vpack.c.b16 %v818, %v817
    %v859 = vpack.c.b16 %v820, %v819
    %v860 = vpack.c.b16 %v822, %v821
    %v861 = vpack.c.b16 %v824, %v823
    %v862 = vpack.c.b16 %v826, %v825
    %v863 = vpack.c.b16 %v828, %v827
    %v864 = vpack.c.b16 %v830, %v829
    %v865 = vpack.c.b16 %v832, %v831
    %v866 = vpack.c.b16 %v834, %v833
    %v867 = vpack.c.b16 %v836, %v835
    %v868 = vpack.c.b16 %v838, %v837
    %v869 = vpack.c.b16 %v840, %v839
    %v870 = vpack.c.b16 %v842, %v841
    %v872 = vsel %vm221, %v843, 0
    %v875 = vsel %vm221, %v844, 0
    %v878 = vsel %vm221, %v845, 0
    %v881 = vsel %vm221, %v846, 0
    %v884 = vsel %vm221, %v847, 0
    %v887 = vsel %vm221, %v848, 0
    %v890 = vsel %vm221, %v849, 0
    %v893 = vsel %vm221, %v850, 0
    %v896 = vsel %vm221, %v851, 0
    %v899 = vsel %vm221, %v852, 0
    %v902 = vsel %vm221, %v853, 0
    %v905 = vsel %vm221, %v854, 0
    %v908 = vsel %vm221, %v855, 0
    %v911 = vsel %vm221, %v856, 0
    %v914 = vsel %vm221, %v857, 0
    %v917 = vsel %vm221, %v858, 0
    %v920 = vsel %vm221, %v859, 0
    %v923 = vsel %vm221, %v860, 0
    %v926 = vsel %vm221, %v861, 0
    %v929 = vsel %vm221, %v862, 0
    %v932 = vsel %vm221, %v863, 0
    %v935 = vsel %vm221, %v864, 0
    %v938 = vsel %vm221, %v865, 0
    %v941 = vsel %vm221, %v866, 0
    %v944 = vsel %vm221, %v867, 0
    %v947 = vsel %vm221, %v868, 0
    %v950 = vsel %vm221, %v869, 0
    %v953 = vsel %vm221, %v870, 0
    %955 = vmatprep.subr.bf16.mxu0 0
    %956 = vmatpush1.bf16.msra.mxu0 0
    %957 = vmatprep.subr.bf16.mxu0 0
    %958 = vmatpush1.bf16.msra.mxu0 0
    %959 = vmatprep.subr.bf16.mxu0 0
    %960 = vmatpush1.bf16.msra.mxu0 0
    %961 = vmatprep.subr.bf16.mxu0 0
    %962 = vmatpush1.bf16.msra.mxu0 0
    %963 = vmatprep.subr.bf16.mxu0 0
    %964 = vmatpush1.bf16.msra.mxu0 %v730
    %965 = vmatprep.subr.bf16.mxu0 0
    %966 = vmatpush1.bf16.msra.mxu0 %v729
    %967 = vmatprep.subr.bf16.mxu0 0
    %968 = vmatpush1.bf16.msra.mxu0 %v728
    %969 = vmatprep.subr.bf16.mxu0 0
    %970 = vmatpush1.bf16.msra.mxu0 %v727
    %971 = vmatprep.subr.bf16.mxu0 0
    %972 = vmatpush2.bf16.msra.mxu0 0
    %973 = vmatprep.subr.bf16.mxu0 0
    %974 = vmatpush2.bf16.msra.mxu0 0
    %975 = vmatprep.subr.bf16.mxu0 0
    %976 = vmatpush2.bf16.msra.mxu0 0
    %977 = vmatprep.subr.bf16.mxu0 0
    %978 = vmatpush2.bf16.msra.mxu0 0
    %979 = vmatprep.subr.bf16.mxu0 0
    %980 = vmatpush2.bf16.msra.mxu0 0
    %981 = vmatprep.subr.bf16.mxu0 0
    %982 = vmatpush2.bf16.msra.mxu0 0
    %983 = vmatprep.subr.bf16.mxu0 0
    %984 = vmatpush2.bf16.msra.mxu0 0
    %985 = vmatprep.subr.bf16.mxu0 0
    %986 = vmatpush2.bf16.msra.mxu0 0
    %987 = vmatprep.mubr.bf16.mxu0 0
    %988 = vmatmul.mubr.bf16.gmra.mxu0 %v872
    %v989 = vpop.f32.mrf.mxu0
    %v990 = vadd.f32 0.0, %v989
    %v991 = vpop.f32.mrf.mxu0
    %v992 = vpop.f32.mrf.mxu0
    %v993 = vadd.f32 0.0, %v992
    %v994 = vpop.f32.mrf.mxu0
    %995 = vmatprep.mubr.bf16.mxu0 0
    %996 = vmatmul.mubr.bf16.gmra.mxu0 %v875
    %v997 = vpop.f32.mrf.mxu0
    %v998 = vadd.f32 0.0, %v997
    %v999 = vpop.f32.mrf.mxu0
    %v1000 = vpop.f32.mrf.mxu0
    %v1001 = vadd.f32 0.0, %v1000
    %v1002 = vpop.f32.mrf.mxu0
    %1003 = vmatprep.mubr.bf16.mxu0 0
    %1004 = vmatmul.mubr.bf16.gmra.mxu0 %v878
    %v1005 = vpop.f32.mrf.mxu0
    %v1006 = vadd.f32 0.0, %v1005
    %v1007 = vpop.f32.mrf.mxu0
    %v1008 = vpop.f32.mrf.mxu0
    %v1009 = vadd.f32 0.0, %v1008
    %v1010 = vpop.f32.mrf.mxu0
    %1011 = vmatprep.mubr.bf16.mxu0 0
    %1012 = vmatmul.mubr.bf16.gmra.mxu0 %v881
    %v1013 = vpop.f32.mrf.mxu0
    %v1014 = vadd.f32 0.0, %v1013
    %v1015 = vpop.f32.mrf.mxu0
    %v1016 = vpop.f32.mrf.mxu0
    %v1017 = vadd.f32 0.0, %v1016
    %v1018 = vpop.f32.mrf.mxu0
    %1019 = vmatprep.mubr.bf16.mxu0 0
    %1020 = vmatmul.mubr.bf16.gmra.mxu0 %v884
    %v1021 = vpop.f32.mrf.mxu0
    %v1022 = vadd.f32 0.0, %v1021
    %v1023 = vpop.f32.mrf.mxu0
    %v1024 = vpop.f32.mrf.mxu0
    %v1025 = vadd.f32 0.0, %v1024
    %v1026 = vpop.f32.mrf.mxu0
    %1027 = vmatprep.mubr.bf16.mxu0 0
    %1028 = vmatmul.mubr.bf16.gmra.mxu0 %v887
    %v1029 = vpop.f32.mrf.mxu0
    %v1030 = vadd.f32 0.0, %v1029
    %v1031 = vpop.f32.mrf.mxu0
    %v1032 = vpop.f32.mrf.mxu0
    %v1033 = vadd.f32 0.0, %v1032
    %v1034 = vpop.f32.mrf.mxu0
    %1035 = vmatprep.mubr.bf16.mxu0 0
    %1036 = vmatmul.mubr.bf16.gmra.mxu0 %v890
    %v1037 = vpop.f32.mrf.mxu0
    %v1038 = vadd.f32 0.0, %v1037
    %v1039 = vpop.f32.mrf.mxu0
    %v1040 = vpop.f32.mrf.mxu0
    %v1041 = vadd.f32 0.0, %v1040
    %v1042 = vpop.f32.mrf.mxu0
    %1043 = vmatprep.mubr.bf16.mxu0 0
    %1044 = vmatmul.mubr.bf16.gmra.mxu0 %v893
    %v1045 = vpop.f32.mrf.mxu0
    %v1046 = vadd.f32 0.0, %v1045
    %v1047 = vpop.f32.mrf.mxu0
    %v1048 = vpop.f32.mrf.mxu0
    %v1049 = vadd.f32 0.0, %v1048
    %v1050 = vpop.f32.mrf.mxu0
    %1051 = vmatprep.mubr.bf16.mxu0 0
    %1052 = vmatmul.mubr.bf16.gmra.mxu0 %v896
    %v1053 = vpop.f32.mrf.mxu0
    %v1054 = vadd.f32 0.0, %v1053
    %v1055 = vpop.f32.mrf.mxu0
    %v1056 = vpop.f32.mrf.mxu0
    %v1057 = vadd.f32 0.0, %v1056
    %v1058 = vpop.f32.mrf.mxu0
    %1059 = vmatprep.mubr.bf16.mxu0 0
    %1060 = vmatmul.mubr.bf16.gmra.mxu0 %v899
    %v1061 = vpop.f32.mrf.mxu0
    %v1062 = vadd.f32 0.0, %v1061
    %v1063 = vpop.f32.mrf.mxu0
    %v1064 = vpop.f32.mrf.mxu0
    %v1065 = vadd.f32 0.0, %v1064
    %v1066 = vpop.f32.mrf.mxu0
    %1067 = vmatprep.mubr.bf16.mxu0 0
    %1068 = vmatmul.mubr.bf16.gmra.mxu0 %v902
    %v1069 = vpop.f32.mrf.mxu0
    %v1070 = vadd.f32 0.0, %v1069
    %v1071 = vpop.f32.mrf.mxu0
    %v1072 = vpop.f32.mrf.mxu0
    %v1073 = vadd.f32 0.0, %v1072
    %v1074 = vpop.f32.mrf.mxu0
    %1075 = vmatprep.mubr.bf16.mxu0 0
    %1076 = vmatmul.mubr.bf16.gmra.mxu0 %v905
    %v1077 = vpop.f32.mrf.mxu0
    %v1078 = vadd.f32 0.0, %v1077
    %v1079 = vpop.f32.mrf.mxu0
    %v1080 = vpop.f32.mrf.mxu0
    %v1081 = vadd.f32 0.0, %v1080
    %v1082 = vpop.f32.mrf.mxu0
    %1083 = vmatprep.mubr.bf16.mxu0 0
    %1084 = vmatmul.mubr.bf16.gmra.mxu0 %v908
    %v1085 = vpop.f32.mrf.mxu0
    %v1086 = vadd.f32 0.0, %v1085
    %v1087 = vpop.f32.mrf.mxu0
    %v1088 = vpop.f32.mrf.mxu0
    %v1089 = vadd.f32 0.0, %v1088
    %v1090 = vpop.f32.mrf.mxu0
    %1091 = vmatprep.mubr.bf16.mxu0 0
    %1092 = vmatmul.mubr.bf16.gmra.mxu0 %v911
    %v1093 = vpop.f32.mrf.mxu0
    %v1094 = vadd.f32 0.0, %v1093
    %v1095 = vpop.f32.mrf.mxu0
    %v1096 = vpop.f32.mrf.mxu0
    %v1097 = vadd.f32 0.0, %v1096
    %v1098 = vpop.f32.mrf.mxu0
    %1099 = vmatprep.mubr.bf16.mxu0 0
    %1100 = vmatmul.mubr.bf16.gmra.mxu0 %v914
    %v1101 = vpop.f32.mrf.mxu0
    %v1102 = vadd.f32 0.0, %v1101
    %v1103 = vpop.f32.mrf.mxu0
    %v1104 = vpop.f32.mrf.mxu0
    %v1105 = vadd.f32 0.0, %v1104
    %v1106 = vpop.f32.mrf.mxu0
    %1107 = vmatprep.mubr.bf16.mxu0 0
    %1108 = vmatmul.mubr.bf16.gmra.mxu0 %v917
    %v1109 = vpop.f32.mrf.mxu0
    %v1110 = vadd.f32 0.0, %v1109
    %v1111 = vpop.f32.mrf.mxu0
    %v1112 = vpop.f32.mrf.mxu0
    %v1113 = vadd.f32 0.0, %v1112
    %v1114 = vpop.f32.mrf.mxu0
    %1115 = vmatprep.mubr.bf16.mxu0 0
    %1116 = vmatmul.mubr.bf16.gmra.mxu0 %v920
    %v1117 = vpop.f32.mrf.mxu0
    %v1118 = vadd.f32 0.0, %v1117
    %v1119 = vpop.f32.mrf.mxu0
    %v1120 = vpop.f32.mrf.mxu0
    %v1121 = vadd.f32 0.0, %v1120
    %v1122 = vpop.f32.mrf.mxu0
    %1123 = vmatprep.mubr.bf16.mxu0 0
    %1124 = vmatmul.mubr.bf16.gmra.mxu0 %v923
    %v1125 = vpop.f32.mrf.mxu0
    %v1126 = vadd.f32 0.0, %v1125
    %v1127 = vpop.f32.mrf.mxu0
    %v1128 = vpop.f32.mrf.mxu0
    %v1129 = vadd.f32 0.0, %v1128
    %v1130 = vpop.f32.mrf.mxu0
    %1131 = vmatprep.mubr.bf16.mxu0 0
    %1132 = vmatmul.mubr.bf16.gmra.mxu0 %v926
    %v1133 = vpop.f32.mrf.mxu0
    %v1134 = vadd.f32 0.0, %v1133
    %v1135 = vpop.f32.mrf.mxu0
    %v1136 = vpop.f32.mrf.mxu0
    %v1137 = vadd.f32 0.0, %v1136
    %v1138 = vpop.f32.mrf.mxu0
    %1139 = vmatprep.mubr.bf16.mxu0 0
    %1140 = vmatmul.mubr.bf16.gmra.mxu0 %v929
    %v1141 = vpop.f32.mrf.mxu0
    %v1142 = vadd.f32 0.0, %v1141
    %v1143 = vpop.f32.mrf.mxu0
    %v1144 = vpop.f32.mrf.mxu0
    %v1145 = vadd.f32 0.0, %v1144
    %v1146 = vpop.f32.mrf.mxu0
    %1147 = vmatprep.mubr.bf16.mxu0 0
    %1148 = vmatmul.mubr.bf16.gmra.mxu0 %v932
    %v1149 = vpop.f32.mrf.mxu0
    %v1150 = vadd.f32 0.0, %v1149
    %v1151 = vpop.f32.mrf.mxu0
    %v1152 = vpop.f32.mrf.mxu0
    %v1153 = vadd.f32 0.0, %v1152
    %v1154 = vpop.f32.mrf.mxu0
    %1155 = vmatprep.mubr.bf16.mxu0 0
    %1156 = vmatmul.mubr.bf16.gmra.mxu0 %v935
    %v1157 = vpop.f32.mrf.mxu0
    %v1158 = vadd.f32 0.0, %v1157
    %v1159 = vpop.f32.mrf.mxu0
    %v1160 = vpop.f32.mrf.mxu0
    %v1161 = vadd.f32 0.0, %v1160
    %v1162 = vpop.f32.mrf.mxu0
    %1163 = vmatprep.mubr.bf16.mxu0 0
    %1164 = vmatmul.mubr.bf16.gmra.mxu0 %v938
    %v1165 = vpop.f32.mrf.mxu0
    %v1166 = vadd.f32 0.0, %v1165
    %v1167 = vpop.f32.mrf.mxu0
    %v1168 = vpop.f32.mrf.mxu0
    %v1169 = vadd.f32 0.0, %v1168
    %v1170 = vpop.f32.mrf.mxu0
    %1171 = vmatprep.mubr.bf16.mxu0 0
    %1172 = vmatmul.mubr.bf16.gmra.mxu0 %v941
    %v1173 = vpop.f32.mrf.mxu0
    %v1174 = vadd.f32 0.0, %v1173
    %v1175 = vpop.f32.mrf.mxu0
    %v1176 = vpop.f32.mrf.mxu0
    %v1177 = vadd.f32 0.0, %v1176
    %v1178 = vpop.f32.mrf.mxu0
    %1179 = vmatprep.mubr.bf16.mxu0 0
    %1180 = vmatmul.mubr.bf16.gmra.mxu0 %v944
    %v1181 = vpop.f32.mrf.mxu0
    %v1182 = vadd.f32 0.0, %v1181
    %v1183 = vpop.f32.mrf.mxu0
    %v1184 = vpop.f32.mrf.mxu0
    %v1185 = vadd.f32 0.0, %v1184
    %v1186 = vpop.f32.mrf.mxu0
    %1187 = vmatprep.mubr.bf16.mxu0 0
    %1188 = vmatmul.mubr.bf16.gmra.mxu0 %v947
    %v1189 = vpop.f32.mrf.mxu0
    %v1190 = vadd.f32 0.0, %v1189
    %v1191 = vpop.f32.mrf.mxu0
    %v1192 = vpop.f32.mrf.mxu0
    %v1193 = vadd.f32 0.0, %v1192
    %v1194 = vpop.f32.mrf.mxu0
    %1195 = vmatprep.mubr.bf16.mxu0 0
    %1196 = vmatmul.mubr.bf16.gmra.mxu0 %v950
    %v1197 = vpop.f32.mrf.mxu0
    %v1198 = vadd.f32 0.0, %v1197
    %v1199 = vpop.f32.mrf.mxu0
    %v1200 = vpop.f32.mrf.mxu0
    %v1201 = vadd.f32 0.0, %v1200
    %v1202 = vpop.f32.mrf.mxu0
    %1203 = vmatprep.mubr.bf16.mxu0 0
    %1204 = vmatmul.mubr.bf16.gmra.mxu0 %v953
    %v1205 = vpop.f32.mrf.mxu0
    %v1206 = vadd.f32 0.0, %v1205
    %v1207 = vpop.f32.mrf.mxu0
    %v1208 = vpop.f32.mrf.mxu0
    %v1209 = vadd.f32 0.0, %v1208
    %v1210 = vpop.f32.mrf.mxu0
    %1211 = vdwg.mxu0
    %v1212 = vpack.c.bf16 %v993, %v990
    %v1213 = vpack.c.bf16 %v1001, %v998
    %v1214 = vpack.c.bf16 %v1009, %v1006
    %v1215 = vpack.c.bf16 %v1017, %v1014
    %v1216 = vpack.c.bf16 %v1025, %v1022
    %v1217 = vpack.c.bf16 %v1033, %v1030
    %v1218 = vpack.c.bf16 %v1041, %v1038
    %v1219 = vpack.c.bf16 %v1049, %v1046
    %v1220 = vpack.c.bf16 %v1057, %v1054
    %v1221 = vpack.c.bf16 %v1065, %v1062
    %v1222 = vpack.c.bf16 %v1073, %v1070
    %v1223 = vpack.c.bf16 %v1081, %v1078
    %v1224 = vpack.c.bf16 %v1089, %v1086
    %v1225 = vpack.c.bf16 %v1097, %v1094
    %v1226 = vpack.c.bf16 %v1105, %v1102
    %v1227 = vpack.c.bf16 %v1113, %v1110
    %v1228 = vpack.c.bf16 %v1121, %v1118
    %v1229 = vpack.c.bf16 %v1129, %v1126
    %v1230 = vpack.c.bf16 %v1137, %v1134
    %v1231 = vpack.c.bf16 %v1145, %v1142
    %v1232 = vpack.c.bf16 %v1153, %v1150
    %v1233 = vpack.c.bf16 %v1161, %v1158
    %v1234 = vpack.c.bf16 %v1169, %v1166
    %v1235 = vpack.c.bf16 %v1177, %v1174
    %v1236 = vpack.c.bf16 %v1185, %v1182
    %v1237 = vpack.c.bf16 %v1193, %v1190
    %v1238 = vpack.c.bf16 %v1201, %v1198
    %v1239 = vpack.c.bf16 %v1209, %v1206
    %v1240 = vld [vmem:[#allocation2] sm:$0xf]
    %v1241 = vld [vmem:[#allocation2 + $0x4] sm:$0xf]
    %v1242 = vld [vmem:[#allocation2 + $0x8] sm:$0xf]
    %v1243 = vld [vmem:[#allocation2 + $0xc] sm:$0xf]
    %v1244 = vld [vmem:[#allocation2 + $0x10] sm:$0xf]
    %v1245 = vld [vmem:[#allocation2 + $0x14] sm:$0xf]
    %v1246 = vld [vmem:[#allocation2 + $0x18] sm:$0xf]
    %v1247 = vld [vmem:[#allocation2 + $0x1c] sm:$0xf]
    %v1248 = vld [vmem:[#allocation2 + $0x20] sm:$0xf]
    %v1249 = vld [vmem:[#allocation2 + $0x24] sm:$0xf]
    %v1250 = vld [vmem:[#allocation2 + $0x28] sm:$0xf]
    %v1251 = vld [vmem:[#allocation2 + $0x2c] sm:$0xf]
    %v1252 = vld [vmem:[#allocation2 + $0x30] sm:$0xf]
    %v1253 = vld [vmem:[#allocation2 + $0x34] sm:$0xf]
    %v1254 = vld [vmem:[#allocation2 + $0x38] sm:$0xf]
    %v1255 = vld [vmem:[#allocation2 + $0x3c] sm:$0xf]
    %v1256 = vld [vmem:[#allocation2 + $0x40] sm:$0xf]
    %v1257 = vld [vmem:[#allocation2 + $0x44] sm:$0xf]
    %v1258 = vld [vmem:[#allocation2 + $0x48] sm:$0xf]
    %v1259 = vld [vmem:[#allocation2 + $0x4c] sm:$0xf]
    %v1260 = vld [vmem:[#allocation2 + $0x50] sm:$0xf]
    %v1261 = vld [vmem:[#allocation2 + $0x54] sm:$0xf]
    %v1262 = vld [vmem:[#allocation2 + $0x58] sm:$0xf]
    %v1263 = vld [vmem:[#allocation2 + $0x5c] sm:$0xf]
    %v1264 = vld [vmem:[#allocation2 + $0x60] sm:$0xf]
    %v1265 = vld [vmem:[#allocation2 + $0x64] sm:$0xf]
    %v1266 = vld [vmem:[#allocation2 + $0x68] sm:$0xf]
    %v1267 = vld [vmem:[#allocation2 + $0x6c] sm:$0xf]
    %v1272 = vunpack.c.l.b16 %v1244
    %v1273 = vunpack.c.l.b16 %v1245
    %v1274 = vunpack.c.l.b16 %v1246
    %v1275 = vunpack.c.l.b16 %v1247
    %v1276 = vpack.c.b16 %v1273, %v1272
    %v1277 = vpack.c.b16 %v1275, %v1274
    %v1281 = vsel %vm301, %v1216, 0
    %v1284 = vsel %vm301, %v1217, 0
    %v1287 = vsel %vm301, %v1218, 0
    %v1290 = vsel %vm301, %v1219, 0
    %1292 = vmatprep.subr.bf16.mxu0 0
    %1293 = vmatpush1.bf16.msra.mxu0 0
    %1294 = vmatprep.subr.bf16.mxu0 0
    %1295 = vmatpush1.bf16.msra.mxu0 0
    %1296 = vmatprep.subr.bf16.mxu0 0
    %1297 = vmatpush1.bf16.msra.mxu0 0
    %1298 = vmatprep.subr.bf16.mxu0 0
    %1299 = vmatpush1.bf16.msra.mxu0 0
    %1300 = vmatprep.subr.bf16.mxu0 0
    %1301 = vmatpush1.bf16.msra.mxu0 0
    %1302 = vmatprep.subr.bf16.mxu0 0
    %1303 = vmatpush1.bf16.msra.mxu0 0
    %1304 = vmatprep.subr.bf16.mxu0 0
    %1305 = vmatpush1.bf16.msra.mxu0 %v1277
    %1306 = vmatprep.subr.bf16.mxu0 0
    %1307 = vmatpush1.bf16.msra.mxu0 %v1276
    %1308 = vmatprep.subr.bf16.mxu0 0
    %1309 = vmatpush2.bf16.msra.mxu0 0
    %1310 = vmatprep.subr.bf16.mxu0 0
    %1311 = vmatpush2.bf16.msra.mxu0 0
    %1312 = vmatprep.subr.bf16.mxu0 0
    %1313 = vmatpush2.bf16.msra.mxu0 0
    %1314 = vmatprep.subr.bf16.mxu0 0
    %1315 = vmatpush2.bf16.msra.mxu0 0
    %1316 = vmatprep.subr.bf16.mxu0 0
    %1317 = vmatpush2.bf16.msra.mxu0 0
    %1318 = vmatprep.subr.bf16.mxu0 0
    %1319 = vmatpush2.bf16.msra.mxu0 0
    %1320 = vmatprep.subr.bf16.mxu0 0
    %1321 = vmatpush2.bf16.msra.mxu0 0
    %1322 = vmatprep.subr.bf16.mxu0 0
    %1323 = vmatpush2.bf16.msra.mxu0 0
    %1324 = vmatprep.mubr.bf16.mxu0 0
    %1325 = vmatmul.mubr.bf16.gmra.mxu0 %v1281
    %v1326 = vpop.f32.mrf.mxu0
    %v1327 = vadd.f32 0.0, %v1326
    %v1328 = vpop.f32.mrf.mxu0
    %v1329 = vpop.f32.mrf.mxu0
    %v1330 = vadd.f32 0.0, %v1329
    %v1331 = vpop.f32.mrf.mxu0
    %1332 = vmatprep.mubr.bf16.mxu0 0
    %1333 = vmatmul.mubr.bf16.gmra.mxu0 %v1284
    %v1334 = vpop.f32.mrf.mxu0
    %v1335 = vadd.f32 0.0, %v1334
    %v1336 = vpop.f32.mrf.mxu0
    %v1337 = vpop.f32.mrf.mxu0
    %v1338 = vadd.f32 0.0, %v1337
    %v1339 = vpop.f32.mrf.mxu0
    %1340 = vmatprep.mubr.bf16.mxu0 0
    %1341 = vmatmul.mubr.bf16.gmra.mxu0 %v1287
    %v1342 = vpop.f32.mrf.mxu0
    %v1343 = vadd.f32 0.0, %v1342
    %v1344 = vpop.f32.mrf.mxu0
    %v1345 = vpop.f32.mrf.mxu0
    %v1346 = vadd.f32 0.0, %v1345
    %v1347 = vpop.f32.mrf.mxu0
    %1348 = vmatprep.mubr.bf16.mxu0 0
    %1349 = vmatmul.mubr.bf16.gmra.mxu0 %v1290
    %v1350 = vpop.f32.mrf.mxu0
    %v1351 = vadd.f32 0.0, %v1350
    %v1352 = vpop.f32.mrf.mxu0
    %v1353 = vpop.f32.mrf.mxu0
    %v1354 = vadd.f32 0.0, %v1353
    %v1355 = vpop.f32.mrf.mxu0
    %1356 = vdwg.mxu0
    %v1361 = vunpack.c.l.b16 %v1240
    %v1362 = vunpack.c.l.b16 %v1241
    %v1363 = vunpack.c.l.b16 %v1242
    %v1364 = vunpack.c.l.b16 %v1243
    %v1365 = vpack.c.b16 %v1362, %v1361
    %v1366 = vpack.c.b16 %v1364, %v1363
    %v1370 = vsel %vm301, %v1212, 0
    %v1373 = vsel %vm301, %v1213, 0
    %v1376 = vsel %vm301, %v1214, 0
    %v1379 = vsel %vm301, %v1215, 0
    %1381 = vmatprep.subr.bf16.mxu0 0
    %1382 = vmatpush1.bf16.msra.mxu0 0
    %1383 = vmatprep.subr.bf16.mxu0 0
    %1384 = vmatpush1.bf16.msra.mxu0 0
    %1385 = vmatprep.subr.bf16.mxu0 0
    %1386 = vmatpush1.bf16.msra.mxu0 0
    %1387 = vmatprep.subr.bf16.mxu0 0
    %1388 = vmatpush1.bf16.msra.mxu0 0
    %1389 = vmatprep.subr.bf16.mxu0 0
    %1390 = vmatpush1.bf16.msra.mxu0 0
    %1391 = vmatprep.subr.bf16.mxu0 0
    %1392 = vmatpush1.bf16.msra.mxu0 0
    %1393 = vmatprep.subr.bf16.mxu0 0
    %1394 = vmatpush1.bf16.msra.mxu0 %v1366
    %1395 = vmatprep.subr.bf16.mxu0 0
    %1396 = vmatpush1.bf16.msra.mxu0 %v1365
    %1397 = vmatprep.subr.bf16.mxu0 0
    %1398 = vmatpush2.bf16.msra.mxu0 0
    %1399 = vmatprep.subr.bf16.mxu0 0
    %1400 = vmatpush2.bf16.msra.mxu0 0
    %1401 = vmatprep.subr.bf16.mxu0 0
    %1402 = vmatpush2.bf16.msra.mxu0 0
    %1403 = vmatprep.subr.bf16.mxu0 0
    %1404 = vmatpush2.bf16.msra.mxu0 0
    %1405 = vmatprep.subr.bf16.mxu0 0
    %1406 = vmatpush2.bf16.msra.mxu0 0
    %1407 = vmatprep.subr.bf16.mxu0 0
    %1408 = vmatpush2.bf16.msra.mxu0 0
    %1409 = vmatprep.subr.bf16.mxu0 0
    %1410 = vmatpush2.bf16.msra.mxu0 0
    %1411 = vmatprep.subr.bf16.mxu0 0
    %1412 = vmatpush2.bf16.msra.mxu0 0
    %1413 = vmatprep.mubr.bf16.mxu0 0
    %1414 = vmatmul.mubr.bf16.gmra.mxu0 %v1370
    %v1415 = vpop.f32.mrf.mxu0
    %v1416 = vadd.f32 %v1327, %v1415
    %v1417 = vpop.f32.mrf.mxu0
    %v1418 = vpop.f32.mrf.mxu0
    %v1419 = vadd.f32 %v1330, %v1418
    %v1420 = vpop.f32.mrf.mxu0
    %1421 = vmatprep.mubr.bf16.mxu0 0
    %1422 = vmatmul.mubr.bf16.gmra.mxu0 %v1373
    %v1423 = vpop.f32.mrf.mxu0
    %v1424 = vadd.f32 %v1335, %v1423
    %v1425 = vpop.f32.mrf.mxu0
    %v1426 = vpop.f32.mrf.mxu0
    %v1427 = vadd.f32 %v1338, %v1426
    %v1428 = vpop.f32.mrf.mxu0
    %1429 = vmatprep.mubr.bf16.mxu0 0
    %1430 = vmatmul.mubr.bf16.gmra.mxu0 %v1376
    %v1431 = vpop.f32.mrf.mxu0
    %v1432 = vadd.f32 %v1343, %v1431
    %v1433 = vpop.f32.mrf.mxu0
    %v1434 = vpop.f32.mrf.mxu0
    %v1435 = vadd.f32 %v1346, %v1434
    %v1436 = vpop.f32.mrf.mxu0
    %1437 = vmatprep.mubr.bf16.mxu0 0
    %1438 = vmatmul.mubr.bf16.gmra.mxu0 %v1379
    %v1439 = vpop.f32.mrf.mxu0
    %v1440 = vadd.f32 %v1351, %v1439
    %v1441 = vpop.f32.mrf.mxu0
    %v1442 = vpop.f32.mrf.mxu0
    %v1443 = vadd.f32 %v1354, %v1442
    %v1444 = vpop.f32.mrf.mxu0
    %1445 = vdwg.mxu0
    %v1450 = vunpack.c.l.b16 %v1248
    %v1451 = vunpack.c.l.b16 %v1249
    %v1452 = vunpack.c.l.b16 %v1250
    %v1453 = vunpack.c.l.b16 %v1251
    %v1454 = vpack.c.b16 %v1451, %v1450
    %v1455 = vpack.c.b16 %v1453, %v1452
    %v1459 = vsel %vm301, %v1220, 0
    %v1462 = vsel %vm301, %v1221, 0
    %v1465 = vsel %vm301, %v1222, 0
    %v1468 = vsel %vm301, %v1223, 0
    %1470 = vmatprep.subr.bf16.mxu0 0
    %1471 = vmatpush1.bf16.msra.mxu0 0
    %1472 = vmatprep.subr.bf16.mxu0 0
    %1473 = vmatpush1.bf16.msra.mxu0 0
    %1474 = vmatprep.subr.bf16.mxu0 0
    %1475 = vmatpush1.bf16.msra.mxu0 0
    %1476 = vmatprep.subr.bf16.mxu0 0
    %1477 = vmatpush1.bf16.msra.mxu0 0
    %1478 = vmatprep.subr.bf16.mxu0 0
    %1479 = vmatpush1.bf16.msra.mxu0 0
    %1480 = vmatprep.subr.bf16.mxu0 0
    %1481 = vmatpush1.bf16.msra.mxu0 0
    %1482 = vmatprep.subr.bf16.mxu0 0
    %1483 = vmatpush1.bf16.msra.mxu0 %v1455
    %1484 = vmatprep.subr.bf16.mxu0 0
    %1485 = vmatpush1.bf16.msra.mxu0 %v1454
    %1486 = vmatprep.subr.bf16.mxu0 0
    %1487 = vmatpush2.bf16.msra.mxu0 0
    %1488 = vmatprep.subr.bf16.mxu0 0
    %1489 = vmatpush2.bf16.msra.mxu0 0
    %1490 = vmatprep.subr.bf16.mxu0 0
    %1491 = vmatpush2.bf16.msra.mxu0 0
    %1492 = vmatprep.subr.bf16.mxu0 0
    %1493 = vmatpush2.bf16.msra.mxu0 0
    %1494 = vmatprep.subr.bf16.mxu0 0
    %1495 = vmatpush2.bf16.msra.mxu0 0
    %1496 = vmatprep.subr.bf16.mxu0 0
    %1497 = vmatpush2.bf16.msra.mxu0 0
    %1498 = vmatprep.subr.bf16.mxu0 0
    %1499 = vmatpush2.bf16.msra.mxu0 0
    %1500 = vmatprep.subr.bf16.mxu0 0
    %1501 = vmatpush2.bf16.msra.mxu0 0
    %1502 = vmatprep.mubr.bf16.mxu0 0
    %1503 = vmatmul.mubr.bf16.gmra.mxu0 %v1459
    %v1504 = vpop.f32.mrf.mxu0
    %v1505 = vadd.f32 0.0, %v1504
    %v1506 = vpop.f32.mrf.mxu0
    %v1507 = vpop.f32.mrf.mxu0
    %v1508 = vadd.f32 0.0, %v1507
    %v1509 = vpop.f32.mrf.mxu0
    %1510 = vmatprep.mubr.bf16.mxu0 0
    %1511 = vmatmul.mubr.bf16.gmra.mxu0 %v1462
    %v1512 = vpop.f32.mrf.mxu0
    %v1513 = vadd.f32 0.0, %v1512
    %v1514 = vpop.f32.mrf.mxu0
    %v1515 = vpop.f32.mrf.mxu0
    %v1516 = vadd.f32 0.0, %v1515
    %v1517 = vpop.f32.mrf.mxu0
    %1518 = vmatprep.mubr.bf16.mxu0 0
    %1519 = vmatmul.mubr.bf16.gmra.mxu0 %v1465
    %v1520 = vpop.f32.mrf.mxu0
    %v1521 = vadd.f32 0.0, %v1520
    %v1522 = vpop.f32.mrf.mxu0
    %v1523 = vpop.f32.mrf.mxu0
    %v1524 = vadd.f32 0.0, %v1523
    %v1525 = vpop.f32.mrf.mxu0
    %1526 = vmatprep.mubr.bf16.mxu0 0
    %1527 = vmatmul.mubr.bf16.gmra.mxu0 %v1468
    %v1528 = vpop.f32.mrf.mxu0
    %v1529 = vadd.f32 0.0, %v1528
    %v1530 = vpop.f32.mrf.mxu0
    %v1531 = vpop.f32.mrf.mxu0
    %v1532 = vadd.f32 0.0, %v1531
    %v1533 = vpop.f32.mrf.mxu0
    %1534 = vdwg.mxu0
    %v1535 = vadd.f32 %v1416, %v1505
    %v1536 = vadd.f32 %v1419, %v1508
    %v1537 = vadd.f32 %v1424, %v1513
    %v1538 = vadd.f32 %v1427, %v1516
    %v1539 = vadd.f32 %v1432, %v1521
    %v1540 = vadd.f32 %v1435, %v1524
    %v1541 = vadd.f32 %v1440, %v1529
    %v1542 = vadd.f32 %v1443, %v1532
    %v1547 = vunpack.c.l.b16 %v1252
    %v1548 = vunpack.c.l.b16 %v1253
    %v1549 = vunpack.c.l.b16 %v1254
    %v1550 = vunpack.c.l.b16 %v1255
    %v1551 = vpack.c.b16 %v1548, %v1547
    %v1552 = vpack.c.b16 %v1550, %v1549
    %v1556 = vsel %vm301, %v1224, 0
    %v1559 = vsel %vm301, %v1225, 0
    %v1562 = vsel %vm301, %v1226, 0
    %v1565 = vsel %vm301, %v1227, 0
    %1567 = vmatprep.subr.bf16.mxu0 0
    %1568 = vmatpush1.bf16.msra.mxu0 0
    %1569 = vmatprep.subr.bf16.mxu0 0
    %1570 = vmatpush1.bf16.msra.mxu0 0
    %1571 = vmatprep.subr.bf16.mxu0 0
    %1572 = vmatpush1.bf16.msra.mxu0 0
    %1573 = vmatprep.subr.bf16.mxu0 0
    %1574 = vmatpush1.bf16.msra.mxu0 0
    %1575 = vmatprep.subr.bf16.mxu0 0
    %1576 = vmatpush1.bf16.msra.mxu0 0
    %1577 = vmatprep.subr.bf16.mxu0 0
    %1578 = vmatpush1.bf16.msra.mxu0 0
    %1579 = vmatprep.subr.bf16.mxu0 0
    %1580 = vmatpush1.bf16.msra.mxu0 %v1552
    %1581 = vmatprep.subr.bf16.mxu0 0
    %1582 = vmatpush1.bf16.msra.mxu0 %v1551
    %1583 = vmatprep.subr.bf16.mxu0 0
    %1584 = vmatpush2.bf16.msra.mxu0 0
    %1585 = vmatprep.subr.bf16.mxu0 0
    %1586 = vmatpush2.bf16.msra.mxu0 0
    %1587 = vmatprep.subr.bf16.mxu0 0
    %1588 = vmatpush2.bf16.msra.mxu0 0
    %1589 = vmatprep.subr.bf16.mxu0 0
    %1590 = vmatpush2.bf16.msra.mxu0 0
    %1591 = vmatprep.subr.bf16.mxu0 0
    %1592 = vmatpush2.bf16.msra.mxu0 0
    %1593 = vmatprep.subr.bf16.mxu0 0
    %1594 = vmatpush2.bf16.msra.mxu0 0
    %1595 = vmatprep.subr.bf16.mxu0 0
    %1596 = vmatpush2.bf16.msra.mxu0 0
    %1597 = vmatprep.subr.bf16.mxu0 0
    %1598 = vmatpush2.bf16.msra.mxu0 0
    %1599 = vmatprep.mubr.bf16.mxu0 0
    %1600 = vmatmul.mubr.bf16.gmra.mxu0 %v1556
    %v1601 = vpop.f32.mrf.mxu0
    %v1602 = vadd.f32 0.0, %v1601
    %v1603 = vpop.f32.mrf.mxu0
    %v1604 = vpop.f32.mrf.mxu0
    %v1605 = vadd.f32 0.0, %v1604
    %v1606 = vpop.f32.mrf.mxu0
    %1607 = vmatprep.mubr.bf16.mxu0 0
    %1608 = vmatmul.mubr.bf16.gmra.mxu0 %v1559
    %v1609 = vpop.f32.mrf.mxu0
    %v1610 = vadd.f32 0.0, %v1609
    %v1611 = vpop.f32.mrf.mxu0
    %v1612 = vpop.f32.mrf.mxu0
    %v1613 = vadd.f32 0.0, %v1612
    %v1614 = vpop.f32.mrf.mxu0
    %1615 = vmatprep.mubr.bf16.mxu0 0
    %1616 = vmatmul.mubr.bf16.gmra.mxu0 %v1562
    %v1617 = vpop.f32.mrf.mxu0
    %v1618 = vadd.f32 0.0, %v1617
    %v1619 = vpop.f32.mrf.mxu0
    %v1620 = vpop.f32.mrf.mxu0
    %v1621 = vadd.f32 0.0, %v1620
    %v1622 = vpop.f32.mrf.mxu0
    %1623 = vmatprep.mubr.bf16.mxu0 0
    %1624 = vmatmul.mubr.bf16.gmra.mxu0 %v1565
    %v1625 = vpop.f32.mrf.mxu0
    %v1626 = vadd.f32 0.0, %v1625
    %v1627 = vpop.f32.mrf.mxu0
    %v1628 = vpop.f32.mrf.mxu0
    %v1629 = vadd.f32 0.0, %v1628
    %v1630 = vpop.f32.mrf.mxu0
    %1631 = vdwg.mxu0
    %v1632 = vadd.f32 %v1535, %v1602
    %v1633 = vadd.f32 %v1536, %v1605
    %v1634 = vadd.f32 %v1537, %v1610
    %v1635 = vadd.f32 %v1538, %v1613
    %v1636 = vadd.f32 %v1539, %v1618
    %v1637 = vadd.f32 %v1540, %v1621
    %v1638 = vadd.f32 %v1541, %v1626
    %v1639 = vadd.f32 %v1542, %v1629
    %v1644 = vunpack.c.l.b16 %v1256
    %v1645 = vunpack.c.l.b16 %v1257
    %v1646 = vunpack.c.l.b16 %v1258
    %v1647 = vunpack.c.l.b16 %v1259
    %v1648 = vpack.c.b16 %v1645, %v1644
    %v1649 = vpack.c.b16 %v1647, %v1646
    %v1653 = vsel %vm301, %v1228, 0
    %v1656 = vsel %vm301, %v1229, 0
    %v1659 = vsel %vm301, %v1230, 0
    %v1662 = vsel %vm301, %v1231, 0
    %1664 = vmatprep.subr.bf16.mxu0 0
    %1665 = vmatpush1.bf16.msra.mxu0 0
    %1666 = vmatprep.subr.bf16.mxu0 0
    %1667 = vmatpush1.bf16.msra.mxu0 0
    %1668 = vmatprep.subr.bf16.mxu0 0
    %1669 = vmatpush1.bf16.msra.mxu0 0
    %1670 = vmatprep.subr.bf16.mxu0 0
    %1671 = vmatpush1.bf16.msra.mxu0 0
    %1672 = vmatprep.subr.bf16.mxu0 0
    %1673 = vmatpush1.bf16.msra.mxu0 0
    %1674 = vmatprep.subr.bf16.mxu0 0
    %1675 = vmatpush1.bf16.msra.mxu0 0
    %1676 = vmatprep.subr.bf16.mxu0 0
    %1677 = vmatpush1.bf16.msra.mxu0 %v1649
    %1678 = vmatprep.subr.bf16.mxu0 0
    %1679 = vmatpush1.bf16.msra.mxu0 %v1648
    %1680 = vmatprep.subr.bf16.mxu0 0
    %1681 = vmatpush2.bf16.msra.mxu0 0
    %1682 = vmatprep.subr.bf16.mxu0 0
    %1683 = vmatpush2.bf16.msra.mxu0 0
    %1684 = vmatprep.subr.bf16.mxu0 0
    %1685 = vmatpush2.bf16.msra.mxu0 0
    %1686 = vmatprep.subr.bf16.mxu0 0
    %1687 = vmatpush2.bf16.msra.mxu0 0
    %1688 = vmatprep.subr.bf16.mxu0 0
    %1689 = vmatpush2.bf16.msra.mxu0 0
    %1690 = vmatprep.subr.bf16.mxu0 0
    %1691 = vmatpush2.bf16.msra.mxu0 0
    %1692 = vmatprep.subr.bf16.mxu0 0
    %1693 = vmatpush2.bf16.msra.mxu0 0
    %1694 = vmatprep.subr.bf16.mxu0 0
    %1695 = vmatpush2.bf16.msra.mxu0 0
    %1696 = vmatprep.mubr.bf16.mxu0 0
    %1697 = vmatmul.mubr.bf16.gmra.mxu0 %v1653
    %v1698 = vpop.f32.mrf.mxu0
    %v1699 = vadd.f32 0.0, %v1698
    %v1700 = vpop.f32.mrf.mxu0
    %v1701 = vpop.f32.mrf.mxu0
    %v1702 = vadd.f32 0.0, %v1701
    %v1703 = vpop.f32.mrf.mxu0
    %1704 = vmatprep.mubr.bf16.mxu0 0
    %1705 = vmatmul.mubr.bf16.gmra.mxu0 %v1656
    %v1706 = vpop.f32.mrf.mxu0
    %v1707 = vadd.f32 0.0, %v1706
    %v1708 = vpop.f32.mrf.mxu0
    %v1709 = vpop.f32.mrf.mxu0
    %v1710 = vadd.f32 0.0, %v1709
    %v1711 = vpop.f32.mrf.mxu0
    %1712 = vmatprep.mubr.bf16.mxu0 0
    %1713 = vmatmul.mubr.bf16.gmra.mxu0 %v1659
    %v1714 = vpop.f32.mrf.mxu0
    %v1715 = vadd.f32 0.0, %v1714
    %v1716 = vpop.f32.mrf.mxu0
    %v1717 = vpop.f32.mrf.mxu0
    %v1718 = vadd.f32 0.0, %v1717
    %v1719 = vpop.f32.mrf.mxu0
    %1720 = vmatprep.mubr.bf16.mxu0 0
    %1721 = vmatmul.mubr.bf16.gmra.mxu0 %v1662
    %v1722 = vpop.f32.mrf.mxu0
    %v1723 = vadd.f32 0.0, %v1722
    %v1724 = vpop.f32.mrf.mxu0
    %v1725 = vpop.f32.mrf.mxu0
    %v1726 = vadd.f32 0.0, %v1725
    %v1727 = vpop.f32.mrf.mxu0
    %1728 = vdwg.mxu0
    %v1729 = vadd.f32 %v1632, %v1699
    %v1730 = vadd.f32 %v1633, %v1702
    %v1731 = vadd.f32 %v1634, %v1707
    %v1732 = vadd.f32 %v1635, %v1710
    %v1733 = vadd.f32 %v1636, %v1715
    %v1734 = vadd.f32 %v1637, %v1718
    %v1735 = vadd.f32 %v1638, %v1723
    %v1736 = vadd.f32 %v1639, %v1726
    %v1741 = vunpack.c.l.b16 %v1260
    %v1742 = vunpack.c.l.b16 %v1261
    %v1743 = vunpack.c.l.b16 %v1262
    %v1744 = vunpack.c.l.b16 %v1263
    %v1745 = vpack.c.b16 %v1742, %v1741
    %v1746 = vpack.c.b16 %v1744, %v1743
    %v1750 = vsel %vm301, %v1232, 0
    %v1753 = vsel %vm301, %v1233, 0
    %v1756 = vsel %vm301, %v1234, 0
    %v1759 = vsel %vm301, %v1235, 0
    %1761 = vmatprep.subr.bf16.mxu0 0
    %1762 = vmatpush1.bf16.msra.mxu0 0
    %1763 = vmatprep.subr.bf16.mxu0 0
    %1764 = vmatpush1.bf16.msra.mxu0 0
    %1765 = vmatprep.subr.bf16.mxu0 0
    %1766 = vmatpush1.bf16.msra.mxu0 0
    %1767 = vmatprep.subr.bf16.mxu0 0
    %1768 = vmatpush1.bf16.msra.mxu0 0
    %1769 = vmatprep.subr.bf16.mxu0 0
    %1770 = vmatpush1.bf16.msra.mxu0 0
    %1771 = vmatprep.subr.bf16.mxu0 0
    %1772 = vmatpush1.bf16.msra.mxu0 0
    %1773 = vmatprep.subr.bf16.mxu0 0
    %1774 = vmatpush1.bf16.msra.mxu0 %v1746
    %1775 = vmatprep.subr.bf16.mxu0 0
    %1776 = vmatpush1.bf16.msra.mxu0 %v1745
    %1777 = vmatprep.subr.bf16.mxu0 0
    %1778 = vmatpush2.bf16.msra.mxu0 0
    %1779 = vmatprep.subr.bf16.mxu0 0
    %1780 = vmatpush2.bf16.msra.mxu0 0
    %1781 = vmatprep.subr.bf16.mxu0 0
    %1782 = vmatpush2.bf16.msra.mxu0 0
    %1783 = vmatprep.subr.bf16.mxu0 0
    %1784 = vmatpush2.bf16.msra.mxu0 0
    %1785 = vmatprep.subr.bf16.mxu0 0
    %1786 = vmatpush2.bf16.msra.mxu0 0
    %1787 = vmatprep.subr.bf16.mxu0 0
    %1788 = vmatpush2.bf16.msra.mxu0 0
    %1789 = vmatprep.subr.bf16.mxu0 0
    %1790 = vmatpush2.bf16.msra.mxu0 0
    %1791 = vmatprep.subr.bf16.mxu0 0
    %1792 = vmatpush2.bf16.msra.mxu0 0
    %1793 = vmatprep.mubr.bf16.mxu0 0
    %1794 = vmatmul.mubr.bf16.gmra.mxu0 %v1750
    %v1795 = vpop.f32.mrf.mxu0
    %v1796 = vadd.f32 0.0, %v1795
    %v1797 = vpop.f32.mrf.mxu0
    %v1798 = vpop.f32.mrf.mxu0
    %v1799 = vadd.f32 0.0, %v1798
    %v1800 = vpop.f32.mrf.mxu0
    %1801 = vmatprep.mubr.bf16.mxu0 0
    %1802 = vmatmul.mubr.bf16.gmra.mxu0 %v1753
    %v1803 = vpop.f32.mrf.mxu0
    %v1804 = vadd.f32 0.0, %v1803
    %v1805 = vpop.f32.mrf.mxu0
    %v1806 = vpop.f32.mrf.mxu0
    %v1807 = vadd.f32 0.0, %v1806
    %v1808 = vpop.f32.mrf.mxu0
    %1809 = vmatprep.mubr.bf16.mxu0 0
    %1810 = vmatmul.mubr.bf16.gmra.mxu0 %v1756
    %v1811 = vpop.f32.mrf.mxu0
    %v1812 = vadd.f32 0.0, %v1811
    %v1813 = vpop.f32.mrf.mxu0
    %v1814 = vpop.f32.mrf.mxu0
    %v1815 = vadd.f32 0.0, %v1814
    %v1816 = vpop.f32.mrf.mxu0
    %1817 = vmatprep.mubr.bf16.mxu0 0
    %1818 = vmatmul.mubr.bf16.gmra.mxu0 %v1759
    %v1819 = vpop.f32.mrf.mxu0
    %v1820 = vadd.f32 0.0, %v1819
    %v1821 = vpop.f32.mrf.mxu0
    %v1822 = vpop.f32.mrf.mxu0
    %v1823 = vadd.f32 0.0, %v1822
    %v1824 = vpop.f32.mrf.mxu0
    %1825 = vdwg.mxu0
    %v1826 = vadd.f32 %v1729, %v1796
    %v1827 = vadd.f32 %v1730, %v1799
    %v1828 = vadd.f32 %v1731, %v1804
    %v1829 = vadd.f32 %v1732, %v1807
    %v1830 = vadd.f32 %v1733, %v1812
    %v1831 = vadd.f32 %v1734, %v1815
    %v1832 = vadd.f32 %v1735, %v1820
    %v1833 = vadd.f32 %v1736, %v1823
    %v1838 = vunpack.c.l.b16 %v1264
    %v1839 = vunpack.c.l.b16 %v1265
    %v1840 = vunpack.c.l.b16 %v1266
    %v1841 = vunpack.c.l.b16 %v1267
    %v1842 = vpack.c.b16 %v1839, %v1838
    %v1843 = vpack.c.b16 %v1841, %v1840
    %v1847 = vsel %vm301, %v1236, 0
    %v1850 = vsel %vm301, %v1237, 0
    %v1853 = vsel %vm301, %v1238, 0
    %v1856 = vsel %vm301, %v1239, 0
    %1858 = vmatprep.subr.bf16.mxu0 0
    %1859 = vmatpush1.bf16.msra.mxu0 0
    %1860 = vmatprep.subr.bf16.mxu0 0
    %1861 = vmatpush1.bf16.msra.mxu0 0
    %1862 = vmatprep.subr.bf16.mxu0 0
    %1863 = vmatpush1.bf16.msra.mxu0 0
    %1864 = vmatprep.subr.bf16.mxu0 0
    %1865 = vmatpush1.bf16.msra.mxu0 0
    %1866 = vmatprep.subr.bf16.mxu0 0
    %1867 = vmatpush1.bf16.msra.mxu0 0
    %1868 = vmatprep.subr.bf16.mxu0 0
    %1869 = vmatpush1.bf16.msra.mxu0 0
    %1870 = vmatprep.subr.bf16.mxu0 0
    %1871 = vmatpush1.bf16.msra.mxu0 %v1843
    %1872 = vmatprep.subr.bf16.mxu0 0
    %1873 = vmatpush1.bf16.msra.mxu0 %v1842
    %1874 = vmatprep.subr.bf16.mxu0 0
    %1875 = vmatpush2.bf16.msra.mxu0 0
    %1876 = vmatprep.subr.bf16.mxu0 0
    %1877 = vmatpush2.bf16.msra.mxu0 0
    %1878 = vmatprep.subr.bf16.mxu0 0
    %1879 = vmatpush2.bf16.msra.mxu0 0
    %1880 = vmatprep.subr.bf16.mxu0 0
    %1881 = vmatpush2.bf16.msra.mxu0 0
    %1882 = vmatprep.subr.bf16.mxu0 0
    %1883 = vmatpush2.bf16.msra.mxu0 0
    %1884 = vmatprep.subr.bf16.mxu0 0
    %1885 = vmatpush2.bf16.msra.mxu0 0
    %1886 = vmatprep.subr.bf16.mxu0 0
    %1887 = vmatpush2.bf16.msra.mxu0 0
    %1888 = vmatprep.subr.bf16.mxu0 0
    %1889 = vmatpush2.bf16.msra.mxu0 0
    %1890 = vmatprep.mubr.bf16.mxu0 0
    %1891 = vmatmul.mubr.bf16.gmra.mxu0 %v1847
    %v1892 = vpop.f32.mrf.mxu0
    %v1893 = vadd.f32 0.0, %v1892
    %v1894 = vpop.f32.mrf.mxu0
    %v1895 = vpop.f32.mrf.mxu0
    %v1896 = vadd.f32 0.0, %v1895
    %v1897 = vpop.f32.mrf.mxu0
    %1898 = vmatprep.mubr.bf16.mxu0 0
    %1899 = vmatmul.mubr.bf16.gmra.mxu0 %v1850
    %v1900 = vpop.f32.mrf.mxu0
    %v1901 = vadd.f32 0.0, %v1900
    %v1902 = vpop.f32.mrf.mxu0
    %v1903 = vpop.f32.mrf.mxu0
    %v1904 = vadd.f32 0.0, %v1903
    %v1905 = vpop.f32.mrf.mxu0
    %1906 = vmatprep.mubr.bf16.mxu0 0
    %1907 = vmatmul.mubr.bf16.gmra.mxu0 %v1853
    %v1908 = vpop.f32.mrf.mxu0
    %v1909 = vadd.f32 0.0, %v1908
    %v1910 = vpop.f32.mrf.mxu0
    %v1911 = vpop.f32.mrf.mxu0
    %v1912 = vadd.f32 0.0, %v1911
    %v1913 = vpop.f32.mrf.mxu0
    %1914 = vmatprep.mubr.bf16.mxu0 0
    %1915 = vmatmul.mubr.bf16.gmra.mxu0 %v1856
    %v1916 = vpop.f32.mrf.mxu0
    %v1917 = vadd.f32 0.0, %v1916
    %v1918 = vpop.f32.mrf.mxu0
    %v1919 = vpop.f32.mrf.mxu0
    %v1920 = vadd.f32 0.0, %v1919
    %v1921 = vpop.f32.mrf.mxu0
    %1922 = vdwg.mxu0
    %v1923 = vadd.f32 %v1826, %v1893
    %v1924 = vadd.f32 %v1827, %v1896
    %v1925 = vadd.f32 %v1828, %v1901
    %v1926 = vadd.f32 %v1829, %v1904
    %v1927 = vadd.f32 %v1830, %v1909
    %v1928 = vadd.f32 %v1831, %v1912
    %v1929 = vadd.f32 %v1832, %v1917
    %v1930 = vadd.f32 %v1833, %v1920
    %v1931 = vsel %vm301, %v1923, 0.0
    %1932 = vadd.xlane.f32.xlu0 %v1931
    %v1933 = vpop.xlane.xlu0 %1932
    %v1934 = vsel %vm301, %v1924, 0.0
    %1935 = vadd.xlane.f32.xlu0 %v1934
    %v1936 = vpop.xlane.xlu0 %1935
    %v1937 = vsel %vm301, %v1925, 0.0
    %1938 = vadd.xlane.f32.xlu0 %v1937
    %v1939 = vpop.xlane.xlu0 %1938
    %v1940 = vsel %vm301, %v1926, 0.0
    %1941 = vadd.xlane.f32.xlu0 %v1940
    %v1942 = vpop.xlane.xlu0 %1941
    %v1943 = vsel %vm301, %v1927, 0.0
    %1944 = vadd.xlane.f32.xlu0 %v1943
    %v1945 = vpop.xlane.xlu0 %1944
    %v1946 = vsel %vm301, %v1928, 0.0
    %1947 = vadd.xlane.f32.xlu0 %v1946
    %v1948 = vpop.xlane.xlu0 %1947
    %v1949 = vsel %vm301, %v1929, 0.0
    %1950 = vadd.xlane.f32.xlu0 %v1949
    %v1951 = vpop.xlane.xlu0 %1950
    %v1952 = vsel %vm301, %v1930, 0.0
    %1953 = vadd.xlane.f32.xlu0 %v1952
    %v1954 = vpop.xlane.xlu0 %1953
    %v1955 = vmul.f32 %v1933, %v326
    %v1956 = vmul.f32 %v1936, %v326
    %v1957 = vmul.f32 %v1939, %v326
    %v1958 = vmul.f32 %v1942, %v326
    %v1959 = vmul.f32 %v1945, %v326
    %v1960 = vmul.f32 %v1948, %v326
    %v1961 = vmul.f32 %v1951, %v326
    %v1962 = vmul.f32 %v1954, %v326
    %v1963 = vsub.f32 %v1923, %v1955
    %v1964 = vsub.f32 %v1924, %v1956
    %v1965 = vsub.f32 %v1925, %v1957
    %v1966 = vsub.f32 %v1926, %v1958
    %v1967 = vsub.f32 %v1927, %v1959
    %v1968 = vsub.f32 %v1928, %v1960
    %v1969 = vsub.f32 %v1929, %v1961
    %v1970 = vsub.f32 %v1930, %v1962
    %v1971 = vmul.f32 %v1963, %v1963
    %v1972 = vmul.f32 %v1964, %v1964
    %v1973 = vmul.f32 %v1965, %v1965
    %v1974 = vmul.f32 %v1966, %v1966
    %v1975 = vmul.f32 %v1967, %v1967
    %v1976 = vmul.f32 %v1968, %v1968
    %v1977 = vmul.f32 %v1969, %v1969
    %v1978 = vmul.f32 %v1970, %v1970
    %v1979 = vsel %vm301, %v1971, 0.0
    %1980 = vadd.xlane.f32.xlu0 %v1979
    %v1981 = vpop.xlane.xlu0 %1980
    %v1982 = vsel %vm301, %v1972, 0.0
    %1983 = vadd.xlane.f32.xlu0 %v1982
    %v1984 = vpop.xlane.xlu0 %1983
    %v1985 = vsel %vm301, %v1973, 0.0
    %1986 = vadd.xlane.f32.xlu0 %v1985
    %v1987 = vpop.xlane.xlu0 %1986
    %v1988 = vsel %vm301, %v1974, 0.0
    %1989 = vadd.xlane.f32.xlu0 %v1988
    %v1990 = vpop.xlane.xlu0 %1989
    %v1991 = vsel %vm301, %v1975, 0.0
    %1992 = vadd.xlane.f32.xlu0 %v1991
    %v1993 = vpop.xlane.xlu0 %1992
    %v1994 = vsel %vm301, %v1976, 0.0
    %1995 = vadd.xlane.f32.xlu0 %v1994
    %v1996 = vpop.xlane.xlu0 %1995
    %v1997 = vsel %vm301, %v1977, 0.0
    %1998 = vadd.xlane.f32.xlu0 %v1997
    %v1999 = vpop.xlane.xlu0 %1998
    %v2000 = vsel %vm301, %v1978, 0.0
    %2001 = vadd.xlane.f32.xlu0 %v2000
    %v2002 = vpop.xlane.xlu0 %2001
    %v2003 = vmul.f32 %v1981, %v326
    %v2004 = vmul.f32 %v1984, %v326
    %v2005 = vmul.f32 %v1987, %v326
    %v2006 = vmul.f32 %v1990, %v326
    %v2007 = vmul.f32 %v1993, %v326
    %v2008 = vmul.f32 %v1996, %v326
    %v2009 = vmul.f32 %v1999, %v326
    %v2010 = vmul.f32 %v2002, %v326
    %v2011 = vadd.f32 %v2003, 1e-05
    %v2012 = vadd.f32 %v2004, 1e-05
    %v2013 = vadd.f32 %v2005, 1e-05
    %v2014 = vadd.f32 %v2006, 1e-05
    %v2015 = vadd.f32 %v2007, 1e-05
    %v2016 = vadd.f32 %v2008, 1e-05
    %v2017 = vadd.f32 %v2009, 1e-05
    %v2018 = vadd.f32 %v2010, 1e-05
    %v2019 = vrsqrt.pop %v2011
    %v2020 = vrsqrt.pop %v2012
    %v2021 = vrsqrt.pop %v2013
    %v2022 = vrsqrt.pop %v2014
    %v2023 = vrsqrt.pop %v2015
    %v2024 = vrsqrt.pop %v2016
    %v2025 = vrsqrt.pop %v2017
    %v2026 = vrsqrt.pop %v2018
    %v2027 = vmul.f32 %v1963, %v2019
    %v2028 = vmul.f32 %v1964, %v2020
    %v2029 = vmul.f32 %v1965, %v2021
    %v2030 = vmul.f32 %v1966, %v2022
    %v2031 = vmul.f32 %v1967, %v2023
    %v2032 = vmul.f32 %v1968, %v2024
    %v2033 = vmul.f32 %v1969, %v2025
    %v2034 = vmul.f32 %v1970, %v2026
    %v2035 = vlaneseq
    %v2036 = vshrl.u32 %v2035, 7
    %v2037 = vsub.s32 0, %v2036
    %v2038 = vrot.slane %v667, %v2037
    %v2039 = vmul.f32 %v2027, %v2038
    %v2040 = vmul.f32 %v2028, %v2038
    %v2041 = vmul.f32 %v2029, %v2038
    %v2042 = vmul.f32 %v2030, %v2038
    %v2043 = vmul.f32 %v2031, %v2038
    %v2044 = vmul.f32 %v2032, %v2038
    %v2045 = vmul.f32 %v2033, %v2038
    %v2046 = vmul.f32 %v2034, %v2038
    %v2047 = vlaneseq
    %v2048 = vshrl.u32 %v2047, 7
    %v2049 = vsub.s32 0, %v2048
    %v2050 = vrot.slane %v668, %v2049
    %v2051 = vadd.f32 %v2039, %v2050
    %v2052 = vadd.f32 %v2040, %v2050
    %v2053 = vadd.f32 %v2041, %v2050
    %v2054 = vadd.f32 %v2042, %v2050
    %v2055 = vadd.f32 %v2043, %v2050
    %v2056 = vadd.f32 %v2044, %v2050
    %v2057 = vadd.f32 %v2045, %v2050
    %v2058 = vadd.f32 %v2046, %v2050
    %v2059 = vmax.f32 %v2051, 0.0
    %v2060 = vmax.f32 %v2052, 0.0
    %v2061 = vmax.f32 %v2053, 0.0
    %v2062 = vmax.f32 %v2054, 0.0
    %v2063 = vmax.f32 %v2055, 0.0
    %v2064 = vmax.f32 %v2056, 0.0
    %v2065 = vmax.f32 %v2057, 0.0
    %v2066 = vmax.f32 %v2058, 0.0
    %v2067 = vpack.c.bf16 %v2060, %v2059
    %v2068 = vpack.c.bf16 %v2062, %v2061
    %v2069 = vpack.c.bf16 %v2064, %v2063
    %v2070 = vpack.c.bf16 %v2066, %v2065
    %v2071 = vld [vmem:[%s10] sm:$0xf]
    %v2072 = vld [vmem:[%s10 + $0x4] sm:$0xf]
    %v2073 = vld [vmem:[%s10 + $0x8] sm:$0xf]
    %v2074 = vld [vmem:[%s10 + $0xc] sm:$0xf]
    %v2079 = vunpack.c.l.b16 %v2071
    %v2080 = vunpack.c.l.b16 %v2072
    %v2081 = vunpack.c.l.b16 %v2073
    %v2082 = vunpack.c.l.b16 %v2074
    %v2083 = vpack.c.b16 %v2080, %v2079
    %v2084 = vpack.c.b16 %v2082, %v2081
    %v2088 = vsel %vm301, %v2067, 0
    %v2091 = vsel %vm301, %v2068, 0
    %v2094 = vsel %vm301, %v2069, 0
    %v2097 = vsel %vm301, %v2070, 0
    %2099 = vmatprep.subr.bf16.mxu0 0
    %2100 = vmatpush1.bf16.msra.mxu0 0
    %2101 = vmatprep.subr.bf16.mxu0 0
    %2102 = vmatpush1.bf16.msra.mxu0 0
    %2103 = vmatprep.subr.bf16.mxu0 0
    %2104 = vmatpush1.bf16.msra.mxu0 0
    %2105 = vmatprep.subr.bf16.mxu0 0
    %2106 = vmatpush1.bf16.msra.mxu0 0
    %2107 = vmatprep.subr.bf16.mxu0 0
    %2108 = vmatpush1.bf16.msra.mxu0 0
    %2109 = vmatprep.subr.bf16.mxu0 0
    %2110 = vmatpush1.bf16.msra.mxu0 0
    %2111 = vmatprep.subr.bf16.mxu0 0
    %2112 = vmatpush1.bf16.msra.mxu0 %v2084
    %2113 = vmatprep.subr.bf16.mxu0 0
    %2114 = vmatpush1.bf16.msra.mxu0 %v2083
    %2115 = vmatprep.subr.bf16.mxu0 0
    %2116 = vmatpush2.bf16.msra.mxu0 0
    %2117 = vmatprep.subr.bf16.mxu0 0
    %2118 = vmatpush2.bf16.msra.mxu0 0
    %2119 = vmatprep.subr.bf16.mxu0 0
    %2120 = vmatpush2.bf16.msra.mxu0 0
    %2121 = vmatprep.subr.bf16.mxu0 0
    %2122 = vmatpush2.bf16.msra.mxu0 0
    %2123 = vmatprep.subr.bf16.mxu0 0
    %2124 = vmatpush2.bf16.msra.mxu0 0
    %2125 = vmatprep.subr.bf16.mxu0 0
    %2126 = vmatpush2.bf16.msra.mxu0 0
    %2127 = vmatprep.subr.bf16.mxu0 0
    %2128 = vmatpush2.bf16.msra.mxu0 0
    %2129 = vmatprep.subr.bf16.mxu0 0
    %2130 = vmatpush2.bf16.msra.mxu0 0
    %2131 = vmatprep.mubr.bf16.mxu0 0
    %2132 = vmatmul.mubr.bf16.gmra.mxu0 %v2088
    %v2133 = vpop.f32.mrf.mxu0
    %v2134 = vadd.f32 0.0, %v2133
    %v2135 = vpop.f32.mrf.mxu0
    %v2136 = vpop.f32.mrf.mxu0
    %v2137 = vadd.f32 0.0, %v2136
    %v2138 = vpop.f32.mrf.mxu0
    %2139 = vmatprep.mubr.bf16.mxu0 0
    %2140 = vmatmul.mubr.bf16.gmra.mxu0 %v2091
    %v2141 = vpop.f32.mrf.mxu0
    %v2142 = vadd.f32 0.0, %v2141
    %v2143 = vpop.f32.mrf.mxu0
    %v2144 = vpop.f32.mrf.mxu0
    %v2145 = vadd.f32 0.0, %v2144
    %v2146 = vpop.f32.mrf.mxu0
    %2147 = vmatprep.mubr.bf16.mxu0 0
    %2148 = vmatmul.mubr.bf16.gmra.mxu0 %v2094
    %v2149 = vpop.f32.mrf.mxu0
    %v2150 = vadd.f32 0.0, %v2149
    %v2151 = vpop.f32.mrf.mxu0
    %v2152 = vpop.f32.mrf.mxu0
    %v2153 = vadd.f32 0.0, %v2152
    %v2154 = vpop.f32.mrf.mxu0
    %2155 = vmatprep.mubr.bf16.mxu0 0
    %2156 = vmatmul.mubr.bf16.gmra.mxu0 %v2097
    %v2157 = vpop.f32.mrf.mxu0
    %v2158 = vadd.f32 0.0, %v2157
    %v2159 = vpop.f32.mrf.mxu0
    %v2160 = vpop.f32.mrf.mxu0
    %v2161 = vadd.f32 0.0, %v2160
    %v2162 = vpop.f32.mrf.mxu0
    %2163 = vdwg.mxu0
    %v2164 = vsel %vm301, %v2134, 0.0
    %2165 = vadd.xlane.f32.xlu0 %v2164
    %v2166 = vpop.xlane.xlu0 %2165
    %v2167 = vsel %vm301, %v2137, 0.0
    %2168 = vadd.xlane.f32.xlu0 %v2167
    %v2169 = vpop.xlane.xlu0 %2168
    %v2170 = vsel %vm301, %v2142, 0.0
    %2171 = vadd.xlane.f32.xlu0 %v2170
    %v2172 = vpop.xlane.xlu0 %2171
    %v2173 = vsel %vm301, %v2145, 0.0
    %2174 = vadd.xlane.f32.xlu0 %v2173
    %v2175 = vpop.xlane.xlu0 %2174
    %v2176 = vsel %vm301, %v2150, 0.0
    %2177 = vadd.xlane.f32.xlu0 %v2176
    %v2178 = vpop.xlane.xlu0 %2177
    %v2179 = vsel %vm301, %v2153, 0.0
    %2180 = vadd.xlane.f32.xlu0 %v2179
    %v2181 = vpop.xlane.xlu0 %2180
    %v2182 = vsel %vm301, %v2158, 0.0
    %2183 = vadd.xlane.f32.xlu0 %v2182
    %v2184 = vpop.xlane.xlu0 %2183
    %v2185 = vsel %vm301, %v2161, 0.0
    %2186 = vadd.xlane.f32.xlu0 %v2185
    %v2187 = vpop.xlane.xlu0 %2186
    %v2188 = vmul.f32 %v2166, %v326
    %v2189 = vmul.f32 %v2169, %v326
    %v2190 = vmul.f32 %v2172, %v326
    %v2191 = vmul.f32 %v2175, %v326
    %v2192 = vmul.f32 %v2178, %v326
    %v2193 = vmul.f32 %v2181, %v326
    %v2194 = vmul.f32 %v2184, %v326
    %v2195 = vmul.f32 %v2187, %v326
    %v2196 = vsub.f32 %v2134, %v2188
    %v2197 = vsub.f32 %v2137, %v2189
    %v2198 = vsub.f32 %v2142, %v2190
    %v2199 = vsub.f32 %v2145, %v2191
    %v2200 = vsub.f32 %v2150, %v2192
    %v2201 = vsub.f32 %v2153, %v2193
    %v2202 = vsub.f32 %v2158, %v2194
    %v2203 = vsub.f32 %v2161, %v2195
    %v2204 = vmul.f32 %v2196, %v2196
    %v2205 = vmul.f32 %v2197, %v2197
    %v2206 = vmul.f32 %v2198, %v2198
    %v2207 = vmul.f32 %v2199, %v2199
    %v2208 = vmul.f32 %v2200, %v2200
    %v2209 = vmul.f32 %v2201, %v2201
    %v2210 = vmul.f32 %v2202, %v2202
    %v2211 = vmul.f32 %v2203, %v2203
    %v2212 = vsel %vm301, %v2204, 0.0
    %2213 = vadd.xlane.f32.xlu0 %v2212
    %v2214 = vpop.xlane.xlu0 %2213
    %v2215 = vsel %vm301, %v2205, 0.0
    %2216 = vadd.xlane.f32.xlu0 %v2215
    %v2217 = vpop.xlane.xlu0 %2216
    %v2218 = vsel %vm301, %v2206, 0.0
    %2219 = vadd.xlane.f32.xlu0 %v2218
    %v2220 = vpop.xlane.xlu0 %2219
    %v2221 = vsel %vm301, %v2207, 0.0
    %2222 = vadd.xlane.f32.xlu0 %v2221
    %v2223 = vpop.xlane.xlu0 %2222
    %v2224 = vsel %vm301, %v2208, 0.0
    %2225 = vadd.xlane.f32.xlu0 %v2224
    %v2226 = vpop.xlane.xlu0 %2225
    %v2227 = vsel %vm301, %v2209, 0.0
    %2228 = vadd.xlane.f32.xlu0 %v2227
    %v2229 = vpop.xlane.xlu0 %2228
    %v2230 = vsel %vm301, %v2210, 0.0
    %2231 = vadd.xlane.f32.xlu0 %v2230
    %v2232 = vpop.xlane.xlu0 %2231
    %v2233 = vsel %vm301, %v2211, 0.0
    %2234 = vadd.xlane.f32.xlu0 %v2233
    %v2235 = vpop.xlane.xlu0 %2234
    %v2236 = vmul.f32 %v2214, %v326
    %v2237 = vmul.f32 %v2217, %v326
    %v2238 = vmul.f32 %v2220, %v326
    %v2239 = vmul.f32 %v2223, %v326
    %v2240 = vmul.f32 %v2226, %v326
    %v2241 = vmul.f32 %v2229, %v326
    %v2242 = vmul.f32 %v2232, %v326
    %v2243 = vmul.f32 %v2235, %v326
    %v2244 = vadd.f32 %v2236, 1e-05
    %v2245 = vadd.f32 %v2237, 1e-05
    %v2246 = vadd.f32 %v2238, 1e-05
    %v2247 = vadd.f32 %v2239, 1e-05
    %v2248 = vadd.f32 %v2240, 1e-05
    %v2249 = vadd.f32 %v2241, 1e-05
    %v2250 = vadd.f32 %v2242, 1e-05
    %v2251 = vadd.f32 %v2243, 1e-05
    %v2252 = vrsqrt.pop %v2244
    %v2253 = vrsqrt.pop %v2245
    %v2254 = vrsqrt.pop %v2246
    %v2255 = vrsqrt.pop %v2247
    %v2256 = vrsqrt.pop %v2248
    %v2257 = vrsqrt.pop %v2249
    %v2258 = vrsqrt.pop %v2250
    %v2259 = vrsqrt.pop %v2251
    %v2260 = vmul.f32 %v2196, %v2252
    %v2261 = vmul.f32 %v2197, %v2253
    %v2262 = vmul.f32 %v2198, %v2254
    %v2263 = vmul.f32 %v2199, %v2255
    %v2264 = vmul.f32 %v2200, %v2256
    %v2265 = vmul.f32 %v2201, %v2257
    %v2266 = vmul.f32 %v2202, %v2258
    %v2267 = vmul.f32 %v2203, %v2259
    %v2268 = vlaneseq
    %v2269 = vshrl.u32 %v2268, 7
    %v2270 = vsub.s32 0, %v2269
    %v2271 = vrot.slane %v669, %v2270
    %v2272 = vmul.f32 %v2260, %v2271
    %v2273 = vmul.f32 %v2261, %v2271
    %v2274 = vmul.f32 %v2262, %v2271
    %v2275 = vmul.f32 %v2263, %v2271
    %v2276 = vmul.f32 %v2264, %v2271
    %v2277 = vmul.f32 %v2265, %v2271
    %v2278 = vmul.f32 %v2266, %v2271
    %v2279 = vmul.f32 %v2267, %v2271
    %v2280 = vlaneseq
    %v2281 = vshrl.u32 %v2280, 7
    %v2282 = vsub.s32 0, %v2281
    %v2283 = vrot.slane %v670, %v2282
    %v2284 = vadd.f32 %v2272, %v2283
    %v2285 = vadd.f32 %v2273, %v2283
    %v2286 = vadd.f32 %v2274, %v2283
    %v2287 = vadd.f32 %v2275, %v2283
    %v2288 = vadd.f32 %v2276, %v2283
    %v2289 = vadd.f32 %v2277, %v2283
    %v2290 = vadd.f32 %v2278, %v2283
    %v2291 = vadd.f32 %v2279, %v2283
    %v2292 = vadd.f32 %v2284, %v659
    %v2293 = vadd.f32 %v2285, %v660
    %v2294 = vadd.f32 %v2286, %v661
    %v2295 = vadd.f32 %v2287, %v662
    %v2296 = vadd.f32 %v2288, %v663
    %v2297 = vadd.f32 %v2289, %v664
    %v2298 = vadd.f32 %v2290, %v665
    %v2299 = vadd.f32 %v2291, %v666
    %v2300 = vmax.f32 %v2292, 0.0
    %v2301 = vmax.f32 %v2293, 0.0
    %v2302 = vmax.f32 %v2294, 0.0
    %v2303 = vmax.f32 %v2295, 0.0
    %v2304 = vmax.f32 %v2296, 0.0
    %v2305 = vmax.f32 %v2297, 0.0
    %v2306 = vmax.f32 %v2298, 0.0
    %v2307 = vmax.f32 %v2299, 0.0
    %v2308 = vpack.c.bf16 %v2301, %v2300
    %v2309 = vpack.c.bf16 %v2303, %v2302
    %v2310 = vpack.c.bf16 %v2305, %v2304
    %v2311 = vpack.c.bf16 %v2307, %v2306
    %2312 = vmatprep.subr.bf16.mxu0 0
    %2313 = vmatpush1.bf16.msra.mxu0 0
    %2314 = vmatprep.subr.bf16.mxu0 0
    %2315 = vmatpush1.bf16.msra.mxu0 0
    %2316 = vmatprep.subr.bf16.mxu0 0
    %2317 = vmatpush1.bf16.msra.mxu0 0
    %2318 = vmatprep.subr.bf16.mxu0 0
    %2319 = vmatpush1.bf16.msra.mxu0 0
    %2320 = vmatprep.subr.bf16.mxu0 0
    %2321 = vmatpush1.bf16.msra.mxu0 %v2311
    %2322 = vmatprep.subr.bf16.mxu0 0
    %2323 = vmatpush1.bf16.msra.mxu0 %v2310
    %2324 = vmatprep.subr.bf16.mxu0 0
    %2325 = vmatpush1.bf16.msra.mxu0 %v2309
    %2326 = vmatprep.subr.bf16.mxu0 0
    %2327 = vmatpush1.bf16.msra.mxu0 %v2308
    %2328 = vmatprep.subr.bf16.mxu0 0
    %2329 = vmatpush2.bf16.msra.mxu0 0
    %2330 = vmatprep.subr.bf16.mxu0 0
    %2331 = vmatpush2.bf16.msra.mxu0 0
    %2332 = vmatprep.subr.bf16.mxu0 0
    %2333 = vmatpush2.bf16.msra.mxu0 0
    %2334 = vmatprep.subr.bf16.mxu0 0
    %2335 = vmatpush2.bf16.msra.mxu0 0
    %2336 = vmatprep.subr.bf16.mxu0 0
    %2337 = vmatpush2.bf16.msra.mxu0 0
    %2338 = vmatprep.subr.bf16.mxu0 0
    %2339 = vmatpush2.bf16.msra.mxu0 0
    %2340 = vmatprep.subr.bf16.mxu0 0
    %2341 = vmatpush2.bf16.msra.mxu0 0
    %2342 = vmatprep.subr.bf16.mxu0 0
    %2343 = vmatpush2.bf16.msra.mxu0 0
    %2344 = vmatprep.mubr.bf16.mxu0 0
    %2345 = vmatmul.mubr.bf16.gmra.mxu0 %v872
    %v2346 = vpop.f32.mrf.mxu0
    %v2347 = vadd.f32 0.0, %v2346
    %v2348 = vpop.f32.mrf.mxu0
    %v2349 = vpop.f32.mrf.mxu0
    %v2350 = vadd.f32 0.0, %v2349
    %v2351 = vpop.f32.mrf.mxu0
    %2352 = vmatprep.mubr.bf16.mxu0 0
    %2353 = vmatmul.mubr.bf16.gmra.mxu0 %v875
    %v2354 = vpop.f32.mrf.mxu0
    %v2355 = vadd.f32 0.0, %v2354
    %v2356 = vpop.f32.mrf.mxu0
    %v2357 = vpop.f32.mrf.mxu0
    %v2358 = vadd.f32 0.0, %v2357
    %v2359 = vpop.f32.mrf.mxu0
    %2360 = vmatprep.mubr.bf16.mxu0 0
    %2361 = vmatmul.mubr.bf16.gmra.mxu0 %v878
    %v2362 = vpop.f32.mrf.mxu0
    %v2363 = vadd.f32 0.0, %v2362
    %v2364 = vpop.f32.mrf.mxu0
    %v2365 = vpop.f32.mrf.mxu0
    %v2366 = vadd.f32 0.0, %v2365
    %v2367 = vpop.f32.mrf.mxu0
    %2368 = vmatprep.mubr.bf16.mxu0 0
    %2369 = vmatmul.mubr.bf16.gmra.mxu0 %v881
    %v2370 = vpop.f32.mrf.mxu0
    %v2371 = vadd.f32 0.0, %v2370
    %v2372 = vpop.f32.mrf.mxu0
    %v2373 = vpop.f32.mrf.mxu0
    %v2374 = vadd.f32 0.0, %v2373
    %v2375 = vpop.f32.mrf.mxu0
    %2376 = vmatprep.mubr.bf16.mxu0 0
    %2377 = vmatmul.mubr.bf16.gmra.mxu0 %v884
    %v2378 = vpop.f32.mrf.mxu0
    %v2379 = vadd.f32 0.0, %v2378
    %v2380 = vpop.f32.mrf.mxu0
    %v2381 = vpop.f32.mrf.mxu0
    %v2382 = vadd.f32 0.0, %v2381
    %v2383 = vpop.f32.mrf.mxu0
    %2384 = vmatprep.mubr.bf16.mxu0 0
    %2385 = vmatmul.mubr.bf16.gmra.mxu0 %v887
    %v2386 = vpop.f32.mrf.mxu0
    %v2387 = vadd.f32 0.0, %v2386
    %v2388 = vpop.f32.mrf.mxu0
    %v2389 = vpop.f32.mrf.mxu0
    %v2390 = vadd.f32 0.0, %v2389
    %v2391 = vpop.f32.mrf.mxu0
    %2392 = vmatprep.mubr.bf16.mxu0 0
    %2393 = vmatmul.mubr.bf16.gmra.mxu0 %v890
    %v2394 = vpop.f32.mrf.mxu0
    %v2395 = vadd.f32 0.0, %v2394
    %v2396 = vpop.f32.mrf.mxu0
    %v2397 = vpop.f32.mrf.mxu0
    %v2398 = vadd.f32 0.0, %v2397
    %v2399 = vpop.f32.mrf.mxu0
    %2400 = vmatprep.mubr.bf16.mxu0 0
    %2401 = vmatmul.mubr.bf16.gmra.mxu0 %v893
    %v2402 = vpop.f32.mrf.mxu0
    %v2403 = vadd.f32 0.0, %v2402
    %v2404 = vpop.f32.mrf.mxu0
    %v2405 = vpop.f32.mrf.mxu0
    %v2406 = vadd.f32 0.0, %v2405
    %v2407 = vpop.f32.mrf.mxu0
    %2408 = vmatprep.mubr.bf16.mxu0 0
    %2409 = vmatmul.mubr.bf16.gmra.mxu0 %v896
    %v2410 = vpop.f32.mrf.mxu0
    %v2411 = vadd.f32 0.0, %v2410
    %v2412 = vpop.f32.mrf.mxu0
    %v2413 = vpop.f32.mrf.mxu0
    %v2414 = vadd.f32 0.0, %v2413
    %v2415 = vpop.f32.mrf.mxu0
    %2416 = vmatprep.mubr.bf16.mxu0 0
    %2417 = vmatmul.mubr.bf16.gmra.mxu0 %v899
    %v2418 = vpop.f32.mrf.mxu0
    %v2419 = vadd.f32 0.0, %v2418
    %v2420 = vpop.f32.mrf.mxu0
    %v2421 = vpop.f32.mrf.mxu0
    %v2422 = vadd.f32 0.0, %v2421
    %v2423 = vpop.f32.mrf.mxu0
    %2424 = vmatprep.mubr.bf16.mxu0 0
    %2425 = vmatmul.mubr.bf16.gmra.mxu0 %v902
    %v2426 = vpop.f32.mrf.mxu0
    %v2427 = vadd.f32 0.0, %v2426
    %v2428 = vpop.f32.mrf.mxu0
    %v2429 = vpop.f32.mrf.mxu0
    %v2430 = vadd.f32 0.0, %v2429
    %v2431 = vpop.f32.mrf.mxu0
    %2432 = vmatprep.mubr.bf16.mxu0 0
    %2433 = vmatmul.mubr.bf16.gmra.mxu0 %v905
    %v2434 = vpop.f32.mrf.mxu0
    %v2435 = vadd.f32 0.0, %v2434
    %v2436 = vpop.f32.mrf.mxu0
    %v2437 = vpop.f32.mrf.mxu0
    %v2438 = vadd.f32 0.0, %v2437
    %v2439 = vpop.f32.mrf.mxu0
    %2440 = vmatprep.mubr.bf16.mxu0 0
    %2441 = vmatmul.mubr.bf16.gmra.mxu0 %v908
    %v2442 = vpop.f32.mrf.mxu0
    %v2443 = vadd.f32 0.0, %v2442
    %v2444 = vpop.f32.mrf.mxu0
    %v2445 = vpop.f32.mrf.mxu0
    %v2446 = vadd.f32 0.0, %v2445
    %v2447 = vpop.f32.mrf.mxu0
    %2448 = vmatprep.mubr.bf16.mxu0 0
    %2449 = vmatmul.mubr.bf16.gmra.mxu0 %v911
    %v2450 = vpop.f32.mrf.mxu0
    %v2451 = vadd.f32 0.0, %v2450
    %v2452 = vpop.f32.mrf.mxu0
    %v2453 = vpop.f32.mrf.mxu0
    %v2454 = vadd.f32 0.0, %v2453
    %v2455 = vpop.f32.mrf.mxu0
    %2456 = vmatprep.mubr.bf16.mxu0 0
    %2457 = vmatmul.mubr.bf16.gmra.mxu0 %v914
    %v2458 = vpop.f32.mrf.mxu0
    %v2459 = vadd.f32 0.0, %v2458
    %v2460 = vpop.f32.mrf.mxu0
    %v2461 = vpop.f32.mrf.mxu0
    %v2462 = vadd.f32 0.0, %v2461
    %v2463 = vpop.f32.mrf.mxu0
    %2464 = vmatprep.mubr.bf16.mxu0 0
    %2465 = vmatmul.mubr.bf16.gmra.mxu0 %v917
    %v2466 = vpop.f32.mrf.mxu0
    %v2467 = vadd.f32 0.0, %v2466
    %v2468 = vpop.f32.mrf.mxu0
    %v2469 = vpop.f32.mrf.mxu0
    %v2470 = vadd.f32 0.0, %v2469
    %v2471 = vpop.f32.mrf.mxu0
    %2472 = vmatprep.mubr.bf16.mxu0 0
    %2473 = vmatmul.mubr.bf16.gmra.mxu0 %v920
    %v2474 = vpop.f32.mrf.mxu0
    %v2475 = vadd.f32 0.0, %v2474
    %v2476 = vpop.f32.mrf.mxu0
    %v2477 = vpop.f32.mrf.mxu0
    %v2478 = vadd.f32 0.0, %v2477
    %v2479 = vpop.f32.mrf.mxu0
    %2480 = vmatprep.mubr.bf16.mxu0 0
    %2481 = vmatmul.mubr.bf16.gmra.mxu0 %v923
    %v2482 = vpop.f32.mrf.mxu0
    %v2483 = vadd.f32 0.0, %v2482
    %v2484 = vpop.f32.mrf.mxu0
    %v2485 = vpop.f32.mrf.mxu0
    %v2486 = vadd.f32 0.0, %v2485
    %v2487 = vpop.f32.mrf.mxu0
    %2488 = vmatprep.mubr.bf16.mxu0 0
    %2489 = vmatmul.mubr.bf16.gmra.mxu0 %v926
    %v2490 = vpop.f32.mrf.mxu0
    %v2491 = vadd.f32 0.0, %v2490
    %v2492 = vpop.f32.mrf.mxu0
    %v2493 = vpop.f32.mrf.mxu0
    %v2494 = vadd.f32 0.0, %v2493
    %v2495 = vpop.f32.mrf.mxu0
    %2496 = vmatprep.mubr.bf16.mxu0 0
    %2497 = vmatmul.mubr.bf16.gmra.mxu0 %v929
    %v2498 = vpop.f32.mrf.mxu0
    %v2499 = vadd.f32 0.0, %v2498
    %v2500 = vpop.f32.mrf.mxu0
    %v2501 = vpop.f32.mrf.mxu0
    %v2502 = vadd.f32 0.0, %v2501
    %v2503 = vpop.f32.mrf.mxu0
    %2504 = vmatprep.mubr.bf16.mxu0 0
    %2505 = vmatmul.mubr.bf16.gmra.mxu0 %v932
    %v2506 = vpop.f32.mrf.mxu0
    %v2507 = vadd.f32 0.0, %v2506
    %v2508 = vpop.f32.mrf.mxu0
    %v2509 = vpop.f32.mrf.mxu0
    %v2510 = vadd.f32 0.0, %v2509
    %v2511 = vpop.f32.mrf.mxu0
    %2512 = vmatprep.mubr.bf16.mxu0 0
    %2513 = vmatmul.mubr.bf16.gmra.mxu0 %v935
    %v2514 = vpop.f32.mrf.mxu0
    %v2515 = vadd.f32 0.0, %v2514
    %v2516 = vpop.f32.mrf.mxu0
    %v2517 = vpop.f32.mrf.mxu0
    %v2518 = vadd.f32 0.0, %v2517
    %v2519 = vpop.f32.mrf.mxu0
    %2520 = vmatprep.mubr.bf16.mxu0 0
    %2521 = vmatmul.mubr.bf16.gmra.mxu0 %v938
    %v2522 = vpop.f32.mrf.mxu0
    %v2523 = vadd.f32 0.0, %v2522
    %v2524 = vpop.f32.mrf.mxu0
    %v2525 = vpop.f32.mrf.mxu0
    %v2526 = vadd.f32 0.0, %v2525
    %v2527 = vpop.f32.mrf.mxu0
    %2528 = vmatprep.mubr.bf16.mxu0 0
    %2529 = vmatmul.mubr.bf16.gmra.mxu0 %v941
    %v2530 = vpop.f32.mrf.mxu0
    %v2531 = vadd.f32 0.0, %v2530
    %v2532 = vpop.f32.mrf.mxu0
    %v2533 = vpop.f32.mrf.mxu0
    %v2534 = vadd.f32 0.0, %v2533
    %v2535 = vpop.f32.mrf.mxu0
    %2536 = vmatprep.mubr.bf16.mxu0 0
    %2537 = vmatmul.mubr.bf16.gmra.mxu0 %v944
    %v2538 = vpop.f32.mrf.mxu0
    %v2539 = vadd.f32 0.0, %v2538
    %v2540 = vpop.f32.mrf.mxu0
    %v2541 = vpop.f32.mrf.mxu0
    %v2542 = vadd.f32 0.0, %v2541
    %v2543 = vpop.f32.mrf.mxu0
    %2544 = vmatprep.mubr.bf16.mxu0 0
    %2545 = vmatmul.mubr.bf16.gmra.mxu0 %v947
    %v2546 = vpop.f32.mrf.mxu0
    %v2547 = vadd.f32 0.0, %v2546
    %v2548 = vpop.f32.mrf.mxu0
    %v2549 = vpop.f32.mrf.mxu0
    %v2550 = vadd.f32 0.0, %v2549
    %v2551 = vpop.f32.mrf.mxu0
    %2552 = vmatprep.mubr.bf16.mxu0 0
    %2553 = vmatmul.mubr.bf16.gmra.mxu0 %v950
    %v2554 = vpop.f32.mrf.mxu0
    %v2555 = vadd.f32 0.0, %v2554
    %v2556 = vpop.f32.mrf.mxu0
    %v2557 = vpop.f32.mrf.mxu0
    %v2558 = vadd.f32 0.0, %v2557
    %v2559 = vpop.f32.mrf.mxu0
    %2560 = vmatprep.mubr.bf16.mxu0 0
    %2561 = vmatmul.mubr.bf16.gmra.mxu0 %v953
    %v2562 = vpop.f32.mrf.mxu0
    %v2563 = vadd.f32 0.0, %v2562
    %v2564 = vpop.f32.mrf.mxu0
    %v2565 = vpop.f32.mrf.mxu0
    %v2566 = vadd.f32 0.0, %v2565
    %v2567 = vpop.f32.mrf.mxu0
    %2568 = vdwg.mxu0
    %v2569 = vpack.c.bf16 %v2350, %v2347
    %v2570 = vpack.c.bf16 %v2358, %v2355
    %v2571 = vpack.c.bf16 %v2366, %v2363
    %v2572 = vpack.c.bf16 %v2374, %v2371
    %v2573 = vpack.c.bf16 %v2382, %v2379
    %v2574 = vpack.c.bf16 %v2390, %v2387
    %v2575 = vpack.c.bf16 %v2398, %v2395
    %v2576 = vpack.c.bf16 %v2406, %v2403
    %v2577 = vpack.c.bf16 %v2414, %v2411
    %v2578 = vpack.c.bf16 %v2422, %v2419
    %v2579 = vpack.c.bf16 %v2430, %v2427
    %v2580 = vpack.c.bf16 %v2438, %v2435
    %v2581 = vpack.c.bf16 %v2446, %v2443
    %v2582 = vpack.c.bf16 %v2454, %v2451
    %v2583 = vpack.c.bf16 %v2462, %v2459
    %v2584 = vpack.c.bf16 %v2470, %v2467
    %v2585 = vpack.c.bf16 %v2478, %v2475
    %v2586 = vpack.c.bf16 %v2486, %v2483
    %v2587 = vpack.c.bf16 %v2494, %v2491
    %v2588 = vpack.c.bf16 %v2502, %v2499
    %v2589 = vpack.c.bf16 %v2510, %v2507
    %v2590 = vpack.c.bf16 %v2518, %v2515
    %v2591 = vpack.c.bf16 %v2526, %v2523
    %v2592 = vpack.c.bf16 %v2534, %v2531
    %v2593 = vpack.c.bf16 %v2542, %v2539
    %v2594 = vpack.c.bf16 %v2550, %v2547
    %v2595 = vpack.c.bf16 %v2558, %v2555
    %v2596 = vpack.c.bf16 %v2566, %v2563
    %s2597 = scalar_lea.vmem [#allocation2], 112
    %v2598 = vld [vmem:[%s2597] sm:$0xf]
    %v2599 = vld [vmem:[%s2597 + $0x4] sm:$0xf]
    %v2600 = vld [vmem:[%s2597 + $0x8] sm:$0xf]
    %v2601 = vld [vmem:[%s2597 + $0xc] sm:$0xf]
    %v2602 = vld [vmem:[%s2597 + $0x10] sm:$0xf]
    %v2603 = vld [vmem:[%s2597 + $0x14] sm:$0xf]
    %v2604 = vld [vmem:[%s2597 + $0x18] sm:$0xf]
    %v2605 = vld [vmem:[%s2597 + $0x1c] sm:$0xf]
    %v2606 = vld [vmem:[%s2597 + $0x20] sm:$0xf]
    %v2607 = vld [vmem:[%s2597 + $0x24] sm:$0xf]
    %v2608 = vld [vmem:[%s2597 + $0x28] sm:$0xf]
    %v2609 = vld [vmem:[%s2597 + $0x2c] sm:$0xf]
    %v2610 = vld [vmem:[%s2597 + $0x30] sm:$0xf]
    %v2611 = vld [vmem:[%s2597 + $0x34] sm:$0xf]
    %v2612 = vld [vmem:[%s2597 + $0x38] sm:$0xf]
    %v2613 = vld [vmem:[%s2597 + $0x3c] sm:$0xf]
    %v2614 = vld [vmem:[%s2597 + $0x40] sm:$0xf]
    %v2615 = vld [vmem:[%s2597 + $0x44] sm:$0xf]
    %v2616 = vld [vmem:[%s2597 + $0x48] sm:$0xf]
    %v2617 = vld [vmem:[%s2597 + $0x4c] sm:$0xf]
    %v2618 = vld [vmem:[%s2597 + $0x50] sm:$0xf]
    %v2619 = vld [vmem:[%s2597 + $0x54] sm:$0xf]
    %v2620 = vld [vmem:[%s2597 + $0x58] sm:$0xf]
    %v2621 = vld [vmem:[%s2597 + $0x5c] sm:$0xf]
    %v2622 = vld [vmem:[%s2597 + $0x60] sm:$0xf]
    %v2623 = vld [vmem:[%s2597 + $0x64] sm:$0xf]
    %v2624 = vld [vmem:[%s2597 + $0x68] sm:$0xf]
    %v2625 = vld [vmem:[%s2597 + $0x6c] sm:$0xf]
    %v2630 = vunpack.c.l.b16 %v2602
    %v2631 = vunpack.c.l.b16 %v2603
    %v2632 = vunpack.c.l.b16 %v2604
    %v2633 = vunpack.c.l.b16 %v2605
    %v2634 = vpack.c.b16 %v2631, %v2630
    %v2635 = vpack.c.b16 %v2633, %v2632
    %v2639 = vsel %vm301, %v2573, 0
    %v2642 = vsel %vm301, %v2574, 0
    %v2645 = vsel %vm301, %v2575, 0
    %v2648 = vsel %vm301, %v2576, 0
    %2650 = vmatprep.subr.bf16.mxu0 0
    %2651 = vmatpush1.bf16.msra.mxu0 0
    %2652 = vmatprep.subr.bf16.mxu0 0
    %2653 = vmatpush1.bf16.msra.mxu0 0
    %2654 = vmatprep.subr.bf16.mxu0 0
    %2655 = vmatpush1.bf16.msra.mxu0 0
    %2656 = vmatprep.subr.bf16.mxu0 0
    %2657 = vmatpush1.bf16.msra.mxu0 0
    %2658 = vmatprep.subr.bf16.mxu0 0
    %2659 = vmatpush1.bf16.msra.mxu0 0
    %2660 = vmatprep.subr.bf16.mxu0 0
    %2661 = vmatpush1.bf16.msra.mxu0 0
    %2662 = vmatprep.subr.bf16.mxu0 0
    %2663 = vmatpush1.bf16.msra.mxu0 %v2635
    %2664 = vmatprep.subr.bf16.mxu0 0
    %2665 = vmatpush1.bf16.msra.mxu0 %v2634
    %2666 = vmatprep.subr.bf16.mxu0 0
    %2667 = vmatpush2.bf16.msra.mxu0 0
    %2668 = vmatprep.subr.bf16.mxu0 0
    %2669 = vmatpush2.bf16.msra.mxu0 0
    %2670 = vmatprep.subr.bf16.mxu0 0
    %2671 = vmatpush2.bf16.msra.mxu0 0
    %2672 = vmatprep.subr.bf16.mxu0 0
    %2673 = vmatpush2.bf16.msra.mxu0 0
    %2674 = vmatprep.subr.bf16.mxu0 0
    %2675 = vmatpush2.bf16.msra.mxu0 0
    %2676 = vmatprep.subr.bf16.mxu0 0
    %2677 = vmatpush2.bf16.msra.mxu0 0
    %2678 = vmatprep.subr.bf16.mxu0 0
    %2679 = vmatpush2.bf16.msra.mxu0 0
    %2680 = vmatprep.subr.bf16.mxu0 0
    %2681 = vmatpush2.bf16.msra.mxu0 0
    %2682 = vmatprep.mubr.bf16.mxu0 0
    %2683 = vmatmul.mubr.bf16.gmra.mxu0 %v2639
    %v2684 = vpop.f32.mrf.mxu0
    %v2685 = vadd.f32 0.0, %v2684
    %v2686 = vpop.f32.mrf.mxu0
    %v2687 = vpop.f32.mrf.mxu0
    %v2688 = vadd.f32 0.0, %v2687
    %v2689 = vpop.f32.mrf.mxu0
    %2690 = vmatprep.mubr.bf16.mxu0 0
    %2691 = vmatmul.mubr.bf16.gmra.mxu0 %v2642
    %v2692 = vpop.f32.mrf.mxu0
    %v2693 = vadd.f32 0.0, %v2692
    %v2694 = vpop.f32.mrf.mxu0
    %v2695 = vpop.f32.mrf.mxu0
    %v2696 = vadd.f32 0.0, %v2695
    %v2697 = vpop.f32.mrf.mxu0
    %2698 = vmatprep.mubr.bf16.mxu0 0
    %2699 = vmatmul.mubr.bf16.gmra.mxu0 %v2645
    %v2700 = vpop.f32.mrf.mxu0
    %v2701 = vadd.f32 0.0, %v2700
    %v2702 = vpop.f32.mrf.mxu0
    %v2703 = vpop.f32.mrf.mxu0
    %v2704 = vadd.f32 0.0, %v2703
    %v2705 = vpop.f32.mrf.mxu0
    %2706 = vmatprep.mubr.bf16.mxu0 0
    %2707 = vmatmul.mubr.bf16.gmra.mxu0 %v2648
    %v2708 = vpop.f32.mrf.mxu0
    %v2709 = vadd.f32 0.0, %v2708
    %v2710 = vpop.f32.mrf.mxu0
    %v2711 = vpop.f32.mrf.mxu0
    %v2712 = vadd.f32 0.0, %v2711
    %v2713 = vpop.f32.mrf.mxu0
    %2714 = vdwg.mxu0
    %v2719 = vunpack.c.l.b16 %v2598
    %v2720 = vunpack.c.l.b16 %v2599
    %v2721 = vunpack.c.l.b16 %v2600
    %v2722 = vunpack.c.l.b16 %v2601
    %v2723 = vpack.c.b16 %v2720, %v2719
    %v2724 = vpack.c.b16 %v2722, %v2721
    %v2728 = vsel %vm301, %v2569, 0
    %v2731 = vsel %vm301, %v2570, 0
    %v2734 = vsel %vm301, %v2571, 0
    %v2737 = vsel %vm301, %v2572, 0
    %2739 = vmatprep.subr.bf16.mxu0 0
    %2740 = vmatpush1.bf16.msra.mxu0 0
    %2741 = vmatprep.subr.bf16.mxu0 0
    %2742 = vmatpush1.bf16.msra.mxu0 0
    %2743 = vmatprep.subr.bf16.mxu0 0
    %2744 = vmatpush1.bf16.msra.mxu0 0
    %2745 = vmatprep.subr.bf16.mxu0 0
    %2746 = vmatpush1.bf16.msra.mxu0 0
    %2747 = vmatprep.subr.bf16.mxu0 0
    %2748 = vmatpush1.bf16.msra.mxu0 0
    %2749 = vmatprep.subr.bf16.mxu0 0
    %2750 = vmatpush1.bf16.msra.mxu0 0
    %2751 = vmatprep.subr.bf16.mxu0 0
    %2752 = vmatpush1.bf16.msra.mxu0 %v2724
    %2753 = vmatprep.subr.bf16.mxu0 0
    %2754 = vmatpush1.bf16.msra.mxu0 %v2723
    %2755 = vmatprep.subr.bf16.mxu0 0
    %2756 = vmatpush2.bf16.msra.mxu0 0
    %2757 = vmatprep.subr.bf16.mxu0 0
    %2758 = vmatpush2.bf16.msra.mxu0 0
    %2759 = vmatprep.subr.bf16.mxu0 0
    %2760 = vmatpush2.bf16.msra.mxu0 0
    %2761 = vmatprep.subr.bf16.mxu0 0
    %2762 = vmatpush2.bf16.msra.mxu0 0
    %2763 = vmatprep.subr.bf16.mxu0 0
    %2764 = vmatpush2.bf16.msra.mxu0 0
    %2765 = vmatprep.subr.bf16.mxu0 0
    %2766 = vmatpush2.bf16.msra.mxu0 0
    %2767 = vmatprep.subr.bf16.mxu0 0
    %2768 = vmatpush2.bf16.msra.mxu0 0
    %2769 = vmatprep.subr.bf16.mxu0 0
    %2770 = vmatpush2.bf16.msra.mxu0 0
    %2771 = vmatprep.mubr.bf16.mxu0 0
    %2772 = vmatmul.mubr.bf16.gmra.mxu0 %v2728
    %v2773 = vpop.f32.mrf.mxu0
    %v2774 = vadd.f32 %v2685, %v2773
    %v2775 = vpop.f32.mrf.mxu0
    %v2776 = vpop.f32.mrf.mxu0
    %v2777 = vadd.f32 %v2688, %v2776
    %v2778 = vpop.f32.mrf.mxu0
    %2779 = vmatprep.mubr.bf16.mxu0 0
    %2780 = vmatmul.mubr.bf16.gmra.mxu0 %v2731
    %v2781 = vpop.f32.mrf.mxu0
    %v2782 = vadd.f32 %v2693, %v2781
    %v2783 = vpop.f32.mrf.mxu0
    %v2784 = vpop.f32.mrf.mxu0
    %v2785 = vadd.f32 %v2696, %v2784
    %v2786 = vpop.f32.mrf.mxu0
    %2787 = vmatprep.mubr.bf16.mxu0 0
    %2788 = vmatmul.mubr.bf16.gmra.mxu0 %v2734
    %v2789 = vpop.f32.mrf.mxu0
    %v2790 = vadd.f32 %v2701, %v2789
    %v2791 = vpop.f32.mrf.mxu0
    %v2792 = vpop.f32.mrf.mxu0
    %v2793 = vadd.f32 %v2704, %v2792
    %v2794 = vpop.f32.mrf.mxu0
    %2795 = vmatprep.mubr.bf16.mxu0 0
    %2796 = vmatmul.mubr.bf16.gmra.mxu0 %v2737
    %v2797 = vpop.f32.mrf.mxu0
    %v2798 = vadd.f32 %v2709, %v2797
    %v2799 = vpop.f32.mrf.mxu0
    %v2800 = vpop.f32.mrf.mxu0
    %v2801 = vadd.f32 %v2712, %v2800
    %v2802 = vpop.f32.mrf.mxu0
    %2803 = vdwg.mxu0
    %v2808 = vunpack.c.l.b16 %v2606
    %v2809 = vunpack.c.l.b16 %v2607
    %v2810 = vunpack.c.l.b16 %v2608
    %v2811 = vunpack.c.l.b16 %v2609
    %v2812 = vpack.c.b16 %v2809, %v2808
    %v2813 = vpack.c.b16 %v2811, %v2810
    %v2817 = vsel %vm301, %v2577, 0
    %v2820 = vsel %vm301, %v2578, 0
    %v2823 = vsel %vm301, %v2579, 0
    %v2826 = vsel %vm301, %v2580, 0
    %2828 = vmatprep.subr.bf16.mxu0 0
    %2829 = vmatpush1.bf16.msra.mxu0 0
    %2830 = vmatprep.subr.bf16.mxu0 0
    %2831 = vmatpush1.bf16.msra.mxu0 0
    %2832 = vmatprep.subr.bf16.mxu0 0
    %2833 = vmatpush1.bf16.msra.mxu0 0
    %2834 = vmatprep.subr.bf16.mxu0 0
    %2835 = vmatpush1.bf16.msra.mxu0 0
    %2836 = vmatprep.subr.bf16.mxu0 0
    %2837 = vmatpush1.bf16.msra.mxu0 0
    %2838 = vmatprep.subr.bf16.mxu0 0
    %2839 = vmatpush1.bf16.msra.mxu0 0
    %2840 = vmatprep.subr.bf16.mxu0 0
    %2841 = vmatpush1.bf16.msra.mxu0 %v2813
    %2842 = vmatprep.subr.bf16.mxu0 0
    %2843 = vmatpush1.bf16.msra.mxu0 %v2812
    %2844 = vmatprep.subr.bf16.mxu0 0
    %2845 = vmatpush2.bf16.msra.mxu0 0
    %2846 = vmatprep.subr.bf16.mxu0 0
    %2847 = vmatpush2.bf16.msra.mxu0 0
    %2848 = vmatprep.subr.bf16.mxu0 0
    %2849 = vmatpush2.bf16.msra.mxu0 0
    %2850 = vmatprep.subr.bf16.mxu0 0
    %2851 = vmatpush2.bf16.msra.mxu0 0
    %2852 = vmatprep.subr.bf16.mxu0 0
    %2853 = vmatpush2.bf16.msra.mxu0 0
    %2854 = vmatprep.subr.bf16.mxu0 0
    %2855 = vmatpush2.bf16.msra.mxu0 0
    %2856 = vmatprep.subr.bf16.mxu0 0
    %2857 = vmatpush2.bf16.msra.mxu0 0
    %2858 = vmatprep.subr.bf16.mxu0 0
    %2859 = vmatpush2.bf16.msra.mxu0 0
    %2860 = vmatprep.mubr.bf16.mxu0 0
    %2861 = vmatmul.mubr.bf16.gmra.mxu0 %v2817
    %v2862 = vpop.f32.mrf.mxu0
    %v2863 = vadd.f32 0.0, %v2862
    %v2864 = vpop.f32.mrf.mxu0
    %v2865 = vpop.f32.mrf.mxu0
    %v2866 = vadd.f32 0.0, %v2865
    %v2867 = vpop.f32.mrf.mxu0
    %2868 = vmatprep.mubr.bf16.mxu0 0
    %2869 = vmatmul.mubr.bf16.gmra.mxu0 %v2820
    %v2870 = vpop.f32.mrf.mxu0
    %v2871 = vadd.f32 0.0, %v2870
    %v2872 = vpop.f32.mrf.mxu0
    %v2873 = vpop.f32.mrf.mxu0
    %v2874 = vadd.f32 0.0, %v2873
    %v2875 = vpop.f32.mrf.mxu0
    %2876 = vmatprep.mubr.bf16.mxu0 0
    %2877 = vmatmul.mubr.bf16.gmra.mxu0 %v2823
    %v2878 = vpop.f32.mrf.mxu0
    %v2879 = vadd.f32 0.0, %v2878
    %v2880 = vpop.f32.mrf.mxu0
    %v2881 = vpop.f32.mrf.mxu0
    %v2882 = vadd.f32 0.0, %v2881
    %v2883 = vpop.f32.mrf.mxu0
    %2884 = vmatprep.mubr.bf16.mxu0 0
    %2885 = vmatmul.mubr.bf16.gmra.mxu0 %v2826
    %v2886 = vpop.f32.mrf.mxu0
    %v2887 = vadd.f32 0.0, %v2886
    %v2888 = vpop.f32.mrf.mxu0
    %v2889 = vpop.f32.mrf.mxu0
    %v2890 = vadd.f32 0.0, %v2889
    %v2891 = vpop.f32.mrf.mxu0
    %2892 = vdwg.mxu0
    %v2893 = vadd.f32 %v2774, %v2863
    %v2894 = vadd.f32 %v2777, %v2866
    %v2895 = vadd.f32 %v2782, %v2871
    %v2896 = vadd.f32 %v2785, %v2874
    %v2897 = vadd.f32 %v2790, %v2879
    %v2898 = vadd.f32 %v2793, %v2882
    %v2899 = vadd.f32 %v2798, %v2887
    %v2900 = vadd.f32 %v2801, %v2890
    %v2905 = vunpack.c.l.b16 %v2610
    %v2906 = vunpack.c.l.b16 %v2611
    %v2907 = vunpack.c.l.b16 %v2612
    %v2908 = vunpack.c.l.b16 %v2613
    %v2909 = vpack.c.b16 %v2906, %v2905
    %v2910 = vpack.c.b16 %v2908, %v2907
    %v2914 = vsel %vm301, %v2581, 0
    %v2917 = vsel %vm301, %v2582, 0
    %v2920 = vsel %vm301, %v2583, 0
    %v2923 = vsel %vm301, %v2584, 0
    %2925 = vmatprep.subr.bf16.mxu0 0
    %2926 = vmatpush1.bf16.msra.mxu0 0
    %2927 = vmatprep.subr.bf16.mxu0 0
    %2928 = vmatpush1.bf16.msra.mxu0 0
    %2929 = vmatprep.subr.bf16.mxu0 0
    %2930 = vmatpush1.bf16.msra.mxu0 0
    %2931 = vmatprep.subr.bf16.mxu0 0
    %2932 = vmatpush1.bf16.msra.mxu0 0
    %2933 = vmatprep.subr.bf16.mxu0 0
    %2934 = vmatpush1.bf16.msra.mxu0 0
    %2935 = vmatprep.subr.bf16.mxu0 0
    %2936 = vmatpush1.bf16.msra.mxu0 0
    %2937 = vmatprep.subr.bf16.mxu0 0
    %2938 = vmatpush1.bf16.msra.mxu0 %v2910
    %2939 = vmatprep.subr.bf16.mxu0 0
    %2940 = vmatpush1.bf16.msra.mxu0 %v2909
    %2941 = vmatprep.subr.bf16.mxu0 0
    %2942 = vmatpush2.bf16.msra.mxu0 0
    %2943 = vmatprep.subr.bf16.mxu0 0
    %2944 = vmatpush2.bf16.msra.mxu0 0
    %2945 = vmatprep.subr.bf16.mxu0 0
    %2946 = vmatpush2.bf16.msra.mxu0 0
    %2947 = vmatprep.subr.bf16.mxu0 0
    %2948 = vmatpush2.bf16.msra.mxu0 0
    %2949 = vmatprep.subr.bf16.mxu0 0
    %2950 = vmatpush2.bf16.msra.mxu0 0
    %2951 = vmatprep.subr.bf16.mxu0 0
    %2952 = vmatpush2.bf16.msra.mxu0 0
    %2953 = vmatprep.subr.bf16.mxu0 0
    %2954 = vmatpush2.bf16.msra.mxu0 0
    %2955 = vmatprep.subr.bf16.mxu0 0
    %2956 = vmatpush2.bf16.msra.mxu0 0
    %2957 = vmatprep.mubr.bf16.mxu0 0
    %2958 = vmatmul.mubr.bf16.gmra.mxu0 %v2914
    %v2959 = vpop.f32.mrf.mxu0
    %v2960 = vadd.f32 0.0, %v2959
    %v2961 = vpop.f32.mrf.mxu0
    %v2962 = vpop.f32.mrf.mxu0
    %v2963 = vadd.f32 0.0, %v2962
    %v2964 = vpop.f32.mrf.mxu0
    %2965 = vmatprep.mubr.bf16.mxu0 0
    %2966 = vmatmul.mubr.bf16.gmra.mxu0 %v2917
    %v2967 = vpop.f32.mrf.mxu0
    %v2968 = vadd.f32 0.0, %v2967
    %v2969 = vpop.f32.mrf.mxu0
    %v2970 = vpop.f32.mrf.mxu0
    %v2971 = vadd.f32 0.0, %v2970
    %v2972 = vpop.f32.mrf.mxu0
    %2973 = vmatprep.mubr.bf16.mxu0 0
    %2974 = vmatmul.mubr.bf16.gmra.mxu0 %v2920
    %v2975 = vpop.f32.mrf.mxu0
    %v2976 = vadd.f32 0.0, %v2975
    %v2977 = vpop.f32.mrf.mxu0
    %v2978 = vpop.f32.mrf.mxu0
    %v2979 = vadd.f32 0.0, %v2978
    %v2980 = vpop.f32.mrf.mxu0
    %2981 = vmatprep.mubr.bf16.mxu0 0
    %2982 = vmatmul.mubr.bf16.gmra.mxu0 %v2923
    %v2983 = vpop.f32.mrf.mxu0
    %v2984 = vadd.f32 0.0, %v2983
    %v2985 = vpop.f32.mrf.mxu0
    %v2986 = vpop.f32.mrf.mxu0
    %v2987 = vadd.f32 0.0, %v2986
    %v2988 = vpop.f32.mrf.mxu0
    %2989 = vdwg.mxu0
    %v2990 = vadd.f32 %v2893, %v2960
    %v2991 = vadd.f32 %v2894, %v2963
    %v2992 = vadd.f32 %v2895, %v2968
    %v2993 = vadd.f32 %v2896, %v2971
    %v2994 = vadd.f32 %v2897, %v2976
    %v2995 = vadd.f32 %v2898, %v2979
    %v2996 = vadd.f32 %v2899, %v2984
    %v2997 = vadd.f32 %v2900, %v2987
    %v3002 = vunpack.c.l.b16 %v2614
    %v3003 = vunpack.c.l.b16 %v2615
    %v3004 = vunpack.c.l.b16 %v2616
    %v3005 = vunpack.c.l.b16 %v2617
    %v3006 = vpack.c.b16 %v3003, %v3002
    %v3007 = vpack.c.b16 %v3005, %v3004
    %v3011 = vsel %vm301, %v2585, 0
    %v3014 = vsel %vm301, %v2586, 0
    %v3017 = vsel %vm301, %v2587, 0
    %v3020 = vsel %vm301, %v2588, 0
    %3022 = vmatprep.subr.bf16.mxu0 0
    %3023 = vmatpush1.bf16.msra.mxu0 0
    %3024 = vmatprep.subr.bf16.mxu0 0
    %3025 = vmatpush1.bf16.msra.mxu0 0
    %3026 = vmatprep.subr.bf16.mxu0 0
    %3027 = vmatpush1.bf16.msra.mxu0 0
    %3028 = vmatprep.subr.bf16.mxu0 0
    %3029 = vmatpush1.bf16.msra.mxu0 0
    %3030 = vmatprep.subr.bf16.mxu0 0
    %3031 = vmatpush1.bf16.msra.mxu0 0
    %3032 = vmatprep.subr.bf16.mxu0 0
    %3033 = vmatpush1.bf16.msra.mxu0 0
    %3034 = vmatprep.subr.bf16.mxu0 0
    %3035 = vmatpush1.bf16.msra.mxu0 %v3007
    %3036 = vmatprep.subr.bf16.mxu0 0
    %3037 = vmatpush1.bf16.msra.mxu0 %v3006
    %3038 = vmatprep.subr.bf16.mxu0 0
    %3039 = vmatpush2.bf16.msra.mxu0 0
    %3040 = vmatprep.subr.bf16.mxu0 0
    %3041 = vmatpush2.bf16.msra.mxu0 0
    %3042 = vmatprep.subr.bf16.mxu0 0
    %3043 = vmatpush2.bf16.msra.mxu0 0
    %3044 = vmatprep.subr.bf16.mxu0 0
    %3045 = vmatpush2.bf16.msra.mxu0 0
    %3046 = vmatprep.subr.bf16.mxu0 0
    %3047 = vmatpush2.bf16.msra.mxu0 0
    %3048 = vmatprep.subr.bf16.mxu0 0
    %3049 = vmatpush2.bf16.msra.mxu0 0
    %3050 = vmatprep.subr.bf16.mxu0 0
    %3051 = vmatpush2.bf16.msra.mxu0 0
    %3052 = vmatprep.subr.bf16.mxu0 0
    %3053 = vmatpush2.bf16.msra.mxu0 0
    %3054 = vmatprep.mubr.bf16.mxu0 0
    %3055 = vmatmul.mubr.bf16.gmra.mxu0 %v3011
    %v3056 = vpop.f32.mrf.mxu0
    %v3057 = vadd.f32 0.0, %v3056
    %v3058 = vpop.f32.mrf.mxu0
    %v3059 = vpop.f32.mrf.mxu0
    %v3060 = vadd.f32 0.0, %v3059
    %v3061 = vpop.f32.mrf.mxu0
    %3062 = vmatprep.mubr.bf16.mxu0 0
    %3063 = vmatmul.mubr.bf16.gmra.mxu0 %v3014
    %v3064 = vpop.f32.mrf.mxu0
    %v3065 = vadd.f32 0.0, %v3064
    %v3066 = vpop.f32.mrf.mxu0
    %v3067 = vpop.f32.mrf.mxu0
    %v3068 = vadd.f32 0.0, %v3067
    %v3069 = vpop.f32.mrf.mxu0
    %3070 = vmatprep.mubr.bf16.mxu0 0
    %3071 = vmatmul.mubr.bf16.gmra.mxu0 %v3017
    %v3072 = vpop.f32.mrf.mxu0
    %v3073 = vadd.f32 0.0, %v3072
    %v3074 = vpop.f32.mrf.mxu0
    %v3075 = vpop.f32.mrf.mxu0
    %v3076 = vadd.f32 0.0, %v3075
    %v3077 = vpop.f32.mrf.mxu0
    %3078 = vmatprep.mubr.bf16.mxu0 0
    %3079 = vmatmul.mubr.bf16.gmra.mxu0 %v3020
    %v3080 = vpop.f32.mrf.mxu0
    %v3081 = vadd.f32 0.0, %v3080
    %v3082 = vpop.f32.mrf.mxu0
    %v3083 = vpop.f32.mrf.mxu0
    %v3084 = vadd.f32 0.0, %v3083
    %v3085 = vpop.f32.mrf.mxu0
    %3086 = vdwg.mxu0
    %v3087 = vadd.f32 %v2990, %v3057
    %v3088 = vadd.f32 %v2991, %v3060
    %v3089 = vadd.f32 %v2992, %v3065
    %v3090 = vadd.f32 %v2993, %v3068
    %v3091 = vadd.f32 %v2994, %v3073
    %v3092 = vadd.f32 %v2995, %v3076
    %v3093 = vadd.f32 %v2996, %v3081
    %v3094 = vadd.f32 %v2997, %v3084
    %v3099 = vunpack.c.l.b16 %v2618
    %v3100 = vunpack.c.l.b16 %v2619
    %v3101 = vunpack.c.l.b16 %v2620
    %v3102 = vunpack.c.l.b16 %v2621
    %v3103 = vpack.c.b16 %v3100, %v3099
    %v3104 = vpack.c.b16 %v3102, %v3101
    %v3108 = vsel %vm301, %v2589, 0
    %v3111 = vsel %vm301, %v2590, 0
    %v3114 = vsel %vm301, %v2591, 0
    %v3117 = vsel %vm301, %v2592, 0
    %3119 = vmatprep.subr.bf16.mxu0 0
    %3120 = vmatpush1.bf16.msra.mxu0 0
    %3121 = vmatprep.subr.bf16.mxu0 0
    %3122 = vmatpush1.bf16.msra.mxu0 0
    %3123 = vmatprep.subr.bf16.mxu0 0
    %3124 = vmatpush1.bf16.msra.mxu0 0
    %3125 = vmatprep.subr.bf16.mxu0 0
    %3126 = vmatpush1.bf16.msra.mxu0 0
    %3127 = vmatprep.subr.bf16.mxu0 0
    %3128 = vmatpush1.bf16.msra.mxu0 0
    %3129 = vmatprep.subr.bf16.mxu0 0
    %3130 = vmatpush1.bf16.msra.mxu0 0
    %3131 = vmatprep.subr.bf16.mxu0 0
    %3132 = vmatpush1.bf16.msra.mxu0 %v3104
    %3133 = vmatprep.subr.bf16.mxu0 0
    %3134 = vmatpush1.bf16.msra.mxu0 %v3103
    %3135 = vmatprep.subr.bf16.mxu0 0
    %3136 = vmatpush2.bf16.msra.mxu0 0
    %3137 = vmatprep.subr.bf16.mxu0 0
    %3138 = vmatpush2.bf16.msra.mxu0 0
    %3139 = vmatprep.subr.bf16.mxu0 0
    %3140 = vmatpush2.bf16.msra.mxu0 0
    %3141 = vmatprep.subr.bf16.mxu0 0
    %3142 = vmatpush2.bf16.msra.mxu0 0
    %3143 = vmatprep.subr.bf16.mxu0 0
    %3144 = vmatpush2.bf16.msra.mxu0 0
    %3145 = vmatprep.subr.bf16.mxu0 0
    %3146 = vmatpush2.bf16.msra.mxu0 0
    %3147 = vmatprep.subr.bf16.mxu0 0
    %3148 = vmatpush2.bf16.msra.mxu0 0
    %3149 = vmatprep.subr.bf16.mxu0 0
    %3150 = vmatpush2.bf16.msra.mxu0 0
    %3151 = vmatprep.mubr.bf16.mxu0 0
    %3152 = vmatmul.mubr.bf16.gmra.mxu0 %v3108
    %v3153 = vpop.f32.mrf.mxu0
    %v3154 = vadd.f32 0.0, %v3153
    %v3155 = vpop.f32.mrf.mxu0
    %v3156 = vpop.f32.mrf.mxu0
    %v3157 = vadd.f32 0.0, %v3156
    %v3158 = vpop.f32.mrf.mxu0
    %3159 = vmatprep.mubr.bf16.mxu0 0
    %3160 = vmatmul.mubr.bf16.gmra.mxu0 %v3111
    %v3161 = vpop.f32.mrf.mxu0
    %v3162 = vadd.f32 0.0, %v3161
    %v3163 = vpop.f32.mrf.mxu0
    %v3164 = vpop.f32.mrf.mxu0
    %v3165 = vadd.f32 0.0, %v3164
    %v3166 = vpop.f32.mrf.mxu0
    %3167 = vmatprep.mubr.bf16.mxu0 0
    %3168 = vmatmul.mubr.bf16.gmra.mxu0 %v3114
    %v3169 = vpop.f32.mrf.mxu0
    %v3170 = vadd.f32 0.0, %v3169
    %v3171 = vpop.f32.mrf.mxu0
    %v3172 = vpop.f32.mrf.mxu0
    %v3173 = vadd.f32 0.0, %v3172
    %v3174 = vpop.f32.mrf.mxu0
    %3175 = vmatprep.mubr.bf16.mxu0 0
    %3176 = vmatmul.mubr.bf16.gmra.mxu0 %v3117
    %v3177 = vpop.f32.mrf.mxu0
    %v3178 = vadd.f32 0.0, %v3177
    %v3179 = vpop.f32.mrf.mxu0
    %v3180 = vpop.f32.mrf.mxu0
    %v3181 = vadd.f32 0.0, %v3180
    %v3182 = vpop.f32.mrf.mxu0
    %3183 = vdwg.mxu0
    %v3184 = vadd.f32 %v3087, %v3154
    %v3185 = vadd.f32 %v3088, %v3157
    %v3186 = vadd.f32 %v3089, %v3162
    %v3187 = vadd.f32 %v3090, %v3165
    %v3188 = vadd.f32 %v3091, %v3170
    %v3189 = vadd.f32 %v3092, %v3173
    %v3190 = vadd.f32 %v3093, %v3178
    %v3191 = vadd.f32 %v3094, %v3181
    %v3196 = vunpack.c.l.b16 %v2622
    %v3197 = vunpack.c.l.b16 %v2623
    %v3198 = vunpack.c.l.b16 %v2624
    %v3199 = vunpack.c.l.b16 %v2625
    %v3200 = vpack.c.b16 %v3197, %v3196
    %v3201 = vpack.c.b16 %v3199, %v3198
    %v3205 = vsel %vm301, %v2593, 0
    %v3208 = vsel %vm301, %v2594, 0
    %v3211 = vsel %vm301, %v2595, 0
    %v3214 = vsel %vm301, %v2596, 0
    %3216 = vmatprep.subr.bf16.mxu0 0
    %3217 = vmatpush1.bf16.msra.mxu0 0
    %3218 = vmatprep.subr.bf16.mxu0 0
    %3219 = vmatpush1.bf16.msra.mxu0 0
    %3220 = vmatprep.subr.bf16.mxu0 0
    %3221 = vmatpush1.bf16.msra.mxu0 0
    %3222 = vmatprep.subr.bf16.mxu0 0
    %3223 = vmatpush1.bf16.msra.mxu0 0
    %3224 = vmatprep.subr.bf16.mxu0 0
    %3225 = vmatpush1.bf16.msra.mxu0 0
    %3226 = vmatprep.subr.bf16.mxu0 0
    %3227 = vmatpush1.bf16.msra.mxu0 0
    %3228 = vmatprep.subr.bf16.mxu0 0
    %3229 = vmatpush1.bf16.msra.mxu0 %v3201
    %3230 = vmatprep.subr.bf16.mxu0 0
    %3231 = vmatpush1.bf16.msra.mxu0 %v3200
    %3232 = vmatprep.subr.bf16.mxu0 0
    %3233 = vmatpush2.bf16.msra.mxu0 0
    %3234 = vmatprep.subr.bf16.mxu0 0
    %3235 = vmatpush2.bf16.msra.mxu0 0
    %3236 = vmatprep.subr.bf16.mxu0 0
    %3237 = vmatpush2.bf16.msra.mxu0 0
    %3238 = vmatprep.subr.bf16.mxu0 0
    %3239 = vmatpush2.bf16.msra.mxu0 0
    %3240 = vmatprep.subr.bf16.mxu0 0
    %3241 = vmatpush2.bf16.msra.mxu0 0
    %3242 = vmatprep.subr.bf16.mxu0 0
    %3243 = vmatpush2.bf16.msra.mxu0 0
    %3244 = vmatprep.subr.bf16.mxu0 0
    %3245 = vmatpush2.bf16.msra.mxu0 0
    %3246 = vmatprep.subr.bf16.mxu0 0
    %3247 = vmatpush2.bf16.msra.mxu0 0
    %3248 = vmatprep.mubr.bf16.mxu0 0
    %3249 = vmatmul.mubr.bf16.gmra.mxu0 %v3205
    %v3250 = vpop.f32.mrf.mxu0
    %v3251 = vadd.f32 0.0, %v3250
    %v3252 = vpop.f32.mrf.mxu0
    %v3253 = vpop.f32.mrf.mxu0
    %v3254 = vadd.f32 0.0, %v3253
    %v3255 = vpop.f32.mrf.mxu0
    %3256 = vmatprep.mubr.bf16.mxu0 0
    %3257 = vmatmul.mubr.bf16.gmra.mxu0 %v3208
    %v3258 = vpop.f32.mrf.mxu0
    %v3259 = vadd.f32 0.0, %v3258
    %v3260 = vpop.f32.mrf.mxu0
    %v3261 = vpop.f32.mrf.mxu0
    %v3262 = vadd.f32 0.0, %v3261
    %v3263 = vpop.f32.mrf.mxu0
    %3264 = vmatprep.mubr.bf16.mxu0 0
    %3265 = vmatmul.mubr.bf16.gmra.mxu0 %v3211
    %v3266 = vpop.f32.mrf.mxu0
    %v3267 = vadd.f32 0.0, %v3266
    %v3268 = vpop.f32.mrf.mxu0
    %v3269 = vpop.f32.mrf.mxu0
    %v3270 = vadd.f32 0.0, %v3269
    %v3271 = vpop.f32.mrf.mxu0
    %3272 = vmatprep.mubr.bf16.mxu0 0
    %3273 = vmatmul.mubr.bf16.gmra.mxu0 %v3214
    %v3274 = vpop.f32.mrf.mxu0
    %v3275 = vadd.f32 0.0, %v3274
    %v3276 = vpop.f32.mrf.mxu0
    %v3277 = vpop.f32.mrf.mxu0
    %v3278 = vadd.f32 0.0, %v3277
    %v3279 = vpop.f32.mrf.mxu0
    %3280 = vdwg.mxu0
    %v3281 = vadd.f32 %v3184, %v3251
    %v3282 = vadd.f32 %v3185, %v3254
    %v3283 = vadd.f32 %v3186, %v3259
    %v3284 = vadd.f32 %v3187, %v3262
    %v3285 = vadd.f32 %v3188, %v3267
    %v3286 = vadd.f32 %v3189, %v3270
    %v3287 = vadd.f32 %v3190, %v3275
    %v3288 = vadd.f32 %v3191, %v3278
    %v3289 = vsel %vm301, %v3281, 0.0
    %3290 = vadd.xlane.f32.xlu0 %v3289
    %v3291 = vpop.xlane.xlu0 %3290
    %v3292 = vsel %vm301, %v3282, 0.0
    %3293 = vadd.xlane.f32.xlu0 %v3292
    %v3294 = vpop.xlane.xlu0 %3293
    %v3295 = vsel %vm301, %v3283, 0.0
    %3296 = vadd.xlane.f32.xlu0 %v3295
    %v3297 = vpop.xlane.xlu0 %3296
    %v3298 = vsel %vm301, %v3284, 0.0
    %3299 = vadd.xlane.f32.xlu0 %v3298
    %v3300 = vpop.xlane.xlu0 %3299
    %v3301 = vsel %vm301, %v3285, 0.0
    %3302 = vadd.xlane.f32.xlu0 %v3301
    %v3303 = vpop.xlane.xlu0 %3302
    %v3304 = vsel %vm301, %v3286, 0.0
    %3305 = vadd.xlane.f32.xlu0 %v3304
    %v3306 = vpop.xlane.xlu0 %3305
    %v3307 = vsel %vm301, %v3287, 0.0
    %3308 = vadd.xlane.f32.xlu0 %v3307
    %v3309 = vpop.xlane.xlu0 %3308
    %v3310 = vsel %vm301, %v3288, 0.0
    %3311 = vadd.xlane.f32.xlu0 %v3310
    %v3312 = vpop.xlane.xlu0 %3311
    %v3313 = vmul.f32 %v3291, %v326
    %v3314 = vmul.f32 %v3294, %v326
    %v3315 = vmul.f32 %v3297, %v326
    %v3316 = vmul.f32 %v3300, %v326
    %v3317 = vmul.f32 %v3303, %v326
    %v3318 = vmul.f32 %v3306, %v326
    %v3319 = vmul.f32 %v3309, %v326
    %v3320 = vmul.f32 %v3312, %v326
    %v3321 = vsub.f32 %v3281, %v3313
    %v3322 = vsub.f32 %v3282, %v3314
    %v3323 = vsub.f32 %v3283, %v3315
    %v3324 = vsub.f32 %v3284, %v3316
    %v3325 = vsub.f32 %v3285, %v3317
    %v3326 = vsub.f32 %v3286, %v3318
    %v3327 = vsub.f32 %v3287, %v3319
    %v3328 = vsub.f32 %v3288, %v3320
    %v3329 = vmul.f32 %v3321, %v3321
    %v3330 = vmul.f32 %v3322, %v3322
    %v3331 = vmul.f32 %v3323, %v3323
    %v3332 = vmul.f32 %v3324, %v3324
    %v3333 = vmul.f32 %v3325, %v3325
    %v3334 = vmul.f32 %v3326, %v3326
    %v3335 = vmul.f32 %v3327, %v3327
    %v3336 = vmul.f32 %v3328, %v3328
    %v3337 = vsel %vm301, %v3329, 0.0
    %3338 = vadd.xlane.f32.xlu0 %v3337
    %v3339 = vpop.xlane.xlu0 %3338
    %v3340 = vsel %vm301, %v3330, 0.0
    %3341 = vadd.xlane.f32.xlu0 %v3340
    %v3342 = vpop.xlane.xlu0 %3341
    %v3343 = vsel %vm301, %v3331, 0.0
    %3344 = vadd.xlane.f32.xlu0 %v3343
    %v3345 = vpop.xlane.xlu0 %3344
    %v3346 = vsel %vm301, %v3332, 0.0
    %3347 = vadd.xlane.f32.xlu0 %v3346
    %v3348 = vpop.xlane.xlu0 %3347
    %v3349 = vsel %vm301, %v3333, 0.0
    %3350 = vadd.xlane.f32.xlu0 %v3349
    %v3351 = vpop.xlane.xlu0 %3350
    %v3352 = vsel %vm301, %v3334, 0.0
    %3353 = vadd.xlane.f32.xlu0 %v3352
    %v3354 = vpop.xlane.xlu0 %3353
    %v3355 = vsel %vm301, %v3335, 0.0
    %3356 = vadd.xlane.f32.xlu0 %v3355
    %v3357 = vpop.xlane.xlu0 %3356
    %v3358 = vsel %vm301, %v3336, 0.0
    %3359 = vadd.xlane.f32.xlu0 %v3358
    %v3360 = vpop.xlane.xlu0 %3359
    %v3361 = vmul.f32 %v3339, %v326
    %v3362 = vmul.f32 %v3342, %v326
    %v3363 = vmul.f32 %v3345, %v326
    %v3364 = vmul.f32 %v3348, %v326
    %v3365 = vmul.f32 %v3351, %v326
    %v3366 = vmul.f32 %v3354, %v326
    %v3367 = vmul.f32 %v3357, %v326
    %v3368 = vmul.f32 %v3360, %v326
    %v3369 = vadd.f32 %v3361, 1e-05
    %v3370 = vadd.f32 %v3362, 1e-05
    %v3371 = vadd.f32 %v3363, 1e-05
    %v3372 = vadd.f32 %v3364, 1e-05
    %v3373 = vadd.f32 %v3365, 1e-05
    %v3374 = vadd.f32 %v3366, 1e-05
    %v3375 = vadd.f32 %v3367, 1e-05
    %v3376 = vadd.f32 %v3368, 1e-05
    %v3377 = vrsqrt.pop %v3369
    %v3378 = vrsqrt.pop %v3370
    %v3379 = vrsqrt.pop %v3371
    %v3380 = vrsqrt.pop %v3372
    %v3381 = vrsqrt.pop %v3373
    %v3382 = vrsqrt.pop %v3374
    %v3383 = vrsqrt.pop %v3375
    %v3384 = vrsqrt.pop %v3376
    %v3385 = vmul.f32 %v3321, %v3377
    %v3386 = vmul.f32 %v3322, %v3378
    %v3387 = vmul.f32 %v3323, %v3379
    %v3388 = vmul.f32 %v3324, %v3380
    %v3389 = vmul.f32 %v3325, %v3381
    %v3390 = vmul.f32 %v3326, %v3382
    %v3391 = vmul.f32 %v3327, %v3383
    %v3392 = vmul.f32 %v3328, %v3384
    %v3393 = vlaneseq
    %v3394 = vshrl.u32 %v3393, 7
    %v3395 = vsub.s32 1, %v3394
    %v3396 = vrot.slane %v667, %v3395
    %v3397 = vmul.f32 %v3385, %v3396
    %v3398 = vmul.f32 %v3386, %v3396
    %v3399 = vmul.f32 %v3387, %v3396
    %v3400 = vmul.f32 %v3388, %v3396
    %v3401 = vmul.f32 %v3389, %v3396
    %v3402 = vmul.f32 %v3390, %v3396
    %v3403 = vmul.f32 %v3391, %v3396
    %v3404 = vmul.f32 %v3392, %v3396
    %v3405 = vlaneseq
    %v3406 = vshrl.u32 %v3405, 7
    %v3407 = vsub.s32 1, %v3406
    %v3408 = vrot.slane %v668, %v3407
    %v3409 = vadd.f32 %v3397, %v3408
    %v3410 = vadd.f32 %v3398, %v3408
    %v3411 = vadd.f32 %v3399, %v3408
    %v3412 = vadd.f32 %v3400, %v3408
    %v3413 = vadd.f32 %v3401, %v3408
    %v3414 = vadd.f32 %v3402, %v3408
    %v3415 = vadd.f32 %v3403, %v3408
    %v3416 = vadd.f32 %v3404, %v3408
    %v3417 = vmax.f32 %v3409, 0.0
    %v3418 = vmax.f32 %v3410, 0.0
    %v3419 = vmax.f32 %v3411, 0.0
    %v3420 = vmax.f32 %v3412, 0.0
    %v3421 = vmax.f32 %v3413, 0.0
    %v3422 = vmax.f32 %v3414, 0.0
    %v3423 = vmax.f32 %v3415, 0.0
    %v3424 = vmax.f32 %v3416, 0.0
    %v3425 = vpack.c.bf16 %v3418, %v3417
    %v3426 = vpack.c.bf16 %v3420, %v3419
    %v3427 = vpack.c.bf16 %v3422, %v3421
    %v3428 = vpack.c.bf16 %v3424, %v3423
    %s3429 = scalar_lea.vmem %s10, 16
    %v3430 = vld [vmem:[%s3429] sm:$0xf]
    %v3431 = vld [vmem:[%s3429 + $0x4] sm:$0xf]
    %v3432 = vld [vmem:[%s3429 + $0x8] sm:$0xf]
    %v3433 = vld [vmem:[%s3429 + $0xc] sm:$0xf]
    %v3438 = vunpack.c.l.b16 %v3430
    %v3439 = vunpack.c.l.b16 %v3431
    %v3440 = vunpack.c.l.b16 %v3432
    %v3441 = vunpack.c.l.b16 %v3433
    %v3442 = vpack.c.b16 %v3439, %v3438
    %v3443 = vpack.c.b16 %v3441, %v3440
    %v3447 = vsel %vm301, %v3425, 0
    %v3450 = vsel %vm301, %v3426, 0
    %v3453 = vsel %vm301, %v3427, 0
    %v3456 = vsel %vm301, %v3428, 0
    %3458 = vmatprep.subr.bf16.mxu0 0
    %3459 = vmatpush1.bf16.msra.mxu0 0
    %3460 = vmatprep.subr.bf16.mxu0 0
    %3461 = vmatpush1.bf16.msra.mxu0 0
    %3462 = vmatprep.subr.bf16.mxu0 0
    %3463 = vmatpush1.bf16.msra.mxu0 0
    %3464 = vmatprep.subr.bf16.mxu0 0
    %3465 = vmatpush1.bf16.msra.mxu0 0
    %3466 = vmatprep.subr.bf16.mxu0 0
    %3467 = vmatpush1.bf16.msra.mxu0 0
    %3468 = vmatprep.subr.bf16.mxu0 0
    %3469 = vmatpush1.bf16.msra.mxu0 0
    %3470 = vmatprep.subr.bf16.mxu0 0
    %3471 = vmatpush1.bf16.msra.mxu0 %v3443
    %3472 = vmatprep.subr.bf16.mxu0 0
    %3473 = vmatpush1.bf16.msra.mxu0 %v3442
    %3474 = vmatprep.subr.bf16.mxu0 0
    %3475 = vmatpush2.bf16.msra.mxu0 0
    %3476 = vmatprep.subr.bf16.mxu0 0
    %3477 = vmatpush2.bf16.msra.mxu0 0
    %3478 = vmatprep.subr.bf16.mxu0 0
    %3479 = vmatpush2.bf16.msra.mxu0 0
    %3480 = vmatprep.subr.bf16.mxu0 0
    %3481 = vmatpush2.bf16.msra.mxu0 0
    %3482 = vmatprep.subr.bf16.mxu0 0
    %3483 = vmatpush2.bf16.msra.mxu0 0
    %3484 = vmatprep.subr.bf16.mxu0 0
    %3485 = vmatpush2.bf16.msra.mxu0 0
    %3486 = vmatprep.subr.bf16.mxu0 0
    %3487 = vmatpush2.bf16.msra.mxu0 0
    %3488 = vmatprep.subr.bf16.mxu0 0
    %3489 = vmatpush2.bf16.msra.mxu0 0
    %3490 = vmatprep.mubr.bf16.mxu0 0
    %3491 = vmatmul.mubr.bf16.gmra.mxu0 %v3447
    %v3492 = vpop.f32.mrf.mxu0
    %v3493 = vadd.f32 0.0, %v3492
    %v3494 = vpop.f32.mrf.mxu0
    %v3495 = vpop.f32.mrf.mxu0
    %v3496 = vadd.f32 0.0, %v3495
    %v3497 = vpop.f32.mrf.mxu0
    %3498 = vmatprep.mubr.bf16.mxu0 0
    %3499 = vmatmul.mubr.bf16.gmra.mxu0 %v3450
    %v3500 = vpop.f32.mrf.mxu0
    %v3501 = vadd.f32 0.0, %v3500
    %v3502 = vpop.f32.mrf.mxu0
    %v3503 = vpop.f32.mrf.mxu0
    %v3504 = vadd.f32 0.0, %v3503
    %v3505 = vpop.f32.mrf.mxu0
    %3506 = vmatprep.mubr.bf16.mxu0 0
    %3507 = vmatmul.mubr.bf16.gmra.mxu0 %v3453
    %v3508 = vpop.f32.mrf.mxu0
    %v3509 = vadd.f32 0.0, %v3508
    %v3510 = vpop.f32.mrf.mxu0
    %v3511 = vpop.f32.mrf.mxu0
    %v3512 = vadd.f32 0.0, %v3511
    %v3513 = vpop.f32.mrf.mxu0
    %3514 = vmatprep.mubr.bf16.mxu0 0
    %3515 = vmatmul.mubr.bf16.gmra.mxu0 %v3456
    %v3516 = vpop.f32.mrf.mxu0
    %v3517 = vadd.f32 0.0, %v3516
    %v3518 = vpop.f32.mrf.mxu0
    %v3519 = vpop.f32.mrf.mxu0
    %v3520 = vadd.f32 0.0, %v3519
    %v3521 = vpop.f32.mrf.mxu0
    %3522 = vdwg.mxu0
    %v3523 = vsel %vm301, %v3493, 0.0
    %3524 = vadd.xlane.f32.xlu0 %v3523
    %v3525 = vpop.xlane.xlu0 %3524
    %v3526 = vsel %vm301, %v3496, 0.0
    %3527 = vadd.xlane.f32.xlu0 %v3526
    %v3528 = vpop.xlane.xlu0 %3527
    %v3529 = vsel %vm301, %v3501, 0.0
    %3530 = vadd.xlane.f32.xlu0 %v3529
    %v3531 = vpop.xlane.xlu0 %3530
    %v3532 = vsel %vm301, %v3504, 0.0
    %3533 = vadd.xlane.f32.xlu0 %v3532
    %v3534 = vpop.xlane.xlu0 %3533
    %v3535 = vsel %vm301, %v3509, 0.0
    %3536 = vadd.xlane.f32.xlu0 %v3535
    %v3537 = vpop.xlane.xlu0 %3536
    %v3538 = vsel %vm301, %v3512, 0.0
    %3539 = vadd.xlane.f32.xlu0 %v3538
    %v3540 = vpop.xlane.xlu0 %3539
    %v3541 = vsel %vm301, %v3517, 0.0
    %3542 = vadd.xlane.f32.xlu0 %v3541
    %v3543 = vpop.xlane.xlu0 %3542
    %v3544 = vsel %vm301, %v3520, 0.0
    %3545 = vadd.xlane.f32.xlu0 %v3544
    %v3546 = vpop.xlane.xlu0 %3545
    %v3547 = vmul.f32 %v3525, %v326
    %v3548 = vmul.f32 %v3528, %v326
    %v3549 = vmul.f32 %v3531, %v326
    %v3550 = vmul.f32 %v3534, %v326
    %v3551 = vmul.f32 %v3537, %v326
    %v3552 = vmul.f32 %v3540, %v326
    %v3553 = vmul.f32 %v3543, %v326
    %v3554 = vmul.f32 %v3546, %v326
    %v3555 = vsub.f32 %v3493, %v3547
    %v3556 = vsub.f32 %v3496, %v3548
    %v3557 = vsub.f32 %v3501, %v3549
    %v3558 = vsub.f32 %v3504, %v3550
    %v3559 = vsub.f32 %v3509, %v3551
    %v3560 = vsub.f32 %v3512, %v3552
    %v3561 = vsub.f32 %v3517, %v3553
    %v3562 = vsub.f32 %v3520, %v3554
    %v3563 = vmul.f32 %v3555, %v3555
    %v3564 = vmul.f32 %v3556, %v3556
    %v3565 = vmul.f32 %v3557, %v3557
    %v3566 = vmul.f32 %v3558, %v3558
    %v3567 = vmul.f32 %v3559, %v3559
    %v3568 = vmul.f32 %v3560, %v3560
    %v3569 = vmul.f32 %v3561, %v3561
    %v3570 = vmul.f32 %v3562, %v3562
    %v3571 = vsel %vm301, %v3563, 0.0
    %3572 = vadd.xlane.f32.xlu0 %v3571
    %v3573 = vpop.xlane.xlu0 %3572
    %v3574 = vsel %vm301, %v3564, 0.0
    %3575 = vadd.xlane.f32.xlu0 %v3574
    %v3576 = vpop.xlane.xlu0 %3575
    %v3577 = vsel %vm301, %v3565, 0.0
    %3578 = vadd.xlane.f32.xlu0 %v3577
    %v3579 = vpop.xlane.xlu0 %3578
    %v3580 = vsel %vm301, %v3566, 0.0
    %3581 = vadd.xlane.f32.xlu0 %v3580
    %v3582 = vpop.xlane.xlu0 %3581
    %v3583 = vsel %vm301, %v3567, 0.0
    %3584 = vadd.xlane.f32.xlu0 %v3583
    %v3585 = vpop.xlane.xlu0 %3584
    %v3586 = vsel %vm301, %v3568, 0.0
    %3587 = vadd.xlane.f32.xlu0 %v3586
    %v3588 = vpop.xlane.xlu0 %3587
    %v3589 = vsel %vm301, %v3569, 0.0
    %3590 = vadd.xlane.f32.xlu0 %v3589
    %v3591 = vpop.xlane.xlu0 %3590
    %v3592 = vsel %vm301, %v3570, 0.0
    %3593 = vadd.xlane.f32.xlu0 %v3592
    %v3594 = vpop.xlane.xlu0 %3593
    %v3595 = vmul.f32 %v3573, %v326
    %v3596 = vmul.f32 %v3576, %v326
    %v3597 = vmul.f32 %v3579, %v326
    %v3598 = vmul.f32 %v3582, %v326
    %v3599 = vmul.f32 %v3585, %v326
    %v3600 = vmul.f32 %v3588, %v326
    %v3601 = vmul.f32 %v3591, %v326
    %v3602 = vmul.f32 %v3594, %v326
    %v3603 = vadd.f32 %v3595, 1e-05
    %v3604 = vadd.f32 %v3596, 1e-05
    %v3605 = vadd.f32 %v3597, 1e-05
    %v3606 = vadd.f32 %v3598, 1e-05
    %v3607 = vadd.f32 %v3599, 1e-05
    %v3608 = vadd.f32 %v3600, 1e-05
    %v3609 = vadd.f32 %v3601, 1e-05
    %v3610 = vadd.f32 %v3602, 1e-05
    %v3611 = vrsqrt.pop %v3603
    %v3612 = vrsqrt.pop %v3604
    %v3613 = vrsqrt.pop %v3605
    %v3614 = vrsqrt.pop %v3606
    %v3615 = vrsqrt.pop %v3607
    %v3616 = vrsqrt.pop %v3608
    %v3617 = vrsqrt.pop %v3609
    %v3618 = vrsqrt.pop %v3610
    %v3619 = vmul.f32 %v3555, %v3611
    %v3620 = vmul.f32 %v3556, %v3612
    %v3621 = vmul.f32 %v3557, %v3613
    %v3622 = vmul.f32 %v3558, %v3614
    %v3623 = vmul.f32 %v3559, %v3615
    %v3624 = vmul.f32 %v3560, %v3616
    %v3625 = vmul.f32 %v3561, %v3617
    %v3626 = vmul.f32 %v3562, %v3618
    %v3627 = vlaneseq
    %v3628 = vshrl.u32 %v3627, 7
    %v3629 = vsub.s32 1, %v3628
    %v3630 = vrot.slane %v669, %v3629
    %v3631 = vmul.f32 %v3619, %v3630
    %v3632 = vmul.f32 %v3620, %v3630
    %v3633 = vmul.f32 %v3621, %v3630
    %v3634 = vmul.f32 %v3622, %v3630
    %v3635 = vmul.f32 %v3623, %v3630
    %v3636 = vmul.f32 %v3624, %v3630
    %v3637 = vmul.f32 %v3625, %v3630
    %v3638 = vmul.f32 %v3626, %v3630
    %v3639 = vlaneseq
    %v3640 = vshrl.u32 %v3639, 7
    %v3641 = vsub.s32 1, %v3640
    %v3642 = vrot.slane %v670, %v3641
    %v3643 = vadd.f32 %v3631, %v3642
    %v3644 = vadd.f32 %v3632, %v3642
    %v3645 = vadd.f32 %v3633, %v3642
    %v3646 = vadd.f32 %v3634, %v3642
    %v3647 = vadd.f32 %v3635, %v3642
    %v3648 = vadd.f32 %v3636, %v3642
    %v3649 = vadd.f32 %v3637, %v3642
    %v3650 = vadd.f32 %v3638, %v3642
    %v3651 = vadd.f32 %v3643, %v2300
    %v3652 = vadd.f32 %v3644, %v2301
    %v3653 = vadd.f32 %v3645, %v2302
    %v3654 = vadd.f32 %v3646, %v2303
    %v3655 = vadd.f32 %v3647, %v2304
    %v3656 = vadd.f32 %v3648, %v2305
    %v3657 = vadd.f32 %v3649, %v2306
    %v3658 = vadd.f32 %v3650, %v2307
    %v3659 = vmax.f32 %v3651, 0.0
    %v3660 = vmax.f32 %v3652, 0.0
    %v3661 = vmax.f32 %v3653, 0.0
    %v3662 = vmax.f32 %v3654, 0.0
    %v3663 = vmax.f32 %v3655, 0.0
    %v3664 = vmax.f32 %v3656, 0.0
    %v3665 = vmax.f32 %v3657, 0.0
    %v3666 = vmax.f32 %v3658, 0.0
    %v3667 = vpack.c.bf16 %v3660, %v3659
    %v3668 = vpack.c.bf16 %v3662, %v3661
    %v3669 = vpack.c.bf16 %v3664, %v3663
    %v3670 = vpack.c.bf16 %v3666, %v3665
    %3671 = vmatprep.subr.bf16.mxu0 0
    %3672 = vmatpush1.bf16.msra.mxu0 0
    %3673 = vmatprep.subr.bf16.mxu0 0
    %3674 = vmatpush1.bf16.msra.mxu0 0
    %3675 = vmatprep.subr.bf16.mxu0 0
    %3676 = vmatpush1.bf16.msra.mxu0 0
    %3677 = vmatprep.subr.bf16.mxu0 0
    %3678 = vmatpush1.bf16.msra.mxu0 0
    %3679 = vmatprep.subr.bf16.mxu0 0
    %3680 = vmatpush1.bf16.msra.mxu0 %v3670
    %3681 = vmatprep.subr.bf16.mxu0 0
    %3682 = vmatpush1.bf16.msra.mxu0 %v3669
    %3683 = vmatprep.subr.bf16.mxu0 0
    %3684 = vmatpush1.bf16.msra.mxu0 %v3668
    %3685 = vmatprep.subr.bf16.mxu0 0
    %3686 = vmatpush1.bf16.msra.mxu0 %v3667
    %3687 = vmatprep.subr.bf16.mxu0 0
    %3688 = vmatpush2.bf16.msra.mxu0 0
    %3689 = vmatprep.subr.bf16.mxu0 0
    %3690 = vmatpush2.bf16.msra.mxu0 0
    %3691 = vmatprep.subr.bf16.mxu0 0
    %3692 = vmatpush2.bf16.msra.mxu0 0
    %3693 = vmatprep.subr.bf16.mxu0 0
    %3694 = vmatpush2.bf16.msra.mxu0 0
    %3695 = vmatprep.subr.bf16.mxu0 0
    %3696 = vmatpush2.bf16.msra.mxu0 0
    %3697 = vmatprep.subr.bf16.mxu0 0
    %3698 = vmatpush2.bf16.msra.mxu0 0
    %3699 = vmatprep.subr.bf16.mxu0 0
    %3700 = vmatpush2.bf16.msra.mxu0 0
    %3701 = vmatprep.subr.bf16.mxu0 0
    %3702 = vmatpush2.bf16.msra.mxu0 0
    %3703 = vmatprep.mubr.bf16.mxu0 0
    %3704 = vmatmul.mubr.bf16.gmra.mxu0 %v872
    %v3705 = vpop.f32.mrf.mxu0
    %v3706 = vadd.f32 0.0, %v3705
    %v3707 = vpop.f32.mrf.mxu0
    %v3708 = vpop.f32.mrf.mxu0
    %v3709 = vadd.f32 0.0, %v3708
    %v3710 = vpop.f32.mrf.mxu0
    %3711 = vmatprep.mubr.bf16.mxu0 0
    %3712 = vmatmul.mubr.bf16.gmra.mxu0 %v875
    %v3713 = vpop.f32.mrf.mxu0
    %v3714 = vadd.f32 0.0, %v3713
    %v3715 = vpop.f32.mrf.mxu0
    %v3716 = vpop.f32.mrf.mxu0
    %v3717 = vadd.f32 0.0, %v3716
    %v3718 = vpop.f32.mrf.mxu0
    %3719 = vmatprep.mubr.bf16.mxu0 0
    %3720 = vmatmul.mubr.bf16.gmra.mxu0 %v878
    %v3721 = vpop.f32.mrf.mxu0
    %v3722 = vadd.f32 0.0, %v3721
    %v3723 = vpop.f32.mrf.mxu0
    %v3724 = vpop.f32.mrf.mxu0
    %v3725 = vadd.f32 0.0, %v3724
    %v3726 = vpop.f32.mrf.mxu0
    %3727 = vmatprep.mubr.bf16.mxu0 0
    %3728 = vmatmul.mubr.bf16.gmra.mxu0 %v881
    %v3729 = vpop.f32.mrf.mxu0
    %v3730 = vadd.f32 0.0, %v3729
    %v3731 = vpop.f32.mrf.mxu0
    %v3732 = vpop.f32.mrf.mxu0
    %v3733 = vadd.f32 0.0, %v3732
    %v3734 = vpop.f32.mrf.mxu0
    %3735 = vmatprep.mubr.bf16.mxu0 0
    %3736 = vmatmul.mubr.bf16.gmra.mxu0 %v884
    %v3737 = vpop.f32.mrf.mxu0
    %v3738 = vadd.f32 0.0, %v3737
    %v3739 = vpop.f32.mrf.mxu0
    %v3740 = vpop.f32.mrf.mxu0
    %v3741 = vadd.f32 0.0, %v3740
    %v3742 = vpop.f32.mrf.mxu0
    %3743 = vmatprep.mubr.bf16.mxu0 0
    %3744 = vmatmul.mubr.bf16.gmra.mxu0 %v887
    %v3745 = vpop.f32.mrf.mxu0
    %v3746 = vadd.f32 0.0, %v3745
    %v3747 = vpop.f32.mrf.mxu0
    %v3748 = vpop.f32.mrf.mxu0
    %v3749 = vadd.f32 0.0, %v3748
    %v3750 = vpop.f32.mrf.mxu0
    %3751 = vmatprep.mubr.bf16.mxu0 0
    %3752 = vmatmul.mubr.bf16.gmra.mxu0 %v890
    %v3753 = vpop.f32.mrf.mxu0
    %v3754 = vadd.f32 0.0, %v3753
    %v3755 = vpop.f32.mrf.mxu0
    %v3756 = vpop.f32.mrf.mxu0
    %v3757 = vadd.f32 0.0, %v3756
    %v3758 = vpop.f32.mrf.mxu0
    %3759 = vmatprep.mubr.bf16.mxu0 0
    %3760 = vmatmul.mubr.bf16.gmra.mxu0 %v893
    %v3761 = vpop.f32.mrf.mxu0
    %v3762 = vadd.f32 0.0, %v3761
    %v3763 = vpop.f32.mrf.mxu0
    %v3764 = vpop.f32.mrf.mxu0
    %v3765 = vadd.f32 0.0, %v3764
    %v3766 = vpop.f32.mrf.mxu0
    %3767 = vmatprep.mubr.bf16.mxu0 0
    %3768 = vmatmul.mubr.bf16.gmra.mxu0 %v896
    %v3769 = vpop.f32.mrf.mxu0
    %v3770 = vadd.f32 0.0, %v3769
    %v3771 = vpop.f32.mrf.mxu0
    %v3772 = vpop.f32.mrf.mxu0
    %v3773 = vadd.f32 0.0, %v3772
    %v3774 = vpop.f32.mrf.mxu0
    %3775 = vmatprep.mubr.bf16.mxu0 0
    %3776 = vmatmul.mubr.bf16.gmra.mxu0 %v899
    %v3777 = vpop.f32.mrf.mxu0
    %v3778 = vadd.f32 0.0, %v3777
    %v3779 = vpop.f32.mrf.mxu0
    %v3780 = vpop.f32.mrf.mxu0
    %v3781 = vadd.f32 0.0, %v3780
    %v3782 = vpop.f32.mrf.mxu0
    %3783 = vmatprep.mubr.bf16.mxu0 0
    %3784 = vmatmul.mubr.bf16.gmra.mxu0 %v902
    %v3785 = vpop.f32.mrf.mxu0
    %v3786 = vadd.f32 0.0, %v3785
    %v3787 = vpop.f32.mrf.mxu0
    %v3788 = vpop.f32.mrf.mxu0
    %v3789 = vadd.f32 0.0, %v3788
    %v3790 = vpop.f32.mrf.mxu0
    %3791 = vmatprep.mubr.bf16.mxu0 0
    %3792 = vmatmul.mubr.bf16.gmra.mxu0 %v905
    %v3793 = vpop.f32.mrf.mxu0
    %v3794 = vadd.f32 0.0, %v3793
    %v3795 = vpop.f32.mrf.mxu0
    %v3796 = vpop.f32.mrf.mxu0
    %v3797 = vadd.f32 0.0, %v3796
    %v3798 = vpop.f32.mrf.mxu0
    %3799 = vmatprep.mubr.bf16.mxu0 0
    %3800 = vmatmul.mubr.bf16.gmra.mxu0 %v908
    %v3801 = vpop.f32.mrf.mxu0
    %v3802 = vadd.f32 0.0, %v3801
    %v3803 = vpop.f32.mrf.mxu0
    %v3804 = vpop.f32.mrf.mxu0
    %v3805 = vadd.f32 0.0, %v3804
    %v3806 = vpop.f32.mrf.mxu0
    %3807 = vmatprep.mubr.bf16.mxu0 0
    %3808 = vmatmul.mubr.bf16.gmra.mxu0 %v911
    %v3809 = vpop.f32.mrf.mxu0
    %v3810 = vadd.f32 0.0, %v3809
    %v3811 = vpop.f32.mrf.mxu0
    %v3812 = vpop.f32.mrf.mxu0
    %v3813 = vadd.f32 0.0, %v3812
    %v3814 = vpop.f32.mrf.mxu0
    %3815 = vmatprep.mubr.bf16.mxu0 0
    %3816 = vmatmul.mubr.bf16.gmra.mxu0 %v914
    %v3817 = vpop.f32.mrf.mxu0
    %v3818 = vadd.f32 0.0, %v3817
    %v3819 = vpop.f32.mrf.mxu0
    %v3820 = vpop.f32.mrf.mxu0
    %v3821 = vadd.f32 0.0, %v3820
    %v3822 = vpop.f32.mrf.mxu0
    %3823 = vmatprep.mubr.bf16.mxu0 0
    %3824 = vmatmul.mubr.bf16.gmra.mxu0 %v917
    %v3825 = vpop.f32.mrf.mxu0
    %v3826 = vadd.f32 0.0, %v3825
    %v3827 = vpop.f32.mrf.mxu0
    %v3828 = vpop.f32.mrf.mxu0
    %v3829 = vadd.f32 0.0, %v3828
    %v3830 = vpop.f32.mrf.mxu0
    %3831 = vmatprep.mubr.bf16.mxu0 0
    %3832 = vmatmul.mubr.bf16.gmra.mxu0 %v920
    %v3833 = vpop.f32.mrf.mxu0
    %v3834 = vadd.f32 0.0, %v3833
    %v3835 = vpop.f32.mrf.mxu0
    %v3836 = vpop.f32.mrf.mxu0
    %v3837 = vadd.f32 0.0, %v3836
    %v3838 = vpop.f32.mrf.mxu0
    %3839 = vmatprep.mubr.bf16.mxu0 0
    %3840 = vmatmul.mubr.bf16.gmra.mxu0 %v923
    %v3841 = vpop.f32.mrf.mxu0
    %v3842 = vadd.f32 0.0, %v3841
    %v3843 = vpop.f32.mrf.mxu0
    %v3844 = vpop.f32.mrf.mxu0
    %v3845 = vadd.f32 0.0, %v3844
    %v3846 = vpop.f32.mrf.mxu0
    %3847 = vmatprep.mubr.bf16.mxu0 0
    %3848 = vmatmul.mubr.bf16.gmra.mxu0 %v926
    %v3849 = vpop.f32.mrf.mxu0
    %v3850 = vadd.f32 0.0, %v3849
    %v3851 = vpop.f32.mrf.mxu0
    %v3852 = vpop.f32.mrf.mxu0
    %v3853 = vadd.f32 0.0, %v3852
    %v3854 = vpop.f32.mrf.mxu0
    %3855 = vmatprep.mubr.bf16.mxu0 0
    %3856 = vmatmul.mubr.bf16.gmra.mxu0 %v929
    %v3857 = vpop.f32.mrf.mxu0
    %v3858 = vadd.f32 0.0, %v3857
    %v3859 = vpop.f32.mrf.mxu0
    %v3860 = vpop.f32.mrf.mxu0
    %v3861 = vadd.f32 0.0, %v3860
    %v3862 = vpop.f32.mrf.mxu0
    %3863 = vmatprep.mubr.bf16.mxu0 0
    %3864 = vmatmul.mubr.bf16.gmra.mxu0 %v932
    %v3865 = vpop.f32.mrf.mxu0
    %v3866 = vadd.f32 0.0, %v3865
    %v3867 = vpop.f32.mrf.mxu0
    %v3868 = vpop.f32.mrf.mxu0
    %v3869 = vadd.f32 0.0, %v3868
    %v3870 = vpop.f32.mrf.mxu0
    %3871 = vmatprep.mubr.bf16.mxu0 0
    %3872 = vmatmul.mubr.bf16.gmra.mxu0 %v935
    %v3873 = vpop.f32.mrf.mxu0
    %v3874 = vadd.f32 0.0, %v3873
    %v3875 = vpop.f32.mrf.mxu0
    %v3876 = vpop.f32.mrf.mxu0
    %v3877 = vadd.f32 0.0, %v3876
    %v3878 = vpop.f32.mrf.mxu0
    %3879 = vmatprep.mubr.bf16.mxu0 0
    %3880 = vmatmul.mubr.bf16.gmra.mxu0 %v938
    %v3881 = vpop.f32.mrf.mxu0
    %v3882 = vadd.f32 0.0, %v3881
    %v3883 = vpop.f32.mrf.mxu0
    %v3884 = vpop.f32.mrf.mxu0
    %v3885 = vadd.f32 0.0, %v3884
    %v3886 = vpop.f32.mrf.mxu0
    %3887 = vmatprep.mubr.bf16.mxu0 0
    %3888 = vmatmul.mubr.bf16.gmra.mxu0 %v941
    %v3889 = vpop.f32.mrf.mxu0
    %v3890 = vadd.f32 0.0, %v3889
    %v3891 = vpop.f32.mrf.mxu0
    %v3892 = vpop.f32.mrf.mxu0
    %v3893 = vadd.f32 0.0, %v3892
    %v3894 = vpop.f32.mrf.mxu0
    %3895 = vmatprep.mubr.bf16.mxu0 0
    %3896 = vmatmul.mubr.bf16.gmra.mxu0 %v944
    %v3897 = vpop.f32.mrf.mxu0
    %v3898 = vadd.f32 0.0, %v3897
    %v3899 = vpop.f32.mrf.mxu0
    %v3900 = vpop.f32.mrf.mxu0
    %v3901 = vadd.f32 0.0, %v3900
    %v3902 = vpop.f32.mrf.mxu0
    %3903 = vmatprep.mubr.bf16.mxu0 0
    %3904 = vmatmul.mubr.bf16.gmra.mxu0 %v947
    %v3905 = vpop.f32.mrf.mxu0
    %v3906 = vadd.f32 0.0, %v3905
    %v3907 = vpop.f32.mrf.mxu0
    %v3908 = vpop.f32.mrf.mxu0
    %v3909 = vadd.f32 0.0, %v3908
    %v3910 = vpop.f32.mrf.mxu0
    %3911 = vmatprep.mubr.bf16.mxu0 0
    %3912 = vmatmul.mubr.bf16.gmra.mxu0 %v950
    %v3913 = vpop.f32.mrf.mxu0
    %v3914 = vadd.f32 0.0, %v3913
    %v3915 = vpop.f32.mrf.mxu0
    %v3916 = vpop.f32.mrf.mxu0
    %v3917 = vadd.f32 0.0, %v3916
    %v3918 = vpop.f32.mrf.mxu0
    %3919 = vmatprep.mubr.bf16.mxu0 0
    %3920 = vmatmul.mubr.bf16.gmra.mxu0 %v953
    %v3921 = vpop.f32.mrf.mxu0
    %v3922 = vadd.f32 0.0, %v3921
    %v3923 = vpop.f32.mrf.mxu0
    %v3924 = vpop.f32.mrf.mxu0
    %v3925 = vadd.f32 0.0, %v3924
    %v3926 = vpop.f32.mrf.mxu0
    %3927 = vdwg.mxu0
    %v3928 = vpack.c.bf16 %v3709, %v3706
    %v3929 = vpack.c.bf16 %v3717, %v3714
    %v3930 = vpack.c.bf16 %v3725, %v3722
    %v3931 = vpack.c.bf16 %v3733, %v3730
    %v3932 = vpack.c.bf16 %v3741, %v3738
    %v3933 = vpack.c.bf16 %v3749, %v3746
    %v3934 = vpack.c.bf16 %v3757, %v3754
    %v3935 = vpack.c.bf16 %v3765, %v3762
    %v3936 = vpack.c.bf16 %v3773, %v3770
    %v3937 = vpack.c.bf16 %v3781, %v3778
    %v3938 = vpack.c.bf16 %v3789, %v3786
    %v3939 = vpack.c.bf16 %v3797, %v3794
    %v3940 = vpack.c.bf16 %v3805, %v3802
    %v3941 = vpack.c.bf16 %v3813, %v3810
    %v3942 = vpack.c.bf16 %v3821, %v3818
    %v3943 = vpack.c.bf16 %v3829, %v3826
    %v3944 = vpack.c.bf16 %v3837, %v3834
    %v3945 = vpack.c.bf16 %v3845, %v3842
    %v3946 = vpack.c.bf16 %v3853, %v3850
    %v3947 = vpack.c.bf16 %v3861, %v3858
    %v3948 = vpack.c.bf16 %v3869, %v3866
    %v3949 = vpack.c.bf16 %v3877, %v3874
    %v3950 = vpack.c.bf16 %v3885, %v3882
    %v3951 = vpack.c.bf16 %v3893, %v3890
    %v3952 = vpack.c.bf16 %v3901, %v3898
    %v3953 = vpack.c.bf16 %v3909, %v3906
    %v3954 = vpack.c.bf16 %v3917, %v3914
    %v3955 = vpack.c.bf16 %v3925, %v3922
    %s3956 = scalar_lea.vmem [#allocation2], 224
    %v3957 = vld [vmem:[%s3956] sm:$0xf]
    %v3958 = vld [vmem:[%s3956 + $0x4] sm:$0xf]
    %v3959 = vld [vmem:[%s3956 + $0x8] sm:$0xf]
    %v3960 = vld [vmem:[%s3956 + $0xc] sm:$0xf]
    %v3961 = vld [vmem:[%s3956 + $0x10] sm:$0xf]
    %v3962 = vld [vmem:[%s3956 + $0x14] sm:$0xf]
    %v3963 = vld [vmem:[%s3956 + $0x18] sm:$0xf]
    %v3964 = vld [vmem:[%s3956 + $0x1c] sm:$0xf]
    %v3965 = vld [vmem:[%s3956 + $0x20] sm:$0xf]
    %v3966 = vld [vmem:[%s3956 + $0x24] sm:$0xf]
    %v3967 = vld [vmem:[%s3956 + $0x28] sm:$0xf]
    %v3968 = vld [vmem:[%s3956 + $0x2c] sm:$0xf]
    %v3969 = vld [vmem:[%s3956 + $0x30] sm:$0xf]
    %v3970 = vld [vmem:[%s3956 + $0x34] sm:$0xf]
    %v3971 = vld [vmem:[%s3956 + $0x38] sm:$0xf]
    %v3972 = vld [vmem:[%s3956 + $0x3c] sm:$0xf]
    %v3973 = vld [vmem:[%s3956 + $0x40] sm:$0xf]
    %v3974 = vld [vmem:[%s3956 + $0x44] sm:$0xf]
    %v3975 = vld [vmem:[%s3956 + $0x48] sm:$0xf]
    %v3976 = vld [vmem:[%s3956 + $0x4c] sm:$0xf]
    %v3977 = vld [vmem:[%s3956 + $0x50] sm:$0xf]
    %v3978 = vld [vmem:[%s3956 + $0x54] sm:$0xf]
    %v3979 = vld [vmem:[%s3956 + $0x58] sm:$0xf]
    %v3980 = vld [vmem:[%s3956 + $0x5c] sm:$0xf]
    %v3981 = vld [vmem:[%s3956 + $0x60] sm:$0xf]
    %v3982 = vld [vmem:[%s3956 + $0x64] sm:$0xf]
    %v3983 = vld [vmem:[%s3956 + $0x68] sm:$0xf]
    %v3984 = vld [vmem:[%s3956 + $0x6c] sm:$0xf]
    %v3989 = vunpack.c.l.b16 %v3961
    %v3990 = vunpack.c.l.b16 %v3962
    %v3991 = vunpack.c.l.b16 %v3963
    %v3992 = vunpack.c.l.b16 %v3964
    %v3993 = vpack.c.b16 %v3990, %v3989
    %v3994 = vpack.c.b16 %v3992, %v3991
    %v3998 = vsel %vm301, %v3932, 0
    %v4001 = vsel %vm301, %v3933, 0
    %v4004 = vsel %vm301, %v3934, 0
    %v4007 = vsel %vm301, %v3935, 0
    %4009 = vmatprep.subr.bf16.mxu0 0
    %4010 = vmatpush1.bf16.msra.mxu0 0
    %4011 = vmatprep.subr.bf16.mxu0 0
    %4012 = vmatpush1.bf16.msra.mxu0 0
    %4013 = vmatprep.subr.bf16.mxu0 0
    %4014 = vmatpush1.bf16.msra.mxu0 0
    %4015 = vmatprep.subr.bf16.mxu0 0
    %4016 = vmatpush1.bf16.msra.mxu0 0
    %4017 = vmatprep.subr.bf16.mxu0 0
    %4018 = vmatpush1.bf16.msra.mxu0 0
    %4019 = vmatprep.subr.bf16.mxu0 0
    %4020 = vmatpush1.bf16.msra.mxu0 0
    %4021 = vmatprep.subr.bf16.mxu0 0
    %4022 = vmatpush1.bf16.msra.mxu0 %v3994
    %4023 = vmatprep.subr.bf16.mxu0 0
    %4024 = vmatpush1.bf16.msra.mxu0 %v3993
    %4025 = vmatprep.subr.bf16.mxu0 0
    %4026 = vmatpush2.bf16.msra.mxu0 0
    %4027 = vmatprep.subr.bf16.mxu0 0
    %4028 = vmatpush2.bf16.msra.mxu0 0
    %4029 = vmatprep.subr.bf16.mxu0 0
    %4030 = vmatpush2.bf16.msra.mxu0 0
    %4031 = vmatprep.subr.bf16.mxu0 0
    %4032 = vmatpush2.bf16.msra.mxu0 0
    %4033 = vmatprep.subr.bf16.mxu0 0
    %4034 = vmatpush2.bf16.msra.mxu0 0
    %4035 = vmatprep.subr.bf16.mxu0 0
    %4036 = vmatpush2.bf16.msra.mxu0 0
    %4037 = vmatprep.subr.bf16.mxu0 0
    %4038 = vmatpush2.bf16.msra.mxu0 0
    %4039 = vmatprep.subr.bf16.mxu0 0
    %4040 = vmatpush2.bf16.msra.mxu0 0
    %4041 = vmatprep.mubr.bf16.mxu0 0
    %4042 = vmatmul.mubr.bf16.gmra.mxu0 %v3998
    %v4043 = vpop.f32.mrf.mxu0
    %v4044 = vadd.f32 0.0, %v4043
    %v4045 = vpop.f32.mrf.mxu0
    %v4046 = vpop.f32.mrf.mxu0
    %v4047 = vadd.f32 0.0, %v4046
    %v4048 = vpop.f32.mrf.mxu0
    %4049 = vmatprep.mubr.bf16.mxu0 0
    %4050 = vmatmul.mubr.bf16.gmra.mxu0 %v4001
    %v4051 = vpop.f32.mrf.mxu0
    %v4052 = vadd.f32 0.0, %v4051
    %v4053 = vpop.f32.mrf.mxu0
    %v4054 = vpop.f32.mrf.mxu0
    %v4055 = vadd.f32 0.0, %v4054
    %v4056 = vpop.f32.mrf.mxu0
    %4057 = vmatprep.mubr.bf16.mxu0 0
    %4058 = vmatmul.mubr.bf16.gmra.mxu0 %v4004
    %v4059 = vpop.f32.mrf.mxu0
    %v4060 = vadd.f32 0.0, %v4059
    %v4061 = vpop.f32.mrf.mxu0
    %v4062 = vpop.f32.mrf.mxu0
    %v4063 = vadd.f32 0.0, %v4062
    %v4064 = vpop.f32.mrf.mxu0
    %4065 = vmatprep.mubr.bf16.mxu0 0
    %4066 = vmatmul.mubr.bf16.gmra.mxu0 %v4007
    %v4067 = vpop.f32.mrf.mxu0
    %v4068 = vadd.f32 0.0, %v4067
    %v4069 = vpop.f32.mrf.mxu0
    %v4070 = vpop.f32.mrf.mxu0
    %v4071 = vadd.f32 0.0, %v4070
    %v4072 = vpop.f32.mrf.mxu0
    %4073 = vdwg.mxu0
    %v4078 = vunpack.c.l.b16 %v3957
    %v4079 = vunpack.c.l.b16 %v3958
    %v4080 = vunpack.c.l.b16 %v3959
    %v4081 = vunpack.c.l.b16 %v3960
    %v4082 = vpack.c.b16 %v4079, %v4078
    %v4083 = vpack.c.b16 %v4081, %v4080
    %v4087 = vsel %vm301, %v3928, 0
    %v4090 = vsel %vm301, %v3929, 0
    %v4093 = vsel %vm301, %v3930, 0
    %v4096 = vsel %vm301, %v3931, 0
    %4098 = vmatprep.subr.bf16.mxu0 0
    %4099 = vmatpush1.bf16.msra.mxu0 0
    %4100 = vmatprep.subr.bf16.mxu0 0
    %4101 = vmatpush1.bf16.msra.mxu0 0
    %4102 = vmatprep.subr.bf16.mxu0 0
    %4103 = vmatpush1.bf16.msra.mxu0 0
    %4104 = vmatprep.subr.bf16.mxu0 0
    %4105 = vmatpush1.bf16.msra.mxu0 0
    %4106 = vmatprep.subr.bf16.mxu0 0
    %4107 = vmatpush1.bf16.msra.mxu0 0
    %4108 = vmatprep.subr.bf16.mxu0 0
    %4109 = vmatpush1.bf16.msra.mxu0 0
    %4110 = vmatprep.subr.bf16.mxu0 0
    %4111 = vmatpush1.bf16.msra.mxu0 %v4083
    %4112 = vmatprep.subr.bf16.mxu0 0
    %4113 = vmatpush1.bf16.msra.mxu0 %v4082
    %4114 = vmatprep.subr.bf16.mxu0 0
    %4115 = vmatpush2.bf16.msra.mxu0 0
    %4116 = vmatprep.subr.bf16.mxu0 0
    %4117 = vmatpush2.bf16.msra.mxu0 0
    %4118 = vmatprep.subr.bf16.mxu0 0
    %4119 = vmatpush2.bf16.msra.mxu0 0
    %4120 = vmatprep.subr.bf16.mxu0 0
    %4121 = vmatpush2.bf16.msra.mxu0 0
    %4122 = vmatprep.subr.bf16.mxu0 0
    %4123 = vmatpush2.bf16.msra.mxu0 0
    %4124 = vmatprep.subr.bf16.mxu0 0
    %4125 = vmatpush2.bf16.msra.mxu0 0
    %4126 = vmatprep.subr.bf16.mxu0 0
    %4127 = vmatpush2.bf16.msra.mxu0 0
    %4128 = vmatprep.subr.bf16.mxu0 0
    %4129 = vmatpush2.bf16.msra.mxu0 0
    %4130 = vmatprep.mubr.bf16.mxu0 0
    %4131 = vmatmul.mubr.bf16.gmra.mxu0 %v4087
    %v4132 = vpop.f32.mrf.mxu0
    %v4133 = vadd.f32 %v4044, %v4132
    %v4134 = vpop.f32.mrf.mxu0
    %v4135 = vpop.f32.mrf.mxu0
    %v4136 = vadd.f32 %v4047, %v4135
    %v4137 = vpop.f32.mrf.mxu0
    %4138 = vmatprep.mubr.bf16.mxu0 0
    %4139 = vmatmul.mubr.bf16.gmra.mxu0 %v4090
    %v4140 = vpop.f32.mrf.mxu0
    %v4141 = vadd.f32 %v4052, %v4140
    %v4142 = vpop.f32.mrf.mxu0
    %v4143 = vpop.f32.mrf.mxu0
    %v4144 = vadd.f32 %v4055, %v4143
    %v4145 = vpop.f32.mrf.mxu0
    %4146 = vmatprep.mubr.bf16.mxu0 0
    %4147 = vmatmul.mubr.bf16.gmra.mxu0 %v4093
    %v4148 = vpop.f32.mrf.mxu0
    %v4149 = vadd.f32 %v4060, %v4148
    %v4150 = vpop.f32.mrf.mxu0
    %v4151 = vpop.f32.mrf.mxu0
    %v4152 = vadd.f32 %v4063, %v4151
    %v4153 = vpop.f32.mrf.mxu0
    %4154 = vmatprep.mubr.bf16.mxu0 0
    %4155 = vmatmul.mubr.bf16.gmra.mxu0 %v4096
    %v4156 = vpop.f32.mrf.mxu0
    %v4157 = vadd.f32 %v4068, %v4156
    %v4158 = vpop.f32.mrf.mxu0
    %v4159 = vpop.f32.mrf.mxu0
    %v4160 = vadd.f32 %v4071, %v4159
    %v4161 = vpop.f32.mrf.mxu0
    %4162 = vdwg.mxu0
    %v4167 = vunpack.c.l.b16 %v3965
    %v4168 = vunpack.c.l.b16 %v3966
    %v4169 = vunpack.c.l.b16 %v3967
    %v4170 = vunpack.c.l.b16 %v3968
    %v4171 = vpack.c.b16 %v4168, %v4167
    %v4172 = vpack.c.b16 %v4170, %v4169
    %v4176 = vsel %vm301, %v3936, 0
    %v4179 = vsel %vm301, %v3937, 0
    %v4182 = vsel %vm301, %v3938, 0
    %v4185 = vsel %vm301, %v3939, 0
    %4187 = vmatprep.subr.bf16.mxu0 0
    %4188 = vmatpush1.bf16.msra.mxu0 0
    %4189 = vmatprep.subr.bf16.mxu0 0
    %4190 = vmatpush1.bf16.msra.mxu0 0
    %4191 = vmatprep.subr.bf16.mxu0 0
    %4192 = vmatpush1.bf16.msra.mxu0 0
    %4193 = vmatprep.subr.bf16.mxu0 0
    %4194 = vmatpush1.bf16.msra.mxu0 0
    %4195 = vmatprep.subr.bf16.mxu0 0
    %4196 = vmatpush1.bf16.msra.mxu0 0
    %4197 = vmatprep.subr.bf16.mxu0 0
    %4198 = vmatpush1.bf16.msra.mxu0 0
    %4199 = vmatprep.subr.bf16.mxu0 0
    %4200 = vmatpush1.bf16.msra.mxu0 %v4172
    %4201 = vmatprep.subr.bf16.mxu0 0
    %4202 = vmatpush1.bf16.msra.mxu0 %v4171
    %4203 = vmatprep.subr.bf16.mxu0 0
    %4204 = vmatpush2.bf16.msra.mxu0 0
    %4205 = vmatprep.subr.bf16.mxu0 0
    %4206 = vmatpush2.bf16.msra.mxu0 0
    %4207 = vmatprep.subr.bf16.mxu0 0
    %4208 = vmatpush2.bf16.msra.mxu0 0
    %4209 = vmatprep.subr.bf16.mxu0 0
    %4210 = vmatpush2.bf16.msra.mxu0 0
    %4211 = vmatprep.subr.bf16.mxu0 0
    %4212 = vmatpush2.bf16.msra.mxu0 0
    %4213 = vmatprep.subr.bf16.mxu0 0
    %4214 = vmatpush2.bf16.msra.mxu0 0
    %4215 = vmatprep.subr.bf16.mxu0 0
    %4216 = vmatpush2.bf16.msra.mxu0 0
    %4217 = vmatprep.subr.bf16.mxu0 0
    %4218 = vmatpush2.bf16.msra.mxu0 0
    %4219 = vmatprep.mubr.bf16.mxu0 0
    %4220 = vmatmul.mubr.bf16.gmra.mxu0 %v4176
    %v4221 = vpop.f32.mrf.mxu0
    %v4222 = vadd.f32 0.0, %v4221
    %v4223 = vpop.f32.mrf.mxu0
    %v4224 = vpop.f32.mrf.mxu0
    %v4225 = vadd.f32 0.0, %v4224
    %v4226 = vpop.f32.mrf.mxu0
    %4227 = vmatprep.mubr.bf16.mxu0 0
    %4228 = vmatmul.mubr.bf16.gmra.mxu0 %v4179
    %v4229 = vpop.f32.mrf.mxu0
    %v4230 = vadd.f32 0.0, %v4229
    %v4231 = vpop.f32.mrf.mxu0
    %v4232 = vpop.f32.mrf.mxu0
    %v4233 = vadd.f32 0.0, %v4232
    %v4234 = vpop.f32.mrf.mxu0
    %4235 = vmatprep.mubr.bf16.mxu0 0
    %4236 = vmatmul.mubr.bf16.gmra.mxu0 %v4182
    %v4237 = vpop.f32.mrf.mxu0
    %v4238 = vadd.f32 0.0, %v4237
    %v4239 = vpop.f32.mrf.mxu0
    %v4240 = vpop.f32.mrf.mxu0
    %v4241 = vadd.f32 0.0, %v4240
    %v4242 = vpop.f32.mrf.mxu0
    %4243 = vmatprep.mubr.bf16.mxu0 0
    %4244 = vmatmul.mubr.bf16.gmra.mxu0 %v4185
    %v4245 = vpop.f32.mrf.mxu0
    %v4246 = vadd.f32 0.0, %v4245
    %v4247 = vpop.f32.mrf.mxu0
    %v4248 = vpop.f32.mrf.mxu0
    %v4249 = vadd.f32 0.0, %v4248
    %v4250 = vpop.f32.mrf.mxu0
    %4251 = vdwg.mxu0
    %v4252 = vadd.f32 %v4133, %v4222
    %v4253 = vadd.f32 %v4136, %v4225
    %v4254 = vadd.f32 %v4141, %v4230
    %v4255 = vadd.f32 %v4144, %v4233
    %v4256 = vadd.f32 %v4149, %v4238
    %v4257 = vadd.f32 %v4152, %v4241
    %v4258 = vadd.f32 %v4157, %v4246
    %v4259 = vadd.f32 %v4160, %v4249
    %v4264 = vunpack.c.l.b16 %v3969
    %v4265 = vunpack.c.l.b16 %v3970
    %v4266 = vunpack.c.l.b16 %v3971
    %v4267 = vunpack.c.l.b16 %v3972
    %v4268 = vpack.c.b16 %v4265, %v4264
    %v4269 = vpack.c.b16 %v4267, %v4266
    %v4273 = vsel %vm301, %v3940, 0
    %v4276 = vsel %vm301, %v3941, 0
    %v4279 = vsel %vm301, %v3942, 0
    %v4282 = vsel %vm301, %v3943, 0
    %4284 = vmatprep.subr.bf16.mxu0 0
    %4285 = vmatpush1.bf16.msra.mxu0 0
    %4286 = vmatprep.subr.bf16.mxu0 0
    %4287 = vmatpush1.bf16.msra.mxu0 0
    %4288 = vmatprep.subr.bf16.mxu0 0
    %4289 = vmatpush1.bf16.msra.mxu0 0
    %4290 = vmatprep.subr.bf16.mxu0 0
    %4291 = vmatpush1.bf16.msra.mxu0 0
    %4292 = vmatprep.subr.bf16.mxu0 0
    %4293 = vmatpush1.bf16.msra.mxu0 0
    %4294 = vmatprep.subr.bf16.mxu0 0
    %4295 = vmatpush1.bf16.msra.mxu0 0
    %4296 = vmatprep.subr.bf16.mxu0 0
    %4297 = vmatpush1.bf16.msra.mxu0 %v4269
    %4298 = vmatprep.subr.bf16.mxu0 0
    %4299 = vmatpush1.bf16.msra.mxu0 %v4268
    %4300 = vmatprep.subr.bf16.mxu0 0
    %4301 = vmatpush2.bf16.msra.mxu0 0
    %4302 = vmatprep.subr.bf16.mxu0 0
    %4303 = vmatpush2.bf16.msra.mxu0 0
    %4304 = vmatprep.subr.bf16.mxu0 0
    %4305 = vmatpush2.bf16.msra.mxu0 0
    %4306 = vmatprep.subr.bf16.mxu0 0
    %4307 = vmatpush2.bf16.msra.mxu0 0
    %4308 = vmatprep.subr.bf16.mxu0 0
    %4309 = vmatpush2.bf16.msra.mxu0 0
    %4310 = vmatprep.subr.bf16.mxu0 0
    %4311 = vmatpush2.bf16.msra.mxu0 0
    %4312 = vmatprep.subr.bf16.mxu0 0
    %4313 = vmatpush2.bf16.msra.mxu0 0
    %4314 = vmatprep.subr.bf16.mxu0 0
    %4315 = vmatpush2.bf16.msra.mxu0 0
    %4316 = vmatprep.mubr.bf16.mxu0 0
    %4317 = vmatmul.mubr.bf16.gmra.mxu0 %v4273
    %v4318 = vpop.f32.mrf.mxu0
    %v4319 = vadd.f32 0.0, %v4318
    %v4320 = vpop.f32.mrf.mxu0
    %v4321 = vpop.f32.mrf.mxu0
    %v4322 = vadd.f32 0.0, %v4321
    %v4323 = vpop.f32.mrf.mxu0
    %4324 = vmatprep.mubr.bf16.mxu0 0
    %4325 = vmatmul.mubr.bf16.gmra.mxu0 %v4276
    %v4326 = vpop.f32.mrf.mxu0
    %v4327 = vadd.f32 0.0, %v4326
    %v4328 = vpop.f32.mrf.mxu0
    %v4329 = vpop.f32.mrf.mxu0
    %v4330 = vadd.f32 0.0, %v4329
    %v4331 = vpop.f32.mrf.mxu0
    %4332 = vmatprep.mubr.bf16.mxu0 0
    %4333 = vmatmul.mubr.bf16.gmra.mxu0 %v4279
    %v4334 = vpop.f32.mrf.mxu0
    %v4335 = vadd.f32 0.0, %v4334
    %v4336 = vpop.f32.mrf.mxu0
    %v4337 = vpop.f32.mrf.mxu0
    %v4338 = vadd.f32 0.0, %v4337
    %v4339 = vpop.f32.mrf.mxu0
    %4340 = vmatprep.mubr.bf16.mxu0 0
    %4341 = vmatmul.mubr.bf16.gmra.mxu0 %v4282
    %v4342 = vpop.f32.mrf.mxu0
    %v4343 = vadd.f32 0.0, %v4342
    %v4344 = vpop.f32.mrf.mxu0
    %v4345 = vpop.f32.mrf.mxu0
    %v4346 = vadd.f32 0.0, %v4345
    %v4347 = vpop.f32.mrf.mxu0
    %4348 = vdwg.mxu0
    %v4349 = vadd.f32 %v4252, %v4319
    %v4350 = vadd.f32 %v4253, %v4322
    %v4351 = vadd.f32 %v4254, %v4327
    %v4352 = vadd.f32 %v4255, %v4330
    %v4353 = vadd.f32 %v4256, %v4335
    %v4354 = vadd.f32 %v4257, %v4338
    %v4355 = vadd.f32 %v4258, %v4343
    %v4356 = vadd.f32 %v4259, %v4346
    %v4361 = vunpack.c.l.b16 %v3973
    %v4362 = vunpack.c.l.b16 %v3974
    %v4363 = vunpack.c.l.b16 %v3975
    %v4364 = vunpack.c.l.b16 %v3976
    %v4365 = vpack.c.b16 %v4362, %v4361
    %v4366 = vpack.c.b16 %v4364, %v4363
    %v4370 = vsel %vm301, %v3944, 0
    %v4373 = vsel %vm301, %v3945, 0
    %v4376 = vsel %vm301, %v3946, 0
    %v4379 = vsel %vm301, %v3947, 0
    %4381 = vmatprep.subr.bf16.mxu0 0
    %4382 = vmatpush1.bf16.msra.mxu0 0
    %4383 = vmatprep.subr.bf16.mxu0 0
    %4384 = vmatpush1.bf16.msra.mxu0 0
    %4385 = vmatprep.subr.bf16.mxu0 0
    %4386 = vmatpush1.bf16.msra.mxu0 0
    %4387 = vmatprep.subr.bf16.mxu0 0
    %4388 = vmatpush1.bf16.msra.mxu0 0
    %4389 = vmatprep.subr.bf16.mxu0 0
    %4390 = vmatpush1.bf16.msra.mxu0 0
    %4391 = vmatprep.subr.bf16.mxu0 0
    %4392 = vmatpush1.bf16.msra.mxu0 0
    %4393 = vmatprep.subr.bf16.mxu0 0
    %4394 = vmatpush1.bf16.msra.mxu0 %v4366
    %4395 = vmatprep.subr.bf16.mxu0 0
    %4396 = vmatpush1.bf16.msra.mxu0 %v4365
    %4397 = vmatprep.subr.bf16.mxu0 0
    %4398 = vmatpush2.bf16.msra.mxu0 0
    %4399 = vmatprep.subr.bf16.mxu0 0
    %4400 = vmatpush2.bf16.msra.mxu0 0
    %4401 = vmatprep.subr.bf16.mxu0 0
    %4402 = vmatpush2.bf16.msra.mxu0 0
    %4403 = vmatprep.subr.bf16.mxu0 0
    %4404 = vmatpush2.bf16.msra.mxu0 0
    %4405 = vmatprep.subr.bf16.mxu0 0
    %4406 = vmatpush2.bf16.msra.mxu0 0
    %4407 = vmatprep.subr.bf16.mxu0 0
    %4408 = vmatpush2.bf16.msra.mxu0 0
    %4409 = vmatprep.subr.bf16.mxu0 0
    %4410 = vmatpush2.bf16.msra.mxu0 0
    %4411 = vmatprep.subr.bf16.mxu0 0
    %4412 = vmatpush2.bf16.msra.mxu0 0
    %4413 = vmatprep.mubr.bf16.mxu0 0
    %4414 = vmatmul.mubr.bf16.gmra.mxu0 %v4370
    %v4415 = vpop.f32.mrf.mxu0
    %v4416 = vadd.f32 0.0, %v4415
    %v4417 = vpop.f32.mrf.mxu0
    %v4418 = vpop.f32.mrf.mxu0
    %v4419 = vadd.f32 0.0, %v4418
    %v4420 = vpop.f32.mrf.mxu0
    %4421 = vmatprep.mubr.bf16.mxu0 0
    %4422 = vmatmul.mubr.bf16.gmra.mxu0 %v4373
    %v4423 = vpop.f32.mrf.mxu0
    %v4424 = vadd.f32 0.0, %v4423
    %v4425 = vpop.f32.mrf.mxu0
    %v4426 = vpop.f32.mrf.mxu0
    %v4427 = vadd.f32 0.0, %v4426
    %v4428 = vpop.f32.mrf.mxu0
    %4429 = vmatprep.mubr.bf16.mxu0 0
    %4430 = vmatmul.mubr.bf16.gmra.mxu0 %v4376
    %v4431 = vpop.f32.mrf.mxu0
    %v4432 = vadd.f32 0.0, %v4431
    %v4433 = vpop.f32.mrf.mxu0
    %v4434 = vpop.f32.mrf.mxu0
    %v4435 = vadd.f32 0.0, %v4434
    %v4436 = vpop.f32.mrf.mxu0
    %4437 = vmatprep.mubr.bf16.mxu0 0
    %4438 = vmatmul.mubr.bf16.gmra.mxu0 %v4379
    %v4439 = vpop.f32.mrf.mxu0
    %v4440 = vadd.f32 0.0, %v4439
    %v4441 = vpop.f32.mrf.mxu0
    %v4442 = vpop.f32.mrf.mxu0
    %v4443 = vadd.f32 0.0, %v4442
    %v4444 = vpop.f32.mrf.mxu0
    %4445 = vdwg.mxu0
    %v4446 = vadd.f32 %v4349, %v4416
    %v4447 = vadd.f32 %v4350, %v4419
    %v4448 = vadd.f32 %v4351, %v4424
    %v4449 = vadd.f32 %v4352, %v4427
    %v4450 = vadd.f32 %v4353, %v4432
    %v4451 = vadd.f32 %v4354, %v4435
    %v4452 = vadd.f32 %v4355, %v4440
    %v4453 = vadd.f32 %v4356, %v4443
    %v4458 = vunpack.c.l.b16 %v3977
    %v4459 = vunpack.c.l.b16 %v3978
    %v4460 = vunpack.c.l.b16 %v3979
    %v4461 = vunpack.c.l.b16 %v3980
    %v4462 = vpack.c.b16 %v4459, %v4458
    %v4463 = vpack.c.b16 %v4461, %v4460
    %v4467 = vsel %vm301, %v3948, 0
    %v4470 = vsel %vm301, %v3949, 0
    %v4473 = vsel %vm301, %v3950, 0
    %v4476 = vsel %vm301, %v3951, 0
    %4478 = vmatprep.subr.bf16.mxu0 0
    %4479 = vmatpush1.bf16.msra.mxu0 0
    %4480 = vmatprep.subr.bf16.mxu0 0
    %4481 = vmatpush1.bf16.msra.mxu0 0
    %4482 = vmatprep.subr.bf16.mxu0 0
    %4483 = vmatpush1.bf16.msra.mxu0 0
    %4484 = vmatprep.subr.bf16.mxu0 0
    %4485 = vmatpush1.bf16.msra.mxu0 0
    %4486 = vmatprep.subr.bf16.mxu0 0
    %4487 = vmatpush1.bf16.msra.mxu0 0
    %4488 = vmatprep.subr.bf16.mxu0 0
    %4489 = vmatpush1.bf16.msra.mxu0 0
    %4490 = vmatprep.subr.bf16.mxu0 0
    %4491 = vmatpush1.bf16.msra.mxu0 %v4463
    %4492 = vmatprep.subr.bf16.mxu0 0
    %4493 = vmatpush1.bf16.msra.mxu0 %v4462
    %4494 = vmatprep.subr.bf16.mxu0 0
    %4495 = vmatpush2.bf16.msra.mxu0 0
    %4496 = vmatprep.subr.bf16.mxu0 0
    %4497 = vmatpush2.bf16.msra.mxu0 0
    %4498 = vmatprep.subr.bf16.mxu0 0
    %4499 = vmatpush2.bf16.msra.mxu0 0
    %4500 = vmatprep.subr.bf16.mxu0 0
    %4501 = vmatpush2.bf16.msra.mxu0 0
    %4502 = vmatprep.subr.bf16.mxu0 0
    %4503 = vmatpush2.bf16.msra.mxu0 0
    %4504 = vmatprep.subr.bf16.mxu0 0
    %4505 = vmatpush2.bf16.msra.mxu0 0
    %4506 = vmatprep.subr.bf16.mxu0 0
    %4507 = vmatpush2.bf16.msra.mxu0 0
    %4508 = vmatprep.subr.bf16.mxu0 0
    %4509 = vmatpush2.bf16.msra.mxu0 0
    %4510 = vmatprep.mubr.bf16.mxu0 0
    %4511 = vmatmul.mubr.bf16.gmra.mxu0 %v4467
    %v4512 = vpop.f32.mrf.mxu0
    %v4513 = vadd.f32 0.0, %v4512
    %v4514 = vpop.f32.mrf.mxu0
    %v4515 = vpop.f32.mrf.mxu0
    %v4516 = vadd.f32 0.0, %v4515
    %v4517 = vpop.f32.mrf.mxu0
    %4518 = vmatprep.mubr.bf16.mxu0 0
    %4519 = vmatmul.mubr.bf16.gmra.mxu0 %v4470
    %v4520 = vpop.f32.mrf.mxu0
    %v4521 = vadd.f32 0.0, %v4520
    %v4522 = vpop.f32.mrf.mxu0
    %v4523 = vpop.f32.mrf.mxu0
    %v4524 = vadd.f32 0.0, %v4523
    %v4525 = vpop.f32.mrf.mxu0
    %4526 = vmatprep.mubr.bf16.mxu0 0
    %4527 = vmatmul.mubr.bf16.gmra.mxu0 %v4473
    %v4528 = vpop.f32.mrf.mxu0
    %v4529 = vadd.f32 0.0, %v4528
    %v4530 = vpop.f32.mrf.mxu0
    %v4531 = vpop.f32.mrf.mxu0
    %v4532 = vadd.f32 0.0, %v4531
    %v4533 = vpop.f32.mrf.mxu0
    %4534 = vmatprep.mubr.bf16.mxu0 0
    %4535 = vmatmul.mubr.bf16.gmra.mxu0 %v4476
    %v4536 = vpop.f32.mrf.mxu0
    %v4537 = vadd.f32 0.0, %v4536
    %v4538 = vpop.f32.mrf.mxu0
    %v4539 = vpop.f32.mrf.mxu0
    %v4540 = vadd.f32 0.0, %v4539
    %v4541 = vpop.f32.mrf.mxu0
    %4542 = vdwg.mxu0
    %v4543 = vadd.f32 %v4446, %v4513
    %v4544 = vadd.f32 %v4447, %v4516
    %v4545 = vadd.f32 %v4448, %v4521
    %v4546 = vadd.f32 %v4449, %v4524
    %v4547 = vadd.f32 %v4450, %v4529
    %v4548 = vadd.f32 %v4451, %v4532
    %v4549 = vadd.f32 %v4452, %v4537
    %v4550 = vadd.f32 %v4453, %v4540
    %v4555 = vunpack.c.l.b16 %v3981
    %v4556 = vunpack.c.l.b16 %v3982
    %v4557 = vunpack.c.l.b16 %v3983
    %v4558 = vunpack.c.l.b16 %v3984
    %v4559 = vpack.c.b16 %v4556, %v4555
    %v4560 = vpack.c.b16 %v4558, %v4557
    %v4564 = vsel %vm301, %v3952, 0
    %v4567 = vsel %vm301, %v3953, 0
    %v4570 = vsel %vm301, %v3954, 0
    %v4573 = vsel %vm301, %v3955, 0
    %4575 = vmatprep.subr.bf16.mxu0 0
    %4576 = vmatpush1.bf16.msra.mxu0 0
    %4577 = vmatprep.subr.bf16.mxu0 0
    %4578 = vmatpush1.bf16.msra.mxu0 0
    %4579 = vmatprep.subr.bf16.mxu0 0
    %4580 = vmatpush1.bf16.msra.mxu0 0
    %4581 = vmatprep.subr.bf16.mxu0 0
    %4582 = vmatpush1.bf16.msra.mxu0 0
    %4583 = vmatprep.subr.bf16.mxu0 0
    %4584 = vmatpush1.bf16.msra.mxu0 0
    %4585 = vmatprep.subr.bf16.mxu0 0
    %4586 = vmatpush1.bf16.msra.mxu0 0
    %4587 = vmatprep.subr.bf16.mxu0 0
    %4588 = vmatpush1.bf16.msra.mxu0 %v4560
    %4589 = vmatprep.subr.bf16.mxu0 0
    %4590 = vmatpush1.bf16.msra.mxu0 %v4559
    %4591 = vmatprep.subr.bf16.mxu0 0
    %4592 = vmatpush2.bf16.msra.mxu0 0
    %4593 = vmatprep.subr.bf16.mxu0 0
    %4594 = vmatpush2.bf16.msra.mxu0 0
    %4595 = vmatprep.subr.bf16.mxu0 0
    %4596 = vmatpush2.bf16.msra.mxu0 0
    %4597 = vmatprep.subr.bf16.mxu0 0
    %4598 = vmatpush2.bf16.msra.mxu0 0
    %4599 = vmatprep.subr.bf16.mxu0 0
    %4600 = vmatpush2.bf16.msra.mxu0 0
    %4601 = vmatprep.subr.bf16.mxu0 0
    %4602 = vmatpush2.bf16.msra.mxu0 0
    %4603 = vmatprep.subr.bf16.mxu0 0
    %4604 = vmatpush2.bf16.msra.mxu0 0
    %4605 = vmatprep.subr.bf16.mxu0 0
    %4606 = vmatpush2.bf16.msra.mxu0 0
    %4607 = vmatprep.mubr.bf16.mxu0 0
    %4608 = vmatmul.mubr.bf16.gmra.mxu0 %v4564
    %v4609 = vpop.f32.mrf.mxu0
    %v4610 = vadd.f32 0.0, %v4609
    %v4611 = vpop.f32.mrf.mxu0
    %v4612 = vpop.f32.mrf.mxu0
    %v4613 = vadd.f32 0.0, %v4612
    %v4614 = vpop.f32.mrf.mxu0
    %4615 = vmatprep.mubr.bf16.mxu0 0
    %4616 = vmatmul.mubr.bf16.gmra.mxu0 %v4567
    %v4617 = vpop.f32.mrf.mxu0
    %v4618 = vadd.f32 0.0, %v4617
    %v4619 = vpop.f32.mrf.mxu0
    %v4620 = vpop.f32.mrf.mxu0
    %v4621 = vadd.f32 0.0, %v4620
    %v4622 = vpop.f32.mrf.mxu0
    %4623 = vmatprep.mubr.bf16.mxu0 0
    %4624 = vmatmul.mubr.bf16.gmra.mxu0 %v4570
    %v4625 = vpop.f32.mrf.mxu0
    %v4626 = vadd.f32 0.0, %v4625
    %v4627 = vpop.f32.mrf.mxu0
    %v4628 = vpop.f32.mrf.mxu0
    %v4629 = vadd.f32 0.0, %v4628
    %v4630 = vpop.f32.mrf.mxu0
    %4631 = vmatprep.mubr.bf16.mxu0 0
    %4632 = vmatmul.mubr.bf16.gmra.mxu0 %v4573
    %v4633 = vpop.f32.mrf.mxu0
    %v4634 = vadd.f32 0.0, %v4633
    %v4635 = vpop.f32.mrf.mxu0
    %v4636 = vpop.f32.mrf.mxu0
    %v4637 = vadd.f32 0.0, %v4636
    %v4638 = vpop.f32.mrf.mxu0
    %4639 = vdwg.mxu0
    %v4640 = vadd.f32 %v4543, %v4610
    %v4641 = vadd.f32 %v4544, %v4613
    %v4642 = vadd.f32 %v4545, %v4618
    %v4643 = vadd.f32 %v4546, %v4621
    %v4644 = vadd.f32 %v4547, %v4626
    %v4645 = vadd.f32 %v4548, %v4629
    %v4646 = vadd.f32 %v4549, %v4634
    %v4647 = vadd.f32 %v4550, %v4637
    %v4648 = vsel %vm301, %v4640, 0.0
    %4649 = vadd.xlane.f32.xlu0 %v4648
    %v4650 = vpop.xlane.xlu0 %4649
    %v4651 = vsel %vm301, %v4641, 0.0
    %4652 = vadd.xlane.f32.xlu0 %v4651
    %v4653 = vpop.xlane.xlu0 %4652
    %v4654 = vsel %vm301, %v4642, 0.0
    %4655 = vadd.xlane.f32.xlu0 %v4654
    %v4656 = vpop.xlane.xlu0 %4655
    %v4657 = vsel %vm301, %v4643, 0.0
    %4658 = vadd.xlane.f32.xlu0 %v4657
    %v4659 = vpop.xlane.xlu0 %4658
    %v4660 = vsel %vm301, %v4644, 0.0
    %4661 = vadd.xlane.f32.xlu0 %v4660
    %v4662 = vpop.xlane.xlu0 %4661
    %v4663 = vsel %vm301, %v4645, 0.0
    %4664 = vadd.xlane.f32.xlu0 %v4663
    %v4665 = vpop.xlane.xlu0 %4664
    %v4666 = vsel %vm301, %v4646, 0.0
    %4667 = vadd.xlane.f32.xlu0 %v4666
    %v4668 = vpop.xlane.xlu0 %4667
    %v4669 = vsel %vm301, %v4647, 0.0
    %4670 = vadd.xlane.f32.xlu0 %v4669
    %v4671 = vpop.xlane.xlu0 %4670
    %v4672 = vmul.f32 %v4650, %v326
    %v4673 = vmul.f32 %v4653, %v326
    %v4674 = vmul.f32 %v4656, %v326
    %v4675 = vmul.f32 %v4659, %v326
    %v4676 = vmul.f32 %v4662, %v326
    %v4677 = vmul.f32 %v4665, %v326
    %v4678 = vmul.f32 %v4668, %v326
    %v4679 = vmul.f32 %v4671, %v326
    %v4680 = vsub.f32 %v4640, %v4672
    %v4681 = vsub.f32 %v4641, %v4673
    %v4682 = vsub.f32 %v4642, %v4674
    %v4683 = vsub.f32 %v4643, %v4675
    %v4684 = vsub.f32 %v4644, %v4676
    %v4685 = vsub.f32 %v4645, %v4677
    %v4686 = vsub.f32 %v4646, %v4678
    %v4687 = vsub.f32 %v4647, %v4679
    %v4688 = vmul.f32 %v4680, %v4680
    %v4689 = vmul.f32 %v4681, %v4681
    %v4690 = vmul.f32 %v4682, %v4682
    %v4691 = vmul.f32 %v4683, %v4683
    %v4692 = vmul.f32 %v4684, %v4684
    %v4693 = vmul.f32 %v4685, %v4685
    %v4694 = vmul.f32 %v4686, %v4686
    %v4695 = vmul.f32 %v4687, %v4687
    %v4696 = vsel %vm301, %v4688, 0.0
    %4697 = vadd.xlane.f32.xlu0 %v4696
    %v4698 = vpop.xlane.xlu0 %4697
    %v4699 = vsel %vm301, %v4689, 0.0
    %4700 = vadd.xlane.f32.xlu0 %v4699
    %v4701 = vpop.xlane.xlu0 %4700
    %v4702 = vsel %vm301, %v4690, 0.0
    %4703 = vadd.xlane.f32.xlu0 %v4702
    %v4704 = vpop.xlane.xlu0 %4703
    %v4705 = vsel %vm301, %v4691, 0.0
    %4706 = vadd.xlane.f32.xlu0 %v4705
    %v4707 = vpop.xlane.xlu0 %4706
    %v4708 = vsel %vm301, %v4692, 0.0
    %4709 = vadd.xlane.f32.xlu0 %v4708
    %v4710 = vpop.xlane.xlu0 %4709
    %v4711 = vsel %vm301, %v4693, 0.0
    %4712 = vadd.xlane.f32.xlu0 %v4711
    %v4713 = vpop.xlane.xlu0 %4712
    %v4714 = vsel %vm301, %v4694, 0.0
    %4715 = vadd.xlane.f32.xlu0 %v4714
    %v4716 = vpop.xlane.xlu0 %4715
    %v4717 = vsel %vm301, %v4695, 0.0
    %4718 = vadd.xlane.f32.xlu0 %v4717
    %v4719 = vpop.xlane.xlu0 %4718
    %v4720 = vmul.f32 %v4698, %v326
    %v4721 = vmul.f32 %v4701, %v326
    %v4722 = vmul.f32 %v4704, %v326
    %v4723 = vmul.f32 %v4707, %v326
    %v4724 = vmul.f32 %v4710, %v326
    %v4725 = vmul.f32 %v4713, %v326
    %v4726 = vmul.f32 %v4716, %v326
    %v4727 = vmul.f32 %v4719, %v326
    %v4728 = vadd.f32 %v4720, 1e-05
    %v4729 = vadd.f32 %v4721, 1e-05
    %v4730 = vadd.f32 %v4722, 1e-05
    %v4731 = vadd.f32 %v4723, 1e-05
    %v4732 = vadd.f32 %v4724, 1e-05
    %v4733 = vadd.f32 %v4725, 1e-05
    %v4734 = vadd.f32 %v4726, 1e-05
    %v4735 = vadd.f32 %v4727, 1e-05
    %v4736 = vrsqrt.pop %v4728
    %v4737 = vrsqrt.pop %v4729
    %v4738 = vrsqrt.pop %v4730
    %v4739 = vrsqrt.pop %v4731
    %v4740 = vrsqrt.pop %v4732
    %v4741 = vrsqrt.pop %v4733
    %v4742 = vrsqrt.pop %v4734
    %v4743 = vrsqrt.pop %v4735
    %v4744 = vmul.f32 %v4680, %v4736
    %v4745 = vmul.f32 %v4681, %v4737
    %v4746 = vmul.f32 %v4682, %v4738
    %v4747 = vmul.f32 %v4683, %v4739
    %v4748 = vmul.f32 %v4684, %v4740
    %v4749 = vmul.f32 %v4685, %v4741
    %v4750 = vmul.f32 %v4686, %v4742
    %v4751 = vmul.f32 %v4687, %v4743
    %v4752 = vlaneseq
    %v4753 = vshrl.u32 %v4752, 7
    %v4754 = vsub.s32 2, %v4753
    %v4755 = vrot.slane %v667, %v4754
    %v4756 = vmul.f32 %v4744, %v4755
    %v4757 = vmul.f32 %v4745, %v4755
    %v4758 = vmul.f32 %v4746, %v4755
    %v4759 = vmul.f32 %v4747, %v4755
    %v4760 = vmul.f32 %v4748, %v4755
    %v4761 = vmul.f32 %v4749, %v4755
    %v4762 = vmul.f32 %v4750, %v4755
    %v4763 = vmul.f32 %v4751, %v4755
    %v4764 = vlaneseq
    %v4765 = vshrl.u32 %v4764, 7
    %v4766 = vsub.s32 2, %v4765
    %v4767 = vrot.slane %v668, %v4766
    %v4768 = vadd.f32 %v4756, %v4767
    %v4769 = vadd.f32 %v4757, %v4767
    %v4770 = vadd.f32 %v4758, %v4767
    %v4771 = vadd.f32 %v4759, %v4767
    %v4772 = vadd.f32 %v4760, %v4767
    %v4773 = vadd.f32 %v4761, %v4767
    %v4774 = vadd.f32 %v4762, %v4767
    %v4775 = vadd.f32 %v4763, %v4767
    %v4776 = vmax.f32 %v4768, 0.0
    %v4777 = vmax.f32 %v4769, 0.0
    %v4778 = vmax.f32 %v4770, 0.0
    %v4779 = vmax.f32 %v4771, 0.0
    %v4780 = vmax.f32 %v4772, 0.0
    %v4781 = vmax.f32 %v4773, 0.0
    %v4782 = vmax.f32 %v4774, 0.0
    %v4783 = vmax.f32 %v4775, 0.0
    %v4784 = vpack.c.bf16 %v4777, %v4776
    %v4785 = vpack.c.bf16 %v4779, %v4778
    %v4786 = vpack.c.bf16 %v4781, %v4780
    %v4787 = vpack.c.bf16 %v4783, %v4782
    %s4788 = scalar_lea.vmem %s10, 32
    %v4789 = vld [vmem:[%s4788] sm:$0xf]
    %v4790 = vld [vmem:[%s4788 + $0x4] sm:$0xf]
    %v4791 = vld [vmem:[%s4788 + $0x8] sm:$0xf]
    %v4792 = vld [vmem:[%s4788 + $0xc] sm:$0xf]
    %v4797 = vunpack.c.l.b16 %v4789
    %v4798 = vunpack.c.l.b16 %v4790
    %v4799 = vunpack.c.l.b16 %v4791
    %v4800 = vunpack.c.l.b16 %v4792
    %v4801 = vpack.c.b16 %v4798, %v4797
    %v4802 = vpack.c.b16 %v4800, %v4799
    %v4806 = vsel %vm301, %v4784, 0
    %v4809 = vsel %vm301, %v4785, 0
    %v4812 = vsel %vm301, %v4786, 0
    %v4815 = vsel %vm301, %v4787, 0
    %4817 = vmatprep.subr.bf16.mxu0 0
    %4818 = vmatpush1.bf16.msra.mxu0 0
    %4819 = vmatprep.subr.bf16.mxu0 0
    %4820 = vmatpush1.bf16.msra.mxu0 0
    %4821 = vmatprep.subr.bf16.mxu0 0
    %4822 = vmatpush1.bf16.msra.mxu0 0
    %4823 = vmatprep.subr.bf16.mxu0 0
    %4824 = vmatpush1.bf16.msra.mxu0 0
    %4825 = vmatprep.subr.bf16.mxu0 0
    %4826 = vmatpush1.bf16.msra.mxu0 0
    %4827 = vmatprep.subr.bf16.mxu0 0
    %4828 = vmatpush1.bf16.msra.mxu0 0
    %4829 = vmatprep.subr.bf16.mxu0 0
    %4830 = vmatpush1.bf16.msra.mxu0 %v4802
    %4831 = vmatprep.subr.bf16.mxu0 0
    %4832 = vmatpush1.bf16.msra.mxu0 %v4801
    %4833 = vmatprep.subr.bf16.mxu0 0
    %4834 = vmatpush2.bf16.msra.mxu0 0
    %4835 = vmatprep.subr.bf16.mxu0 0
    %4836 = vmatpush2.bf16.msra.mxu0 0
    %4837 = vmatprep.subr.bf16.mxu0 0
    %4838 = vmatpush2.bf16.msra.mxu0 0
    %4839 = vmatprep.subr.bf16.mxu0 0
    %4840 = vmatpush2.bf16.msra.mxu0 0
    %4841 = vmatprep.subr.bf16.mxu0 0
    %4842 = vmatpush2.bf16.msra.mxu0 0
    %4843 = vmatprep.subr.bf16.mxu0 0
    %4844 = vmatpush2.bf16.msra.mxu0 0
    %4845 = vmatprep.subr.bf16.mxu0 0
    %4846 = vmatpush2.bf16.msra.mxu0 0
    %4847 = vmatprep.subr.bf16.mxu0 0
    %4848 = vmatpush2.bf16.msra.mxu0 0
    %4849 = vmatprep.mubr.bf16.mxu0 0
    %4850 = vmatmul.mubr.bf16.gmra.mxu0 %v4806
    %v4851 = vpop.f32.mrf.mxu0
    %v4852 = vadd.f32 0.0, %v4851
    %v4853 = vpop.f32.mrf.mxu0
    %v4854 = vpop.f32.mrf.mxu0
    %v4855 = vadd.f32 0.0, %v4854
    %v4856 = vpop.f32.mrf.mxu0
    %4857 = vmatprep.mubr.bf16.mxu0 0
    %4858 = vmatmul.mubr.bf16.gmra.mxu0 %v4809
    %v4859 = vpop.f32.mrf.mxu0
    %v4860 = vadd.f32 0.0, %v4859
    %v4861 = vpop.f32.mrf.mxu0
    %v4862 = vpop.f32.mrf.mxu0
    %v4863 = vadd.f32 0.0, %v4862
    %v4864 = vpop.f32.mrf.mxu0
    %4865 = vmatprep.mubr.bf16.mxu0 0
    %4866 = vmatmul.mubr.bf16.gmra.mxu0 %v4812
    %v4867 = vpop.f32.mrf.mxu0
    %v4868 = vadd.f32 0.0, %v4867
    %v4869 = vpop.f32.mrf.mxu0
    %v4870 = vpop.f32.mrf.mxu0
    %v4871 = vadd.f32 0.0, %v4870
    %v4872 = vpop.f32.mrf.mxu0
    %4873 = vmatprep.mubr.bf16.mxu0 0
    %4874 = vmatmul.mubr.bf16.gmra.mxu0 %v4815
    %v4875 = vpop.f32.mrf.mxu0
    %v4876 = vadd.f32 0.0, %v4875
    %v4877 = vpop.f32.mrf.mxu0
    %v4878 = vpop.f32.mrf.mxu0
    %v4879 = vadd.f32 0.0, %v4878
    %v4880 = vpop.f32.mrf.mxu0
    %4881 = vdwg.mxu0
    %v4882 = vsel %vm301, %v4852, 0.0
    %4883 = vadd.xlane.f32.xlu0 %v4882
    %v4884 = vpop.xlane.xlu0 %4883
    %v4885 = vsel %vm301, %v4855, 0.0
    %4886 = vadd.xlane.f32.xlu0 %v4885
    %v4887 = vpop.xlane.xlu0 %4886
    %v4888 = vsel %vm301, %v4860, 0.0
    %4889 = vadd.xlane.f32.xlu0 %v4888
    %v4890 = vpop.xlane.xlu0 %4889
    %v4891 = vsel %vm301, %v4863, 0.0
    %4892 = vadd.xlane.f32.xlu0 %v4891
    %v4893 = vpop.xlane.xlu0 %4892
    %v4894 = vsel %vm301, %v4868, 0.0
    %4895 = vadd.xlane.f32.xlu0 %v4894
    %v4896 = vpop.xlane.xlu0 %4895
    %v4897 = vsel %vm301, %v4871, 0.0
    %4898 = vadd.xlane.f32.xlu0 %v4897
    %v4899 = vpop.xlane.xlu0 %4898
    %v4900 = vsel %vm301, %v4876, 0.0
    %4901 = vadd.xlane.f32.xlu0 %v4900
    %v4902 = vpop.xlane.xlu0 %4901
    %v4903 = vsel %vm301, %v4879, 0.0
    %4904 = vadd.xlane.f32.xlu0 %v4903
    %v4905 = vpop.xlane.xlu0 %4904
    %v4906 = vmul.f32 %v4884, %v326
    %v4907 = vmul.f32 %v4887, %v326
    %v4908 = vmul.f32 %v4890, %v326
    %v4909 = vmul.f32 %v4893, %v326
    %v4910 = vmul.f32 %v4896, %v326
    %v4911 = vmul.f32 %v4899, %v326
    %v4912 = vmul.f32 %v4902, %v326
    %v4913 = vmul.f32 %v4905, %v326
    %v4914 = vsub.f32 %v4852, %v4906
    %v4915 = vsub.f32 %v4855, %v4907
    %v4916 = vsub.f32 %v4860, %v4908
    %v4917 = vsub.f32 %v4863, %v4909
    %v4918 = vsub.f32 %v4868, %v4910
    %v4919 = vsub.f32 %v4871, %v4911
    %v4920 = vsub.f32 %v4876, %v4912
    %v4921 = vsub.f32 %v4879, %v4913
    %v4922 = vmul.f32 %v4914, %v4914
    %v4923 = vmul.f32 %v4915, %v4915
    %v4924 = vmul.f32 %v4916, %v4916
    %v4925 = vmul.f32 %v4917, %v4917
    %v4926 = vmul.f32 %v4918, %v4918
    %v4927 = vmul.f32 %v4919, %v4919
    %v4928 = vmul.f32 %v4920, %v4920
    %v4929 = vmul.f32 %v4921, %v4921
    %v4930 = vsel %vm301, %v4922, 0.0
    %4931 = vadd.xlane.f32.xlu0 %v4930
    %v4932 = vpop.xlane.xlu0 %4931
    %v4933 = vsel %vm301, %v4923, 0.0
    %4934 = vadd.xlane.f32.xlu0 %v4933
    %v4935 = vpop.xlane.xlu0 %4934
    %v4936 = vsel %vm301, %v4924, 0.0
    %4937 = vadd.xlane.f32.xlu0 %v4936
    %v4938 = vpop.xlane.xlu0 %4937
    %v4939 = vsel %vm301, %v4925, 0.0
    %4940 = vadd.xlane.f32.xlu0 %v4939
    %v4941 = vpop.xlane.xlu0 %4940
    %v4942 = vsel %vm301, %v4926, 0.0
    %4943 = vadd.xlane.f32.xlu0 %v4942
    %v4944 = vpop.xlane.xlu0 %4943
    %v4945 = vsel %vm301, %v4927, 0.0
    %4946 = vadd.xlane.f32.xlu0 %v4945
    %v4947 = vpop.xlane.xlu0 %4946
    %v4948 = vsel %vm301, %v4928, 0.0
    %4949 = vadd.xlane.f32.xlu0 %v4948
    %v4950 = vpop.xlane.xlu0 %4949
    %v4951 = vsel %vm301, %v4929, 0.0
    %4952 = vadd.xlane.f32.xlu0 %v4951
    %v4953 = vpop.xlane.xlu0 %4952
    %v4954 = vmul.f32 %v4932, %v326
    %v4955 = vmul.f32 %v4935, %v326
    %v4956 = vmul.f32 %v4938, %v326
    %v4957 = vmul.f32 %v4941, %v326
    %v4958 = vmul.f32 %v4944, %v326
    %v4959 = vmul.f32 %v4947, %v326
    %v4960 = vmul.f32 %v4950, %v326
    %v4961 = vmul.f32 %v4953, %v326
    %v4962 = vadd.f32 %v4954, 1e-05
    %v4963 = vadd.f32 %v4955, 1e-05
    %v4964 = vadd.f32 %v4956, 1e-05
    %v4965 = vadd.f32 %v4957, 1e-05
    %v4966 = vadd.f32 %v4958, 1e-05
    %v4967 = vadd.f32 %v4959, 1e-05
    %v4968 = vadd.f32 %v4960, 1e-05
    %v4969 = vadd.f32 %v4961, 1e-05
    %v4970 = vrsqrt.pop %v4962
    %v4971 = vrsqrt.pop %v4963
    %v4972 = vrsqrt.pop %v4964
    %v4973 = vrsqrt.pop %v4965
    %v4974 = vrsqrt.pop %v4966
    %v4975 = vrsqrt.pop %v4967
    %v4976 = vrsqrt.pop %v4968
    %v4977 = vrsqrt.pop %v4969
    %v4978 = vmul.f32 %v4914, %v4970
    %v4979 = vmul.f32 %v4915, %v4971
    %v4980 = vmul.f32 %v4916, %v4972
    %v4981 = vmul.f32 %v4917, %v4973
    %v4982 = vmul.f32 %v4918, %v4974
    %v4983 = vmul.f32 %v4919, %v4975
    %v4984 = vmul.f32 %v4920, %v4976
    %v4985 = vmul.f32 %v4921, %v4977
    %v4986 = vlaneseq
    %v4987 = vshrl.u32 %v4986, 7
    %v4988 = vsub.s32 2, %v4987
    %v4989 = vrot.slane %v669, %v4988
    %v4990 = vmul.f32 %v4978, %v4989
    %v4991 = vmul.f32 %v4979, %v4989
    %v4992 = vmul.f32 %v4980, %v4989
    %v4993 = vmul.f32 %v4981, %v4989
    %v4994 = vmul.f32 %v4982, %v4989
    %v4995 = vmul.f32 %v4983, %v4989
    %v4996 = vmul.f32 %v4984, %v4989
    %v4997 = vmul.f32 %v4985, %v4989
    %v4998 = vlaneseq
    %v4999 = vshrl.u32 %v4998, 7
    %v5000 = vsub.s32 2, %v4999
    %v5001 = vrot.slane %v670, %v5000
    %v5002 = vadd.f32 %v4990, %v5001
    %v5003 = vadd.f32 %v4991, %v5001
    %v5004 = vadd.f32 %v4992, %v5001
    %v5005 = vadd.f32 %v4993, %v5001
    %v5006 = vadd.f32 %v4994, %v5001
    %v5007 = vadd.f32 %v4995, %v5001
    %v5008 = vadd.f32 %v4996, %v5001
    %v5009 = vadd.f32 %v4997, %v5001
    %v5010 = vadd.f32 %v5002, %v3659
    %v5011 = vadd.f32 %v5003, %v3660
    %v5012 = vadd.f32 %v5004, %v3661
    %v5013 = vadd.f32 %v5005, %v3662
    %v5014 = vadd.f32 %v5006, %v3663
    %v5015 = vadd.f32 %v5007, %v3664
    %v5016 = vadd.f32 %v5008, %v3665
    %v5017 = vadd.f32 %v5009, %v3666
    %v5018 = vmax.f32 %v5010, 0.0
    %v5019 = vmax.f32 %v5011, 0.0
    %v5020 = vmax.f32 %v5012, 0.0
    %v5021 = vmax.f32 %v5013, 0.0
    %v5022 = vmax.f32 %v5014, 0.0
    %v5023 = vmax.f32 %v5015, 0.0
    %v5024 = vmax.f32 %v5016, 0.0
    %v5025 = vmax.f32 %v5017, 0.0
    %v5026 = vpack.c.bf16 %v5019, %v5018
    %v5027 = vpack.c.bf16 %v5021, %v5020
    %v5028 = vpack.c.bf16 %v5023, %v5022
    %v5029 = vpack.c.bf16 %v5025, %v5024
    %5030 = vmatprep.subr.bf16.mxu0 0
    %5031 = vmatpush1.bf16.msra.mxu0 0
    %5032 = vmatprep.subr.bf16.mxu0 0
    %5033 = vmatpush1.bf16.msra.mxu0 0
    %5034 = vmatprep.subr.bf16.mxu0 0
    %5035 = vmatpush1.bf16.msra.mxu0 0
    %5036 = vmatprep.subr.bf16.mxu0 0
    %5037 = vmatpush1.bf16.msra.mxu0 0
    %5038 = vmatprep.subr.bf16.mxu0 0
    %5039 = vmatpush1.bf16.msra.mxu0 %v5029
    %5040 = vmatprep.subr.bf16.mxu0 0
    %5041 = vmatpush1.bf16.msra.mxu0 %v5028
    %5042 = vmatprep.subr.bf16.mxu0 0
    %5043 = vmatpush1.bf16.msra.mxu0 %v5027
    %5044 = vmatprep.subr.bf16.mxu0 0
    %5045 = vmatpush1.bf16.msra.mxu0 %v5026
    %5046 = vmatprep.subr.bf16.mxu0 0
    %5047 = vmatpush2.bf16.msra.mxu0 0
    %5048 = vmatprep.subr.bf16.mxu0 0
    %5049 = vmatpush2.bf16.msra.mxu0 0
    %5050 = vmatprep.subr.bf16.mxu0 0
    %5051 = vmatpush2.bf16.msra.mxu0 0
    %5052 = vmatprep.subr.bf16.mxu0 0
    %5053 = vmatpush2.bf16.msra.mxu0 0
    %5054 = vmatprep.subr.bf16.mxu0 0
    %5055 = vmatpush2.bf16.msra.mxu0 0
    %5056 = vmatprep.subr.bf16.mxu0 0
    %5057 = vmatpush2.bf16.msra.mxu0 0
    %5058 = vmatprep.subr.bf16.mxu0 0
    %5059 = vmatpush2.bf16.msra.mxu0 0
    %5060 = vmatprep.subr.bf16.mxu0 0
    %5061 = vmatpush2.bf16.msra.mxu0 0
    %5062 = vmatprep.mubr.bf16.mxu0 0
    %5063 = vmatmul.mubr.bf16.gmra.mxu0 %v872
    %v5064 = vpop.f32.mrf.mxu0
    %v5065 = vadd.f32 0.0, %v5064
    %v5066 = vpop.f32.mrf.mxu0
    %v5067 = vpop.f32.mrf.mxu0
    %v5068 = vadd.f32 0.0, %v5067
    %v5069 = vpop.f32.mrf.mxu0
    %5070 = vmatprep.mubr.bf16.mxu0 0
    %5071 = vmatmul.mubr.bf16.gmra.mxu0 %v875
    %v5072 = vpop.f32.mrf.mxu0
    %v5073 = vadd.f32 0.0, %v5072
    %v5074 = vpop.f32.mrf.mxu0
    %v5075 = vpop.f32.mrf.mxu0
    %v5076 = vadd.f32 0.0, %v5075
    %v5077 = vpop.f32.mrf.mxu0
    %5078 = vmatprep.mubr.bf16.mxu0 0
    %5079 = vmatmul.mubr.bf16.gmra.mxu0 %v878
    %v5080 = vpop.f32.mrf.mxu0
    %v5081 = vadd.f32 0.0, %v5080
    %v5082 = vpop.f32.mrf.mxu0
    %v5083 = vpop.f32.mrf.mxu0
    %v5084 = vadd.f32 0.0, %v5083
    %v5085 = vpop.f32.mrf.mxu0
    %5086 = vmatprep.mubr.bf16.mxu0 0
    %5087 = vmatmul.mubr.bf16.gmra.mxu0 %v881
    %v5088 = vpop.f32.mrf.mxu0
    %v5089 = vadd.f32 0.0, %v5088
    %v5090 = vpop.f32.mrf.mxu0
    %v5091 = vpop.f32.mrf.mxu0
    %v5092 = vadd.f32 0.0, %v5091
    %v5093 = vpop.f32.mrf.mxu0
    %5094 = vmatprep.mubr.bf16.mxu0 0
    %5095 = vmatmul.mubr.bf16.gmra.mxu0 %v884
    %v5096 = vpop.f32.mrf.mxu0
    %v5097 = vadd.f32 0.0, %v5096
    %v5098 = vpop.f32.mrf.mxu0
    %v5099 = vpop.f32.mrf.mxu0
    %v5100 = vadd.f32 0.0, %v5099
    %v5101 = vpop.f32.mrf.mxu0
    %5102 = vmatprep.mubr.bf16.mxu0 0
    %5103 = vmatmul.mubr.bf16.gmra.mxu0 %v887
    %v5104 = vpop.f32.mrf.mxu0
    %v5105 = vadd.f32 0.0, %v5104
    %v5106 = vpop.f32.mrf.mxu0
    %v5107 = vpop.f32.mrf.mxu0
    %v5108 = vadd.f32 0.0, %v5107
    %v5109 = vpop.f32.mrf.mxu0
    %5110 = vmatprep.mubr.bf16.mxu0 0
    %5111 = vmatmul.mubr.bf16.gmra.mxu0 %v890
    %v5112 = vpop.f32.mrf.mxu0
    %v5113 = vadd.f32 0.0, %v5112
    %v5114 = vpop.f32.mrf.mxu0
    %v5115 = vpop.f32.mrf.mxu0
    %v5116 = vadd.f32 0.0, %v5115
    %v5117 = vpop.f32.mrf.mxu0
    %5118 = vmatprep.mubr.bf16.mxu0 0
    %5119 = vmatmul.mubr.bf16.gmra.mxu0 %v893
    %v5120 = vpop.f32.mrf.mxu0
    %v5121 = vadd.f32 0.0, %v5120
    %v5122 = vpop.f32.mrf.mxu0
    %v5123 = vpop.f32.mrf.mxu0
    %v5124 = vadd.f32 0.0, %v5123
    %v5125 = vpop.f32.mrf.mxu0
    %5126 = vmatprep.mubr.bf16.mxu0 0
    %5127 = vmatmul.mubr.bf16.gmra.mxu0 %v896
    %v5128 = vpop.f32.mrf.mxu0
    %v5129 = vadd.f32 0.0, %v5128
    %v5130 = vpop.f32.mrf.mxu0
    %v5131 = vpop.f32.mrf.mxu0
    %v5132 = vadd.f32 0.0, %v5131
    %v5133 = vpop.f32.mrf.mxu0
    %5134 = vmatprep.mubr.bf16.mxu0 0
    %5135 = vmatmul.mubr.bf16.gmra.mxu0 %v899
    %v5136 = vpop.f32.mrf.mxu0
    %v5137 = vadd.f32 0.0, %v5136
    %v5138 = vpop.f32.mrf.mxu0
    %v5139 = vpop.f32.mrf.mxu0
    %v5140 = vadd.f32 0.0, %v5139
    %v5141 = vpop.f32.mrf.mxu0
    %5142 = vmatprep.mubr.bf16.mxu0 0
    %5143 = vmatmul.mubr.bf16.gmra.mxu0 %v902
    %v5144 = vpop.f32.mrf.mxu0
    %v5145 = vadd.f32 0.0, %v5144
    %v5146 = vpop.f32.mrf.mxu0
    %v5147 = vpop.f32.mrf.mxu0
    %v5148 = vadd.f32 0.0, %v5147
    %v5149 = vpop.f32.mrf.mxu0
    %5150 = vmatprep.mubr.bf16.mxu0 0
    %5151 = vmatmul.mubr.bf16.gmra.mxu0 %v905
    %v5152 = vpop.f32.mrf.mxu0
    %v5153 = vadd.f32 0.0, %v5152
    %v5154 = vpop.f32.mrf.mxu0
    %v5155 = vpop.f32.mrf.mxu0
    %v5156 = vadd.f32 0.0, %v5155
    %v5157 = vpop.f32.mrf.mxu0
    %5158 = vmatprep.mubr.bf16.mxu0 0
    %5159 = vmatmul.mubr.bf16.gmra.mxu0 %v908
    %v5160 = vpop.f32.mrf.mxu0
    %v5161 = vadd.f32 0.0, %v5160
    %v5162 = vpop.f32.mrf.mxu0
    %v5163 = vpop.f32.mrf.mxu0
    %v5164 = vadd.f32 0.0, %v5163
    %v5165 = vpop.f32.mrf.mxu0
    %5166 = vmatprep.mubr.bf16.mxu0 0
    %5167 = vmatmul.mubr.bf16.gmra.mxu0 %v911
    %v5168 = vpop.f32.mrf.mxu0
    %v5169 = vadd.f32 0.0, %v5168
    %v5170 = vpop.f32.mrf.mxu0
    %v5171 = vpop.f32.mrf.mxu0
    %v5172 = vadd.f32 0.0, %v5171
    %v5173 = vpop.f32.mrf.mxu0
    %5174 = vmatprep.mubr.bf16.mxu0 0
    %5175 = vmatmul.mubr.bf16.gmra.mxu0 %v914
    %v5176 = vpop.f32.mrf.mxu0
    %v5177 = vadd.f32 0.0, %v5176
    %v5178 = vpop.f32.mrf.mxu0
    %v5179 = vpop.f32.mrf.mxu0
    %v5180 = vadd.f32 0.0, %v5179
    %v5181 = vpop.f32.mrf.mxu0
    %5182 = vmatprep.mubr.bf16.mxu0 0
    %5183 = vmatmul.mubr.bf16.gmra.mxu0 %v917
    %v5184 = vpop.f32.mrf.mxu0
    %v5185 = vadd.f32 0.0, %v5184
    %v5186 = vpop.f32.mrf.mxu0
    %v5187 = vpop.f32.mrf.mxu0
    %v5188 = vadd.f32 0.0, %v5187
    %v5189 = vpop.f32.mrf.mxu0
    %5190 = vmatprep.mubr.bf16.mxu0 0
    %5191 = vmatmul.mubr.bf16.gmra.mxu0 %v920
    %v5192 = vpop.f32.mrf.mxu0
    %v5193 = vadd.f32 0.0, %v5192
    %v5194 = vpop.f32.mrf.mxu0
    %v5195 = vpop.f32.mrf.mxu0
    %v5196 = vadd.f32 0.0, %v5195
    %v5197 = vpop.f32.mrf.mxu0
    %5198 = vmatprep.mubr.bf16.mxu0 0
    %5199 = vmatmul.mubr.bf16.gmra.mxu0 %v923
    %v5200 = vpop.f32.mrf.mxu0
    %v5201 = vadd.f32 0.0, %v5200
    %v5202 = vpop.f32.mrf.mxu0
    %v5203 = vpop.f32.mrf.mxu0
    %v5204 = vadd.f32 0.0, %v5203
    %v5205 = vpop.f32.mrf.mxu0
    %5206 = vmatprep.mubr.bf16.mxu0 0
    %5207 = vmatmul.mubr.bf16.gmra.mxu0 %v926
    %v5208 = vpop.f32.mrf.mxu0
    %v5209 = vadd.f32 0.0, %v5208
    %v5210 = vpop.f32.mrf.mxu0
    %v5211 = vpop.f32.mrf.mxu0
    %v5212 = vadd.f32 0.0, %v5211
    %v5213 = vpop.f32.mrf.mxu0
    %5214 = vmatprep.mubr.bf16.mxu0 0
    %5215 = vmatmul.mubr.bf16.gmra.mxu0 %v929
    %v5216 = vpop.f32.mrf.mxu0
    %v5217 = vadd.f32 0.0, %v5216
    %v5218 = vpop.f32.mrf.mxu0
    %v5219 = vpop.f32.mrf.mxu0
    %v5220 = vadd.f32 0.0, %v5219
    %v5221 = vpop.f32.mrf.mxu0
    %5222 = vmatprep.mubr.bf16.mxu0 0
    %5223 = vmatmul.mubr.bf16.gmra.mxu0 %v932
    %v5224 = vpop.f32.mrf.mxu0
    %v5225 = vadd.f32 0.0, %v5224
    %v5226 = vpop.f32.mrf.mxu0
    %v5227 = vpop.f32.mrf.mxu0
    %v5228 = vadd.f32 0.0, %v5227
    %v5229 = vpop.f32.mrf.mxu0
    %5230 = vmatprep.mubr.bf16.mxu0 0
    %5231 = vmatmul.mubr.bf16.gmra.mxu0 %v935
    %v5232 = vpop.f32.mrf.mxu0
    %v5233 = vadd.f32 0.0, %v5232
    %v5234 = vpop.f32.mrf.mxu0
    %v5235 = vpop.f32.mrf.mxu0
    %v5236 = vadd.f32 0.0, %v5235
    %v5237 = vpop.f32.mrf.mxu0
    %5238 = vmatprep.mubr.bf16.mxu0 0
    %5239 = vmatmul.mubr.bf16.gmra.mxu0 %v938
    %v5240 = vpop.f32.mrf.mxu0
    %v5241 = vadd.f32 0.0, %v5240
    %v5242 = vpop.f32.mrf.mxu0
    %v5243 = vpop.f32.mrf.mxu0
    %v5244 = vadd.f32 0.0, %v5243
    %v5245 = vpop.f32.mrf.mxu0
    %5246 = vmatprep.mubr.bf16.mxu0 0
    %5247 = vmatmul.mubr.bf16.gmra.mxu0 %v941
    %v5248 = vpop.f32.mrf.mxu0
    %v5249 = vadd.f32 0.0, %v5248
    %v5250 = vpop.f32.mrf.mxu0
    %v5251 = vpop.f32.mrf.mxu0
    %v5252 = vadd.f32 0.0, %v5251
    %v5253 = vpop.f32.mrf.mxu0
    %5254 = vmatprep.mubr.bf16.mxu0 0
    %5255 = vmatmul.mubr.bf16.gmra.mxu0 %v944
    %v5256 = vpop.f32.mrf.mxu0
    %v5257 = vadd.f32 0.0, %v5256
    %v5258 = vpop.f32.mrf.mxu0
    %v5259 = vpop.f32.mrf.mxu0
    %v5260 = vadd.f32 0.0, %v5259
    %v5261 = vpop.f32.mrf.mxu0
    %5262 = vmatprep.mubr.bf16.mxu0 0
    %5263 = vmatmul.mubr.bf16.gmra.mxu0 %v947
    %v5264 = vpop.f32.mrf.mxu0
    %v5265 = vadd.f32 0.0, %v5264
    %v5266 = vpop.f32.mrf.mxu0
    %v5267 = vpop.f32.mrf.mxu0
    %v5268 = vadd.f32 0.0, %v5267
    %v5269 = vpop.f32.mrf.mxu0
    %5270 = vmatprep.mubr.bf16.mxu0 0
    %5271 = vmatmul.mubr.bf16.gmra.mxu0 %v950
    %v5272 = vpop.f32.mrf.mxu0
    %v5273 = vadd.f32 0.0, %v5272
    %v5274 = vpop.f32.mrf.mxu0
    %v5275 = vpop.f32.mrf.mxu0
    %v5276 = vadd.f32 0.0, %v5275
    %v5277 = vpop.f32.mrf.mxu0
    %5278 = vmatprep.mubr.bf16.mxu0 0
    %5279 = vmatmul.mubr.bf16.gmra.mxu0 %v953
    %v5280 = vpop.f32.mrf.mxu0
    %v5281 = vadd.f32 0.0, %v5280
    %v5282 = vpop.f32.mrf.mxu0
    %v5283 = vpop.f32.mrf.mxu0
    %v5284 = vadd.f32 0.0, %v5283
    %v5285 = vpop.f32.mrf.mxu0
    %5286 = vdwg.mxu0
    %v5287 = vpack.c.bf16 %v5068, %v5065
    %v5288 = vpack.c.bf16 %v5076, %v5073
    %v5289 = vpack.c.bf16 %v5084, %v5081
    %v5290 = vpack.c.bf16 %v5092, %v5089
    %v5291 = vpack.c.bf16 %v5100, %v5097
    %v5292 = vpack.c.bf16 %v5108, %v5105
    %v5293 = vpack.c.bf16 %v5116, %v5113
    %v5294 = vpack.c.bf16 %v5124, %v5121
    %v5295 = vpack.c.bf16 %v5132, %v5129
    %v5296 = vpack.c.bf16 %v5140, %v5137
    %v5297 = vpack.c.bf16 %v5148, %v5145
    %v5298 = vpack.c.bf16 %v5156, %v5153
    %v5299 = vpack.c.bf16 %v5164, %v5161
    %v5300 = vpack.c.bf16 %v5172, %v5169
    %v5301 = vpack.c.bf16 %v5180, %v5177
    %v5302 = vpack.c.bf16 %v5188, %v5185
    %v5303 = vpack.c.bf16 %v5196, %v5193
    %v5304 = vpack.c.bf16 %v5204, %v5201
    %v5305 = vpack.c.bf16 %v5212, %v5209
    %v5306 = vpack.c.bf16 %v5220, %v5217
    %v5307 = vpack.c.bf16 %v5228, %v5225
    %v5308 = vpack.c.bf16 %v5236, %v5233
    %v5309 = vpack.c.bf16 %v5244, %v5241
    %v5310 = vpack.c.bf16 %v5252, %v5249
    %v5311 = vpack.c.bf16 %v5260, %v5257
    %v5312 = vpack.c.bf16 %v5268, %v5265
    %v5313 = vpack.c.bf16 %v5276, %v5273
    %v5314 = vpack.c.bf16 %v5284, %v5281
    %s5315 = scalar_lea.vmem [#allocation2], 336
    %v5316 = vld [vmem:[%s5315] sm:$0xf]
    %v5317 = vld [vmem:[%s5315 + $0x4] sm:$0xf]
    %v5318 = vld [vmem:[%s5315 + $0x8] sm:$0xf]
    %v5319 = vld [vmem:[%s5315 + $0xc] sm:$0xf]
    %v5320 = vld [vmem:[%s5315 + $0x10] sm:$0xf]
    %v5321 = vld [vmem:[%s5315 + $0x14] sm:$0xf]
    %v5322 = vld [vmem:[%s5315 + $0x18] sm:$0xf]
    %v5323 = vld [vmem:[%s5315 + $0x1c] sm:$0xf]
    %v5324 = vld [vmem:[%s5315 + $0x20] sm:$0xf]
    %v5325 = vld [vmem:[%s5315 + $0x24] sm:$0xf]
    %v5326 = vld [vmem:[%s5315 + $0x28] sm:$0xf]
    %v5327 = vld [vmem:[%s5315 + $0x2c] sm:$0xf]
    %v5328 = vld [vmem:[%s5315 + $0x30] sm:$0xf]
    %v5329 = vld [vmem:[%s5315 + $0x34] sm:$0xf]
    %v5330 = vld [vmem:[%s5315 + $0x38] sm:$0xf]
    %v5331 = vld [vmem:[%s5315 + $0x3c] sm:$0xf]
    %v5332 = vld [vmem:[%s5315 + $0x40] sm:$0xf]
    %v5333 = vld [vmem:[%s5315 + $0x44] sm:$0xf]
    %v5334 = vld [vmem:[%s5315 + $0x48] sm:$0xf]
    %v5335 = vld [vmem:[%s5315 + $0x4c] sm:$0xf]
    %v5336 = vld [vmem:[%s5315 + $0x50] sm:$0xf]
    %v5337 = vld [vmem:[%s5315 + $0x54] sm:$0xf]
    %v5338 = vld [vmem:[%s5315 + $0x58] sm:$0xf]
    %v5339 = vld [vmem:[%s5315 + $0x5c] sm:$0xf]
    %v5340 = vld [vmem:[%s5315 + $0x60] sm:$0xf]
    %v5341 = vld [vmem:[%s5315 + $0x64] sm:$0xf]
    %v5342 = vld [vmem:[%s5315 + $0x68] sm:$0xf]
    %v5343 = vld [vmem:[%s5315 + $0x6c] sm:$0xf]
    %v5348 = vunpack.c.l.b16 %v5320
    %v5349 = vunpack.c.l.b16 %v5321
    %v5350 = vunpack.c.l.b16 %v5322
    %v5351 = vunpack.c.l.b16 %v5323
    %v5352 = vpack.c.b16 %v5349, %v5348
    %v5353 = vpack.c.b16 %v5351, %v5350
    %v5357 = vsel %vm301, %v5291, 0
    %v5360 = vsel %vm301, %v5292, 0
    %v5363 = vsel %vm301, %v5293, 0
    %v5366 = vsel %vm301, %v5294, 0
    %5368 = vmatprep.subr.bf16.mxu0 0
    %5369 = vmatpush1.bf16.msra.mxu0 0
    %5370 = vmatprep.subr.bf16.mxu0 0
    %5371 = vmatpush1.bf16.msra.mxu0 0
    %5372 = vmatprep.subr.bf16.mxu0 0
    %5373 = vmatpush1.bf16.msra.mxu0 0
    %5374 = vmatprep.subr.bf16.mxu0 0
    %5375 = vmatpush1.bf16.msra.mxu0 0
    %5376 = vmatprep.subr.bf16.mxu0 0
    %5377 = vmatpush1.bf16.msra.mxu0 0
    %5378 = vmatprep.subr.bf16.mxu0 0
    %5379 = vmatpush1.bf16.msra.mxu0 0
    %5380 = vmatprep.subr.bf16.mxu0 0
    %5381 = vmatpush1.bf16.msra.mxu0 %v5353
    %5382 = vmatprep.subr.bf16.mxu0 0
    %5383 = vmatpush1.bf16.msra.mxu0 %v5352
    %5384 = vmatprep.subr.bf16.mxu0 0
    %5385 = vmatpush2.bf16.msra.mxu0 0
    %5386 = vmatprep.subr.bf16.mxu0 0
    %5387 = vmatpush2.bf16.msra.mxu0 0
    %5388 = vmatprep.subr.bf16.mxu0 0
    %5389 = vmatpush2.bf16.msra.mxu0 0
    %5390 = vmatprep.subr.bf16.mxu0 0
    %5391 = vmatpush2.bf16.msra.mxu0 0
    %5392 = vmatprep.subr.bf16.mxu0 0
    %5393 = vmatpush2.bf16.msra.mxu0 0
    %5394 = vmatprep.subr.bf16.mxu0 0
    %5395 = vmatpush2.bf16.msra.mxu0 0
    %5396 = vmatprep.subr.bf16.mxu0 0
    %5397 = vmatpush2.bf16.msra.mxu0 0
    %5398 = vmatprep.subr.bf16.mxu0 0
    %5399 = vmatpush2.bf16.msra.mxu0 0
    %5400 = vmatprep.mubr.bf16.mxu0 0
    %5401 = vmatmul.mubr.bf16.gmra.mxu0 %v5357
    %v5402 = vpop.f32.mrf.mxu0
    %v5403 = vadd.f32 0.0, %v5402
    %v5404 = vpop.f32.mrf.mxu0
    %v5405 = vpop.f32.mrf.mxu0
    %v5406 = vadd.f32 0.0, %v5405
    %v5407 = vpop.f32.mrf.mxu0
    %5408 = vmatprep.mubr.bf16.mxu0 0
    %5409 = vmatmul.mubr.bf16.gmra.mxu0 %v5360
    %v5410 = vpop.f32.mrf.mxu0
    %v5411 = vadd.f32 0.0, %v5410
    %v5412 = vpop.f32.mrf.mxu0
    %v5413 = vpop.f32.mrf.mxu0
    %v5414 = vadd.f32 0.0, %v5413
    %v5415 = vpop.f32.mrf.mxu0
    %5416 = vmatprep.mubr.bf16.mxu0 0
    %5417 = vmatmul.mubr.bf16.gmra.mxu0 %v5363
    %v5418 = vpop.f32.mrf.mxu0
    %v5419 = vadd.f32 0.0, %v5418
    %v5420 = vpop.f32.mrf.mxu0
    %v5421 = vpop.f32.mrf.mxu0
    %v5422 = vadd.f32 0.0, %v5421
    %v5423 = vpop.f32.mrf.mxu0
    %5424 = vmatprep.mubr.bf16.mxu0 0
    %5425 = vmatmul.mubr.bf16.gmra.mxu0 %v5366
    %v5426 = vpop.f32.mrf.mxu0
    %v5427 = vadd.f32 0.0, %v5426
    %v5428 = vpop.f32.mrf.mxu0
    %v5429 = vpop.f32.mrf.mxu0
    %v5430 = vadd.f32 0.0, %v5429
    %v5431 = vpop.f32.mrf.mxu0
    %5432 = vdwg.mxu0
    %v5437 = vunpack.c.l.b16 %v5316
    %v5438 = vunpack.c.l.b16 %v5317
    %v5439 = vunpack.c.l.b16 %v5318
    %v5440 = vunpack.c.l.b16 %v5319
    %v5441 = vpack.c.b16 %v5438, %v5437
    %v5442 = vpack.c.b16 %v5440, %v5439
    %v5446 = vsel %vm301, %v5287, 0
    %v5449 = vsel %vm301, %v5288, 0
    %v5452 = vsel %vm301, %v5289, 0
    %v5455 = vsel %vm301, %v5290, 0
    %5457 = vmatprep.subr.bf16.mxu0 0
    %5458 = vmatpush1.bf16.msra.mxu0 0
    %5459 = vmatprep.subr.bf16.mxu0 0
    %5460 = vmatpush1.bf16.msra.mxu0 0
    %5461 = vmatprep.subr.bf16.mxu0 0
    %5462 = vmatpush1.bf16.msra.mxu0 0
    %5463 = vmatprep.subr.bf16.mxu0 0
    %5464 = vmatpush1.bf16.msra.mxu0 0
    %5465 = vmatprep.subr.bf16.mxu0 0
    %5466 = vmatpush1.bf16.msra.mxu0 0
    %5467 = vmatprep.subr.bf16.mxu0 0
    %5468 = vmatpush1.bf16.msra.mxu0 0
    %5469 = vmatprep.subr.bf16.mxu0 0
    %5470 = vmatpush1.bf16.msra.mxu0 %v5442
    %5471 = vmatprep.subr.bf16.mxu0 0
    %5472 = vmatpush1.bf16.msra.mxu0 %v5441
    %5473 = vmatprep.subr.bf16.mxu0 0
    %5474 = vmatpush2.bf16.msra.mxu0 0
    %5475 = vmatprep.subr.bf16.mxu0 0
    %5476 = vmatpush2.bf16.msra.mxu0 0
    %5477 = vmatprep.subr.bf16.mxu0 0
    %5478 = vmatpush2.bf16.msra.mxu0 0
    %5479 = vmatprep.subr.bf16.mxu0 0
    %5480 = vmatpush2.bf16.msra.mxu0 0
    %5481 = vmatprep.subr.bf16.mxu0 0
    %5482 = vmatpush2.bf16.msra.mxu0 0
    %5483 = vmatprep.subr.bf16.mxu0 0
    %5484 = vmatpush2.bf16.msra.mxu0 0
    %5485 = vmatprep.subr.bf16.mxu0 0
    %5486 = vmatpush2.bf16.msra.mxu0 0
    %5487 = vmatprep.subr.bf16.mxu0 0
    %5488 = vmatpush2.bf16.msra.mxu0 0
    %5489 = vmatprep.mubr.bf16.mxu0 0
    %5490 = vmatmul.mubr.bf16.gmra.mxu0 %v5446
    %v5491 = vpop.f32.mrf.mxu0
    %v5492 = vadd.f32 %v5403, %v5491
    %v5493 = vpop.f32.mrf.mxu0
    %v5494 = vpop.f32.mrf.mxu0
    %v5495 = vadd.f32 %v5406, %v5494
    %v5496 = vpop.f32.mrf.mxu0
    %5497 = vmatprep.mubr.bf16.mxu0 0
    %5498 = vmatmul.mubr.bf16.gmra.mxu0 %v5449
    %v5499 = vpop.f32.mrf.mxu0
    %v5500 = vadd.f32 %v5411, %v5499
    %v5501 = vpop.f32.mrf.mxu0
    %v5502 = vpop.f32.mrf.mxu0
    %v5503 = vadd.f32 %v5414, %v5502
    %v5504 = vpop.f32.mrf.mxu0
    %5505 = vmatprep.mubr.bf16.mxu0 0
    %5506 = vmatmul.mubr.bf16.gmra.mxu0 %v5452
    %v5507 = vpop.f32.mrf.mxu0
    %v5508 = vadd.f32 %v5419, %v5507
    %v5509 = vpop.f32.mrf.mxu0
    %v5510 = vpop.f32.mrf.mxu0
    %v5511 = vadd.f32 %v5422, %v5510
    %v5512 = vpop.f32.mrf.mxu0
    %5513 = vmatprep.mubr.bf16.mxu0 0
    %5514 = vmatmul.mubr.bf16.gmra.mxu0 %v5455
    %v5515 = vpop.f32.mrf.mxu0
    %v5516 = vadd.f32 %v5427, %v5515
    %v5517 = vpop.f32.mrf.mxu0
    %v5518 = vpop.f32.mrf.mxu0
    %v5519 = vadd.f32 %v5430, %v5518
    %v5520 = vpop.f32.mrf.mxu0
    %5521 = vdwg.mxu0
    %v5526 = vunpack.c.l.b16 %v5324
    %v5527 = vunpack.c.l.b16 %v5325
    %v5528 = vunpack.c.l.b16 %v5326
    %v5529 = vunpack.c.l.b16 %v5327
    %v5530 = vpack.c.b16 %v5527, %v5526
    %v5531 = vpack.c.b16 %v5529, %v5528
    %v5535 = vsel %vm301, %v5295, 0
    %v5538 = vsel %vm301, %v5296, 0
    %v5541 = vsel %vm301, %v5297, 0
    %v5544 = vsel %vm301, %v5298, 0
    %5546 = vmatprep.subr.bf16.mxu0 0
    %5547 = vmatpush1.bf16.msra.mxu0 0
    %5548 = vmatprep.subr.bf16.mxu0 0
    %5549 = vmatpush1.bf16.msra.mxu0 0
    %5550 = vmatprep.subr.bf16.mxu0 0
    %5551 = vmatpush1.bf16.msra.mxu0 0
    %5552 = vmatprep.subr.bf16.mxu0 0
    %5553 = vmatpush1.bf16.msra.mxu0 0
    %5554 = vmatprep.subr.bf16.mxu0 0
    %5555 = vmatpush1.bf16.msra.mxu0 0
    %5556 = vmatprep.subr.bf16.mxu0 0
    %5557 = vmatpush1.bf16.msra.mxu0 0
    %5558 = vmatprep.subr.bf16.mxu0 0
    %5559 = vmatpush1.bf16.msra.mxu0 %v5531
    %5560 = vmatprep.subr.bf16.mxu0 0
    %5561 = vmatpush1.bf16.msra.mxu0 %v5530
    %5562 = vmatprep.subr.bf16.mxu0 0
    %5563 = vmatpush2.bf16.msra.mxu0 0
    %5564 = vmatprep.subr.bf16.mxu0 0
    %5565 = vmatpush2.bf16.msra.mxu0 0
    %5566 = vmatprep.subr.bf16.mxu0 0
    %5567 = vmatpush2.bf16.msra.mxu0 0
    %5568 = vmatprep.subr.bf16.mxu0 0
    %5569 = vmatpush2.bf16.msra.mxu0 0
    %5570 = vmatprep.subr.bf16.mxu0 0
    %5571 = vmatpush2.bf16.msra.mxu0 0
    %5572 = vmatprep.subr.bf16.mxu0 0
    %5573 = vmatpush2.bf16.msra.mxu0 0
    %5574 = vmatprep.subr.bf16.mxu0 0
    %5575 = vmatpush2.bf16.msra.mxu0 0
    %5576 = vmatprep.subr.bf16.mxu0 0
    %5577 = vmatpush2.bf16.msra.mxu0 0
    %5578 = vmatprep.mubr.bf16.mxu0 0
    %5579 = vmatmul.mubr.bf16.gmra.mxu0 %v5535
    %v5580 = vpop.f32.mrf.mxu0
    %v5581 = vadd.f32 0.0, %v5580
    %v5582 = vpop.f32.mrf.mxu0
    %v5583 = vpop.f32.mrf.mxu0
    %v5584 = vadd.f32 0.0, %v5583
    %v5585 = vpop.f32.mrf.mxu0
    %5586 = vmatprep.mubr.bf16.mxu0 0
    %5587 = vmatmul.mubr.bf16.gmra.mxu0 %v5538
    %v5588 = vpop.f32.mrf.mxu0
    %v5589 = vadd.f32 0.0, %v5588
    %v5590 = vpop.f32.mrf.mxu0
    %v5591 = vpop.f32.mrf.mxu0
    %v5592 = vadd.f32 0.0, %v5591
    %v5593 = vpop.f32.mrf.mxu0
    %5594 = vmatprep.mubr.bf16.mxu0 0
    %5595 = vmatmul.mubr.bf16.gmra.mxu0 %v5541
    %v5596 = vpop.f32.mrf.mxu0
    %v5597 = vadd.f32 0.0, %v5596
    %v5598 = vpop.f32.mrf.mxu0
    %v5599 = vpop.f32.mrf.mxu0
    %v5600 = vadd.f32 0.0, %v5599
    %v5601 = vpop.f32.mrf.mxu0
    %5602 = vmatprep.mubr.bf16.mxu0 0
    %5603 = vmatmul.mubr.bf16.gmra.mxu0 %v5544
    %v5604 = vpop.f32.mrf.mxu0
    %v5605 = vadd.f32 0.0, %v5604
    %v5606 = vpop.f32.mrf.mxu0
    %v5607 = vpop.f32.mrf.mxu0
    %v5608 = vadd.f32 0.0, %v5607
    %v5609 = vpop.f32.mrf.mxu0
    %5610 = vdwg.mxu0
    %v5611 = vadd.f32 %v5492, %v5581
    %v5612 = vadd.f32 %v5495, %v5584
    %v5613 = vadd.f32 %v5500, %v5589
    %v5614 = vadd.f32 %v5503, %v5592
    %v5615 = vadd.f32 %v5508, %v5597
    %v5616 = vadd.f32 %v5511, %v5600
    %v5617 = vadd.f32 %v5516, %v5605
    %v5618 = vadd.f32 %v5519, %v5608
    %v5623 = vunpack.c.l.b16 %v5328
    %v5624 = vunpack.c.l.b16 %v5329
    %v5625 = vunpack.c.l.b16 %v5330
    %v5626 = vunpack.c.l.b16 %v5331
    %v5627 = vpack.c.b16 %v5624, %v5623
    %v5628 = vpack.c.b16 %v5626, %v5625
    %v5632 = vsel %vm301, %v5299, 0
    %v5635 = vsel %vm301, %v5300, 0
    %v5638 = vsel %vm301, %v5301, 0
    %v5641 = vsel %vm301, %v5302, 0
    %5643 = vmatprep.subr.bf16.mxu0 0
    %5644 = vmatpush1.bf16.msra.mxu0 0
    %5645 = vmatprep.subr.bf16.mxu0 0
    %5646 = vmatpush1.bf16.msra.mxu0 0
    %5647 = vmatprep.subr.bf16.mxu0 0
    %5648 = vmatpush1.bf16.msra.mxu0 0
    %5649 = vmatprep.subr.bf16.mxu0 0
    %5650 = vmatpush1.bf16.msra.mxu0 0
    %5651 = vmatprep.subr.bf16.mxu0 0
    %5652 = vmatpush1.bf16.msra.mxu0 0
    %5653 = vmatprep.subr.bf16.mxu0 0
    %5654 = vmatpush1.bf16.msra.mxu0 0
    %5655 = vmatprep.subr.bf16.mxu0 0
    %5656 = vmatpush1.bf16.msra.mxu0 %v5628
    %5657 = vmatprep.subr.bf16.mxu0 0
    %5658 = vmatpush1.bf16.msra.mxu0 %v5627
    %5659 = vmatprep.subr.bf16.mxu0 0
    %5660 = vmatpush2.bf16.msra.mxu0 0
    %5661 = vmatprep.subr.bf16.mxu0 0
    %5662 = vmatpush2.bf16.msra.mxu0 0
    %5663 = vmatprep.subr.bf16.mxu0 0
    %5664 = vmatpush2.bf16.msra.mxu0 0
    %5665 = vmatprep.subr.bf16.mxu0 0
    %5666 = vmatpush2.bf16.msra.mxu0 0
    %5667 = vmatprep.subr.bf16.mxu0 0
    %5668 = vmatpush2.bf16.msra.mxu0 0
    %5669 = vmatprep.subr.bf16.mxu0 0
    %5670 = vmatpush2.bf16.msra.mxu0 0
    %5671 = vmatprep.subr.bf16.mxu0 0
    %5672 = vmatpush2.bf16.msra.mxu0 0
    %5673 = vmatprep.subr.bf16.mxu0 0
    %5674 = vmatpush2.bf16.msra.mxu0 0
    %5675 = vmatprep.mubr.bf16.mxu0 0
    %5676 = vmatmul.mubr.bf16.gmra.mxu0 %v5632
    %v5677 = vpop.f32.mrf.mxu0
    %v5678 = vadd.f32 0.0, %v5677
    %v5679 = vpop.f32.mrf.mxu0
    %v5680 = vpop.f32.mrf.mxu0
    %v5681 = vadd.f32 0.0, %v5680
    %v5682 = vpop.f32.mrf.mxu0
    %5683 = vmatprep.mubr.bf16.mxu0 0
    %5684 = vmatmul.mubr.bf16.gmra.mxu0 %v5635
    %v5685 = vpop.f32.mrf.mxu0
    %v5686 = vadd.f32 0.0, %v5685
    %v5687 = vpop.f32.mrf.mxu0
    %v5688 = vpop.f32.mrf.mxu0
    %v5689 = vadd.f32 0.0, %v5688
    %v5690 = vpop.f32.mrf.mxu0
    %5691 = vmatprep.mubr.bf16.mxu0 0
    %5692 = vmatmul.mubr.bf16.gmra.mxu0 %v5638
    %v5693 = vpop.f32.mrf.mxu0
    %v5694 = vadd.f32 0.0, %v5693
    %v5695 = vpop.f32.mrf.mxu0
    %v5696 = vpop.f32.mrf.mxu0
    %v5697 = vadd.f32 0.0, %v5696
    %v5698 = vpop.f32.mrf.mxu0
    %5699 = vmatprep.mubr.bf16.mxu0 0
    %5700 = vmatmul.mubr.bf16.gmra.mxu0 %v5641
    %v5701 = vpop.f32.mrf.mxu0
    %v5702 = vadd.f32 0.0, %v5701
    %v5703 = vpop.f32.mrf.mxu0
    %v5704 = vpop.f32.mrf.mxu0
    %v5705 = vadd.f32 0.0, %v5704
    %v5706 = vpop.f32.mrf.mxu0
    %5707 = vdwg.mxu0
    %v5708 = vadd.f32 %v5611, %v5678
    %v5709 = vadd.f32 %v5612, %v5681
    %v5710 = vadd.f32 %v5613, %v5686
    %v5711 = vadd.f32 %v5614, %v5689
    %v5712 = vadd.f32 %v5615, %v5694
    %v5713 = vadd.f32 %v5616, %v5697
    %v5714 = vadd.f32 %v5617, %v5702
    %v5715 = vadd.f32 %v5618, %v5705
    %v5720 = vunpack.c.l.b16 %v5332
    %v5721 = vunpack.c.l.b16 %v5333
    %v5722 = vunpack.c.l.b16 %v5334
    %v5723 = vunpack.c.l.b16 %v5335
    %v5724 = vpack.c.b16 %v5721, %v5720
    %v5725 = vpack.c.b16 %v5723, %v5722
    %v5729 = vsel %vm301, %v5303, 0
    %v5732 = vsel %vm301, %v5304, 0
    %v5735 = vsel %vm301, %v5305, 0
    %v5738 = vsel %vm301, %v5306, 0
    %5740 = vmatprep.subr.bf16.mxu0 0
    %5741 = vmatpush1.bf16.msra.mxu0 0
    %5742 = vmatprep.subr.bf16.mxu0 0
    %5743 = vmatpush1.bf16.msra.mxu0 0
    %5744 = vmatprep.subr.bf16.mxu0 0
    %5745 = vmatpush1.bf16.msra.mxu0 0
    %5746 = vmatprep.subr.bf16.mxu0 0
    %5747 = vmatpush1.bf16.msra.mxu0 0
    %5748 = vmatprep.subr.bf16.mxu0 0
    %5749 = vmatpush1.bf16.msra.mxu0 0
    %5750 = vmatprep.subr.bf16.mxu0 0
    %5751 = vmatpush1.bf16.msra.mxu0 0
    %5752 = vmatprep.subr.bf16.mxu0 0
    %5753 = vmatpush1.bf16.msra.mxu0 %v5725
    %5754 = vmatprep.subr.bf16.mxu0 0
    %5755 = vmatpush1.bf16.msra.mxu0 %v5724
    %5756 = vmatprep.subr.bf16.mxu0 0
    %5757 = vmatpush2.bf16.msra.mxu0 0
    %5758 = vmatprep.subr.bf16.mxu0 0
    %5759 = vmatpush2.bf16.msra.mxu0 0
    %5760 = vmatprep.subr.bf16.mxu0 0
    %5761 = vmatpush2.bf16.msra.mxu0 0
    %5762 = vmatprep.subr.bf16.mxu0 0
    %5763 = vmatpush2.bf16.msra.mxu0 0
    %5764 = vmatprep.subr.bf16.mxu0 0
    %5765 = vmatpush2.bf16.msra.mxu0 0
    %5766 = vmatprep.subr.bf16.mxu0 0
    %5767 = vmatpush2.bf16.msra.mxu0 0
    %5768 = vmatprep.subr.bf16.mxu0 0
    %5769 = vmatpush2.bf16.msra.mxu0 0
    %5770 = vmatprep.subr.bf16.mxu0 0
    %5771 = vmatpush2.bf16.msra.mxu0 0
    %5772 = vmatprep.mubr.bf16.mxu0 0
    %5773 = vmatmul.mubr.bf16.gmra.mxu0 %v5729
    %v5774 = vpop.f32.mrf.mxu0
    %v5775 = vadd.f32 0.0, %v5774
    %v5776 = vpop.f32.mrf.mxu0
    %v5777 = vpop.f32.mrf.mxu0
    %v5778 = vadd.f32 0.0, %v5777
    %v5779 = vpop.f32.mrf.mxu0
    %5780 = vmatprep.mubr.bf16.mxu0 0
    %5781 = vmatmul.mubr.bf16.gmra.mxu0 %v5732
    %v5782 = vpop.f32.mrf.mxu0
    %v5783 = vadd.f32 0.0, %v5782
    %v5784 = vpop.f32.mrf.mxu0
    %v5785 = vpop.f32.mrf.mxu0
    %v5786 = vadd.f32 0.0, %v5785
    %v5787 = vpop.f32.mrf.mxu0
    %5788 = vmatprep.mubr.bf16.mxu0 0
    %5789 = vmatmul.mubr.bf16.gmra.mxu0 %v5735
    %v5790 = vpop.f32.mrf.mxu0
    %v5791 = vadd.f32 0.0, %v5790
    %v5792 = vpop.f32.mrf.mxu0
    %v5793 = vpop.f32.mrf.mxu0
    %v5794 = vadd.f32 0.0, %v5793
    %v5795 = vpop.f32.mrf.mxu0
    %5796 = vmatprep.mubr.bf16.mxu0 0
    %5797 = vmatmul.mubr.bf16.gmra.mxu0 %v5738
    %v5798 = vpop.f32.mrf.mxu0
    %v5799 = vadd.f32 0.0, %v5798
    %v5800 = vpop.f32.mrf.mxu0
    %v5801 = vpop.f32.mrf.mxu0
    %v5802 = vadd.f32 0.0, %v5801
    %v5803 = vpop.f32.mrf.mxu0
    %5804 = vdwg.mxu0
    %v5805 = vadd.f32 %v5708, %v5775
    %v5806 = vadd.f32 %v5709, %v5778
    %v5807 = vadd.f32 %v5710, %v5783
    %v5808 = vadd.f32 %v5711, %v5786
    %v5809 = vadd.f32 %v5712, %v5791
    %v5810 = vadd.f32 %v5713, %v5794
    %v5811 = vadd.f32 %v5714, %v5799
    %v5812 = vadd.f32 %v5715, %v5802
    %v5817 = vunpack.c.l.b16 %v5336
    %v5818 = vunpack.c.l.b16 %v5337
    %v5819 = vunpack.c.l.b16 %v5338
    %v5820 = vunpack.c.l.b16 %v5339
    %v5821 = vpack.c.b16 %v5818, %v5817
    %v5822 = vpack.c.b16 %v5820, %v5819
    %v5826 = vsel %vm301, %v5307, 0
    %v5829 = vsel %vm301, %v5308, 0
    %v5832 = vsel %vm301, %v5309, 0
    %v5835 = vsel %vm301, %v5310, 0
    %5837 = vmatprep.subr.bf16.mxu0 0
    %5838 = vmatpush1.bf16.msra.mxu0 0
    %5839 = vmatprep.subr.bf16.mxu0 0
    %5840 = vmatpush1.bf16.msra.mxu0 0
    %5841 = vmatprep.subr.bf16.mxu0 0
    %5842 = vmatpush1.bf16.msra.mxu0 0
    %5843 = vmatprep.subr.bf16.mxu0 0
    %5844 = vmatpush1.bf16.msra.mxu0 0
    %5845 = vmatprep.subr.bf16.mxu0 0
    %5846 = vmatpush1.bf16.msra.mxu0 0
    %5847 = vmatprep.subr.bf16.mxu0 0
    %5848 = vmatpush1.bf16.msra.mxu0 0
    %5849 = vmatprep.subr.bf16.mxu0 0
    %5850 = vmatpush1.bf16.msra.mxu0 %v5822
    %5851 = vmatprep.subr.bf16.mxu0 0
    %5852 = vmatpush1.bf16.msra.mxu0 %v5821
    %5853 = vmatprep.subr.bf16.mxu0 0
    %5854 = vmatpush2.bf16.msra.mxu0 0
    %5855 = vmatprep.subr.bf16.mxu0 0
    %5856 = vmatpush2.bf16.msra.mxu0 0
    %5857 = vmatprep.subr.bf16.mxu0 0
    %5858 = vmatpush2.bf16.msra.mxu0 0
    %5859 = vmatprep.subr.bf16.mxu0 0
    %5860 = vmatpush2.bf16.msra.mxu0 0
    %5861 = vmatprep.subr.bf16.mxu0 0
    %5862 = vmatpush2.bf16.msra.mxu0 0
    %5863 = vmatprep.subr.bf16.mxu0 0
    %5864 = vmatpush2.bf16.msra.mxu0 0
    %5865 = vmatprep.subr.bf16.mxu0 0
    %5866 = vmatpush2.bf16.msra.mxu0 0
    %5867 = vmatprep.subr.bf16.mxu0 0
    %5868 = vmatpush2.bf16.msra.mxu0 0
    %5869 = vmatprep.mubr.bf16.mxu0 0
    %5870 = vmatmul.mubr.bf16.gmra.mxu0 %v5826
    %v5871 = vpop.f32.mrf.mxu0
    %v5872 = vadd.f32 0.0, %v5871
    %v5873 = vpop.f32.mrf.mxu0
    %v5874 = vpop.f32.mrf.mxu0
    %v5875 = vadd.f32 0.0, %v5874
    %v5876 = vpop.f32.mrf.mxu0
    %5877 = vmatprep.mubr.bf16.mxu0 0
    %5878 = vmatmul.mubr.bf16.gmra.mxu0 %v5829
    %v5879 = vpop.f32.mrf.mxu0
    %v5880 = vadd.f32 0.0, %v5879
    %v5881 = vpop.f32.mrf.mxu0
    %v5882 = vpop.f32.mrf.mxu0
    %v5883 = vadd.f32 0.0, %v5882
    %v5884 = vpop.f32.mrf.mxu0
    %5885 = vmatprep.mubr.bf16.mxu0 0
    %5886 = vmatmul.mubr.bf16.gmra.mxu0 %v5832
    %v5887 = vpop.f32.mrf.mxu0
    %v5888 = vadd.f32 0.0, %v5887
    %v5889 = vpop.f32.mrf.mxu0
    %v5890 = vpop.f32.mrf.mxu0
    %v5891 = vadd.f32 0.0, %v5890
    %v5892 = vpop.f32.mrf.mxu0
    %5893 = vmatprep.mubr.bf16.mxu0 0
    %5894 = vmatmul.mubr.bf16.gmra.mxu0 %v5835
    %v5895 = vpop.f32.mrf.mxu0
    %v5896 = vadd.f32 0.0, %v5895
    %v5897 = vpop.f32.mrf.mxu0
    %v5898 = vpop.f32.mrf.mxu0
    %v5899 = vadd.f32 0.0, %v5898
    %v5900 = vpop.f32.mrf.mxu0
    %5901 = vdwg.mxu0
    %v5902 = vadd.f32 %v5805, %v5872
    %v5903 = vadd.f32 %v5806, %v5875
    %v5904 = vadd.f32 %v5807, %v5880
    %v5905 = vadd.f32 %v5808, %v5883
    %v5906 = vadd.f32 %v5809, %v5888
    %v5907 = vadd.f32 %v5810, %v5891
    %v5908 = vadd.f32 %v5811, %v5896
    %v5909 = vadd.f32 %v5812, %v5899
    %v5914 = vunpack.c.l.b16 %v5340
    %v5915 = vunpack.c.l.b16 %v5341
    %v5916 = vunpack.c.l.b16 %v5342
    %v5917 = vunpack.c.l.b16 %v5343
    %v5918 = vpack.c.b16 %v5915, %v5914
    %v5919 = vpack.c.b16 %v5917, %v5916
    %v5923 = vsel %vm301, %v5311, 0
    %v5926 = vsel %vm301, %v5312, 0
    %v5929 = vsel %vm301, %v5313, 0
    %v5932 = vsel %vm301, %v5314, 0
    %5934 = vmatprep.subr.bf16.mxu0 0
    %5935 = vmatpush1.bf16.msra.mxu0 0
    %5936 = vmatprep.subr.bf16.mxu0 0
    %5937 = vmatpush1.bf16.msra.mxu0 0
    %5938 = vmatprep.subr.bf16.mxu0 0
    %5939 = vmatpush1.bf16.msra.mxu0 0
    %5940 = vmatprep.subr.bf16.mxu0 0
    %5941 = vmatpush1.bf16.msra.mxu0 0
    %5942 = vmatprep.subr.bf16.mxu0 0
    %5943 = vmatpush1.bf16.msra.mxu0 0
    %5944 = vmatprep.subr.bf16.mxu0 0
    %5945 = vmatpush1.bf16.msra.mxu0 0
    %5946 = vmatprep.subr.bf16.mxu0 0
    %5947 = vmatpush1.bf16.msra.mxu0 %v5919
    %5948 = vmatprep.subr.bf16.mxu0 0
    %5949 = vmatpush1.bf16.msra.mxu0 %v5918
    %5950 = vmatprep.subr.bf16.mxu0 0
    %5951 = vmatpush2.bf16.msra.mxu0 0
    %5952 = vmatprep.subr.bf16.mxu0 0
    %5953 = vmatpush2.bf16.msra.mxu0 0
    %5954 = vmatprep.subr.bf16.mxu0 0
    %5955 = vmatpush2.bf16.msra.mxu0 0
    %5956 = vmatprep.subr.bf16.mxu0 0
    %5957 = vmatpush2.bf16.msra.mxu0 0
    %5958 = vmatprep.subr.bf16.mxu0 0
    %5959 = vmatpush2.bf16.msra.mxu0 0
    %5960 = vmatprep.subr.bf16.mxu0 0
    %5961 = vmatpush2.bf16.msra.mxu0 0
    %5962 = vmatprep.subr.bf16.mxu0 0
    %5963 = vmatpush2.bf16.msra.mxu0 0
    %5964 = vmatprep.subr.bf16.mxu0 0
    %5965 = vmatpush2.bf16.msra.mxu0 0
    %5966 = vmatprep.mubr.bf16.mxu0 0
    %5967 = vmatmul.mubr.bf16.gmra.mxu0 %v5923
    %v5968 = vpop.f32.mrf.mxu0
    %v5969 = vadd.f32 0.0, %v5968
    %v5970 = vpop.f32.mrf.mxu0
    %v5971 = vpop.f32.mrf.mxu0
    %v5972 = vadd.f32 0.0, %v5971
    %v5973 = vpop.f32.mrf.mxu0
    %5974 = vmatprep.mubr.bf16.mxu0 0
    %5975 = vmatmul.mubr.bf16.gmra.mxu0 %v5926
    %v5976 = vpop.f32.mrf.mxu0
    %v5977 = vadd.f32 0.0, %v5976
    %v5978 = vpop.f32.mrf.mxu0
    %v5979 = vpop.f32.mrf.mxu0
    %v5980 = vadd.f32 0.0, %v5979
    %v5981 = vpop.f32.mrf.mxu0
    %5982 = vmatprep.mubr.bf16.mxu0 0
    %5983 = vmatmul.mubr.bf16.gmra.mxu0 %v5929
    %v5984 = vpop.f32.mrf.mxu0
    %v5985 = vadd.f32 0.0, %v5984
    %v5986 = vpop.f32.mrf.mxu0
    %v5987 = vpop.f32.mrf.mxu0
    %v5988 = vadd.f32 0.0, %v5987
    %v5989 = vpop.f32.mrf.mxu0
    %5990 = vmatprep.mubr.bf16.mxu0 0
    %5991 = vmatmul.mubr.bf16.gmra.mxu0 %v5932
    %v5992 = vpop.f32.mrf.mxu0
    %v5993 = vadd.f32 0.0, %v5992
    %v5994 = vpop.f32.mrf.mxu0
    %v5995 = vpop.f32.mrf.mxu0
    %v5996 = vadd.f32 0.0, %v5995
    %v5997 = vpop.f32.mrf.mxu0
    %5998 = vdwg.mxu0
    %v5999 = vadd.f32 %v5902, %v5969
    %v6000 = vadd.f32 %v5903, %v5972
    %v6001 = vadd.f32 %v5904, %v5977
    %v6002 = vadd.f32 %v5905, %v5980
    %v6003 = vadd.f32 %v5906, %v5985
    %v6004 = vadd.f32 %v5907, %v5988
    %v6005 = vadd.f32 %v5908, %v5993
    %v6006 = vadd.f32 %v5909, %v5996
    %v6007 = vsel %vm301, %v5999, 0.0
    %6008 = vadd.xlane.f32.xlu0 %v6007
    %v6009 = vpop.xlane.xlu0 %6008
    %v6010 = vsel %vm301, %v6000, 0.0
    %6011 = vadd.xlane.f32.xlu0 %v6010
    %v6012 = vpop.xlane.xlu0 %6011
    %v6013 = vsel %vm301, %v6001, 0.0
    %6014 = vadd.xlane.f32.xlu0 %v6013
    %v6015 = vpop.xlane.xlu0 %6014
    %v6016 = vsel %vm301, %v6002, 0.0
    %6017 = vadd.xlane.f32.xlu0 %v6016
    %v6018 = vpop.xlane.xlu0 %6017
    %v6019 = vsel %vm301, %v6003, 0.0
    %6020 = vadd.xlane.f32.xlu0 %v6019
    %v6021 = vpop.xlane.xlu0 %6020
    %v6022 = vsel %vm301, %v6004, 0.0
    %6023 = vadd.xlane.f32.xlu0 %v6022
    %v6024 = vpop.xlane.xlu0 %6023
    %v6025 = vsel %vm301, %v6005, 0.0
    %6026 = vadd.xlane.f32.xlu0 %v6025
    %v6027 = vpop.xlane.xlu0 %6026
    %v6028 = vsel %vm301, %v6006, 0.0
    %6029 = vadd.xlane.f32.xlu0 %v6028
    %v6030 = vpop.xlane.xlu0 %6029
    %v6031 = vmul.f32 %v6009, %v326
    %v6032 = vmul.f32 %v6012, %v326
    %v6033 = vmul.f32 %v6015, %v326
    %v6034 = vmul.f32 %v6018, %v326
    %v6035 = vmul.f32 %v6021, %v326
    %v6036 = vmul.f32 %v6024, %v326
    %v6037 = vmul.f32 %v6027, %v326
    %v6038 = vmul.f32 %v6030, %v326
    %v6039 = vsub.f32 %v5999, %v6031
    %v6040 = vsub.f32 %v6000, %v6032
    %v6041 = vsub.f32 %v6001, %v6033
    %v6042 = vsub.f32 %v6002, %v6034
    %v6043 = vsub.f32 %v6003, %v6035
    %v6044 = vsub.f32 %v6004, %v6036
    %v6045 = vsub.f32 %v6005, %v6037
    %v6046 = vsub.f32 %v6006, %v6038
    %v6047 = vmul.f32 %v6039, %v6039
    %v6048 = vmul.f32 %v6040, %v6040
    %v6049 = vmul.f32 %v6041, %v6041
    %v6050 = vmul.f32 %v6042, %v6042
    %v6051 = vmul.f32 %v6043, %v6043
    %v6052 = vmul.f32 %v6044, %v6044
    %v6053 = vmul.f32 %v6045, %v6045
    %v6054 = vmul.f32 %v6046, %v6046
    %v6055 = vsel %vm301, %v6047, 0.0
    %6056 = vadd.xlane.f32.xlu0 %v6055
    %v6057 = vpop.xlane.xlu0 %6056
    %v6058 = vsel %vm301, %v6048, 0.0
    %6059 = vadd.xlane.f32.xlu0 %v6058
    %v6060 = vpop.xlane.xlu0 %6059
    %v6061 = vsel %vm301, %v6049, 0.0
    %6062 = vadd.xlane.f32.xlu0 %v6061
    %v6063 = vpop.xlane.xlu0 %6062
    %v6064 = vsel %vm301, %v6050, 0.0
    %6065 = vadd.xlane.f32.xlu0 %v6064
    %v6066 = vpop.xlane.xlu0 %6065
    %v6067 = vsel %vm301, %v6051, 0.0
    %6068 = vadd.xlane.f32.xlu0 %v6067
    %v6069 = vpop.xlane.xlu0 %6068
    %v6070 = vsel %vm301, %v6052, 0.0
    %6071 = vadd.xlane.f32.xlu0 %v6070
    %v6072 = vpop.xlane.xlu0 %6071
    %v6073 = vsel %vm301, %v6053, 0.0
    %6074 = vadd.xlane.f32.xlu0 %v6073
    %v6075 = vpop.xlane.xlu0 %6074
    %v6076 = vsel %vm301, %v6054, 0.0
    %6077 = vadd.xlane.f32.xlu0 %v6076
    %v6078 = vpop.xlane.xlu0 %6077
    %v6079 = vmul.f32 %v6057, %v326
    %v6080 = vmul.f32 %v6060, %v326
    %v6081 = vmul.f32 %v6063, %v326
    %v6082 = vmul.f32 %v6066, %v326
    %v6083 = vmul.f32 %v6069, %v326
    %v6084 = vmul.f32 %v6072, %v326
    %v6085 = vmul.f32 %v6075, %v326
    %v6086 = vmul.f32 %v6078, %v326
    %v6087 = vadd.f32 %v6079, 1e-05
    %v6088 = vadd.f32 %v6080, 1e-05
    %v6089 = vadd.f32 %v6081, 1e-05
    %v6090 = vadd.f32 %v6082, 1e-05
    %v6091 = vadd.f32 %v6083, 1e-05
    %v6092 = vadd.f32 %v6084, 1e-05
    %v6093 = vadd.f32 %v6085, 1e-05
    %v6094 = vadd.f32 %v6086, 1e-05
    %v6095 = vrsqrt.pop %v6087
    %v6096 = vrsqrt.pop %v6088
    %v6097 = vrsqrt.pop %v6089
    %v6098 = vrsqrt.pop %v6090
    %v6099 = vrsqrt.pop %v6091
    %v6100 = vrsqrt.pop %v6092
    %v6101 = vrsqrt.pop %v6093
    %v6102 = vrsqrt.pop %v6094
    %v6103 = vmul.f32 %v6039, %v6095
    %v6104 = vmul.f32 %v6040, %v6096
    %v6105 = vmul.f32 %v6041, %v6097
    %v6106 = vmul.f32 %v6042, %v6098
    %v6107 = vmul.f32 %v6043, %v6099
    %v6108 = vmul.f32 %v6044, %v6100
    %v6109 = vmul.f32 %v6045, %v6101
    %v6110 = vmul.f32 %v6046, %v6102
    %v6111 = vlaneseq
    %v6112 = vshrl.u32 %v6111, 7
    %v6113 = vsub.s32 3, %v6112
    %v6114 = vrot.slane %v667, %v6113
    %v6115 = vmul.f32 %v6103, %v6114
    %v6116 = vmul.f32 %v6104, %v6114
    %v6117 = vmul.f32 %v6105, %v6114
    %v6118 = vmul.f32 %v6106, %v6114
    %v6119 = vmul.f32 %v6107, %v6114
    %v6120 = vmul.f32 %v6108, %v6114
    %v6121 = vmul.f32 %v6109, %v6114
    %v6122 = vmul.f32 %v6110, %v6114
    %v6123 = vlaneseq
    %v6124 = vshrl.u32 %v6123, 7
    %v6125 = vsub.s32 3, %v6124
    %v6126 = vrot.slane %v668, %v6125
    %v6127 = vadd.f32 %v6115, %v6126
    %v6128 = vadd.f32 %v6116, %v6126
    %v6129 = vadd.f32 %v6117, %v6126
    %v6130 = vadd.f32 %v6118, %v6126
    %v6131 = vadd.f32 %v6119, %v6126
    %v6132 = vadd.f32 %v6120, %v6126
    %v6133 = vadd.f32 %v6121, %v6126
    %v6134 = vadd.f32 %v6122, %v6126
    %v6135 = vmax.f32 %v6127, 0.0
    %v6136 = vmax.f32 %v6128, 0.0
    %v6137 = vmax.f32 %v6129, 0.0
    %v6138 = vmax.f32 %v6130, 0.0
    %v6139 = vmax.f32 %v6131, 0.0
    %v6140 = vmax.f32 %v6132, 0.0
    %v6141 = vmax.f32 %v6133, 0.0
    %v6142 = vmax.f32 %v6134, 0.0
    %v6143 = vpack.c.bf16 %v6136, %v6135
    %v6144 = vpack.c.bf16 %v6138, %v6137
    %v6145 = vpack.c.bf16 %v6140, %v6139
    %v6146 = vpack.c.bf16 %v6142, %v6141
    %s6147 = scalar_lea.vmem %s10, 48
    %v6148 = vld [vmem:[%s6147] sm:$0xf]
    %v6149 = vld [vmem:[%s6147 + $0x4] sm:$0xf]
    %v6150 = vld [vmem:[%s6147 + $0x8] sm:$0xf]
    %v6151 = vld [vmem:[%s6147 + $0xc] sm:$0xf]
    %v6156 = vunpack.c.l.b16 %v6148
    %v6157 = vunpack.c.l.b16 %v6149
    %v6158 = vunpack.c.l.b16 %v6150
    %v6159 = vunpack.c.l.b16 %v6151
    %v6160 = vpack.c.b16 %v6157, %v6156
    %v6161 = vpack.c.b16 %v6159, %v6158
    %v6165 = vsel %vm301, %v6143, 0
    %v6168 = vsel %vm301, %v6144, 0
    %v6171 = vsel %vm301, %v6145, 0
    %v6174 = vsel %vm301, %v6146, 0
    %6176 = vmatprep.subr.bf16.mxu0 0
    %6177 = vmatpush1.bf16.msra.mxu0 0
    %6178 = vmatprep.subr.bf16.mxu0 0
    %6179 = vmatpush1.bf16.msra.mxu0 0
    %6180 = vmatprep.subr.bf16.mxu0 0
    %6181 = vmatpush1.bf16.msra.mxu0 0
    %6182 = vmatprep.subr.bf16.mxu0 0
    %6183 = vmatpush1.bf16.msra.mxu0 0
    %6184 = vmatprep.subr.bf16.mxu0 0
    %6185 = vmatpush1.bf16.msra.mxu0 0
    %6186 = vmatprep.subr.bf16.mxu0 0
    %6187 = vmatpush1.bf16.msra.mxu0 0
    %6188 = vmatprep.subr.bf16.mxu0 0
    %6189 = vmatpush1.bf16.msra.mxu0 %v6161
    %6190 = vmatprep.subr.bf16.mxu0 0
    %6191 = vmatpush1.bf16.msra.mxu0 %v6160
    %6192 = vmatprep.subr.bf16.mxu0 0
    %6193 = vmatpush2.bf16.msra.mxu0 0
    %6194 = vmatprep.subr.bf16.mxu0 0
    %6195 = vmatpush2.bf16.msra.mxu0 0
    %6196 = vmatprep.subr.bf16.mxu0 0
    %6197 = vmatpush2.bf16.msra.mxu0 0
    %6198 = vmatprep.subr.bf16.mxu0 0
    %6199 = vmatpush2.bf16.msra.mxu0 0
    %6200 = vmatprep.subr.bf16.mxu0 0
    %6201 = vmatpush2.bf16.msra.mxu0 0
    %6202 = vmatprep.subr.bf16.mxu0 0
    %6203 = vmatpush2.bf16.msra.mxu0 0
    %6204 = vmatprep.subr.bf16.mxu0 0
    %6205 = vmatpush2.bf16.msra.mxu0 0
    %6206 = vmatprep.subr.bf16.mxu0 0
    %6207 = vmatpush2.bf16.msra.mxu0 0
    %6208 = vmatprep.mubr.bf16.mxu0 0
    %6209 = vmatmul.mubr.bf16.gmra.mxu0 %v6165
    %v6210 = vpop.f32.mrf.mxu0
    %v6211 = vadd.f32 0.0, %v6210
    %v6212 = vpop.f32.mrf.mxu0
    %v6213 = vpop.f32.mrf.mxu0
    %v6214 = vadd.f32 0.0, %v6213
    %v6215 = vpop.f32.mrf.mxu0
    %6216 = vmatprep.mubr.bf16.mxu0 0
    %6217 = vmatmul.mubr.bf16.gmra.mxu0 %v6168
    %v6218 = vpop.f32.mrf.mxu0
    %v6219 = vadd.f32 0.0, %v6218
    %v6220 = vpop.f32.mrf.mxu0
    %v6221 = vpop.f32.mrf.mxu0
    %v6222 = vadd.f32 0.0, %v6221
    %v6223 = vpop.f32.mrf.mxu0
    %6224 = vmatprep.mubr.bf16.mxu0 0
    %6225 = vmatmul.mubr.bf16.gmra.mxu0 %v6171
    %v6226 = vpop.f32.mrf.mxu0
    %v6227 = vadd.f32 0.0, %v6226
    %v6228 = vpop.f32.mrf.mxu0
    %v6229 = vpop.f32.mrf.mxu0
    %v6230 = vadd.f32 0.0, %v6229
    %v6231 = vpop.f32.mrf.mxu0
    %6232 = vmatprep.mubr.bf16.mxu0 0
    %6233 = vmatmul.mubr.bf16.gmra.mxu0 %v6174
    %v6234 = vpop.f32.mrf.mxu0
    %v6235 = vadd.f32 0.0, %v6234
    %v6236 = vpop.f32.mrf.mxu0
    %v6237 = vpop.f32.mrf.mxu0
    %v6238 = vadd.f32 0.0, %v6237
    %v6239 = vpop.f32.mrf.mxu0
    %6240 = vdwg.mxu0
    %v6241 = vsel %vm301, %v6211, 0.0
    %6242 = vadd.xlane.f32.xlu0 %v6241
    %v6243 = vpop.xlane.xlu0 %6242
    %v6244 = vsel %vm301, %v6214, 0.0
    %6245 = vadd.xlane.f32.xlu0 %v6244
    %v6246 = vpop.xlane.xlu0 %6245
    %v6247 = vsel %vm301, %v6219, 0.0
    %6248 = vadd.xlane.f32.xlu0 %v6247
    %v6249 = vpop.xlane.xlu0 %6248
    %v6250 = vsel %vm301, %v6222, 0.0
    %6251 = vadd.xlane.f32.xlu0 %v6250
    %v6252 = vpop.xlane.xlu0 %6251
    %v6253 = vsel %vm301, %v6227, 0.0
    %6254 = vadd.xlane.f32.xlu0 %v6253
    %v6255 = vpop.xlane.xlu0 %6254
    %v6256 = vsel %vm301, %v6230, 0.0
    %6257 = vadd.xlane.f32.xlu0 %v6256
    %v6258 = vpop.xlane.xlu0 %6257
    %v6259 = vsel %vm301, %v6235, 0.0
    %6260 = vadd.xlane.f32.xlu0 %v6259
    %v6261 = vpop.xlane.xlu0 %6260
    %v6262 = vsel %vm301, %v6238, 0.0
    %6263 = vadd.xlane.f32.xlu0 %v6262
    %v6264 = vpop.xlane.xlu0 %6263
    %v6265 = vmul.f32 %v6243, %v326
    %v6266 = vmul.f32 %v6246, %v326
    %v6267 = vmul.f32 %v6249, %v326
    %v6268 = vmul.f32 %v6252, %v326
    %v6269 = vmul.f32 %v6255, %v326
    %v6270 = vmul.f32 %v6258, %v326
    %v6271 = vmul.f32 %v6261, %v326
    %v6272 = vmul.f32 %v6264, %v326
    %v6273 = vsub.f32 %v6211, %v6265
    %v6274 = vsub.f32 %v6214, %v6266
    %v6275 = vsub.f32 %v6219, %v6267
    %v6276 = vsub.f32 %v6222, %v6268
    %v6277 = vsub.f32 %v6227, %v6269
    %v6278 = vsub.f32 %v6230, %v6270
    %v6279 = vsub.f32 %v6235, %v6271
    %v6280 = vsub.f32 %v6238, %v6272
    %v6281 = vmul.f32 %v6273, %v6273
    %v6282 = vmul.f32 %v6274, %v6274
    %v6283 = vmul.f32 %v6275, %v6275
    %v6284 = vmul.f32 %v6276, %v6276
    %v6285 = vmul.f32 %v6277, %v6277
    %v6286 = vmul.f32 %v6278, %v6278
    %v6287 = vmul.f32 %v6279, %v6279
    %v6288 = vmul.f32 %v6280, %v6280
    %v6289 = vsel %vm301, %v6281, 0.0
    %6290 = vadd.xlane.f32.xlu0 %v6289
    %v6291 = vpop.xlane.xlu0 %6290
    %v6292 = vsel %vm301, %v6282, 0.0
    %6293 = vadd.xlane.f32.xlu0 %v6292
    %v6294 = vpop.xlane.xlu0 %6293
    %v6295 = vsel %vm301, %v6283, 0.0
    %6296 = vadd.xlane.f32.xlu0 %v6295
    %v6297 = vpop.xlane.xlu0 %6296
    %v6298 = vsel %vm301, %v6284, 0.0
    %6299 = vadd.xlane.f32.xlu0 %v6298
    %v6300 = vpop.xlane.xlu0 %6299
    %v6301 = vsel %vm301, %v6285, 0.0
    %6302 = vadd.xlane.f32.xlu0 %v6301
    %v6303 = vpop.xlane.xlu0 %6302
    %v6304 = vsel %vm301, %v6286, 0.0
    %6305 = vadd.xlane.f32.xlu0 %v6304
    %v6306 = vpop.xlane.xlu0 %6305
    %v6307 = vsel %vm301, %v6287, 0.0
    %6308 = vadd.xlane.f32.xlu0 %v6307
    %v6309 = vpop.xlane.xlu0 %6308
    %v6310 = vsel %vm301, %v6288, 0.0
    %6311 = vadd.xlane.f32.xlu0 %v6310
    %v6312 = vpop.xlane.xlu0 %6311
    %v6313 = vmul.f32 %v6291, %v326
    %v6314 = vmul.f32 %v6294, %v326
    %v6315 = vmul.f32 %v6297, %v326
    %v6316 = vmul.f32 %v6300, %v326
    %v6317 = vmul.f32 %v6303, %v326
    %v6318 = vmul.f32 %v6306, %v326
    %v6319 = vmul.f32 %v6309, %v326
    %v6320 = vmul.f32 %v6312, %v326
    %v6321 = vadd.f32 %v6313, 1e-05
    %v6322 = vadd.f32 %v6314, 1e-05
    %v6323 = vadd.f32 %v6315, 1e-05
    %v6324 = vadd.f32 %v6316, 1e-05
    %v6325 = vadd.f32 %v6317, 1e-05
    %v6326 = vadd.f32 %v6318, 1e-05
    %v6327 = vadd.f32 %v6319, 1e-05
    %v6328 = vadd.f32 %v6320, 1e-05
    %v6329 = vrsqrt.pop %v6321
    %v6330 = vrsqrt.pop %v6322
    %v6331 = vrsqrt.pop %v6323
    %v6332 = vrsqrt.pop %v6324
    %v6333 = vrsqrt.pop %v6325
    %v6334 = vrsqrt.pop %v6326
    %v6335 = vrsqrt.pop %v6327
    %v6336 = vrsqrt.pop %v6328
    %v6337 = vmul.f32 %v6273, %v6329
    %v6338 = vmul.f32 %v6274, %v6330
    %v6339 = vmul.f32 %v6275, %v6331
    %v6340 = vmul.f32 %v6276, %v6332
    %v6341 = vmul.f32 %v6277, %v6333
    %v6342 = vmul.f32 %v6278, %v6334
    %v6343 = vmul.f32 %v6279, %v6335
    %v6344 = vmul.f32 %v6280, %v6336
    %v6345 = vlaneseq
    %v6346 = vshrl.u32 %v6345, 7
    %v6347 = vsub.s32 3, %v6346
    %v6348 = vrot.slane %v669, %v6347
    %v6349 = vmul.f32 %v6337, %v6348
    %v6350 = vmul.f32 %v6338, %v6348
    %v6351 = vmul.f32 %v6339, %v6348
    %v6352 = vmul.f32 %v6340, %v6348
    %v6353 = vmul.f32 %v6341, %v6348
    %v6354 = vmul.f32 %v6342, %v6348
    %v6355 = vmul.f32 %v6343, %v6348
    %v6356 = vmul.f32 %v6344, %v6348
    %v6357 = vlaneseq
    %v6358 = vshrl.u32 %v6357, 7
    %v6359 = vsub.s32 3, %v6358
    %v6360 = vrot.slane %v670, %v6359
    %v6361 = vadd.f32 %v6349, %v6360
    %v6362 = vadd.f32 %v6350, %v6360
    %v6363 = vadd.f32 %v6351, %v6360
    %v6364 = vadd.f32 %v6352, %v6360
    %v6365 = vadd.f32 %v6353, %v6360
    %v6366 = vadd.f32 %v6354, %v6360
    %v6367 = vadd.f32 %v6355, %v6360
    %v6368 = vadd.f32 %v6356, %v6360
    %v6369 = vadd.f32 %v6361, %v5018
    %v6370 = vadd.f32 %v6362, %v5019
    %v6371 = vadd.f32 %v6363, %v5020
    %v6372 = vadd.f32 %v6364, %v5021
    %v6373 = vadd.f32 %v6365, %v5022
    %v6374 = vadd.f32 %v6366, %v5023
    %v6375 = vadd.f32 %v6367, %v5024
    %v6376 = vadd.f32 %v6368, %v5025
    %v6377 = vmax.f32 %v6369, 0.0
    %v6378 = vmax.f32 %v6370, 0.0
    %v6379 = vmax.f32 %v6371, 0.0
    %v6380 = vmax.f32 %v6372, 0.0
    %v6381 = vmax.f32 %v6373, 0.0
    %v6382 = vmax.f32 %v6374, 0.0
    %v6383 = vmax.f32 %v6375, 0.0
    %v6384 = vmax.f32 %v6376, 0.0
    %6385 = vst.msk [vmem:[%s13] sm:$0xff] %vm301, %v6377
    %6386 = vst.msk [vmem:[%s13 + $0x8] sm:$0xff] %vm301, %v6378
    %6387 = vst.msk [vmem:[%s13 + $0x10] sm:$0xff] %vm301, %v6379
    %6388 = vst.msk [vmem:[%s13 + $0x18] sm:$0xff] %vm301, %v6380
    %6389 = vst.msk [vmem:[%s13 + $0x20] sm:$0xff] %vm301, %v6381
    %6390 = vst.msk [vmem:[%s13 + $0x28] sm:$0xff] %vm301, %v6382
    %6391 = vst.msk [vmem:[%s13 + $0x30] sm:$0xff] %vm301, %v6383
    %6392 = vst.msk [vmem:[%s13 + $0x38] sm:$0xff] %vm301, %v6384
    // Predicated region
    $region58: #{tpu_custom_call.1} parent=1 // pred_check
      _
    $region59: #{tpu_custom_call.1} parent=1 // pred_check_branch
      %6394 = sbr.rel (0) target = $region61
    $region60: #{tpu_custom_call.1} parent=1 // pred_region
      _
    $region61: #{tpu_custom_call.1} parent=1 // pred_fallthru
      _
    // Predicated region
    $region62: #{tpu_custom_call.1} parent=1 // pred_check
      _
    $region63: #{tpu_custom_call.1} parent=1 // pred_check_branch
      %6396 = sbr.rel (0) target = $region65
    $region64: #{tpu_custom_call.1} parent=1 // pred_region
      _
    $region65: #{tpu_custom_call.1} parent=1 // pred_fallthru
      _
    %6397 = vsyncpa [#allocation3], 1

</llo_original>
